<compile_context>
chip_gen: v7x
topology: tpu7x:2x2x1
jax: 0.10.0
libtpu: 0.0.40
codegen_flags: <defaults>
</compile_context>

<pallas_src>
import functools

import jax
import jax.numpy as jnp
from jax.experimental import pallas as pl
from jax.experimental.pallas import tpu as pltpu


# --------------------------------------------------------------------------- #
# Kernel 1: fused  conv(k=5, valid) + bias + 2x2 maxpool + relu  per batch tile.
#
# Input layout (built by the wrapper, one cheap XLA pass over the raw image):
#   xf[b, p, q, c, r*half + s] = x[b, c, 2r+p, 2s+q]      (lane dim zero-padded)
# For pooled pixel (i, j) and pool-window offset (di, dj) the conv reads
# x[2i+di+kh, 2j+dj+kw]; with a = kh+di, e = kw+dj that element lives in parity
# sub-grid (a%2, e%2) at (i + a//2, j + e//2), i.e. a *contiguous* lane slice of
# the flattened sub-grid starting at (a//2)*half + e//2.  So im2col = 25 static
# slices per pool offset, and maxpool = elementwise max over the 4 offsets.
# Each pooled row is computed `half` wide (last 2 lanes are garbage) and the
# wrapper trims them -- this keeps everything contiguous on the lane axis.
# --------------------------------------------------------------------------- #
def _conv_pool_relu_kernel(x_ref, w_ref, b_ref, o_ref, cols_ref, *, C, O, half):
    Hp = half - 2            # pooled output height (valid pooled width is Hp too)
    L = Hp * half            # "wide" flattened pooled spatial length (lane axis)
    K = 25 * C
    BT = o_ref.shape[0]

    w_b = jnp.broadcast_to(w_ref[...], (BT, O, K))       # (BT, O, K)

    pooled = None
    for di in range(2):
        for dj in range(2):
            # Build the im2col matrix for this pool-window parity in VMEM.
            for kh in range(5):
                for kw in range(5):
                    a = kh + di
                    e = kw + dj
                    start = (a // 2) * half + (e // 2)
                    cols_ref[:, pl.ds((kh * 5 + kw) * C, C), :] = (
                        x_ref[:, a % 2, e % 2, :, pl.ds(start, L)])
            part = jnp.einsum("bok,bkl->bol", w_b, cols_ref[...],
                              preferred_element_type=jnp.float32)   # (BT, O, L)
            pooled = part if pooled is None else jnp.maximum(pooled, part)

    pooled = pooled + b_ref[...]                          # (1, O, 1) broadcasts
    o_ref[...] = jnp.maximum(pooled, 0.0).astype(o_ref.dtype)


def _parity_flatten(x, pad_to):
    """(B, C, H, W) -> (B, 2, 2, C, pad_to): xf[b,p,q,c,r*(H//2)+s]=x[b,c,2r+p,2s+q]."""
    B, C, H, W = x.shape
    h = H // 2
    xp = x.reshape(B, C, h, 2, h, 2).transpose(0, 3, 5, 1, 2, 4)   # (B,2,2,C,h,h)
    xf = xp.reshape(B, 2, 2, C, h * h)
    return jnp.pad(xf, ((0, 0), (0, 0), (0, 0), (0, 0), (0, pad_to - h * h)))


def conv_pool_relu_pallas(x, w, b, *, block_b):
    """relu(maxpool2(valid_conv5x5(x) + b)) for NCHW x, OIHW w.  B % block_b == 0."""
    B, C, H, W = x.shape
    O = w.shape[0]
    half = H // 2
    Hp = half - 2
    L = Hp * half
    Lpad = half * half + 2          # room for the (discarded) garbage columns
    K = 25 * C

    xf = _parity_flatten(x, Lpad)                        # (B, 2, 2, C, Lpad)
    w_mat = w.transpose(0, 2, 3, 1).reshape(O, K)        # k = (kh*5 + kw)*C + c
    b_col = b.reshape(1, O, 1)

    kernel = functools.partial(_conv_pool_relu_kernel, C=C, O=O, half=half)
    out = pl.pallas_call(
        kernel,
        out_shape=jax.ShapeDtypeStruct((B, O, L), jnp.float32),
        grid_spec=pltpu.PrefetchScalarGridSpec(
            num_scalar_prefetch=0,
            grid=(B // block_b,),
            in_specs=[
                pl.BlockSpec((block_b, 2, 2, C, Lpad), lambda i: (i, 0, 0, 0, 0)),
                pl.BlockSpec((O, K), lambda i: (0, 0)),
                pl.BlockSpec((1, O, 1), lambda i: (0, 0, 0)),
            ],
            out_specs=pl.BlockSpec((block_b, O, L), lambda i: (i, 0, 0)),
            scratch_shapes=[pltpu.VMEM((block_b, K, L), jnp.float32)],
        ),
        compiler_params=pltpu.CompilerParams(
            dimension_semantics=("parallel",),
            vmem_limit_bytes=32 * 1024 * 1024,
        ),
        cost_estimate=pl.CostEstimate(
            flops=2 * 4 * B * O * K * L,
            transcendentals=0,
            bytes_accessed=4 * (B * 4 * C * Lpad + O * K + O + B * O * L),
        ),
    )(xf, w_mat, b_col)

    # Strip the 2 garbage lanes at the end of each pooled row -> (B, O, Hp, Hp).
    return out.reshape(B, O, Hp, half)[:, :, :, :Hp]


# --------------------------------------------------------------------------- #
# Kernel 2: fused fc1 + relu + fc2 + log_softmax, gridded over batch rows.
# --------------------------------------------------------------------------- #
def _fc_head_kernel(x_ref, w1_ref, b1_ref, w2_ref, b2_ref, o_ref):
    h = jnp.dot(x_ref[...], w1_ref[...], preferred_element_type=jnp.float32)
    h = jnp.maximum(h + b1_ref[...], 0.0)
    logits = jnp.dot(h, w2_ref[...], preferred_element_type=jnp.float32) + b2_ref[...]
    m = jnp.max(logits, axis=-1, keepdims=True)
    s = logits - m
    lse = jnp.log(jnp.sum(jnp.exp(s), axis=-1, keepdims=True))
    o_ref[...] = (s - lse).astype(o_ref.dtype)


def fc_head_pallas(x, w1, b1, w2, b2, *, block_b):
    B, D = x.shape
    H1 = w1.shape[1]
    NO = w2.shape[1]
    return pl.pallas_call(
        _fc_head_kernel,
        out_shape=jax.ShapeDtypeStruct((B, NO), jnp.float32),
        grid_spec=pltpu.PrefetchScalarGridSpec(
            num_scalar_prefetch=0,
            grid=(B // block_b,),
            in_specs=[
                pl.BlockSpec((block_b, D), lambda i: (i, 0)),
                pl.BlockSpec((D, H1), lambda i: (0, 0)),
                pl.BlockSpec((1, H1), lambda i: (0, 0)),
                pl.BlockSpec((H1, NO), lambda i: (0, 0)),
                pl.BlockSpec((1, NO), lambda i: (0, 0)),
            ],
            out_specs=pl.BlockSpec((block_b, NO), lambda i: (i, 0)),
        ),
        compiler_params=pltpu.CompilerParams(
            dimension_semantics=("parallel",),
            vmem_limit_bytes=32 * 1024 * 1024,
        ),
        cost_estimate=pl.CostEstimate(
            flops=2 * B * (D * H1 + H1 * NO),
            transcendentals=B * NO,
            bytes_accessed=4 * (B * D + D * H1 + H1 + H1 * NO + NO + B * NO),
        ),
    )(x, w1, b1.reshape(1, H1), w2, b2.reshape(1, NO))


# --------------------------------------------------------------------------- #
# The network.
# --------------------------------------------------------------------------- #
def init_params(key):
    ks = jax.random.split(key, 8)

    def u(k, shape, fan_in):
        bound = 1.0 / jnp.sqrt(fan_in)
        return jax.random.uniform(k, shape, jnp.float32, -bound, bound)

    return {
        "conv1_w": u(ks[0], (10, 1, 5, 5), 1 * 5 * 5),
        "conv1_b": u(ks[1], (10,), 1 * 5 * 5),
        "conv2_w": u(ks[2], (20, 10, 5, 5), 10 * 5 * 5),
        "conv2_b": u(ks[3], (20,), 10 * 5 * 5),
        "fc1_w": u(ks[4], (320, 50), 320),   # stored as (in, out)
        "fc1_b": u(ks[5], (50,), 320),
        "fc2_w": u(ks[6], (50, 10), 50),
        "fc2_b": u(ks[7], (10,), 50),
    }


@jax.jit
def network_forward(params, x):
    # x: (B, 1, 28, 28) float32
    B = x.shape[0]
    bb = min(64, B)                     # batch tile per grid step
    Bp = -(-B // bb) * bb
    if Bp != B:
        x = jnp.pad(x, ((0, Bp - B), (0, 0), (0, 0), (0, 0)))

    # conv1 + pool + relu  (relu(maxpool(.)) == maxpool(relu(.)), fused in kernel)
    y = conv_pool_relu_pallas(x, params["conv1_w"], params["conv1_b"], block_b=bb)  # (Bp,10,12,12)
    # TODO(synk): Dropout2d(p=0.5) treated as identity (inference mode).
    y = conv_pool_relu_pallas(y, params["conv2_w"], params["conv2_b"], block_b=bb)  # (Bp,20,4,4)
    feats = y.reshape(Bp, 320)          # matches torch .view(-1, 320) (C,H,W order)
    out = fc_head_pallas(feats, params["fc1_w"], params["fc1_b"],
                         params["fc2_w"], params["fc2_b"], block_b=bb)              # (Bp,10)
    return out[:B]


# --------------------------------------------------------------------------- #
# Pure-JAX reference (for a correctness spot-check in __main__).
# --------------------------------------------------------------------------- #
def _reference_forward(params, x):
    hp = jax.lax.Precision.HIGHEST

    def conv(v, w, b):
        o = jax.lax.conv_general_dilated(
            v, w, window_strides=(1, 1), padding="VALID",
            dimension_numbers=("NCHW", "OIHW", "NCHW"), precision=hp)
        return o + b.reshape(1, -1, 1, 1)

    def pool(v):
        B, C, H, W = v.shape
        return v.reshape(B, C, H // 2, 2, W // 2, 2).max(axis=(3, 5))

    y = jax.nn.relu(pool(conv(x, params["conv1_w"], params["conv1_b"])))
    y = jax.nn.relu(pool(conv(y, params["conv2_w"], params["conv2_b"])))
    y = y.reshape(y.shape[0], 320)
    y = jax.nn.relu(jnp.dot(y, params["fc1_w"], precision=hp) + params["fc1_b"])
    y = jnp.dot(y, params["fc2_w"], precision=hp) + params["fc2_b"]
    return jax.nn.log_softmax(y, axis=-1)


if __name__ == "__main__":
    key = jax.random.PRNGKey(0)
    pkey, xkey = jax.random.split(key)
    params = init_params(pkey)
    x = jax.random.normal(xkey, (2, 1, 28, 28), jnp.float32)

    out = jax.block_until_ready(network_forward(params, x))

    assert out.shape == (2, 10), out.shape
    # log_softmax rows must exp-sum to 1
    assert bool(jnp.allclose(jnp.sum(jnp.exp(out), axis=-1), 1.0, atol=1e-4))
    # match the pure-JAX/XLA reference
    ref = _reference_forward(params, x)
    assert bool(jnp.allclose(out, ref, atol=5e-3)), float(jnp.max(jnp.abs(out - ref)))

    print("KERNEL_OK")
</pallas_src>

<mosaic_0001>
module attributes {stable_mosaic.version = 11 : i64} {
  func.func @_conv_pool_relu_kernel(%arg0: i32, %arg1: memref<2x2x2x1x198xf32, #tpu.memory_space<vmem>>, %arg2: memref<10x25xf32, #tpu.memory_space<vmem>>, %arg3: memref<1x10x1xf32, #tpu.memory_space<vmem>>, %arg4: memref<2x10x168xf32, #tpu.memory_space<vmem>>, %arg5: memref<2x25x168xf32, #tpu.memory_space<vmem>>) attributes {dimension_semantics = [#tpu.dimension_semantics<parallel>], iteration_bounds = array<i64: 1>, scalar_prefetch = 0 : i64, scratch_operands = 1 : i64, tpu.core_type = #tpu.core_type<tc>, window_params = [{transform_indices = @transform_0, window_bounds = array<i64: 2, 2, 2, 1, 198>}, {pipeline_mode = #tpu.pipeline_mode<synchronous>, transform_indices = @transform_1, window_bounds = array<i64: 10, 25>}, {pipeline_mode = #tpu.pipeline_mode<synchronous>, transform_indices = @transform_2, window_bounds = array<i64: 1, 10, 1>}, {transform_indices = @transform_3, window_bounds = array<i64: 2, 10, 168>}]} {
    %c0 = arith.constant 0 : index
    %c0_0 = arith.constant 0 : index
    %0 = vector.load %arg2[%c0, %c0_0] : memref<10x25xf32, #tpu.memory_space<vmem>>, vector<10x25xf32>
    %1 = vector.shape_cast %0 : vector<10x25xf32> to vector<1x10x25xf32>
    %2 = vector.broadcast %1 : vector<1x10x25xf32> to vector<2x10x25xf32>
    %c0_1 = arith.constant 0 : index
    %c0_2 = arith.constant 0 : index
    %c0_3 = arith.constant 0 : index
    %c0_4 = arith.constant 0 : index
    %c0_5 = arith.constant 0 : index
    %3 = vector.load %arg1[%c0_1, %c0_2, %c0_3, %c0_4, %c0_5] : memref<2x2x2x1x198xf32, #tpu.memory_space<vmem>>, vector<2x1x1x1x168xf32>
    %4 = vector.shape_cast %3 : vector<2x1x1x1x168xf32> to vector<2x1x168xf32>
    %c0_6 = arith.constant 0 : index
    %c0_7 = arith.constant 0 : index
    %c0_8 = arith.constant 0 : index
    %5 = vector.load %arg5[%c0_6, %c0_7, %c0_8] : memref<2x25x168xf32, #tpu.memory_space<vmem>>, vector<2x1x168xf32>
    tpu.vector_store %arg5[%c0_6, %c0_7, %c0_8], %4 {strides = array<i32>} : memref<2x25x168xf32, #tpu.memory_space<vmem>>, vector<2x1x168xf32>,
    %c0_9 = arith.constant 0 : index
    %c0_10 = arith.constant 0 : index
    %c1 = arith.constant 1 : index
    %c0_11 = arith.constant 0 : index
    %c0_12 = arith.constant 0 : index
    %6 = vector.load %arg1[%c0_9, %c0_10, %c1, %c0_11, %c0_12] : memref<2x2x2x1x198xf32, #tpu.memory_space<vmem>>, vector<2x1x1x1x168xf32>
    %7 = vector.shape_cast %6 : vector<2x1x1x1x168xf32> to vector<2x1x168xf32>
    %c0_13 = arith.constant 0 : index
    %c1_14 = arith.constant 1 : index
    %c0_15 = arith.constant 0 : index
    %8 = vector.load %arg5[%c0_13, %c1_14, %c0_15] : memref<2x25x168xf32, #tpu.memory_space<vmem>>, vector<2x1x168xf32>
    tpu.vector_store %arg5[%c0_13, %c1_14, %c0_15], %7 {strides = array<i32>} : memref<2x25x168xf32, #tpu.memory_space<vmem>>, vector<2x1x168xf32>,
    %c0_16 = arith.constant 0 : index
    %c0_17 = arith.constant 0 : index
    %c0_18 = arith.constant 0 : index
    %c0_19 = arith.constant 0 : index
    %c1_20 = arith.constant 1 : index
    %9 = vector.load %arg1[%c0_16, %c0_17, %c0_18, %c0_19, %c1_20] : memref<2x2x2x1x198xf32, #tpu.memory_space<vmem>>, vector<2x1x1x1x168xf32>
    %10 = vector.shape_cast %9 : vector<2x1x1x1x168xf32> to vector<2x1x168xf32>
    %c0_21 = arith.constant 0 : index
    %c2 = arith.constant 2 : index
    %c0_22 = arith.constant 0 : index
    %11 = vector.load %arg5[%c0_21, %c2, %c0_22] : memref<2x25x168xf32, #tpu.memory_space<vmem>>, vector<2x1x168xf32>
    tpu.vector_store %arg5[%c0_21, %c2, %c0_22], %10 {strides = array<i32>} : memref<2x25x168xf32, #tpu.memory_space<vmem>>, vector<2x1x168xf32>,
    %c0_23 = arith.constant 0 : index
    %c0_24 = arith.constant 0 : index
    %c1_25 = arith.constant 1 : index
    %c0_26 = arith.constant 0 : index
    %c1_27 = arith.constant 1 : index
    %12 = vector.load %arg1[%c0_23, %c0_24, %c1_25, %c0_26, %c1_27] : memref<2x2x2x1x198xf32, #tpu.memory_space<vmem>>, vector<2x1x1x1x168xf32>
    %13 = vector.shape_cast %12 : vector<2x1x1x1x168xf32> to vector<2x1x168xf32>
    %c0_28 = arith.constant 0 : index
    %c3 = arith.constant 3 : index
    %c0_29 = arith.constant 0 : index
    %14 = vector.load %arg5[%c0_28, %c3, %c0_29] : memref<2x25x168xf32, #tpu.memory_space<vmem>>, vector<2x1x168xf32>
    tpu.vector_store %arg5[%c0_28, %c3, %c0_29], %13 {strides = array<i32>} : memref<2x25x168xf32, #tpu.memory_space<vmem>>, vector<2x1x168xf32>,
    %c0_30 = arith.constant 0 : index
    %c0_31 = arith.constant 0 : index
    %c0_32 = arith.constant 0 : index
    %c0_33 = arith.constant 0 : index
    %c2_34 = arith.constant 2 : index
    %15 = vector.load %arg1[%c0_30, %c0_31, %c0_32, %c0_33, %c2_34] : memref<2x2x2x1x198xf32, #tpu.memory_space<vmem>>, vector<2x1x1x1x168xf32>
    %16 = vector.shape_cast %15 : vector<2x1x1x1x168xf32> to vector<2x1x168xf32>
    %c0_35 = arith.constant 0 : index
    %c4 = arith.constant 4 : index
    %c0_36 = arith.constant 0 : index
    %17 = vector.load %arg5[%c0_35, %c4, %c0_36] : memref<2x25x168xf32, #tpu.memory_space<vmem>>, vector<2x1x168xf32>
    tpu.vector_store %arg5[%c0_35, %c4, %c0_36], %16 {strides = array<i32>} : memref<2x25x168xf32, #tpu.memory_space<vmem>>, vector<2x1x168xf32>,
    %c0_37 = arith.constant 0 : index
    %c1_38 = arith.constant 1 : index
    %c0_39 = arith.constant 0 : index
    %c0_40 = arith.constant 0 : index
    %c0_41 = arith.constant 0 : index
    %18 = vector.load %arg1[%c0_37, %c1_38, %c0_39, %c0_40, %c0_41] : memref<2x2x2x1x198xf32, #tpu.memory_space<vmem>>, vector<2x1x1x1x168xf32>
    %19 = vector.shape_cast %18 : vector<2x1x1x1x168xf32> to vector<2x1x168xf32>
    %c0_42 = arith.constant 0 : index
    %c5 = arith.constant 5 : index
    %c0_43 = arith.constant 0 : index
    %20 = vector.load %arg5[%c0_42, %c5, %c0_43] : memref<2x25x168xf32, #tpu.memory_space<vmem>>, vector<2x1x168xf32>
    tpu.vector_store %arg5[%c0_42, %c5, %c0_43], %19 {strides = array<i32>} : memref<2x25x168xf32, #tpu.memory_space<vmem>>, vector<2x1x168xf32>,
    %c0_44 = arith.constant 0 : index
    %c1_45 = arith.constant 1 : index
    %c1_46 = arith.constant 1 : index
    %c0_47 = arith.constant 0 : index
    %c0_48 = arith.constant 0 : index
    %21 = vector.load %arg1[%c0_44, %c1_45, %c1_46, %c0_47, %c0_48] : memref<2x2x2x1x198xf32, #tpu.memory_space<vmem>>, vector<2x1x1x1x168xf32>
    %22 = vector.shape_cast %21 : vector<2x1x1x1x168xf32> to vector<2x1x168xf32>
    %c0_49 = arith.constant 0 : index
    %c6 = arith.constant 6 : index
    %c0_50 = arith.constant 0 : index
    %23 = vector.load %arg5[%c0_49, %c6, %c0_50] : memref<2x25x168xf32, #tpu.memory_space<vmem>>, vector<2x1x168xf32>
    tpu.vector_store %arg5[%c0_49, %c6, %c0_50], %22 {strides = array<i32>} : memref<2x25x168xf32, #tpu.memory_space<vmem>>, vector<2x1x168xf32>,
    %c0_51 = arith.constant 0 : index
    %c1_52 = arith.constant 1 : index
    %c0_53 = arith.constant 0 : index
    %c0_54 = arith.constant 0 : index
    %c1_55 = arith.constant 1 : index
    %24 = vector.load %arg1[%c0_51, %c1_52, %c0_53, %c0_54, %c1_55] : memref<2x2x2x1x198xf32, #tpu.memory_space<vmem>>, vector<2x1x1x1x168xf32>
    %25 = vector.shape_cast %24 : vector<2x1x1x1x168xf32> to vector<2x1x168xf32>
    %c0_56 = arith.constant 0 : index
    %c7 = arith.constant 7 : index
    %c0_57 = arith.constant 0 : index
    %26 = vector.load %arg5[%c0_56, %c7, %c0_57] : memref<2x25x168xf32, #tpu.memory_space<vmem>>, vector<2x1x168xf32>
    tpu.vector_store %arg5[%c0_56, %c7, %c0_57], %25 {strides = array<i32>} : memref<2x25x168xf32, #tpu.memory_space<vmem>>, vector<2x1x168xf32>,
    %c0_58 = arith.constant 0 : index
    %c1_59 = arith.constant 1 : index
    %c1_60 = arith.constant 1 : index
    %c0_61 = arith.constant 0 : index
    %c1_62 = arith.constant 1 : index
    %27 = vector.load %arg1[%c0_58, %c1_59, %c1_60, %c0_61, %c1_62] : memref<2x2x2x1x198xf32, #tpu.memory_space<vmem>>, vector<2x1x1x1x168xf32>
    %28 = vector.shape_cast %27 : vector<2x1x1x1x168xf32> to vector<2x1x168xf32>
    %c0_63 = arith.constant 0 : index
    %c8 = arith.constant 8 : index
    %c0_64 = arith.constant 0 : index
    %29 = vector.load %arg5[%c0_63, %c8, %c0_64] : memref<2x25x168xf32, #tpu.memory_space<vmem>>, vector<2x1x168xf32>
    tpu.vector_store %arg5[%c0_63, %c8, %c0_64], %28 {strides = array<i32>} : memref<2x25x168xf32, #tpu.memory_space<vmem>>, vector<2x1x168xf32>,
    %c0_65 = arith.constant 0 : index
    %c1_66 = arith.constant 1 : index
    %c0_67 = arith.constant 0 : index
    %c0_68 = arith.constant 0 : index
    %c2_69 = arith.constant 2 : index
    %30 = vector.load %arg1[%c0_65, %c1_66, %c0_67, %c0_68, %c2_69] : memref<2x2x2x1x198xf32, #tpu.memory_space<vmem>>, vector<2x1x1x1x168xf32>
    %31 = vector.shape_cast %30 : vector<2x1x1x1x168xf32> to vector<2x1x168xf32>
    %c0_70 = arith.constant 0 : index
    %c9 = arith.constant 9 : index
    %c0_71 = arith.constant 0 : index
    %32 = vector.load %arg5[%c0_70, %c9, %c0_71] : memref<2x25x168xf32, #tpu.memory_space<vmem>>, vector<2x1x168xf32>
    tpu.vector_store %arg5[%c0_70, %c9, %c0_71], %31 {strides = array<i32>} : memref<2x25x168xf32, #tpu.memory_space<vmem>>, vector<2x1x168xf32>,
    %c0_72 = arith.constant 0 : index
    %c0_73 = arith.constant 0 : index
    %c0_74 = arith.constant 0 : index
    %c0_75 = arith.constant 0 : index
    %c14 = arith.constant 14 : index
    %33 = vector.load %arg1[%c0_72, %c0_73, %c0_74, %c0_75, %c14] : memref<2x2x2x1x198xf32, #tpu.memory_space<vmem>>, vector<2x1x1x1x168xf32>
    %34 = vector.shape_cast %33 : vector<2x1x1x1x168xf32> to vector<2x1x168xf32>
    %c0_76 = arith.constant 0 : index
    %c10 = arith.constant 10 : index
    %c0_77 = arith.constant 0 : index
    %35 = vector.load %arg5[%c0_76, %c10, %c0_77] : memref<2x25x168xf32, #tpu.memory_space<vmem>>, vector<2x1x168xf32>
    tpu.vector_store %arg5[%c0_76, %c10, %c0_77], %34 {strides = array<i32>} : memref<2x25x168xf32, #tpu.memory_space<vmem>>, vector<2x1x168xf32>,
    %c0_78 = arith.constant 0 : index
    %c0_79 = arith.constant 0 : index
    %c1_80 = arith.constant 1 : index
    %c0_81 = arith.constant 0 : index
    %c14_82 = arith.constant 14 : index
    %36 = vector.load %arg1[%c0_78, %c0_79, %c1_80, %c0_81, %c14_82] : memref<2x2x2x1x198xf32, #tpu.memory_space<vmem>>, vector<2x1x1x1x168xf32>
    %37 = vector.shape_cast %36 : vector<2x1x1x1x168xf32> to vector<2x1x168xf32>
    %c0_83 = arith.constant 0 : index
    %c11 = arith.constant 11 : index
    %c0_84 = arith.constant 0 : index
    %38 = vector.load %arg5[%c0_83, %c11, %c0_84] : memref<2x25x168xf32, #tpu.memory_space<vmem>>, vector<2x1x168xf32>
    tpu.vector_store %arg5[%c0_83, %c11, %c0_84], %37 {strides = array<i32>} : memref<2x25x168xf32, #tpu.memory_space<vmem>>, vector<2x1x168xf32>,
    %c0_85 = arith.constant 0 : index
    %c0_86 = arith.constant 0 : index
    %c0_87 = arith.constant 0 : index
    %c0_88 = arith.constant 0 : index
    %c15 = arith.constant 15 : index
    %39 = vector.load %arg1[%c0_85, %c0_86, %c0_87, %c0_88, %c15] : memref<2x2x2x1x198xf32, #tpu.memory_space<vmem>>, vector<2x1x1x1x168xf32>
    %40 = vector.shape_cast %39 : vector<2x1x1x1x168xf32> to vector<2x1x168xf32>
    %c0_89 = arith.constant 0 : index
    %c12 = arith.constant 12 : index
    %c0_90 = arith.constant 0 : index
    %41 = vector.load %arg5[%c0_89, %c12, %c0_90] : memref<2x25x168xf32, #tpu.memory_space<vmem>>, vector<2x1x168xf32>
    tpu.vector_store %arg5[%c0_89, %c12, %c0_90], %40 {strides = array<i32>} : memref<2x25x168xf32, #tpu.memory_space<vmem>>, vector<2x1x168xf32>,
    %c0_91 = arith.constant 0 : index
    %c0_92 = arith.constant 0 : index
    %c1_93 = arith.constant 1 : index
    %c0_94 = arith.constant 0 : index
    %c15_95 = arith.constant 15 : index
    %42 = vector.load %arg1[%c0_91, %c0_92, %c1_93, %c0_94, %c15_95] : memref<2x2x2x1x198xf32, #tpu.memory_space<vmem>>, vector<2x1x1x1x168xf32>
    %43 = vector.shape_cast %42 : vector<2x1x1x1x168xf32> to vector<2x1x168xf32>
    %c0_96 = arith.constant 0 : index
    %c13 = arith.constant 13 : index
    %c0_97 = arith.constant 0 : index
    %44 = vector.load %arg5[%c0_96, %c13, %c0_97] : memref<2x25x168xf32, #tpu.memory_space<vmem>>, vector<2x1x168xf32>
    tpu.vector_store %arg5[%c0_96, %c13, %c0_97], %43 {strides = array<i32>} : memref<2x25x168xf32, #tpu.memory_space<vmem>>, vector<2x1x168xf32>,
    %c0_98 = arith.constant 0 : index
    %c0_99 = arith.constant 0 : index
    %c0_100 = arith.constant 0 : index
    %c0_101 = arith.constant 0 : index
    %c16 = arith.constant 16 : index
    %45 = vector.load %arg1[%c0_98, %c0_99, %c0_100, %c0_101, %c16] : memref<2x2x2x1x198xf32, #tpu.memory_space<vmem>>, vector<2x1x1x1x168xf32>
    %46 = vector.shape_cast %45 : vector<2x1x1x1x168xf32> to vector<2x1x168xf32>
    %c0_102 = arith.constant 0 : index
    %c14_103 = arith.constant 14 : index
    %c0_104 = arith.constant 0 : index
    %47 = vector.load %arg5[%c0_102, %c14_103, %c0_104] : memref<2x25x168xf32, #tpu.memory_space<vmem>>, vector<2x1x168xf32>
    tpu.vector_store %arg5[%c0_102, %c14_103, %c0_104], %46 {strides = array<i32>} : memref<2x25x168xf32, #tpu.memory_space<vmem>>, vector<2x1x168xf32>,
    %c0_105 = arith.constant 0 : index
    %c1_106 = arith.constant 1 : index
    %c0_107 = arith.constant 0 : index
    %c0_108 = arith.constant 0 : index
    %c14_109 = arith.constant 14 : index
    %48 = vector.load %arg1[%c0_105, %c1_106, %c0_107, %c0_108, %c14_109] : memref<2x2x2x1x198xf32, #tpu.memory_space<vmem>>, vector<2x1x1x1x168xf32>
    %49 = vector.shape_cast %48 : vector<2x1x1x1x168xf32> to vector<2x1x168xf32>
    %c0_110 = arith.constant 0 : index
    %c15_111 = arith.constant 15 : index
    %c0_112 = arith.constant 0 : index
    %50 = vector.load %arg5[%c0_110, %c15_111, %c0_112] : memref<2x25x168xf32, #tpu.memory_space<vmem>>, vector<2x1x168xf32>
    tpu.vector_store %arg5[%c0_110, %c15_111, %c0_112], %49 {strides = array<i32>} : memref<2x25x168xf32, #tpu.memory_space<vmem>>, vector<2x1x168xf32>,
    %c0_113 = arith.constant 0 : index
    %c1_114 = arith.constant 1 : index
    %c1_115 = arith.constant 1 : index
    %c0_116 = arith.constant 0 : index
    %c14_117 = arith.constant 14 : index
    %51 = vector.load %arg1[%c0_113, %c1_114, %c1_115, %c0_116, %c14_117] : memref<2x2x2x1x198xf32, #tpu.memory_space<vmem>>, vector<2x1x1x1x168xf32>
    %52 = vector.shape_cast %51 : vector<2x1x1x1x168xf32> to vector<2x1x168xf32>
    %c0_118 = arith.constant 0 : index
    %c16_119 = arith.constant 16 : index
    %c0_120 = arith.constant 0 : index
    %53 = vector.load %arg5[%c0_118, %c16_119, %c0_120] : memref<2x25x168xf32, #tpu.memory_space<vmem>>, vector<2x1x168xf32>
    tpu.vector_store %arg5[%c0_118, %c16_119, %c0_120], %52 {strides = array<i32>} : memref<2x25x168xf32, #tpu.memory_space<vmem>>, vector<2x1x168xf32>,
    %c0_121 = arith.constant 0 : index
    %c1_122 = arith.constant 1 : index
    %c0_123 = arith.constant 0 : index
    %c0_124 = arith.constant 0 : index
    %c15_125 = arith.constant 15 : index
    %54 = vector.load %arg1[%c0_121, %c1_122, %c0_123, %c0_124, %c15_125] : memref<2x2x2x1x198xf32, #tpu.memory_space<vmem>>, vector<2x1x1x1x168xf32>
    %55 = vector.shape_cast %54 : vector<2x1x1x1x168xf32> to vector<2x1x168xf32>
    %c0_126 = arith.constant 0 : index
    %c17 = arith.constant 17 : index
    %c0_127 = arith.constant 0 : index
    %56 = vector.load %arg5[%c0_126, %c17, %c0_127] : memref<2x25x168xf32, #tpu.memory_space<vmem>>, vector<2x1x168xf32>
    tpu.vector_store %arg5[%c0_126, %c17, %c0_127], %55 {strides = array<i32>} : memref<2x25x168xf32, #tpu.memory_space<vmem>>, vector<2x1x168xf32>,
    %c0_128 = arith.constant 0 : index
    %c1_129 = arith.constant 1 : index
    %c1_130 = arith.constant 1 : index
    %c0_131 = arith.constant 0 : index
    %c15_132 = arith.constant 15 : index
    %57 = vector.load %arg1[%c0_128, %c1_129, %c1_130, %c0_131, %c15_132] : memref<2x2x2x1x198xf32, #tpu.memory_space<vmem>>, vector<2x1x1x1x168xf32>
    %58 = vector.shape_cast %57 : vector<2x1x1x1x168xf32> to vector<2x1x168xf32>
    %c0_133 = arith.constant 0 : index
    %c18 = arith.constant 18 : index
    %c0_134 = arith.constant 0 : index
    %59 = vector.load %arg5[%c0_133, %c18, %c0_134] : memref<2x25x168xf32, #tpu.memory_space<vmem>>, vector<2x1x168xf32>
    tpu.vector_store %arg5[%c0_133, %c18, %c0_134], %58 {strides = array<i32>} : memref<2x25x168xf32, #tpu.memory_space<vmem>>, vector<2x1x168xf32>,
    %c0_135 = arith.constant 0 : index
    %c1_136 = arith.constant 1 : index
    %c0_137 = arith.constant 0 : index
    %c0_138 = arith.constant 0 : index
    %c16_139 = arith.constant 16 : index
    %60 = vector.load %arg1[%c0_135, %c1_136, %c0_137, %c0_138, %c16_139] : memref<2x2x2x1x198xf32, #tpu.memory_space<vmem>>, vector<2x1x1x1x168xf32>
    %61 = vector.shape_cast %60 : vector<2x1x1x1x168xf32> to vector<2x1x168xf32>
    %c0_140 = arith.constant 0 : index
    %c19 = arith.constant 19 : index
    %c0_141 = arith.constant 0 : index
    %62 = vector.load %arg5[%c0_140, %c19, %c0_141] : memref<2x25x168xf32, #tpu.memory_space<vmem>>, vector<2x1x168xf32>
    tpu.vector_store %arg5[%c0_140, %c19, %c0_141], %61 {strides = array<i32>} : memref<2x25x168xf32, #tpu.memory_space<vmem>>, vector<2x1x168xf32>,
    %c0_142 = arith.constant 0 : index
    %c0_143 = arith.constant 0 : index
    %c0_144 = arith.constant 0 : index
    %c0_145 = arith.constant 0 : index
    %c28 = arith.constant 28 : index
    %63 = vector.load %arg1[%c0_142, %c0_143, %c0_144, %c0_145, %c28] : memref<2x2x2x1x198xf32, #tpu.memory_space<vmem>>, vector<2x1x1x1x168xf32>
    %64 = vector.shape_cast %63 : vector<2x1x1x1x168xf32> to vector<2x1x168xf32>
    %c0_146 = arith.constant 0 : index
    %c20 = arith.constant 20 : index
    %c0_147 = arith.constant 0 : index
    %65 = vector.load %arg5[%c0_146, %c20, %c0_147] : memref<2x25x168xf32, #tpu.memory_space<vmem>>, vector<2x1x168xf32>
    tpu.vector_store %arg5[%c0_146, %c20, %c0_147], %64 {strides = array<i32>} : memref<2x25x168xf32, #tpu.memory_space<vmem>>, vector<2x1x168xf32>,
    %c0_148 = arith.constant 0 : index
    %c0_149 = arith.constant 0 : index
    %c1_150 = arith.constant 1 : index
    %c0_151 = arith.constant 0 : index
    %c28_152 = arith.constant 28 : index
    %66 = vector.load %arg1[%c0_148, %c0_149, %c1_150, %c0_151, %c28_152] : memref<2x2x2x1x198xf32, #tpu.memory_space<vmem>>, vector<2x1x1x1x168xf32>
    %67 = vector.shape_cast %66 : vector<2x1x1x1x168xf32> to vector<2x1x168xf32>
    %c0_153 = arith.constant 0 : index
    %c21 = arith.constant 21 : index
    %c0_154 = arith.constant 0 : index
    %68 = vector.load %arg5[%c0_153, %c21, %c0_154] : memref<2x25x168xf32, #tpu.memory_space<vmem>>, vector<2x1x168xf32>
    tpu.vector_store %arg5[%c0_153, %c21, %c0_154], %67 {strides = array<i32>} : memref<2x25x168xf32, #tpu.memory_space<vmem>>, vector<2x1x168xf32>,
    %c0_155 = arith.constant 0 : index
    %c0_156 = arith.constant 0 : index
    %c0_157 = arith.constant 0 : index
    %c0_158 = arith.constant 0 : index
    %c29 = arith.constant 29 : index
    %69 = vector.load %arg1[%c0_155, %c0_156, %c0_157, %c0_158, %c29] : memref<2x2x2x1x198xf32, #tpu.memory_space<vmem>>, vector<2x1x1x1x168xf32>
    %70 = vector.shape_cast %69 : vector<2x1x1x1x168xf32> to vector<2x1x168xf32>
    %c0_159 = arith.constant 0 : index
    %c22 = arith.constant 22 : index
    %c0_160 = arith.constant 0 : index
    %71 = vector.load %arg5[%c0_159, %c22, %c0_160] : memref<2x25x168xf32, #tpu.memory_space<vmem>>, vector<2x1x168xf32>
    tpu.vector_store %arg5[%c0_159, %c22, %c0_160], %70 {strides = array<i32>} : memref<2x25x168xf32, #tpu.memory_space<vmem>>, vector<2x1x168xf32>,
    %c0_161 = arith.constant 0 : index
    %c0_162 = arith.constant 0 : index
    %c1_163 = arith.constant 1 : index
    %c0_164 = arith.constant 0 : index
    %c29_165 = arith.constant 29 : index
    %72 = vector.load %arg1[%c0_161, %c0_162, %c1_163, %c0_164, %c29_165] : memref<2x2x2x1x198xf32, #tpu.memory_space<vmem>>, vector<2x1x1x1x168xf32>
    %73 = vector.shape_cast %72 : vector<2x1x1x1x168xf32> to vector<2x1x168xf32>
    %c0_166 = arith.constant 0 : index
    %c23 = arith.constant 23 : index
    %c0_167 = arith.constant 0 : index
    %74 = vector.load %arg5[%c0_166, %c23, %c0_167] : memref<2x25x168xf32, #tpu.memory_space<vmem>>, vector<2x1x168xf32>
    tpu.vector_store %arg5[%c0_166, %c23, %c0_167], %73 {strides = array<i32>} : memref<2x25x168xf32, #tpu.memory_space<vmem>>, vector<2x1x168xf32>,
    %c0_168 = arith.constant 0 : index
    %c0_169 = arith.constant 0 : index
    %c0_170 = arith.constant 0 : index
    %c0_171 = arith.constant 0 : index
    %c30 = arith.constant 30 : index
    %75 = vector.load %arg1[%c0_168, %c0_169, %c0_170, %c0_171, %c30] : memref<2x2x2x1x198xf32, #tpu.memory_space<vmem>>, vector<2x1x1x1x168xf32>
    %76 = vector.shape_cast %75 : vector<2x1x1x1x168xf32> to vector<2x1x168xf32>
    %c0_172 = arith.constant 0 : index
    %c24 = arith.constant 24 : index
    %c0_173 = arith.constant 0 : index
    %77 = vector.load %arg5[%c0_172, %c24, %c0_173] : memref<2x25x168xf32, #tpu.memory_space<vmem>>, vector<2x1x168xf32>
    tpu.vector_store %arg5[%c0_172, %c24, %c0_173], %76 {strides = array<i32>} : memref<2x25x168xf32, #tpu.memory_space<vmem>>, vector<2x1x168xf32>,
    %c0_174 = arith.constant 0 : index
    %c0_175 = arith.constant 0 : index
    %c0_176 = arith.constant 0 : index
    %78 = vector.load %arg5[%c0_174, %c0_175, %c0_176] : memref<2x25x168xf32, #tpu.memory_space<vmem>>, vector<2x25x168xf32>
    "tpu.trace_start"() <{level = 10 : i32, message = "bok,bkl->bol"}> : () -> ()
    %cst = arith.constant dense<0.000000e+00> : vector<2x10x168xf32>
    %79 = tpu.matmul %2, %78, %cst {dimension_numbers = #tpu.dot_dimension_numbers<[2], [1], [1], [2], [0, 0, 0, 1, 1, 2], [0], [0]>} : vector<2x10x25xf32>, vector<2x25x168xf32>, vector<2x10x168xf32> -> vector<2x10x168xf32>
    "tpu.trace_stop"() : () -> ()
    %c0_177 = arith.constant 0 : index
    %c0_178 = arith.constant 0 : index
    %c1_179 = arith.constant 1 : index
    %c0_180 = arith.constant 0 : index
    %c0_181 = arith.constant 0 : index
    %80 = vector.load %arg1[%c0_177, %c0_178, %c1_179, %c0_180, %c0_181] : memref<2x2x2x1x198xf32, #tpu.memory_space<vmem>>, vector<2x1x1x1x168xf32>
    %81 = vector.shape_cast %80 : vector<2x1x1x1x168xf32> to vector<2x1x168xf32>
    %c0_182 = arith.constant 0 : index
    %c0_183 = arith.constant 0 : index
    %c0_184 = arith.constant 0 : index
    %82 = vector.load %arg5[%c0_182, %c0_183, %c0_184] : memref<2x25x168xf32, #tpu.memory_space<vmem>>, vector<2x1x168xf32>
    tpu.vector_store %arg5[%c0_182, %c0_183, %c0_184], %81 {strides = array<i32>} : memref<2x25x168xf32, #tpu.memory_space<vmem>>, vector<2x1x168xf32>,
    %c0_185 = arith.constant 0 : index
    %c0_186 = arith.constant 0 : index
    %c0_187 = arith.constant 0 : index
    %c0_188 = arith.constant 0 : index
    %c1_189 = arith.constant 1 : index
    %83 = vector.load %arg1[%c0_185, %c0_186, %c0_187, %c0_188, %c1_189] : memref<2x2x2x1x198xf32, #tpu.memory_space<vmem>>, vector<2x1x1x1x168xf32>
    %84 = vector.shape_cast %83 : vector<2x1x1x1x168xf32> to vector<2x1x168xf32>
    %c0_190 = arith.constant 0 : index
    %c1_191 = arith.constant 1 : index
    %c0_192 = arith.constant 0 : index
    %85 = vector.load %arg5[%c0_190, %c1_191, %c0_192] : memref<2x25x168xf32, #tpu.memory_space<vmem>>, vector<2x1x168xf32>
    tpu.vector_store %arg5[%c0_190, %c1_191, %c0_192], %84 {strides = array<i32>} : memref<2x25x168xf32, #tpu.memory_space<vmem>>, vector<2x1x168xf32>,
    %c0_193 = arith.constant 0 : index
    %c0_194 = arith.constant 0 : index
    %c1_195 = arith.constant 1 : index
    %c0_196 = arith.constant 0 : index
    %c1_197 = arith.constant 1 : index
    %86 = vector.load %arg1[%c0_193, %c0_194, %c1_195, %c0_196, %c1_197] : memref<2x2x2x1x198xf32, #tpu.memory_space<vmem>>, vector<2x1x1x1x168xf32>
    %87 = vector.shape_cast %86 : vector<2x1x1x1x168xf32> to vector<2x1x168xf32>
    %c0_198 = arith.constant 0 : index
    %c2_199 = arith.constant 2 : index
    %c0_200 = arith.constant 0 : index
    %88 = vector.load %arg5[%c0_198, %c2_199, %c0_200] : memref<2x25x168xf32, #tpu.memory_space<vmem>>, vector<2x1x168xf32>
    tpu.vector_store %arg5[%c0_198, %c2_199, %c0_200], %87 {strides = array<i32>} : memref<2x25x168xf32, #tpu.memory_space<vmem>>, vector<2x1x168xf32>,
    %c0_201 = arith.constant 0 : index
    %c0_202 = arith.constant 0 : index
    %c0_203 = arith.constant 0 : index
    %c0_204 = arith.constant 0 : index
    %c2_205 = arith.constant 2 : index
    %89 = vector.load %arg1[%c0_201, %c0_202, %c0_203, %c0_204, %c2_205] : memref<2x2x2x1x198xf32, #tpu.memory_space<vmem>>, vector<2x1x1x1x168xf32>
    %90 = vector.shape_cast %89 : vector<2x1x1x1x168xf32> to vector<2x1x168xf32>
    %c0_206 = arith.constant 0 : index
    %c3_207 = arith.constant 3 : index
    %c0_208 = arith.constant 0 : index
    %91 = vector.load %arg5[%c0_206, %c3_207, %c0_208] : memref<2x25x168xf32, #tpu.memory_space<vmem>>, vector<2x1x168xf32>
    tpu.vector_store %arg5[%c0_206, %c3_207, %c0_208], %90 {strides = array<i32>} : memref<2x25x168xf32, #tpu.memory_space<vmem>>, vector<2x1x168xf32>,
    %c0_209 = arith.constant 0 : index
    %c0_210 = arith.constant 0 : index
    %c1_211 = arith.constant 1 : index
    %c0_212 = arith.constant 0 : index
    %c2_213 = arith.constant 2 : index
    %92 = vector.load %arg1[%c0_209, %c0_210, %c1_211, %c0_212, %c2_213] : memref<2x2x2x1x198xf32, #tpu.memory_space<vmem>>, vector<2x1x1x1x168xf32>
    %93 = vector.shape_cast %92 : vector<2x1x1x1x168xf32> to vector<2x1x168xf32>
    %c0_214 = arith.constant 0 : index
    %c4_215 = arith.constant 4 : index
    %c0_216 = arith.constant 0 : index
    %94 = vector.load %arg5[%c0_214, %c4_215, %c0_216] : memref<2x25x168xf32, #tpu.memory_space<vmem>>, vector<2x1x168xf32>
    tpu.vector_store %arg5[%c0_214, %c4_215, %c0_216], %93 {strides = array<i32>} : memref<2x25x168xf32, #tpu.memory_space<vmem>>, vector<2x1x168xf32>,
    %c0_217 = arith.constant 0 : index
    %c1_218 = arith.constant 1 : index
    %c1_219 = arith.constant 1 : index
    %c0_220 = arith.constant 0 : index
    %c0_221 = arith.constant 0 : index
    %95 = vector.load %arg1[%c0_217, %c1_218, %c1_219, %c0_220, %c0_221] : memref<2x2x2x1x198xf32, #tpu.memory_space<vmem>>, vector<2x1x1x1x168xf32>
    %96 = vector.shape_cast %95 : vector<2x1x1x1x168xf32> to vector<2x1x168xf32>
    %c0_222 = arith.constant 0 : index
    %c5_223 = arith.constant 5 : index
    %c0_224 = arith.constant 0 : index
    %97 = vector.load %arg5[%c0_222, %c5_223, %c0_224] : memref<2x25x168xf32, #tpu.memory_space<vmem>>, vector<2x1x168xf32>
    tpu.vector_store %arg5[%c0_222, %c5_223, %c0_224], %96 {strides = array<i32>} : memref<2x25x168xf32, #tpu.memory_space<vmem>>, vector<2x1x168xf32>,
    %c0_225 = arith.constant 0 : index
    %c1_226 = arith.constant 1 : index
    %c0_227 = arith.constant 0 : index
    %c0_228 = arith.constant 0 : index
    %c1_229 = arith.constant 1 : index
    %98 = vector.load %arg1[%c0_225, %c1_226, %c0_227, %c0_228, %c1_229] : memref<2x2x2x1x198xf32, #tpu.memory_space<vmem>>, vector<2x1x1x1x168xf32>
    %99 = vector.shape_cast %98 : vector<2x1x1x1x168xf32> to vector<2x1x168xf32>
    %c0_230 = arith.constant 0 : index
    %c6_231 = arith.constant 6 : index
    %c0_232 = arith.constant 0 : index
    %100 = vector.load %arg5[%c0_230, %c6_231, %c0_232] : memref<2x25x168xf32, #tpu.memory_space<vmem>>, vector<2x1x168xf32>
    tpu.vector_store %arg5[%c0_230, %c6_231, %c0_232], %99 {strides = array<i32>} : memref<2x25x168xf32, #tpu.memory_space<vmem>>, vector<2x1x168xf32>,
    %c0_233 = arith.constant 0 : index
    %c1_234 = arith.constant 1 : index
    %c1_235 = arith.constant 1 : index
    %c0_236 = arith.constant 0 : index
    %c1_237 = arith.constant 1 : index
    %101 = vector.load %arg1[%c0_233, %c1_234, %c1_235, %c0_236, %c1_237] : memref<2x2x2x1x198xf32, #tpu.memory_space<vmem>>, vector<2x1x1x1x168xf32>
    %102 = vector.shape_cast %101 : vector<2x1x1x1x168xf32> to vector<2x1x168xf32>
    %c0_238 = arith.constant 0 : index
    %c7_239 = arith.constant 7 : index
    %c0_240 = arith.constant 0 : index
    %103 = vector.load %arg5[%c0_238, %c7_239, %c0_240] : memref<2x25x168xf32, #tpu.memory_space<vmem>>, vector<2x1x168xf32>
    tpu.vector_store %arg5[%c0_238, %c7_239, %c0_240], %102 {strides = array<i32>} : memref<2x25x168xf32, #tpu.memory_space<vmem>>, vector<2x1x168xf32>,
    %c0_241 = arith.constant 0 : index
    %c1_242 = arith.constant 1 : index
    %c0_243 = arith.constant 0 : index
    %c0_244 = arith.constant 0 : index
    %c2_245 = arith.constant 2 : index
    %104 = vector.load %arg1[%c0_241, %c1_242, %c0_243, %c0_244, %c2_245] : memref<2x2x2x1x198xf32, #tpu.memory_space<vmem>>, vector<2x1x1x1x168xf32>
    %105 = vector.shape_cast %104 : vector<2x1x1x1x168xf32> to vector<2x1x168xf32>
    %c0_246 = arith.constant 0 : index
    %c8_247 = arith.constant 8 : index
    %c0_248 = arith.constant 0 : index
    %106 = vector.load %arg5[%c0_246, %c8_247, %c0_248] : memref<2x25x168xf32, #tpu.memory_space<vmem>>, vector<2x1x168xf32>
    tpu.vector_store %arg5[%c0_246, %c8_247, %c0_248], %105 {strides = array<i32>} : memref<2x25x168xf32, #tpu.memory_space<vmem>>, vector<2x1x168xf32>,
    %c0_249 = arith.constant 0 : index
    %c1_250 = arith.constant 1 : index
    %c1_251 = arith.constant 1 : index
    %c0_252 = arith.constant 0 : index
    %c2_253 = arith.constant 2 : index
    %107 = vector.load %arg1[%c0_249, %c1_250, %c1_251, %c0_252, %c2_253] : memref<2x2x2x1x198xf32, #tpu.memory_space<vmem>>, vector<2x1x1x1x168xf32>
    %108 = vector.shape_cast %107 : vector<2x1x1x1x168xf32> to vector<2x1x168xf32>
    %c0_254 = arith.constant 0 : index
    %c9_255 = arith.constant 9 : index
    %c0_256 = arith.constant 0 : index
    %109 = vector.load %arg5[%c0_254, %c9_255, %c0_256] : memref<2x25x168xf32, #tpu.memory_space<vmem>>, vector<2x1x168xf32>
    tpu.vector_store %arg5[%c0_254, %c9_255, %c0_256], %108 {strides = array<i32>} : memref<2x25x168xf32, #tpu.memory_space<vmem>>, vector<2x1x168xf32>,
    %c0_257 = arith.constant 0 : index
    %c0_258 = arith.constant 0 : index
    %c1_259 = arith.constant 1 : index
    %c0_260 = arith.constant 0 : index
    %c14_261 = arith.constant 14 : index
    %110 = vector.load %arg1[%c0_257, %c0_258, %c1_259, %c0_260, %c14_261] : memref<2x2x2x1x198xf32, #tpu.memory_space<vmem>>, vector<2x1x1x1x168xf32>
    %111 = vector.shape_cast %110 : vector<2x1x1x1x168xf32> to vector<2x1x168xf32>
    %c0_262 = arith.constant 0 : index
    %c10_263 = arith.constant 10 : index
    %c0_264 = arith.constant 0 : index
    %112 = vector.load %arg5[%c0_262, %c10_263, %c0_264] : memref<2x25x168xf32, #tpu.memory_space<vmem>>, vector<2x1x168xf32>
    tpu.vector_store %arg5[%c0_262, %c10_263, %c0_264], %111 {strides = array<i32>} : memref<2x25x168xf32, #tpu.memory_space<vmem>>, vector<2x1x168xf32>,
    %c0_265 = arith.constant 0 : index
    %c0_266 = arith.constant 0 : index
    %c0_267 = arith.constant 0 : index
    %c0_268 = arith.constant 0 : index
    %c15_269 = arith.constant 15 : index
    %113 = vector.load %arg1[%c0_265, %c0_266, %c0_267, %c0_268, %c15_269] : memref<2x2x2x1x198xf32, #tpu.memory_space<vmem>>, vector<2x1x1x1x168xf32>
    %114 = vector.shape_cast %113 : vector<2x1x1x1x168xf32> to vector<2x1x168xf32>
    %c0_270 = arith.constant 0 : index
    %c11_271 = arith.constant 11 : index
    %c0_272 = arith.constant 0 : index
    %115 = vector.load %arg5[%c0_270, %c11_271, %c0_272] : memref<2x25x168xf32, #tpu.memory_space<vmem>>, vector<2x1x168xf32>
    tpu.vector_store %arg5[%c0_270, %c11_271, %c0_272], %114 {strides = array<i32>} : memref<2x25x168xf32, #tpu.memory_space<vmem>>, vector<2x1x168xf32>,
    %c0_273 = arith.constant 0 : index
    %c0_274 = arith.constant 0 : index
    %c1_275 = arith.constant 1 : index
    %c0_276 = arith.constant 0 : index
    %c15_277 = arith.constant 15 : index
    %116 = vector.load %arg1[%c0_273, %c0_274, %c1_275, %c0_276, %c15_277] : memref<2x2x2x1x198xf32, #tpu.memory_space<vmem>>, vector<2x1x1x1x168xf32>
    %117 = vector.shape_cast %116 : vector<2x1x1x1x168xf32> to vector<2x1x168xf32>
    %c0_278 = arith.constant 0 : index
    %c12_279 = arith.constant 12 : index
    %c0_280 = arith.constant 0 : index
    %118 = vector.load %arg5[%c0_278, %c12_279, %c0_280] : memref<2x25x168xf32, #tpu.memory_space<vmem>>, vector<2x1x168xf32>
    tpu.vector_store %arg5[%c0_278, %c12_279, %c0_280], %117 {strides = array<i32>} : memref<2x25x168xf32, #tpu.memory_space<vmem>>, vector<2x1x168xf32>,
    %c0_281 = arith.constant 0 : index
    %c0_282 = arith.constant 0 : index
    %c0_283 = arith.constant 0 : index
    %c0_284 = arith.constant 0 : index
    %c16_285 = arith.constant 16 : index
    %119 = vector.load %arg1[%c0_281, %c0_282, %c0_283, %c0_284, %c16_285] : memref<2x2x2x1x198xf32, #tpu.memory_space<vmem>>, vector<2x1x1x1x168xf32>
    %120 = vector.shape_cast %119 : vector<2x1x1x1x168xf32> to vector<2x1x168xf32>
    %c0_286 = arith.constant 0 : index
    %c13_287 = arith.constant 13 : index
    %c0_288 = arith.constant 0 : index
    %121 = vector.load %arg5[%c0_286, %c13_287, %c0_288] : memref<2x25x168xf32, #tpu.memory_space<vmem>>, vector<2x1x168xf32>
    tpu.vector_store %arg5[%c0_286, %c13_287, %c0_288], %120 {strides = array<i32>} : memref<2x25x168xf32, #tpu.memory_space<vmem>>, vector<2x1x168xf32>,
    %c0_289 = arith.constant 0 : index
    %c0_290 = arith.constant 0 : index
    %c1_291 = arith.constant 1 : index
    %c0_292 = arith.constant 0 : index
    %c16_293 = arith.constant 16 : index
    %122 = vector.load %arg1[%c0_289, %c0_290, %c1_291, %c0_292, %c16_293] : memref<2x2x2x1x198xf32, #tpu.memory_space<vmem>>, vector<2x1x1x1x168xf32>
    %123 = vector.shape_cast %122 : vector<2x1x1x1x168xf32> to vector<2x1x168xf32>
    %c0_294 = arith.constant 0 : index
    %c14_295 = arith.constant 14 : index
    %c0_296 = arith.constant 0 : index
    %124 = vector.load %arg5[%c0_294, %c14_295, %c0_296] : memref<2x25x168xf32, #tpu.memory_space<vmem>>, vector<2x1x168xf32>
    tpu.vector_store %arg5[%c0_294, %c14_295, %c0_296], %123 {strides = array<i32>} : memref<2x25x168xf32, #tpu.memory_space<vmem>>, vector<2x1x168xf32>,
    %c0_297 = arith.constant 0 : index
    %c1_298 = arith.constant 1 : index
    %c1_299 = arith.constant 1 : index
    %c0_300 = arith.constant 0 : index
    %c14_301 = arith.constant 14 : index
    %125 = vector.load %arg1[%c0_297, %c1_298, %c1_299, %c0_300, %c14_301] : memref<2x2x2x1x198xf32, #tpu.memory_space<vmem>>, vector<2x1x1x1x168xf32>
    %126 = vector.shape_cast %125 : vector<2x1x1x1x168xf32> to vector<2x1x168xf32>
    %c0_302 = arith.constant 0 : index
    %c15_303 = arith.constant 15 : index
    %c0_304 = arith.constant 0 : index
    %127 = vector.load %arg5[%c0_302, %c15_303, %c0_304] : memref<2x25x168xf32, #tpu.memory_space<vmem>>, vector<2x1x168xf32>
    tpu.vector_store %arg5[%c0_302, %c15_303, %c0_304], %126 {strides = array<i32>} : memref<2x25x168xf32, #tpu.memory_space<vmem>>, vector<2x1x168xf32>,
    %c0_305 = arith.constant 0 : index
    %c1_306 = arith.constant 1 : index
    %c0_307 = arith.constant 0 : index
    %c0_308 = arith.constant 0 : index
    %c15_309 = arith.constant 15 : index
    %128 = vector.load %arg1[%c0_305, %c1_306, %c0_307, %c0_308, %c15_309] : memref<2x2x2x1x198xf32, #tpu.memory_space<vmem>>, vector<2x1x1x1x168xf32>
    %129 = vector.shape_cast %128 : vector<2x1x1x1x168xf32> to vector<2x1x168xf32>
    %c0_310 = arith.constant 0 : index
    %c16_311 = arith.constant 16 : index
    %c0_312 = arith.constant 0 : index
    %130 = vector.load %arg5[%c0_310, %c16_311, %c0_312] : memref<2x25x168xf32, #tpu.memory_space<vmem>>, vector<2x1x168xf32>
    tpu.vector_store %arg5[%c0_310, %c16_311, %c0_312], %129 {strides = array<i32>} : memref<2x25x168xf32, #tpu.memory_space<vmem>>, vector<2x1x168xf32>,
    %c0_313 = arith.constant 0 : index
    %c1_314 = arith.constant 1 : index
    %c1_315 = arith.constant 1 : index
    %c0_316 = arith.constant 0 : index
    %c15_317 = arith.constant 15 : index
    %131 = vector.load %arg1[%c0_313, %c1_314, %c1_315, %c0_316, %c15_317] : memref<2x2x2x1x198xf32, #tpu.memory_space<vmem>>, vector<2x1x1x1x168xf32>
    %132 = vector.shape_cast %131 : vector<2x1x1x1x168xf32> to vector<2x1x168xf32>
    %c0_318 = arith.constant 0 : index
    %c17_319 = arith.constant 17 : index
    %c0_320 = arith.constant 0 : index
    %133 = vector.load %arg5[%c0_318, %c17_319, %c0_320] : memref<2x25x168xf32, #tpu.memory_space<vmem>>, vector<2x1x168xf32>
    tpu.vector_store %arg5[%c0_318, %c17_319, %c0_320], %132 {strides = array<i32>} : memref<2x25x168xf32, #tpu.memory_space<vmem>>, vector<2x1x168xf32>,
    %c0_321 = arith.constant 0 : index
    %c1_322 = arith.constant 1 : index
    %c0_323 = arith.constant 0 : index
    %c0_324 = arith.constant 0 : index
    %c16_325 = arith.constant 16 : index
    %134 = vector.load %arg1[%c0_321, %c1_322, %c0_323, %c0_324, %c16_325] : memref<2x2x2x1x198xf32, #tpu.memory_space<vmem>>, vector<2x1x1x1x168xf32>
    %135 = vector.shape_cast %134 : vector<2x1x1x1x168xf32> to vector<2x1x168xf32>
    %c0_326 = arith.constant 0 : index
    %c18_327 = arith.constant 18 : index
    %c0_328 = arith.constant 0 : index
    %136 = vector.load %arg5[%c0_326, %c18_327, %c0_328] : memref<2x25x168xf32, #tpu.memory_space<vmem>>, vector<2x1x168xf32>
    tpu.vector_store %arg5[%c0_326, %c18_327, %c0_328], %135 {strides = array<i32>} : memref<2x25x168xf32, #tpu.memory_space<vmem>>, vector<2x1x168xf32>,
    %c0_329 = arith.constant 0 : index
    %c1_330 = arith.constant 1 : index
    %c1_331 = arith.constant 1 : index
    %c0_332 = arith.constant 0 : index
    %c16_333 = arith.constant 16 : index
    %137 = vector.load %arg1[%c0_329, %c1_330, %c1_331, %c0_332, %c16_333] : memref<2x2x2x1x198xf32, #tpu.memory_space<vmem>>, vector<2x1x1x1x168xf32>
    %138 = vector.shape_cast %137 : vector<2x1x1x1x168xf32> to vector<2x1x168xf32>
    %c0_334 = arith.constant 0 : index
    %c19_335 = arith.constant 19 : index
    %c0_336 = arith.constant 0 : index
    %139 = vector.load %arg5[%c0_334, %c19_335, %c0_336] : memref<2x25x168xf32, #tpu.memory_space<vmem>>, vector<2x1x168xf32>
    tpu.vector_store %arg5[%c0_334, %c19_335, %c0_336], %138 {strides = array<i32>} : memref<2x25x168xf32, #tpu.memory_space<vmem>>, vector<2x1x168xf32>,
    %c0_337 = arith.constant 0 : index
    %c0_338 = arith.constant 0 : index
    %c1_339 = arith.constant 1 : index
    %c0_340 = arith.constant 0 : index
    %c28_341 = arith.constant 28 : index
    %140 = vector.load %arg1[%c0_337, %c0_338, %c1_339, %c0_340, %c28_341] : memref<2x2x2x1x198xf32, #tpu.memory_space<vmem>>, vector<2x1x1x1x168xf32>
    %141 = vector.shape_cast %140 : vector<2x1x1x1x168xf32> to vector<2x1x168xf32>
    %c0_342 = arith.constant 0 : index
    %c20_343 = arith.constant 20 : index
    %c0_344 = arith.constant 0 : index
    %142 = vector.load %arg5[%c0_342, %c20_343, %c0_344] : memref<2x25x168xf32, #tpu.memory_space<vmem>>, vector<2x1x168xf32>
    tpu.vector_store %arg5[%c0_342, %c20_343, %c0_344], %141 {strides = array<i32>} : memref<2x25x168xf32, #tpu.memory_space<vmem>>, vector<2x1x168xf32>,
    %c0_345 = arith.constant 0 : index
    %c0_346 = arith.constant 0 : index
    %c0_347 = arith.constant 0 : index
    %c0_348 = arith.constant 0 : index
    %c29_349 = arith.constant 29 : index
    %143 = vector.load %arg1[%c0_345, %c0_346, %c0_347, %c0_348, %c29_349] : memref<2x2x2x1x198xf32, #tpu.memory_space<vmem>>, vector<2x1x1x1x168xf32>
    %144 = vector.shape_cast %143 : vector<2x1x1x1x168xf32> to vector<2x1x168xf32>
    %c0_350 = arith.constant 0 : index
    %c21_351 = arith.constant 21 : index
    %c0_352 = arith.constant 0 : index
    %145 = vector.load %arg5[%c0_350, %c21_351, %c0_352] : memref<2x25x168xf32, #tpu.memory_space<vmem>>, vector<2x1x168xf32>
    tpu.vector_store %arg5[%c0_350, %c21_351, %c0_352], %144 {strides = array<i32>} : memref<2x25x168xf32, #tpu.memory_space<vmem>>, vector<2x1x168xf32>,
    %c0_353 = arith.constant 0 : index
    %c0_354 = arith.constant 0 : index
    %c1_355 = arith.constant 1 : index
    %c0_356 = arith.constant 0 : index
    %c29_357 = arith.constant 29 : index
    %146 = vector.load %arg1[%c0_353, %c0_354, %c1_355, %c0_356, %c29_357] : memref<2x2x2x1x198xf32, #tpu.memory_space<vmem>>, vector<2x1x1x1x168xf32>
    %147 = vector.shape_cast %146 : vector<2x1x1x1x168xf32> to vector<2x1x168xf32>
    %c0_358 = arith.constant 0 : index
    %c22_359 = arith.constant 22 : index
    %c0_360 = arith.constant 0 : index
    %148 = vector.load %arg5[%c0_358, %c22_359, %c0_360] : memref<2x25x168xf32, #tpu.memory_space<vmem>>, vector<2x1x168xf32>
    tpu.vector_store %arg5[%c0_358, %c22_359, %c0_360], %147 {strides = array<i32>} : memref<2x25x168xf32, #tpu.memory_space<vmem>>, vector<2x1x168xf32>,
    %c0_361 = arith.constant 0 : index
    %c0_362 = arith.constant 0 : index
    %c0_363 = arith.constant 0 : index
    %c0_364 = arith.constant 0 : index
    %c30_365 = arith.constant 30 : index
    %149 = vector.load %arg1[%c0_361, %c0_362, %c0_363, %c0_364, %c30_365] : memref<2x2x2x1x198xf32, #tpu.memory_space<vmem>>, vector<2x1x1x1x168xf32>
    %150 = vector.shape_cast %149 : vector<2x1x1x1x168xf32> to vector<2x1x168xf32>
    %c0_366 = arith.constant 0 : index
    %c23_367 = arith.constant 23 : index
    %c0_368 = arith.constant 0 : index
    %151 = vector.load %arg5[%c0_366, %c23_367, %c0_368] : memref<2x25x168xf32, #tpu.memory_space<vmem>>, vector<2x1x168xf32>
    tpu.vector_store %arg5[%c0_366, %c23_367, %c0_368], %150 {strides = array<i32>} : memref<2x25x168xf32, #tpu.memory_space<vmem>>, vector<2x1x168xf32>,
    %c0_369 = arith.constant 0 : index
    %c0_370 = arith.constant 0 : index
    %c1_371 = arith.constant 1 : index
    %c0_372 = arith.constant 0 : index
    %c30_373 = arith.constant 30 : index
    %152 = vector.load %arg1[%c0_369, %c0_370, %c1_371, %c0_372, %c30_373] : memref<2x2x2x1x198xf32, #tpu.memory_space<vmem>>, vector<2x1x1x1x168xf32>
    %153 = vector.shape_cast %152 : vector<2x1x1x1x168xf32> to vector<2x1x168xf32>
    %c0_374 = arith.constant 0 : index
    %c24_375 = arith.constant 24 : index
    %c0_376 = arith.constant 0 : index
    %154 = vector.load %arg5[%c0_374, %c24_375, %c0_376] : memref<2x25x168xf32, #tpu.memory_space<vmem>>, vector<2x1x168xf32>
    tpu.vector_store %arg5[%c0_374, %c24_375, %c0_376], %153 {strides = array<i32>} : memref<2x25x168xf32, #tpu.memory_space<vmem>>, vector<2x1x168xf32>,
    %c0_377 = arith.constant 0 : index
    %c0_378 = arith.constant 0 : index
    %c0_379 = arith.constant 0 : index
    %155 = vector.load %arg5[%c0_377, %c0_378, %c0_379] : memref<2x25x168xf32, #tpu.memory_space<vmem>>, vector<2x25x168xf32>
    "tpu.trace_start"() <{level = 10 : i32, message = "bok,bkl->bol"}> : () -> ()
    %cst_380 = arith.constant dense<0.000000e+00> : vector<2x10x168xf32>
    %156 = tpu.matmul %2, %155, %cst_380 {dimension_numbers = #tpu.dot_dimension_numbers<[2], [1], [1], [2], [0, 0, 0, 1, 1, 2], [0], [0]>} : vector<2x10x25xf32>, vector<2x25x168xf32>, vector<2x10x168xf32> -> vector<2x10x168xf32>
    "tpu.trace_stop"() : () -> ()
    %157 = arith.maximumf %79, %156 : vector<2x10x168xf32>
    %c0_381 = arith.constant 0 : index
    %c1_382 = arith.constant 1 : index
    %c0_383 = arith.constant 0 : index
    %c0_384 = arith.constant 0 : index
    %c0_385 = arith.constant 0 : index
    %158 = vector.load %arg1[%c0_381, %c1_382, %c0_383, %c0_384, %c0_385] : memref<2x2x2x1x198xf32, #tpu.memory_space<vmem>>, vector<2x1x1x1x168xf32>
    %159 = vector.shape_cast %158 : vector<2x1x1x1x168xf32> to vector<2x1x168xf32>
    %c0_386 = arith.constant 0 : index
    %c0_387 = arith.constant 0 : index
    %c0_388 = arith.constant 0 : index
    %160 = vector.load %arg5[%c0_386, %c0_387, %c0_388] : memref<2x25x168xf32, #tpu.memory_space<vmem>>, vector<2x1x168xf32>
    tpu.vector_store %arg5[%c0_386, %c0_387, %c0_388], %159 {strides = array<i32>} : memref<2x25x168xf32, #tpu.memory_space<vmem>>, vector<2x1x168xf32>,
    %c0_389 = arith.constant 0 : index
    %c1_390 = arith.constant 1 : index
    %c1_391 = arith.constant 1 : index
    %c0_392 = arith.constant 0 : index
    %c0_393 = arith.constant 0 : index
    %161 = vector.load %arg1[%c0_389, %c1_390, %c1_391, %c0_392, %c0_393] : memref<2x2x2x1x198xf32, #tpu.memory_space<vmem>>, vector<2x1x1x1x168xf32>
    %162 = vector.shape_cast %161 : vector<2x1x1x1x168xf32> to vector<2x1x168xf32>
    %c0_394 = arith.constant 0 : index
    %c1_395 = arith.constant 1 : index
    %c0_396 = arith.constant 0 : index
    %163 = vector.load %arg5[%c0_394, %c1_395, %c0_396] : memref<2x25x168xf32, #tpu.memory_space<vmem>>, vector<2x1x168xf32>
    tpu.vector_store %arg5[%c0_394, %c1_395, %c0_396], %162 {strides = array<i32>} : memref<2x25x168xf32, #tpu.memory_space<vmem>>, vector<2x1x168xf32>,
    %c0_397 = arith.constant 0 : index
    %c1_398 = arith.constant 1 : index
    %c0_399 = arith.constant 0 : index
    %c0_400 = arith.constant 0 : index
    %c1_401 = arith.constant 1 : index
    %164 = vector.load %arg1[%c0_397, %c1_398, %c0_399, %c0_400, %c1_401] : memref<2x2x2x1x198xf32, #tpu.memory_space<vmem>>, vector<2x1x1x1x168xf32>
    %165 = vector.shape_cast %164 : vector<2x1x1x1x168xf32> to vector<2x1x168xf32>
    %c0_402 = arith.constant 0 : index
    %c2_403 = arith.constant 2 : index
    %c0_404 = arith.constant 0 : index
    %166 = vector.load %arg5[%c0_402, %c2_403, %c0_404] : memref<2x25x168xf32, #tpu.memory_space<vmem>>, vector<2x1x168xf32>
    tpu.vector_store %arg5[%c0_402, %c2_403, %c0_404], %165 {strides = array<i32>} : memref<2x25x168xf32, #tpu.memory_space<vmem>>, vector<2x1x168xf32>,
    %c0_405 = arith.constant 0 : index
    %c1_406 = arith.constant 1 : index
    %c1_407 = arith.constant 1 : index
    %c0_408 = arith.constant 0 : index
    %c1_409 = arith.constant 1 : index
    %167 = vector.load %arg1[%c0_405, %c1_406, %c1_407, %c0_408, %c1_409] : memref<2x2x2x1x198xf32, #tpu.memory_space<vmem>>, vector<2x1x1x1x168xf32>
    %168 = vector.shape_cast %167 : vector<2x1x1x1x168xf32> to vector<2x1x168xf32>
    %c0_410 = arith.constant 0 : index
    %c3_411 = arith.constant 3 : index
    %c0_412 = arith.constant 0 : index
    %169 = vector.load %arg5[%c0_410, %c3_411, %c0_412] : memref<2x25x168xf32, #tpu.memory_space<vmem>>, vector<2x1x168xf32>
    tpu.vector_store %arg5[%c0_410, %c3_411, %c0_412], %168 {strides = array<i32>} : memref<2x25x168xf32, #tpu.memory_space<vmem>>, vector<2x1x168xf32>,
    %c0_413 = arith.constant 0 : index
    %c1_414 = arith.constant 1 : index
    %c0_415 = arith.constant 0 : index
    %c0_416 = arith.constant 0 : index
    %c2_417 = arith.constant 2 : index
    %170 = vector.load %arg1[%c0_413, %c1_414, %c0_415, %c0_416, %c2_417] : memref<2x2x2x1x198xf32, #tpu.memory_space<vmem>>, vector<2x1x1x1x168xf32>
    %171 = vector.shape_cast %170 : vector<2x1x1x1x168xf32> to vector<2x1x168xf32>
    %c0_418 = arith.constant 0 : index
    %c4_419 = arith.constant 4 : index
    %c0_420 = arith.constant 0 : index
    %172 = vector.load %arg5[%c0_418, %c4_419, %c0_420] : memref<2x25x168xf32, #tpu.memory_space<vmem>>, vector<2x1x168xf32>
    tpu.vector_store %arg5[%c0_418, %c4_419, %c0_420], %171 {strides = array<i32>} : memref<2x25x168xf32, #tpu.memory_space<vmem>>, vector<2x1x168xf32>,
    %c0_421 = arith.constant 0 : index
    %c0_422 = arith.constant 0 : index
    %c0_423 = arith.constant 0 : index
    %c0_424 = arith.constant 0 : index
    %c14_425 = arith.constant 14 : index
    %173 = vector.load %arg1[%c0_421, %c0_422, %c0_423, %c0_424, %c14_425] : memref<2x2x2x1x198xf32, #tpu.memory_space<vmem>>, vector<2x1x1x1x168xf32>
    %174 = vector.shape_cast %173 : vector<2x1x1x1x168xf32> to vector<2x1x168xf32>
    %c0_426 = arith.constant 0 : index
    %c5_427 = arith.constant 5 : index
    %c0_428 = arith.constant 0 : index
    %175 = vector.load %arg5[%c0_426, %c5_427, %c0_428] : memref<2x25x168xf32, #tpu.memory_space<vmem>>, vector<2x1x168xf32>
    tpu.vector_store %arg5[%c0_426, %c5_427, %c0_428], %174 {strides = array<i32>} : memref<2x25x168xf32, #tpu.memory_space<vmem>>, vector<2x1x168xf32>,
    %c0_429 = arith.constant 0 : index
    %c0_430 = arith.constant 0 : index
    %c1_431 = arith.constant 1 : index
    %c0_432 = arith.constant 0 : index
    %c14_433 = arith.constant 14 : index
    %176 = vector.load %arg1[%c0_429, %c0_430, %c1_431, %c0_432, %c14_433] : memref<2x2x2x1x198xf32, #tpu.memory_space<vmem>>, vector<2x1x1x1x168xf32>
    %177 = vector.shape_cast %176 : vector<2x1x1x1x168xf32> to vector<2x1x168xf32>
    %c0_434 = arith.constant 0 : index
    %c6_435 = arith.constant 6 : index
    %c0_436 = arith.constant 0 : index
    %178 = vector.load %arg5[%c0_434, %c6_435, %c0_436] : memref<2x25x168xf32, #tpu.memory_space<vmem>>, vector<2x1x168xf32>
    tpu.vector_store %arg5[%c0_434, %c6_435, %c0_436], %177 {strides = array<i32>} : memref<2x25x168xf32, #tpu.memory_space<vmem>>, vector<2x1x168xf32>,
    %c0_437 = arith.constant 0 : index
    %c0_438 = arith.constant 0 : index
    %c0_439 = arith.constant 0 : index
    %c0_440 = arith.constant 0 : index
    %c15_441 = arith.constant 15 : index
    %179 = vector.load %arg1[%c0_437, %c0_438, %c0_439, %c0_440, %c15_441] : memref<2x2x2x1x198xf32, #tpu.memory_space<vmem>>, vector<2x1x1x1x168xf32>
    %180 = vector.shape_cast %179 : vector<2x1x1x1x168xf32> to vector<2x1x168xf32>
    %c0_442 = arith.constant 0 : index
    %c7_443 = arith.constant 7 : index
    %c0_444 = arith.constant 0 : index
    %181 = vector.load %arg5[%c0_442, %c7_443, %c0_444] : memref<2x25x168xf32, #tpu.memory_space<vmem>>, vector<2x1x168xf32>
    tpu.vector_store %arg5[%c0_442, %c7_443, %c0_444], %180 {strides = array<i32>} : memref<2x25x168xf32, #tpu.memory_space<vmem>>, vector<2x1x168xf32>,
    %c0_445 = arith.constant 0 : index
    %c0_446 = arith.constant 0 : index
    %c1_447 = arith.constant 1 : index
    %c0_448 = arith.constant 0 : index
    %c15_449 = arith.constant 15 : index
    %182 = vector.load %arg1[%c0_445, %c0_446, %c1_447, %c0_448, %c15_449] : memref<2x2x2x1x198xf32, #tpu.memory_space<vmem>>, vector<2x1x1x1x168xf32>
    %183 = vector.shape_cast %182 : vector<2x1x1x1x168xf32> to vector<2x1x168xf32>
    %c0_450 = arith.constant 0 : index
    %c8_451 = arith.constant 8 : index
    %c0_452 = arith.constant 0 : index
    %184 = vector.load %arg5[%c0_450, %c8_451, %c0_452] : memref<2x25x168xf32, #tpu.memory_space<vmem>>, vector<2x1x168xf32>
    tpu.vector_store %arg5[%c0_450, %c8_451, %c0_452], %183 {strides = array<i32>} : memref<2x25x168xf32, #tpu.memory_space<vmem>>, vector<2x1x168xf32>,
    %c0_453 = arith.constant 0 : index
    %c0_454 = arith.constant 0 : index
    %c0_455 = arith.constant 0 : index
    %c0_456 = arith.constant 0 : index
    %c16_457 = arith.constant 16 : index
    %185 = vector.load %arg1[%c0_453, %c0_454, %c0_455, %c0_456, %c16_457] : memref<2x2x2x1x198xf32, #tpu.memory_space<vmem>>, vector<2x1x1x1x168xf32>
    %186 = vector.shape_cast %185 : vector<2x1x1x1x168xf32> to vector<2x1x168xf32>
    %c0_458 = arith.constant 0 : index
    %c9_459 = arith.constant 9 : index
    %c0_460 = arith.constant 0 : index
    %187 = vector.load %arg5[%c0_458, %c9_459, %c0_460] : memref<2x25x168xf32, #tpu.memory_space<vmem>>, vector<2x1x168xf32>
    tpu.vector_store %arg5[%c0_458, %c9_459, %c0_460], %186 {strides = array<i32>} : memref<2x25x168xf32, #tpu.memory_space<vmem>>, vector<2x1x168xf32>,
    %c0_461 = arith.constant 0 : index
    %c1_462 = arith.constant 1 : index
    %c0_463 = arith.constant 0 : index
    %c0_464 = arith.constant 0 : index
    %c14_465 = arith.constant 14 : index
    %188 = vector.load %arg1[%c0_461, %c1_462, %c0_463, %c0_464, %c14_465] : memref<2x2x2x1x198xf32, #tpu.memory_space<vmem>>, vector<2x1x1x1x168xf32>
    %189 = vector.shape_cast %188 : vector<2x1x1x1x168xf32> to vector<2x1x168xf32>
    %c0_466 = arith.constant 0 : index
    %c10_467 = arith.constant 10 : index
    %c0_468 = arith.constant 0 : index
    %190 = vector.load %arg5[%c0_466, %c10_467, %c0_468] : memref<2x25x168xf32, #tpu.memory_space<vmem>>, vector<2x1x168xf32>
    tpu.vector_store %arg5[%c0_466, %c10_467, %c0_468], %189 {strides = array<i32>} : memref<2x25x168xf32, #tpu.memory_space<vmem>>, vector<2x1x168xf32>,
    %c0_469 = arith.constant 0 : index
    %c1_470 = arith.constant 1 : index
    %c1_471 = arith.constant 1 : index
    %c0_472 = arith.constant 0 : index
    %c14_473 = arith.constant 14 : index
    %191 = vector.load %arg1[%c0_469, %c1_470, %c1_471, %c0_472, %c14_473] : memref<2x2x2x1x198xf32, #tpu.memory_space<vmem>>, vector<2x1x1x1x168xf32>
    %192 = vector.shape_cast %191 : vector<2x1x1x1x168xf32> to vector<2x1x168xf32>
    %c0_474 = arith.constant 0 : index
    %c11_475 = arith.constant 11 : index
    %c0_476 = arith.constant 0 : index
    %193 = vector.load %arg5[%c0_474, %c11_475, %c0_476] : memref<2x25x168xf32, #tpu.memory_space<vmem>>, vector<2x1x168xf32>
    tpu.vector_store %arg5[%c0_474, %c11_475, %c0_476], %192 {strides = array<i32>} : memref<2x25x168xf32, #tpu.memory_space<vmem>>, vector<2x1x168xf32>,
    %c0_477 = arith.constant 0 : index
    %c1_478 = arith.constant 1 : index
    %c0_479 = arith.constant 0 : index
    %c0_480 = arith.constant 0 : index
    %c15_481 = arith.constant 15 : index
    %194 = vector.load %arg1[%c0_477, %c1_478, %c0_479, %c0_480, %c15_481] : memref<2x2x2x1x198xf32, #tpu.memory_space<vmem>>, vector<2x1x1x1x168xf32>
    %195 = vector.shape_cast %194 : vector<2x1x1x1x168xf32> to vector<2x1x168xf32>
    %c0_482 = arith.constant 0 : index
    %c12_483 = arith.constant 12 : index
    %c0_484 = arith.constant 0 : index
    %196 = vector.load %arg5[%c0_482, %c12_483, %c0_484] : memref<2x25x168xf32, #tpu.memory_space<vmem>>, vector<2x1x168xf32>
    tpu.vector_store %arg5[%c0_482, %c12_483, %c0_484], %195 {strides = array<i32>} : memref<2x25x168xf32, #tpu.memory_space<vmem>>, vector<2x1x168xf32>,
    %c0_485 = arith.constant 0 : index
    %c1_486 = arith.constant 1 : index
    %c1_487 = arith.constant 1 : index
    %c0_488 = arith.constant 0 : index
    %c15_489 = arith.constant 15 : index
    %197 = vector.load %arg1[%c0_485, %c1_486, %c1_487, %c0_488, %c15_489] : memref<2x2x2x1x198xf32, #tpu.memory_space<vmem>>, vector<2x1x1x1x168xf32>
    %198 = vector.shape_cast %197 : vector<2x1x1x1x168xf32> to vector<2x1x168xf32>
    %c0_490 = arith.constant 0 : index
    %c13_491 = arith.constant 13 : index
    %c0_492 = arith.constant 0 : index
    %199 = vector.load %arg5[%c0_490, %c13_491, %c0_492] : memref<2x25x168xf32, #tpu.memory_space<vmem>>, vector<2x1x168xf32>
    tpu.vector_store %arg5[%c0_490, %c13_491, %c0_492], %198 {strides = array<i32>} : memref<2x25x168xf32, #tpu.memory_space<vmem>>, vector<2x1x168xf32>,
    %c0_493 = arith.constant 0 : index
    %c1_494 = arith.constant 1 : index
    %c0_495 = arith.constant 0 : index
    %c0_496 = arith.constant 0 : index
    %c16_497 = arith.constant 16 : index
    %200 = vector.load %arg1[%c0_493, %c1_494, %c0_495, %c0_496, %c16_497] : memref<2x2x2x1x198xf32, #tpu.memory_space<vmem>>, vector<2x1x1x1x168xf32>
    %201 = vector.shape_cast %200 : vector<2x1x1x1x168xf32> to vector<2x1x168xf32>
    %c0_498 = arith.constant 0 : index
    %c14_499 = arith.constant 14 : index
    %c0_500 = arith.constant 0 : index
    %202 = vector.load %arg5[%c0_498, %c14_499, %c0_500] : memref<2x25x168xf32, #tpu.memory_space<vmem>>, vector<2x1x168xf32>
    tpu.vector_store %arg5[%c0_498, %c14_499, %c0_500], %201 {strides = array<i32>} : memref<2x25x168xf32, #tpu.memory_space<vmem>>, vector<2x1x168xf32>,
    %c0_501 = arith.constant 0 : index
    %c0_502 = arith.constant 0 : index
    %c0_503 = arith.constant 0 : index
    %c0_504 = arith.constant 0 : index
    %c28_505 = arith.constant 28 : index
    %203 = vector.load %arg1[%c0_501, %c0_502, %c0_503, %c0_504, %c28_505] : memref<2x2x2x1x198xf32, #tpu.memory_space<vmem>>, vector<2x1x1x1x168xf32>
    %204 = vector.shape_cast %203 : vector<2x1x1x1x168xf32> to vector<2x1x168xf32>
    %c0_506 = arith.constant 0 : index
    %c15_507 = arith.constant 15 : index
    %c0_508 = arith.constant 0 : index
    %205 = vector.load %arg5[%c0_506, %c15_507, %c0_508] : memref<2x25x168xf32, #tpu.memory_space<vmem>>, vector<2x1x168xf32>
    tpu.vector_store %arg5[%c0_506, %c15_507, %c0_508], %204 {strides = array<i32>} : memref<2x25x168xf32, #tpu.memory_space<vmem>>, vector<2x1x168xf32>,
    %c0_509 = arith.constant 0 : index
    %c0_510 = arith.constant 0 : index
    %c1_511 = arith.constant 1 : index
    %c0_512 = arith.constant 0 : index
    %c28_513 = arith.constant 28 : index
    %206 = vector.load %arg1[%c0_509, %c0_510, %c1_511, %c0_512, %c28_513] : memref<2x2x2x1x198xf32, #tpu.memory_space<vmem>>, vector<2x1x1x1x168xf32>
    %207 = vector.shape_cast %206 : vector<2x1x1x1x168xf32> to vector<2x1x168xf32>
    %c0_514 = arith.constant 0 : index
    %c16_515 = arith.constant 16 : index
    %c0_516 = arith.constant 0 : index
    %208 = vector.load %arg5[%c0_514, %c16_515, %c0_516] : memref<2x25x168xf32, #tpu.memory_space<vmem>>, vector<2x1x168xf32>
    tpu.vector_store %arg5[%c0_514, %c16_515, %c0_516], %207 {strides = array<i32>} : memref<2x25x168xf32, #tpu.memory_space<vmem>>, vector<2x1x168xf32>,
    %c0_517 = arith.constant 0 : index
    %c0_518 = arith.constant 0 : index
    %c0_519 = arith.constant 0 : index
    %c0_520 = arith.constant 0 : index
    %c29_521 = arith.constant 29 : index
    %209 = vector.load %arg1[%c0_517, %c0_518, %c0_519, %c0_520, %c29_521] : memref<2x2x2x1x198xf32, #tpu.memory_space<vmem>>, vector<2x1x1x1x168xf32>
    %210 = vector.shape_cast %209 : vector<2x1x1x1x168xf32> to vector<2x1x168xf32>
    %c0_522 = arith.constant 0 : index
    %c17_523 = arith.constant 17 : index
    %c0_524 = arith.constant 0 : index
    %211 = vector.load %arg5[%c0_522, %c17_523, %c0_524] : memref<2x25x168xf32, #tpu.memory_space<vmem>>, vector<2x1x168xf32>
    tpu.vector_store %arg5[%c0_522, %c17_523, %c0_524], %210 {strides = array<i32>} : memref<2x25x168xf32, #tpu.memory_space<vmem>>, vector<2x1x168xf32>,
    %c0_525 = arith.constant 0 : index
    %c0_526 = arith.constant 0 : index
    %c1_527 = arith.constant 1 : index
    %c0_528 = arith.constant 0 : index
    %c29_529 = arith.constant 29 : index
    %212 = vector.load %arg1[%c0_525, %c0_526, %c1_527, %c0_528, %c29_529] : memref<2x2x2x1x198xf32, #tpu.memory_space<vmem>>, vector<2x1x1x1x168xf32>
    %213 = vector.shape_cast %212 : vector<2x1x1x1x168xf32> to vector<2x1x168xf32>
    %c0_530 = arith.constant 0 : index
    %c18_531 = arith.constant 18 : index
    %c0_532 = arith.constant 0 : index
    %214 = vector.load %arg5[%c0_530, %c18_531, %c0_532] : memref<2x25x168xf32, #tpu.memory_space<vmem>>, vector<2x1x168xf32>
    tpu.vector_store %arg5[%c0_530, %c18_531, %c0_532], %213 {strides = array<i32>} : memref<2x25x168xf32, #tpu.memory_space<vmem>>, vector<2x1x168xf32>,
    %c0_533 = arith.constant 0 : index
    %c0_534 = arith.constant 0 : index
    %c0_535 = arith.constant 0 : index
    %c0_536 = arith.constant 0 : index
    %c30_537 = arith.constant 30 : index
    %215 = vector.load %arg1[%c0_533, %c0_534, %c0_535, %c0_536, %c30_537] : memref<2x2x2x1x198xf32, #tpu.memory_space<vmem>>, vector<2x1x1x1x168xf32>
    %216 = vector.shape_cast %215 : vector<2x1x1x1x168xf32> to vector<2x1x168xf32>
    %c0_538 = arith.constant 0 : index
    %c19_539 = arith.constant 19 : index
    %c0_540 = arith.constant 0 : index
    %217 = vector.load %arg5[%c0_538, %c19_539, %c0_540] : memref<2x25x168xf32, #tpu.memory_space<vmem>>, vector<2x1x168xf32>
    tpu.vector_store %arg5[%c0_538, %c19_539, %c0_540], %216 {strides = array<i32>} : memref<2x25x168xf32, #tpu.memory_space<vmem>>, vector<2x1x168xf32>,
    %c0_541 = arith.constant 0 : index
    %c1_542 = arith.constant 1 : index
    %c0_543 = arith.constant 0 : index
    %c0_544 = arith.constant 0 : index
    %c28_545 = arith.constant 28 : index
    %218 = vector.load %arg1[%c0_541, %c1_542, %c0_543, %c0_544, %c28_545] : memref<2x2x2x1x198xf32, #tpu.memory_space<vmem>>, vector<2x1x1x1x168xf32>
    %219 = vector.shape_cast %218 : vector<2x1x1x1x168xf32> to vector<2x1x168xf32>
    %c0_546 = arith.constant 0 : index
    %c20_547 = arith.constant 20 : index
    %c0_548 = arith.constant 0 : index
    %220 = vector.load %arg5[%c0_546, %c20_547, %c0_548] : memref<2x25x168xf32, #tpu.memory_space<vmem>>, vector<2x1x168xf32>
    tpu.vector_store %arg5[%c0_546, %c20_547, %c0_548], %219 {strides = array<i32>} : memref<2x25x168xf32, #tpu.memory_space<vmem>>, vector<2x1x168xf32>,
    %c0_549 = arith.constant 0 : index
    %c1_550 = arith.constant 1 : index
    %c1_551 = arith.constant 1 : index
    %c0_552 = arith.constant 0 : index
    %c28_553 = arith.constant 28 : index
    %221 = vector.load %arg1[%c0_549, %c1_550, %c1_551, %c0_552, %c28_553] : memref<2x2x2x1x198xf32, #tpu.memory_space<vmem>>, vector<2x1x1x1x168xf32>
    %222 = vector.shape_cast %221 : vector<2x1x1x1x168xf32> to vector<2x1x168xf32>
    %c0_554 = arith.constant 0 : index
    %c21_555 = arith.constant 21 : index
    %c0_556 = arith.constant 0 : index
    %223 = vector.load %arg5[%c0_554, %c21_555, %c0_556] : memref<2x25x168xf32, #tpu.memory_space<vmem>>, vector<2x1x168xf32>
    tpu.vector_store %arg5[%c0_554, %c21_555, %c0_556], %222 {strides = array<i32>} : memref<2x25x168xf32, #tpu.memory_space<vmem>>, vector<2x1x168xf32>,
    %c0_557 = arith.constant 0 : index
    %c1_558 = arith.constant 1 : index
    %c0_559 = arith.constant 0 : index
    %c0_560 = arith.constant 0 : index
    %c29_561 = arith.constant 29 : index
    %224 = vector.load %arg1[%c0_557, %c1_558, %c0_559, %c0_560, %c29_561] : memref<2x2x2x1x198xf32, #tpu.memory_space<vmem>>, vector<2x1x1x1x168xf32>
    %225 = vector.shape_cast %224 : vector<2x1x1x1x168xf32> to vector<2x1x168xf32>
    %c0_562 = arith.constant 0 : index
    %c22_563 = arith.constant 22 : index
    %c0_564 = arith.constant 0 : index
    %226 = vector.load %arg5[%c0_562, %c22_563, %c0_564] : memref<2x25x168xf32, #tpu.memory_space<vmem>>, vector<2x1x168xf32>
    tpu.vector_store %arg5[%c0_562, %c22_563, %c0_564], %225 {strides = array<i32>} : memref<2x25x168xf32, #tpu.memory_space<vmem>>, vector<2x1x168xf32>,
    %c0_565 = arith.constant 0 : index
    %c1_566 = arith.constant 1 : index
    %c1_567 = arith.constant 1 : index
    %c0_568 = arith.constant 0 : index
    %c29_569 = arith.constant 29 : index
    %227 = vector.load %arg1[%c0_565, %c1_566, %c1_567, %c0_568, %c29_569] : memref<2x2x2x1x198xf32, #tpu.memory_space<vmem>>, vector<2x1x1x1x168xf32>
    %228 = vector.shape_cast %227 : vector<2x1x1x1x168xf32> to vector<2x1x168xf32>
    %c0_570 = arith.constant 0 : index
    %c23_571 = arith.constant 23 : index
    %c0_572 = arith.constant 0 : index
    %229 = vector.load %arg5[%c0_570, %c23_571, %c0_572] : memref<2x25x168xf32, #tpu.memory_space<vmem>>, vector<2x1x168xf32>
    tpu.vector_store %arg5[%c0_570, %c23_571, %c0_572], %228 {strides = array<i32>} : memref<2x25x168xf32, #tpu.memory_space<vmem>>, vector<2x1x168xf32>,
    %c0_573 = arith.constant 0 : index
    %c1_574 = arith.constant 1 : index
    %c0_575 = arith.constant 0 : index
    %c0_576 = arith.constant 0 : index
    %c30_577 = arith.constant 30 : index
    %230 = vector.load %arg1[%c0_573, %c1_574, %c0_575, %c0_576, %c30_577] : memref<2x2x2x1x198xf32, #tpu.memory_space<vmem>>, vector<2x1x1x1x168xf32>
    %231 = vector.shape_cast %230 : vector<2x1x1x1x168xf32> to vector<2x1x168xf32>
    %c0_578 = arith.constant 0 : index
    %c24_579 = arith.constant 24 : index
    %c0_580 = arith.constant 0 : index
    %232 = vector.load %arg5[%c0_578, %c24_579, %c0_580] : memref<2x25x168xf32, #tpu.memory_space<vmem>>, vector<2x1x168xf32>
    tpu.vector_store %arg5[%c0_578, %c24_579, %c0_580], %231 {strides = array<i32>} : memref<2x25x168xf32, #tpu.memory_space<vmem>>, vector<2x1x168xf32>,
    %c0_581 = arith.constant 0 : index
    %c0_582 = arith.constant 0 : index
    %c0_583 = arith.constant 0 : index
    %233 = vector.load %arg5[%c0_581, %c0_582, %c0_583] : memref<2x25x168xf32, #tpu.memory_space<vmem>>, vector<2x25x168xf32>
    "tpu.trace_start"() <{level = 10 : i32, message = "bok,bkl->bol"}> : () -> ()
    %cst_584 = arith.constant dense<0.000000e+00> : vector<2x10x168xf32>
    %234 = tpu.matmul %2, %233, %cst_584 {dimension_numbers = #tpu.dot_dimension_numbers<[2], [1], [1], [2], [0, 0, 0, 1, 1, 2], [0], [0]>} : vector<2x10x25xf32>, vector<2x25x168xf32>, vector<2x10x168xf32> -> vector<2x10x168xf32>
    "tpu.trace_stop"() : () -> ()
    %235 = arith.maximumf %157, %234 : vector<2x10x168xf32>
    %c0_585 = arith.constant 0 : index
    %c1_586 = arith.constant 1 : index
    %c1_587 = arith.constant 1 : index
    %c0_588 = arith.constant 0 : index
    %c0_589 = arith.constant 0 : index
    %236 = vector.load %arg1[%c0_585, %c1_586, %c1_587, %c0_588, %c0_589] : memref<2x2x2x1x198xf32, #tpu.memory_space<vmem>>, vector<2x1x1x1x168xf32>
    %237 = vector.shape_cast %236 : vector<2x1x1x1x168xf32> to vector<2x1x168xf32>
    %c0_590 = arith.constant 0 : index
    %c0_591 = arith.constant 0 : index
    %c0_592 = arith.constant 0 : index
    %238 = vector.load %arg5[%c0_590, %c0_591, %c0_592] : memref<2x25x168xf32, #tpu.memory_space<vmem>>, vector<2x1x168xf32>
    tpu.vector_store %arg5[%c0_590, %c0_591, %c0_592], %237 {strides = array<i32>} : memref<2x25x168xf32, #tpu.memory_space<vmem>>, vector<2x1x168xf32>,
    %c0_593 = arith.constant 0 : index
    %c1_594 = arith.constant 1 : index
    %c0_595 = arith.constant 0 : index
    %c0_596 = arith.constant 0 : index
    %c1_597 = arith.constant 1 : index
    %239 = vector.load %arg1[%c0_593, %c1_594, %c0_595, %c0_596, %c1_597] : memref<2x2x2x1x198xf32, #tpu.memory_space<vmem>>, vector<2x1x1x1x168xf32>
    %240 = vector.shape_cast %239 : vector<2x1x1x1x168xf32> to vector<2x1x168xf32>
    %c0_598 = arith.constant 0 : index
    %c1_599 = arith.constant 1 : index
    %c0_600 = arith.constant 0 : index
    %241 = vector.load %arg5[%c0_598, %c1_599, %c0_600] : memref<2x25x168xf32, #tpu.memory_space<vmem>>, vector<2x1x168xf32>
    tpu.vector_store %arg5[%c0_598, %c1_599, %c0_600], %240 {strides = array<i32>} : memref<2x25x168xf32, #tpu.memory_space<vmem>>, vector<2x1x168xf32>,
    %c0_601 = arith.constant 0 : index
    %c1_602 = arith.constant 1 : index
    %c1_603 = arith.constant 1 : index
    %c0_604 = arith.constant 0 : index
    %c1_605 = arith.constant 1 : index
    %242 = vector.load %arg1[%c0_601, %c1_602, %c1_603, %c0_604, %c1_605] : memref<2x2x2x1x198xf32, #tpu.memory_space<vmem>>, vector<2x1x1x1x168xf32>
    %243 = vector.shape_cast %242 : vector<2x1x1x1x168xf32> to vector<2x1x168xf32>
    %c0_606 = arith.constant 0 : index
    %c2_607 = arith.constant 2 : index
    %c0_608 = arith.constant 0 : index
    %244 = vector.load %arg5[%c0_606, %c2_607, %c0_608] : memref<2x25x168xf32, #tpu.memory_space<vmem>>, vector<2x1x168xf32>
    tpu.vector_store %arg5[%c0_606, %c2_607, %c0_608], %243 {strides = array<i32>} : memref<2x25x168xf32, #tpu.memory_space<vmem>>, vector<2x1x168xf32>,
    %c0_609 = arith.constant 0 : index
    %c1_610 = arith.constant 1 : index
    %c0_611 = arith.constant 0 : index
    %c0_612 = arith.constant 0 : index
    %c2_613 = arith.constant 2 : index
    %245 = vector.load %arg1[%c0_609, %c1_610, %c0_611, %c0_612, %c2_613] : memref<2x2x2x1x198xf32, #tpu.memory_space<vmem>>, vector<2x1x1x1x168xf32>
    %246 = vector.shape_cast %245 : vector<2x1x1x1x168xf32> to vector<2x1x168xf32>
    %c0_614 = arith.constant 0 : index
    %c3_615 = arith.constant 3 : index
    %c0_616 = arith.constant 0 : index
    %247 = vector.load %arg5[%c0_614, %c3_615, %c0_616] : memref<2x25x168xf32, #tpu.memory_space<vmem>>, vector<2x1x168xf32>
    tpu.vector_store %arg5[%c0_614, %c3_615, %c0_616], %246 {strides = array<i32>} : memref<2x25x168xf32, #tpu.memory_space<vmem>>, vector<2x1x168xf32>,
    %c0_617 = arith.constant 0 : index
    %c1_618 = arith.constant 1 : index
    %c1_619 = arith.constant 1 : index
    %c0_620 = arith.constant 0 : index
    %c2_621 = arith.constant 2 : index
    %248 = vector.load %arg1[%c0_617, %c1_618, %c1_619, %c0_620, %c2_621] : memref<2x2x2x1x198xf32, #tpu.memory_space<vmem>>, vector<2x1x1x1x168xf32>
    %249 = vector.shape_cast %248 : vector<2x1x1x1x168xf32> to vector<2x1x168xf32>
    %c0_622 = arith.constant 0 : index
    %c4_623 = arith.constant 4 : index
    %c0_624 = arith.constant 0 : index
    %250 = vector.load %arg5[%c0_622, %c4_623, %c0_624] : memref<2x25x168xf32, #tpu.memory_space<vmem>>, vector<2x1x168xf32>
    tpu.vector_store %arg5[%c0_622, %c4_623, %c0_624], %249 {strides = array<i32>} : memref<2x25x168xf32, #tpu.memory_space<vmem>>, vector<2x1x168xf32>,
    %c0_625 = arith.constant 0 : index
    %c0_626 = arith.constant 0 : index
    %c1_627 = arith.constant 1 : index
    %c0_628 = arith.constant 0 : index
    %c14_629 = arith.constant 14 : index
    %251 = vector.load %arg1[%c0_625, %c0_626, %c1_627, %c0_628, %c14_629] : memref<2x2x2x1x198xf32, #tpu.memory_space<vmem>>, vector<2x1x1x1x168xf32>
    %252 = vector.shape_cast %251 : vector<2x1x1x1x168xf32> to vector<2x1x168xf32>
    %c0_630 = arith.constant 0 : index
    %c5_631 = arith.constant 5 : index
    %c0_632 = arith.constant 0 : index
    %253 = vector.load %arg5[%c0_630, %c5_631, %c0_632] : memref<2x25x168xf32, #tpu.memory_space<vmem>>, vector<2x1x168xf32>
    tpu.vector_store %arg5[%c0_630, %c5_631, %c0_632], %252 {strides = array<i32>} : memref<2x25x168xf32, #tpu.memory_space<vmem>>, vector<2x1x168xf32>,
    %c0_633 = arith.constant 0 : index
    %c0_634 = arith.constant 0 : index
    %c0_635 = arith.constant 0 : index
    %c0_636 = arith.constant 0 : index
    %c15_637 = arith.constant 15 : index
    %254 = vector.load %arg1[%c0_633, %c0_634, %c0_635, %c0_636, %c15_637] : memref<2x2x2x1x198xf32, #tpu.memory_space<vmem>>, vector<2x1x1x1x168xf32>
    %255 = vector.shape_cast %254 : vector<2x1x1x1x168xf32> to vector<2x1x168xf32>
    %c0_638 = arith.constant 0 : index
    %c6_639 = arith.constant 6 : index
    %c0_640 = arith.constant 0 : index
    %256 = vector.load %arg5[%c0_638, %c6_639, %c0_640] : memref<2x25x168xf32, #tpu.memory_space<vmem>>, vector<2x1x168xf32>
    tpu.vector_store %arg5[%c0_638, %c6_639, %c0_640], %255 {strides = array<i32>} : memref<2x25x168xf32, #tpu.memory_space<vmem>>, vector<2x1x168xf32>,
    %c0_641 = arith.constant 0 : index
    %c0_642 = arith.constant 0 : index
    %c1_643 = arith.constant 1 : index
    %c0_644 = arith.constant 0 : index
    %c15_645 = arith.constant 15 : index
    %257 = vector.load %arg1[%c0_641, %c0_642, %c1_643, %c0_644, %c15_645] : memref<2x2x2x1x198xf32, #tpu.memory_space<vmem>>, vector<2x1x1x1x168xf32>
    %258 = vector.shape_cast %257 : vector<2x1x1x1x168xf32> to vector<2x1x168xf32>
    %c0_646 = arith.constant 0 : index
    %c7_647 = arith.constant 7 : index
    %c0_648 = arith.constant 0 : index
    %259 = vector.load %arg5[%c0_646, %c7_647, %c0_648] : memref<2x25x168xf32, #tpu.memory_space<vmem>>, vector<2x1x168xf32>
    tpu.vector_store %arg5[%c0_646, %c7_647, %c0_648], %258 {strides = array<i32>} : memref<2x25x168xf32, #tpu.memory_space<vmem>>, vector<2x1x168xf32>,
    %c0_649 = arith.constant 0 : index
    %c0_650 = arith.constant 0 : index
    %c0_651 = arith.constant 0 : index
    %c0_652 = arith.constant 0 : index
    %c16_653 = arith.constant 16 : index
    %260 = vector.load %arg1[%c0_649, %c0_650, %c0_651, %c0_652, %c16_653] : memref<2x2x2x1x198xf32, #tpu.memory_space<vmem>>, vector<2x1x1x1x168xf32>
    %261 = vector.shape_cast %260 : vector<2x1x1x1x168xf32> to vector<2x1x168xf32>
    %c0_654 = arith.constant 0 : index
    %c8_655 = arith.constant 8 : index
    %c0_656 = arith.constant 0 : index
    %262 = vector.load %arg5[%c0_654, %c8_655, %c0_656] : memref<2x25x168xf32, #tpu.memory_space<vmem>>, vector<2x1x168xf32>
    tpu.vector_store %arg5[%c0_654, %c8_655, %c0_656], %261 {strides = array<i32>} : memref<2x25x168xf32, #tpu.memory_space<vmem>>, vector<2x1x168xf32>,
    %c0_657 = arith.constant 0 : index
    %c0_658 = arith.constant 0 : index
    %c1_659 = arith.constant 1 : index
    %c0_660 = arith.constant 0 : index
    %c16_661 = arith.constant 16 : index
    %263 = vector.load %arg1[%c0_657, %c0_658, %c1_659, %c0_660, %c16_661] : memref<2x2x2x1x198xf32, #tpu.memory_space<vmem>>, vector<2x1x1x1x168xf32>
    %264 = vector.shape_cast %263 : vector<2x1x1x1x168xf32> to vector<2x1x168xf32>
    %c0_662 = arith.constant 0 : index
    %c9_663 = arith.constant 9 : index
    %c0_664 = arith.constant 0 : index
    %265 = vector.load %arg5[%c0_662, %c9_663, %c0_664] : memref<2x25x168xf32, #tpu.memory_space<vmem>>, vector<2x1x168xf32>
    tpu.vector_store %arg5[%c0_662, %c9_663, %c0_664], %264 {strides = array<i32>} : memref<2x25x168xf32, #tpu.memory_space<vmem>>, vector<2x1x168xf32>,
    %c0_665 = arith.constant 0 : index
    %c1_666 = arith.constant 1 : index
    %c1_667 = arith.constant 1 : index
    %c0_668 = arith.constant 0 : index
    %c14_669 = arith.constant 14 : index
    %266 = vector.load %arg1[%c0_665, %c1_666, %c1_667, %c0_668, %c14_669] : memref<2x2x2x1x198xf32, #tpu.memory_space<vmem>>, vector<2x1x1x1x168xf32>
    %267 = vector.shape_cast %266 : vector<2x1x1x1x168xf32> to vector<2x1x168xf32>
    %c0_670 = arith.constant 0 : index
    %c10_671 = arith.constant 10 : index
    %c0_672 = arith.constant 0 : index
    %268 = vector.load %arg5[%c0_670, %c10_671, %c0_672] : memref<2x25x168xf32, #tpu.memory_space<vmem>>, vector<2x1x168xf32>
    tpu.vector_store %arg5[%c0_670, %c10_671, %c0_672], %267 {strides = array<i32>} : memref<2x25x168xf32, #tpu.memory_space<vmem>>, vector<2x1x168xf32>,
    %c0_673 = arith.constant 0 : index
    %c1_674 = arith.constant 1 : index
    %c0_675 = arith.constant 0 : index
    %c0_676 = arith.constant 0 : index
    %c15_677 = arith.constant 15 : index
    %269 = vector.load %arg1[%c0_673, %c1_674, %c0_675, %c0_676, %c15_677] : memref<2x2x2x1x198xf32, #tpu.memory_space<vmem>>, vector<2x1x1x1x168xf32>
    %270 = vector.shape_cast %269 : vector<2x1x1x1x168xf32> to vector<2x1x168xf32>
    %c0_678 = arith.constant 0 : index
    %c11_679 = arith.constant 11 : index
    %c0_680 = arith.constant 0 : index
    %271 = vector.load %arg5[%c0_678, %c11_679, %c0_680] : memref<2x25x168xf32, #tpu.memory_space<vmem>>, vector<2x1x168xf32>
    tpu.vector_store %arg5[%c0_678, %c11_679, %c0_680], %270 {strides = array<i32>} : memref<2x25x168xf32, #tpu.memory_space<vmem>>, vector<2x1x168xf32>,
    %c0_681 = arith.constant 0 : index
    %c1_682 = arith.constant 1 : index
    %c1_683 = arith.constant 1 : index
    %c0_684 = arith.constant 0 : index
    %c15_685 = arith.constant 15 : index
    %272 = vector.load %arg1[%c0_681, %c1_682, %c1_683, %c0_684, %c15_685] : memref<2x2x2x1x198xf32, #tpu.memory_space<vmem>>, vector<2x1x1x1x168xf32>
    %273 = vector.shape_cast %272 : vector<2x1x1x1x168xf32> to vector<2x1x168xf32>
    %c0_686 = arith.constant 0 : index
    %c12_687 = arith.constant 12 : index
    %c0_688 = arith.constant 0 : index
    %274 = vector.load %arg5[%c0_686, %c12_687, %c0_688] : memref<2x25x168xf32, #tpu.memory_space<vmem>>, vector<2x1x168xf32>
    tpu.vector_store %arg5[%c0_686, %c12_687, %c0_688], %273 {strides = array<i32>} : memref<2x25x168xf32, #tpu.memory_space<vmem>>, vector<2x1x168xf32>,
    %c0_689 = arith.constant 0 : index
    %c1_690 = arith.constant 1 : index
    %c0_691 = arith.constant 0 : index
    %c0_692 = arith.constant 0 : index
    %c16_693 = arith.constant 16 : index
    %275 = vector.load %arg1[%c0_689, %c1_690, %c0_691, %c0_692, %c16_693] : memref<2x2x2x1x198xf32, #tpu.memory_space<vmem>>, vector<2x1x1x1x168xf32>
    %276 = vector.shape_cast %275 : vector<2x1x1x1x168xf32> to vector<2x1x168xf32>
    %c0_694 = arith.constant 0 : index
    %c13_695 = arith.constant 13 : index
    %c0_696 = arith.constant 0 : index
    %277 = vector.load %arg5[%c0_694, %c13_695, %c0_696] : memref<2x25x168xf32, #tpu.memory_space<vmem>>, vector<2x1x168xf32>
    tpu.vector_store %arg5[%c0_694, %c13_695, %c0_696], %276 {strides = array<i32>} : memref<2x25x168xf32, #tpu.memory_space<vmem>>, vector<2x1x168xf32>,
    %c0_697 = arith.constant 0 : index
    %c1_698 = arith.constant 1 : index
    %c1_699 = arith.constant 1 : index
    %c0_700 = arith.constant 0 : index
    %c16_701 = arith.constant 16 : index
    %278 = vector.load %arg1[%c0_697, %c1_698, %c1_699, %c0_700, %c16_701] : memref<2x2x2x1x198xf32, #tpu.memory_space<vmem>>, vector<2x1x1x1x168xf32>
    %279 = vector.shape_cast %278 : vector<2x1x1x1x168xf32> to vector<2x1x168xf32>
    %c0_702 = arith.constant 0 : index
    %c14_703 = arith.constant 14 : index
    %c0_704 = arith.constant 0 : index
    %280 = vector.load %arg5[%c0_702, %c14_703, %c0_704] : memref<2x25x168xf32, #tpu.memory_space<vmem>>, vector<2x1x168xf32>
    tpu.vector_store %arg5[%c0_702, %c14_703, %c0_704], %279 {strides = array<i32>} : memref<2x25x168xf32, #tpu.memory_space<vmem>>, vector<2x1x168xf32>,
    %c0_705 = arith.constant 0 : index
    %c0_706 = arith.constant 0 : index
    %c1_707 = arith.constant 1 : index
    %c0_708 = arith.constant 0 : index
    %c28_709 = arith.constant 28 : index
    %281 = vector.load %arg1[%c0_705, %c0_706, %c1_707, %c0_708, %c28_709] : memref<2x2x2x1x198xf32, #tpu.memory_space<vmem>>, vector<2x1x1x1x168xf32>
    %282 = vector.shape_cast %281 : vector<2x1x1x1x168xf32> to vector<2x1x168xf32>
    %c0_710 = arith.constant 0 : index
    %c15_711 = arith.constant 15 : index
    %c0_712 = arith.constant 0 : index
    %283 = vector.load %arg5[%c0_710, %c15_711, %c0_712] : memref<2x25x168xf32, #tpu.memory_space<vmem>>, vector<2x1x168xf32>
    tpu.vector_store %arg5[%c0_710, %c15_711, %c0_712], %282 {strides = array<i32>} : memref<2x25x168xf32, #tpu.memory_space<vmem>>, vector<2x1x168xf32>,
    %c0_713 = arith.constant 0 : index
    %c0_714 = arith.constant 0 : index
    %c0_715 = arith.constant 0 : index
    %c0_716 = arith.constant 0 : index
    %c29_717 = arith.constant 29 : index
    %284 = vector.load %arg1[%c0_713, %c0_714, %c0_715, %c0_716, %c29_717] : memref<2x2x2x1x198xf32, #tpu.memory_space<vmem>>, vector<2x1x1x1x168xf32>
    %285 = vector.shape_cast %284 : vector<2x1x1x1x168xf32> to vector<2x1x168xf32>
    %c0_718 = arith.constant 0 : index
    %c16_719 = arith.constant 16 : index
    %c0_720 = arith.constant 0 : index
    %286 = vector.load %arg5[%c0_718, %c16_719, %c0_720] : memref<2x25x168xf32, #tpu.memory_space<vmem>>, vector<2x1x168xf32>
    tpu.vector_store %arg5[%c0_718, %c16_719, %c0_720], %285 {strides = array<i32>} : memref<2x25x168xf32, #tpu.memory_space<vmem>>, vector<2x1x168xf32>,
    %c0_721 = arith.constant 0 : index
    %c0_722 = arith.constant 0 : index
    %c1_723 = arith.constant 1 : index
    %c0_724 = arith.constant 0 : index
    %c29_725 = arith.constant 29 : index
    %287 = vector.load %arg1[%c0_721, %c0_722, %c1_723, %c0_724, %c29_725] : memref<2x2x2x1x198xf32, #tpu.memory_space<vmem>>, vector<2x1x1x1x168xf32>
    %288 = vector.shape_cast %287 : vector<2x1x1x1x168xf32> to vector<2x1x168xf32>
    %c0_726 = arith.constant 0 : index
    %c17_727 = arith.constant 17 : index
    %c0_728 = arith.constant 0 : index
    %289 = vector.load %arg5[%c0_726, %c17_727, %c0_728] : memref<2x25x168xf32, #tpu.memory_space<vmem>>, vector<2x1x168xf32>
    tpu.vector_store %arg5[%c0_726, %c17_727, %c0_728], %288 {strides = array<i32>} : memref<2x25x168xf32, #tpu.memory_space<vmem>>, vector<2x1x168xf32>,
    %c0_729 = arith.constant 0 : index
    %c0_730 = arith.constant 0 : index
    %c0_731 = arith.constant 0 : index
    %c0_732 = arith.constant 0 : index
    %c30_733 = arith.constant 30 : index
    %290 = vector.load %arg1[%c0_729, %c0_730, %c0_731, %c0_732, %c30_733] : memref<2x2x2x1x198xf32, #tpu.memory_space<vmem>>, vector<2x1x1x1x168xf32>
    %291 = vector.shape_cast %290 : vector<2x1x1x1x168xf32> to vector<2x1x168xf32>
    %c0_734 = arith.constant 0 : index
    %c18_735 = arith.constant 18 : index
    %c0_736 = arith.constant 0 : index
    %292 = vector.load %arg5[%c0_734, %c18_735, %c0_736] : memref<2x25x168xf32, #tpu.memory_space<vmem>>, vector<2x1x168xf32>
    tpu.vector_store %arg5[%c0_734, %c18_735, %c0_736], %291 {strides = array<i32>} : memref<2x25x168xf32, #tpu.memory_space<vmem>>, vector<2x1x168xf32>,
    %c0_737 = arith.constant 0 : index
    %c0_738 = arith.constant 0 : index
    %c1_739 = arith.constant 1 : index
    %c0_740 = arith.constant 0 : index
    %c30_741 = arith.constant 30 : index
    %293 = vector.load %arg1[%c0_737, %c0_738, %c1_739, %c0_740, %c30_741] : memref<2x2x2x1x198xf32, #tpu.memory_space<vmem>>, vector<2x1x1x1x168xf32>
    %294 = vector.shape_cast %293 : vector<2x1x1x1x168xf32> to vector<2x1x168xf32>
    %c0_742 = arith.constant 0 : index
    %c19_743 = arith.constant 19 : index
    %c0_744 = arith.constant 0 : index
    %295 = vector.load %arg5[%c0_742, %c19_743, %c0_744] : memref<2x25x168xf32, #tpu.memory_space<vmem>>, vector<2x1x168xf32>
    tpu.vector_store %arg5[%c0_742, %c19_743, %c0_744], %294 {strides = array<i32>} : memref<2x25x168xf32, #tpu.memory_space<vmem>>, vector<2x1x168xf32>,
    %c0_745 = arith.constant 0 : index
    %c1_746 = arith.constant 1 : index
    %c1_747 = arith.constant 1 : index
    %c0_748 = arith.constant 0 : index
    %c28_749 = arith.constant 28 : index
    %296 = vector.load %arg1[%c0_745, %c1_746, %c1_747, %c0_748, %c28_749] : memref<2x2x2x1x198xf32, #tpu.memory_space<vmem>>, vector<2x1x1x1x168xf32>
    %297 = vector.shape_cast %296 : vector<2x1x1x1x168xf32> to vector<2x1x168xf32>
    %c0_750 = arith.constant 0 : index
    %c20_751 = arith.constant 20 : index
    %c0_752 = arith.constant 0 : index
    %298 = vector.load %arg5[%c0_750, %c20_751, %c0_752] : memref<2x25x168xf32, #tpu.memory_space<vmem>>, vector<2x1x168xf32>
    tpu.vector_store %arg5[%c0_750, %c20_751, %c0_752], %297 {strides = array<i32>} : memref<2x25x168xf32, #tpu.memory_space<vmem>>, vector<2x1x168xf32>,
    %c0_753 = arith.constant 0 : index
    %c1_754 = arith.constant 1 : index
    %c0_755 = arith.constant 0 : index
    %c0_756 = arith.constant 0 : index
    %c29_757 = arith.constant 29 : index
    %299 = vector.load %arg1[%c0_753, %c1_754, %c0_755, %c0_756, %c29_757] : memref<2x2x2x1x198xf32, #tpu.memory_space<vmem>>, vector<2x1x1x1x168xf32>
    %300 = vector.shape_cast %299 : vector<2x1x1x1x168xf32> to vector<2x1x168xf32>
    %c0_758 = arith.constant 0 : index
    %c21_759 = arith.constant 21 : index
    %c0_760 = arith.constant 0 : index
    %301 = vector.load %arg5[%c0_758, %c21_759, %c0_760] : memref<2x25x168xf32, #tpu.memory_space<vmem>>, vector<2x1x168xf32>
    tpu.vector_store %arg5[%c0_758, %c21_759, %c0_760], %300 {strides = array<i32>} : memref<2x25x168xf32, #tpu.memory_space<vmem>>, vector<2x1x168xf32>,
    %c0_761 = arith.constant 0 : index
    %c1_762 = arith.constant 1 : index
    %c1_763 = arith.constant 1 : index
    %c0_764 = arith.constant 0 : index
    %c29_765 = arith.constant 29 : index
    %302 = vector.load %arg1[%c0_761, %c1_762, %c1_763, %c0_764, %c29_765] : memref<2x2x2x1x198xf32, #tpu.memory_space<vmem>>, vector<2x1x1x1x168xf32>
    %303 = vector.shape_cast %302 : vector<2x1x1x1x168xf32> to vector<2x1x168xf32>
    %c0_766 = arith.constant 0 : index
    %c22_767 = arith.constant 22 : index
    %c0_768 = arith.constant 0 : index
    %304 = vector.load %arg5[%c0_766, %c22_767, %c0_768] : memref<2x25x168xf32, #tpu.memory_space<vmem>>, vector<2x1x168xf32>
    tpu.vector_store %arg5[%c0_766, %c22_767, %c0_768], %303 {strides = array<i32>} : memref<2x25x168xf32, #tpu.memory_space<vmem>>, vector<2x1x168xf32>,
    %c0_769 = arith.constant 0 : index
    %c1_770 = arith.constant 1 : index
    %c0_771 = arith.constant 0 : index
    %c0_772 = arith.constant 0 : index
    %c30_773 = arith.constant 30 : index
    %305 = vector.load %arg1[%c0_769, %c1_770, %c0_771, %c0_772, %c30_773] : memref<2x2x2x1x198xf32, #tpu.memory_space<vmem>>, vector<2x1x1x1x168xf32>
    %306 = vector.shape_cast %305 : vector<2x1x1x1x168xf32> to vector<2x1x168xf32>
    %c0_774 = arith.constant 0 : index
    %c23_775 = arith.constant 23 : index
    %c0_776 = arith.constant 0 : index
    %307 = vector.load %arg5[%c0_774, %c23_775, %c0_776] : memref<2x25x168xf32, #tpu.memory_space<vmem>>, vector<2x1x168xf32>
    tpu.vector_store %arg5[%c0_774, %c23_775, %c0_776], %306 {strides = array<i32>} : memref<2x25x168xf32, #tpu.memory_space<vmem>>, vector<2x1x168xf32>,
    %c0_777 = arith.constant 0 : index
    %c1_778 = arith.constant 1 : index
    %c1_779 = arith.constant 1 : index
    %c0_780 = arith.constant 0 : index
    %c30_781 = arith.constant 30 : index
    %308 = vector.load %arg1[%c0_777, %c1_778, %c1_779, %c0_780, %c30_781] : memref<2x2x2x1x198xf32, #tpu.memory_space<vmem>>, vector<2x1x1x1x168xf32>
    %309 = vector.shape_cast %308 : vector<2x1x1x1x168xf32> to vector<2x1x168xf32>
    %c0_782 = arith.constant 0 : index
    %c24_783 = arith.constant 24 : index
    %c0_784 = arith.constant 0 : index
    %310 = vector.load %arg5[%c0_782, %c24_783, %c0_784] : memref<2x25x168xf32, #tpu.memory_space<vmem>>, vector<2x1x168xf32>
    tpu.vector_store %arg5[%c0_782, %c24_783, %c0_784], %309 {strides = array<i32>} : memref<2x25x168xf32, #tpu.memory_space<vmem>>, vector<2x1x168xf32>,
    %c0_785 = arith.constant 0 : index
    %c0_786 = arith.constant 0 : index
    %c0_787 = arith.constant 0 : index
    %311 = vector.load %arg5[%c0_785, %c0_786, %c0_787] : memref<2x25x168xf32, #tpu.memory_space<vmem>>, vector<2x25x168xf32>
    "tpu.trace_start"() <{level = 10 : i32, message = "bok,bkl->bol"}> : () -> ()
    %cst_788 = arith.constant dense<0.000000e+00> : vector<2x10x168xf32>
    %312 = tpu.matmul %2, %311, %cst_788 {dimension_numbers = #tpu.dot_dimension_numbers<[2], [1], [1], [2], [0, 0, 0, 1, 1, 2], [0], [0]>} : vector<2x10x25xf32>, vector<2x25x168xf32>, vector<2x10x168xf32> -> vector<2x10x168xf32>
    "tpu.trace_stop"() : () -> ()
    %313 = arith.maximumf %235, %312 : vector<2x10x168xf32>
    %c0_789 = arith.constant 0 : index
    %c0_790 = arith.constant 0 : index
    %c0_791 = arith.constant 0 : index
    %314 = vector.load %arg3[%c0_789, %c0_790, %c0_791] : memref<1x10x1xf32, #tpu.memory_space<vmem>>, vector<1x10x1xf32>
    %315 = vector.broadcast %314 : vector<1x10x1xf32> to vector<2x10x168xf32>
    %316 = arith.addf %313, %315 : vector<2x10x168xf32>
    %cst_792 = arith.constant 0.000000e+00 : f32
    %317 = vector.broadcast %cst_792 : f32 to vector<2x10x168xf32>
    %318 = arith.maximumf %316, %317 : vector<2x10x168xf32>
    %c0_793 = arith.constant 0 : index
    %c0_794 = arith.constant 0 : index
    %c0_795 = arith.constant 0 : index
    %319 = vector.load %arg4[%c0_793, %c0_794, %c0_795] : memref<2x10x168xf32, #tpu.memory_space<vmem>>, vector<2x10x168xf32>
    tpu.vector_store %arg4[%c0_793, %c0_794, %c0_795], %318 {strides = array<i32>} : memref<2x10x168xf32, #tpu.memory_space<vmem>>, vector<2x10x168xf32>,
    return
  }
  func.func @transform_0(%arg0: i32) -> (i32, i32, i32, i32, i32) {
    %c0_i32 = arith.constant 0 : i32
    %c0_i32_0 = arith.constant 0 : i32
    %c0_i32_1 = arith.constant 0 : i32
    %c0_i32_2 = arith.constant 0 : i32
    %c0_i32_3 = arith.constant 0 : i32
    return %arg0, %c0_i32, %c0_i32_0, %c0_i32_1, %c0_i32_2 : i32, i32, i32, i32, i32
  }
  func.func @transform_1(%arg0: i32) -> (i32, i32) {
    %c0_i32 = arith.constant 0 : i32
    %c0_i32_0 = arith.constant 0 : i32
    %c0_i32_1 = arith.constant 0 : i32
    return %c0_i32, %c0_i32_0 : i32, i32
  }
  func.func @transform_2(%arg0: i32) -> (i32, i32, i32) {
    %c0_i32 = arith.constant 0 : i32
    %c0_i32_0 = arith.constant 0 : i32
    %c0_i32_1 = arith.constant 0 : i32
    %c0_i32_2 = arith.constant 0 : i32
    return %c0_i32, %c0_i32_0, %c0_i32_1 : i32, i32, i32
  }
  func.func @transform_3(%arg0: i32) -> (i32, i32, i32) {
    %c0_i32 = arith.constant 0 : i32
    %c0_i32_0 = arith.constant 0 : i32
    %c0_i32_1 = arith.constant 0 : i32
    return %arg0, %c0_i32, %c0_i32_0 : i32, i32, i32
  }
}

module attributes {stable_mosaic.version = 11 : i64} {
  func.func @_conv_pool_relu_kernel(%arg0: i32, %arg1: memref<2x2x2x10x38xf32, #tpu.memory_space<vmem>>, %arg2: memref<20x250xf32, #tpu.memory_space<vmem>>, %arg3: memref<1x20x1xf32, #tpu.memory_space<vmem>>, %arg4: memref<2x20x24xf32, #tpu.memory_space<vmem>>, %arg5: memref<2x250x24xf32, #tpu.memory_space<vmem>>) attributes {dimension_semantics = [#tpu.dimension_semantics<parallel>], iteration_bounds = array<i64: 1>, scalar_prefetch = 0 : i64, scratch_operands = 1 : i64, tpu.core_type = #tpu.core_type<tc>, window_params = [{transform_indices = @transform_0, window_bounds = array<i64: 2, 2, 2, 10, 38>}, {pipeline_mode = #tpu.pipeline_mode<synchronous>, transform_indices = @transform_1, window_bounds = array<i64: 20, 250>}, {pipeline_mode = #tpu.pipeline_mode<synchronous>, transform_indices = @transform_2, window_bounds = array<i64: 1, 20, 1>}, {transform_indices = @transform_3, window_bounds = array<i64: 2, 20, 24>}]} {
    %c0 = arith.constant 0 : index
    %c0_0 = arith.constant 0 : index
    %0 = vector.load %arg2[%c0, %c0_0] : memref<20x250xf32, #tpu.memory_space<vmem>>, vector<20x250xf32>
    %1 = vector.shape_cast %0 : vector<20x250xf32> to vector<1x20x250xf32>
    %2 = vector.broadcast %1 : vector<1x20x250xf32> to vector<2x20x250xf32>
    %c0_1 = arith.constant 0 : index
    %c0_2 = arith.constant 0 : index
    %c0_3 = arith.constant 0 : index
    %c0_4 = arith.constant 0 : index
    %c0_5 = arith.constant 0 : index
    %3 = vector.load %arg1[%c0_1, %c0_2, %c0_3, %c0_4, %c0_5] : memref<2x2x2x10x38xf32, #tpu.memory_space<vmem>>, vector<2x1x1x10x24xf32>
    %4 = vector.shape_cast %3 : vector<2x1x1x10x24xf32> to vector<2x10x24xf32>
    %c0_6 = arith.constant 0 : index
    %c0_7 = arith.constant 0 : index
    %c0_8 = arith.constant 0 : index
    %5 = vector.load %arg5[%c0_6, %c0_7, %c0_8] : memref<2x250x24xf32, #tpu.memory_space<vmem>>, vector<2x10x24xf32>
    tpu.vector_store %arg5[%c0_6, %c0_7, %c0_8], %4 {strides = array<i32>} : memref<2x250x24xf32, #tpu.memory_space<vmem>>, vector<2x10x24xf32>,
    %c0_9 = arith.constant 0 : index
    %c0_10 = arith.constant 0 : index
    %c1 = arith.constant 1 : index
    %c0_11 = arith.constant 0 : index
    %c0_12 = arith.constant 0 : index
    %6 = vector.load %arg1[%c0_9, %c0_10, %c1, %c0_11, %c0_12] : memref<2x2x2x10x38xf32, #tpu.memory_space<vmem>>, vector<2x1x1x10x24xf32>
    %7 = vector.shape_cast %6 : vector<2x1x1x10x24xf32> to vector<2x10x24xf32>
    %c0_13 = arith.constant 0 : index
    %c10 = arith.constant 10 : index
    %c0_14 = arith.constant 0 : index
    %8 = vector.load %arg5[%c0_13, %c10, %c0_14] : memref<2x250x24xf32, #tpu.memory_space<vmem>>, vector<2x10x24xf32>
    tpu.vector_store %arg5[%c0_13, %c10, %c0_14], %7 {strides = array<i32>} : memref<2x250x24xf32, #tpu.memory_space<vmem>>, vector<2x10x24xf32>,
    %c0_15 = arith.constant 0 : index
    %c0_16 = arith.constant 0 : index
    %c0_17 = arith.constant 0 : index
    %c0_18 = arith.constant 0 : index
    %c1_19 = arith.constant 1 : index
    %9 = vector.load %arg1[%c0_15, %c0_16, %c0_17, %c0_18, %c1_19] : memref<2x2x2x10x38xf32, #tpu.memory_space<vmem>>, vector<2x1x1x10x24xf32>
    %10 = vector.shape_cast %9 : vector<2x1x1x10x24xf32> to vector<2x10x24xf32>
    %c0_20 = arith.constant 0 : index
    %c20 = arith.constant 20 : index
    %c0_21 = arith.constant 0 : index
    %11 = vector.load %arg5[%c0_20, %c20, %c0_21] : memref<2x250x24xf32, #tpu.memory_space<vmem>>, vector<2x10x24xf32>
    tpu.vector_store %arg5[%c0_20, %c20, %c0_21], %10 {strides = array<i32>} : memref<2x250x24xf32, #tpu.memory_space<vmem>>, vector<2x10x24xf32>,
    %c0_22 = arith.constant 0 : index
    %c0_23 = arith.constant 0 : index
    %c1_24 = arith.constant 1 : index
    %c0_25 = arith.constant 0 : index
    %c1_26 = arith.constant 1 : index
    %12 = vector.load %arg1[%c0_22, %c0_23, %c1_24, %c0_25, %c1_26] : memref<2x2x2x10x38xf32, #tpu.memory_space<vmem>>, vector<2x1x1x10x24xf32>
    %13 = vector.shape_cast %12 : vector<2x1x1x10x24xf32> to vector<2x10x24xf32>
    %c0_27 = arith.constant 0 : index
    %c30 = arith.constant 30 : index
    %c0_28 = arith.constant 0 : index
    %14 = vector.load %arg5[%c0_27, %c30, %c0_28] : memref<2x250x24xf32, #tpu.memory_space<vmem>>, vector<2x10x24xf32>
    tpu.vector_store %arg5[%c0_27, %c30, %c0_28], %13 {strides = array<i32>} : memref<2x250x24xf32, #tpu.memory_space<vmem>>, vector<2x10x24xf32>,
    %c0_29 = arith.constant 0 : index
    %c0_30 = arith.constant 0 : index
    %c0_31 = arith.constant 0 : index
    %c0_32 = arith.constant 0 : index
    %c2 = arith.constant 2 : index
    %15 = vector.load %arg1[%c0_29, %c0_30, %c0_31, %c0_32, %c2] : memref<2x2x2x10x38xf32, #tpu.memory_space<vmem>>, vector<2x1x1x10x24xf32>
    %16 = vector.shape_cast %15 : vector<2x1x1x10x24xf32> to vector<2x10x24xf32>
    %c0_33 = arith.constant 0 : index
    %c40 = arith.constant 40 : index
    %c0_34 = arith.constant 0 : index
    %17 = vector.load %arg5[%c0_33, %c40, %c0_34] : memref<2x250x24xf32, #tpu.memory_space<vmem>>, vector<2x10x24xf32>
    tpu.vector_store %arg5[%c0_33, %c40, %c0_34], %16 {strides = array<i32>} : memref<2x250x24xf32, #tpu.memory_space<vmem>>, vector<2x10x24xf32>,
    %c0_35 = arith.constant 0 : index
    %c1_36 = arith.constant 1 : index
    %c0_37 = arith.constant 0 : index
    %c0_38 = arith.constant 0 : index
    %c0_39 = arith.constant 0 : index
    %18 = vector.load %arg1[%c0_35, %c1_36, %c0_37, %c0_38, %c0_39] : memref<2x2x2x10x38xf32, #tpu.memory_space<vmem>>, vector<2x1x1x10x24xf32>
    %19 = vector.shape_cast %18 : vector<2x1x1x10x24xf32> to vector<2x10x24xf32>
    %c0_40 = arith.constant 0 : index
    %c50 = arith.constant 50 : index
    %c0_41 = arith.constant 0 : index
    %20 = vector.load %arg5[%c0_40, %c50, %c0_41] : memref<2x250x24xf32, #tpu.memory_space<vmem>>, vector<2x10x24xf32>
    tpu.vector_store %arg5[%c0_40, %c50, %c0_41], %19 {strides = array<i32>} : memref<2x250x24xf32, #tpu.memory_space<vmem>>, vector<2x10x24xf32>,
    %c0_42 = arith.constant 0 : index
    %c1_43 = arith.constant 1 : index
    %c1_44 = arith.constant 1 : index
    %c0_45 = arith.constant 0 : index
    %c0_46 = arith.constant 0 : index
    %21 = vector.load %arg1[%c0_42, %c1_43, %c1_44, %c0_45, %c0_46] : memref<2x2x2x10x38xf32, #tpu.memory_space<vmem>>, vector<2x1x1x10x24xf32>
    %22 = vector.shape_cast %21 : vector<2x1x1x10x24xf32> to vector<2x10x24xf32>
    %c0_47 = arith.constant 0 : index
    %c60 = arith.constant 60 : index
    %c0_48 = arith.constant 0 : index
    %23 = vector.load %arg5[%c0_47, %c60, %c0_48] : memref<2x250x24xf32, #tpu.memory_space<vmem>>, vector<2x10x24xf32>
    tpu.vector_store %arg5[%c0_47, %c60, %c0_48], %22 {strides = array<i32>} : memref<2x250x24xf32, #tpu.memory_space<vmem>>, vector<2x10x24xf32>,
    %c0_49 = arith.constant 0 : index
    %c1_50 = arith.constant 1 : index
    %c0_51 = arith.constant 0 : index
    %c0_52 = arith.constant 0 : index
    %c1_53 = arith.constant 1 : index
    %24 = vector.load %arg1[%c0_49, %c1_50, %c0_51, %c0_52, %c1_53] : memref<2x2x2x10x38xf32, #tpu.memory_space<vmem>>, vector<2x1x1x10x24xf32>
    %25 = vector.shape_cast %24 : vector<2x1x1x10x24xf32> to vector<2x10x24xf32>
    %c0_54 = arith.constant 0 : index
    %c70 = arith.constant 70 : index
    %c0_55 = arith.constant 0 : index
    %26 = vector.load %arg5[%c0_54, %c70, %c0_55] : memref<2x250x24xf32, #tpu.memory_space<vmem>>, vector<2x10x24xf32>
    tpu.vector_store %arg5[%c0_54, %c70, %c0_55], %25 {strides = array<i32>} : memref<2x250x24xf32, #tpu.memory_space<vmem>>, vector<2x10x24xf32>,
    %c0_56 = arith.constant 0 : index
    %c1_57 = arith.constant 1 : index
    %c1_58 = arith.constant 1 : index
    %c0_59 = arith.constant 0 : index
    %c1_60 = arith.constant 1 : index
    %27 = vector.load %arg1[%c0_56, %c1_57, %c1_58, %c0_59, %c1_60] : memref<2x2x2x10x38xf32, #tpu.memory_space<vmem>>, vector<2x1x1x10x24xf32>
    %28 = vector.shape_cast %27 : vector<2x1x1x10x24xf32> to vector<2x10x24xf32>
    %c0_61 = arith.constant 0 : index
    %c80 = arith.constant 80 : index
    %c0_62 = arith.constant 0 : index
    %29 = vector.load %arg5[%c0_61, %c80, %c0_62] : memref<2x250x24xf32, #tpu.memory_space<vmem>>, vector<2x10x24xf32>
    tpu.vector_store %arg5[%c0_61, %c80, %c0_62], %28 {strides = array<i32>} : memref<2x250x24xf32, #tpu.memory_space<vmem>>, vector<2x10x24xf32>,
    %c0_63 = arith.constant 0 : index
    %c1_64 = arith.constant 1 : index
    %c0_65 = arith.constant 0 : index
    %c0_66 = arith.constant 0 : index
    %c2_67 = arith.constant 2 : index
    %30 = vector.load %arg1[%c0_63, %c1_64, %c0_65, %c0_66, %c2_67] : memref<2x2x2x10x38xf32, #tpu.memory_space<vmem>>, vector<2x1x1x10x24xf32>
    %31 = vector.shape_cast %30 : vector<2x1x1x10x24xf32> to vector<2x10x24xf32>
    %c0_68 = arith.constant 0 : index
    %c90 = arith.constant 90 : index
    %c0_69 = arith.constant 0 : index
    %32 = vector.load %arg5[%c0_68, %c90, %c0_69] : memref<2x250x24xf32, #tpu.memory_space<vmem>>, vector<2x10x24xf32>
    tpu.vector_store %arg5[%c0_68, %c90, %c0_69], %31 {strides = array<i32>} : memref<2x250x24xf32, #tpu.memory_space<vmem>>, vector<2x10x24xf32>,
    %c0_70 = arith.constant 0 : index
    %c0_71 = arith.constant 0 : index
    %c0_72 = arith.constant 0 : index
    %c0_73 = arith.constant 0 : index
    %c6 = arith.constant 6 : index
    %33 = vector.load %arg1[%c0_70, %c0_71, %c0_72, %c0_73, %c6] : memref<2x2x2x10x38xf32, #tpu.memory_space<vmem>>, vector<2x1x1x10x24xf32>
    %34 = vector.shape_cast %33 : vector<2x1x1x10x24xf32> to vector<2x10x24xf32>
    %c0_74 = arith.constant 0 : index
    %c100 = arith.constant 100 : index
    %c0_75 = arith.constant 0 : index
    %35 = vector.load %arg5[%c0_74, %c100, %c0_75] : memref<2x250x24xf32, #tpu.memory_space<vmem>>, vector<2x10x24xf32>
    tpu.vector_store %arg5[%c0_74, %c100, %c0_75], %34 {strides = array<i32>} : memref<2x250x24xf32, #tpu.memory_space<vmem>>, vector<2x10x24xf32>,
    %c0_76 = arith.constant 0 : index
    %c0_77 = arith.constant 0 : index
    %c1_78 = arith.constant 1 : index
    %c0_79 = arith.constant 0 : index
    %c6_80 = arith.constant 6 : index
    %36 = vector.load %arg1[%c0_76, %c0_77, %c1_78, %c0_79, %c6_80] : memref<2x2x2x10x38xf32, #tpu.memory_space<vmem>>, vector<2x1x1x10x24xf32>
    %37 = vector.shape_cast %36 : vector<2x1x1x10x24xf32> to vector<2x10x24xf32>
    %c0_81 = arith.constant 0 : index
    %c110 = arith.constant 110 : index
    %c0_82 = arith.constant 0 : index
    %38 = vector.load %arg5[%c0_81, %c110, %c0_82] : memref<2x250x24xf32, #tpu.memory_space<vmem>>, vector<2x10x24xf32>
    tpu.vector_store %arg5[%c0_81, %c110, %c0_82], %37 {strides = array<i32>} : memref<2x250x24xf32, #tpu.memory_space<vmem>>, vector<2x10x24xf32>,
    %c0_83 = arith.constant 0 : index
    %c0_84 = arith.constant 0 : index
    %c0_85 = arith.constant 0 : index
    %c0_86 = arith.constant 0 : index
    %c7 = arith.constant 7 : index
    %39 = vector.load %arg1[%c0_83, %c0_84, %c0_85, %c0_86, %c7] : memref<2x2x2x10x38xf32, #tpu.memory_space<vmem>>, vector<2x1x1x10x24xf32>
    %40 = vector.shape_cast %39 : vector<2x1x1x10x24xf32> to vector<2x10x24xf32>
    %c0_87 = arith.constant 0 : index
    %c120 = arith.constant 120 : index
    %c0_88 = arith.constant 0 : index
    %41 = vector.load %arg5[%c0_87, %c120, %c0_88] : memref<2x250x24xf32, #tpu.memory_space<vmem>>, vector<2x10x24xf32>
    tpu.vector_store %arg5[%c0_87, %c120, %c0_88], %40 {strides = array<i32>} : memref<2x250x24xf32, #tpu.memory_space<vmem>>, vector<2x10x24xf32>,
    %c0_89 = arith.constant 0 : index
    %c0_90 = arith.constant 0 : index
    %c1_91 = arith.constant 1 : index
    %c0_92 = arith.constant 0 : index
    %c7_93 = arith.constant 7 : index
    %42 = vector.load %arg1[%c0_89, %c0_90, %c1_91, %c0_92, %c7_93] : memref<2x2x2x10x38xf32, #tpu.memory_space<vmem>>, vector<2x1x1x10x24xf32>
    %43 = vector.shape_cast %42 : vector<2x1x1x10x24xf32> to vector<2x10x24xf32>
    %c0_94 = arith.constant 0 : index
    %c130 = arith.constant 130 : index
    %c0_95 = arith.constant 0 : index
    %44 = vector.load %arg5[%c0_94, %c130, %c0_95] : memref<2x250x24xf32, #tpu.memory_space<vmem>>, vector<2x10x24xf32>
    tpu.vector_store %arg5[%c0_94, %c130, %c0_95], %43 {strides = array<i32>} : memref<2x250x24xf32, #tpu.memory_space<vmem>>, vector<2x10x24xf32>,
    %c0_96 = arith.constant 0 : index
    %c0_97 = arith.constant 0 : index
    %c0_98 = arith.constant 0 : index
    %c0_99 = arith.constant 0 : index
    %c8 = arith.constant 8 : index
    %45 = vector.load %arg1[%c0_96, %c0_97, %c0_98, %c0_99, %c8] : memref<2x2x2x10x38xf32, #tpu.memory_space<vmem>>, vector<2x1x1x10x24xf32>
    %46 = vector.shape_cast %45 : vector<2x1x1x10x24xf32> to vector<2x10x24xf32>
    %c0_100 = arith.constant 0 : index
    %c140 = arith.constant 140 : index
    %c0_101 = arith.constant 0 : index
    %47 = vector.load %arg5[%c0_100, %c140, %c0_101] : memref<2x250x24xf32, #tpu.memory_space<vmem>>, vector<2x10x24xf32>
    tpu.vector_store %arg5[%c0_100, %c140, %c0_101], %46 {strides = array<i32>} : memref<2x250x24xf32, #tpu.memory_space<vmem>>, vector<2x10x24xf32>,
    %c0_102 = arith.constant 0 : index
    %c1_103 = arith.constant 1 : index
    %c0_104 = arith.constant 0 : index
    %c0_105 = arith.constant 0 : index
    %c6_106 = arith.constant 6 : index
    %48 = vector.load %arg1[%c0_102, %c1_103, %c0_104, %c0_105, %c6_106] : memref<2x2x2x10x38xf32, #tpu.memory_space<vmem>>, vector<2x1x1x10x24xf32>
    %49 = vector.shape_cast %48 : vector<2x1x1x10x24xf32> to vector<2x10x24xf32>
    %c0_107 = arith.constant 0 : index
    %c150 = arith.constant 150 : index
    %c0_108 = arith.constant 0 : index
    %50 = vector.load %arg5[%c0_107, %c150, %c0_108] : memref<2x250x24xf32, #tpu.memory_space<vmem>>, vector<2x10x24xf32>
    tpu.vector_store %arg5[%c0_107, %c150, %c0_108], %49 {strides = array<i32>} : memref<2x250x24xf32, #tpu.memory_space<vmem>>, vector<2x10x24xf32>,
    %c0_109 = arith.constant 0 : index
    %c1_110 = arith.constant 1 : index
    %c1_111 = arith.constant 1 : index
    %c0_112 = arith.constant 0 : index
    %c6_113 = arith.constant 6 : index
    %51 = vector.load %arg1[%c0_109, %c1_110, %c1_111, %c0_112, %c6_113] : memref<2x2x2x10x38xf32, #tpu.memory_space<vmem>>, vector<2x1x1x10x24xf32>
    %52 = vector.shape_cast %51 : vector<2x1x1x10x24xf32> to vector<2x10x24xf32>
    %c0_114 = arith.constant 0 : index
    %c160 = arith.constant 160 : index
    %c0_115 = arith.constant 0 : index
    %53 = vector.load %arg5[%c0_114, %c160, %c0_115] : memref<2x250x24xf32, #tpu.memory_space<vmem>>, vector<2x10x24xf32>
    tpu.vector_store %arg5[%c0_114, %c160, %c0_115], %52 {strides = array<i32>} : memref<2x250x24xf32, #tpu.memory_space<vmem>>, vector<2x10x24xf32>,
    %c0_116 = arith.constant 0 : index
    %c1_117 = arith.constant 1 : index
    %c0_118 = arith.constant 0 : index
    %c0_119 = arith.constant 0 : index
    %c7_120 = arith.constant 7 : index
    %54 = vector.load %arg1[%c0_116, %c1_117, %c0_118, %c0_119, %c7_120] : memref<2x2x2x10x38xf32, #tpu.memory_space<vmem>>, vector<2x1x1x10x24xf32>
    %55 = vector.shape_cast %54 : vector<2x1x1x10x24xf32> to vector<2x10x24xf32>
    %c0_121 = arith.constant 0 : index
    %c170 = arith.constant 170 : index
    %c0_122 = arith.constant 0 : index
    %56 = vector.load %arg5[%c0_121, %c170, %c0_122] : memref<2x250x24xf32, #tpu.memory_space<vmem>>, vector<2x10x24xf32>
    tpu.vector_store %arg5[%c0_121, %c170, %c0_122], %55 {strides = array<i32>} : memref<2x250x24xf32, #tpu.memory_space<vmem>>, vector<2x10x24xf32>,
    %c0_123 = arith.constant 0 : index
    %c1_124 = arith.constant 1 : index
    %c1_125 = arith.constant 1 : index
    %c0_126 = arith.constant 0 : index
    %c7_127 = arith.constant 7 : index
    %57 = vector.load %arg1[%c0_123, %c1_124, %c1_125, %c0_126, %c7_127] : memref<2x2x2x10x38xf32, #tpu.memory_space<vmem>>, vector<2x1x1x10x24xf32>
    %58 = vector.shape_cast %57 : vector<2x1x1x10x24xf32> to vector<2x10x24xf32>
    %c0_128 = arith.constant 0 : index
    %c180 = arith.constant 180 : index
    %c0_129 = arith.constant 0 : index
    %59 = vector.load %arg5[%c0_128, %c180, %c0_129] : memref<2x250x24xf32, #tpu.memory_space<vmem>>, vector<2x10x24xf32>
    tpu.vector_store %arg5[%c0_128, %c180, %c0_129], %58 {strides = array<i32>} : memref<2x250x24xf32, #tpu.memory_space<vmem>>, vector<2x10x24xf32>,
    %c0_130 = arith.constant 0 : index
    %c1_131 = arith.constant 1 : index
    %c0_132 = arith.constant 0 : index
    %c0_133 = arith.constant 0 : index
    %c8_134 = arith.constant 8 : index
    %60 = vector.load %arg1[%c0_130, %c1_131, %c0_132, %c0_133, %c8_134] : memref<2x2x2x10x38xf32, #tpu.memory_space<vmem>>, vector<2x1x1x10x24xf32>
    %61 = vector.shape_cast %60 : vector<2x1x1x10x24xf32> to vector<2x10x24xf32>
    %c0_135 = arith.constant 0 : index
    %c190 = arith.constant 190 : index
    %c0_136 = arith.constant 0 : index
    %62 = vector.load %arg5[%c0_135, %c190, %c0_136] : memref<2x250x24xf32, #tpu.memory_space<vmem>>, vector<2x10x24xf32>
    tpu.vector_store %arg5[%c0_135, %c190, %c0_136], %61 {strides = array<i32>} : memref<2x250x24xf32, #tpu.memory_space<vmem>>, vector<2x10x24xf32>,
    %c0_137 = arith.constant 0 : index
    %c0_138 = arith.constant 0 : index
    %c0_139 = arith.constant 0 : index
    %c0_140 = arith.constant 0 : index
    %c12 = arith.constant 12 : index
    %63 = vector.load %arg1[%c0_137, %c0_138, %c0_139, %c0_140, %c12] : memref<2x2x2x10x38xf32, #tpu.memory_space<vmem>>, vector<2x1x1x10x24xf32>
    %64 = vector.shape_cast %63 : vector<2x1x1x10x24xf32> to vector<2x10x24xf32>
    %c0_141 = arith.constant 0 : index
    %c200 = arith.constant 200 : index
    %c0_142 = arith.constant 0 : index
    %65 = vector.load %arg5[%c0_141, %c200, %c0_142] : memref<2x250x24xf32, #tpu.memory_space<vmem>>, vector<2x10x24xf32>
    tpu.vector_store %arg5[%c0_141, %c200, %c0_142], %64 {strides = array<i32>} : memref<2x250x24xf32, #tpu.memory_space<vmem>>, vector<2x10x24xf32>,
    %c0_143 = arith.constant 0 : index
    %c0_144 = arith.constant 0 : index
    %c1_145 = arith.constant 1 : index
    %c0_146 = arith.constant 0 : index
    %c12_147 = arith.constant 12 : index
    %66 = vector.load %arg1[%c0_143, %c0_144, %c1_145, %c0_146, %c12_147] : memref<2x2x2x10x38xf32, #tpu.memory_space<vmem>>, vector<2x1x1x10x24xf32>
    %67 = vector.shape_cast %66 : vector<2x1x1x10x24xf32> to vector<2x10x24xf32>
    %c0_148 = arith.constant 0 : index
    %c210 = arith.constant 210 : index
    %c0_149 = arith.constant 0 : index
    %68 = vector.load %arg5[%c0_148, %c210, %c0_149] : memref<2x250x24xf32, #tpu.memory_space<vmem>>, vector<2x10x24xf32>
    tpu.vector_store %arg5[%c0_148, %c210, %c0_149], %67 {strides = array<i32>} : memref<2x250x24xf32, #tpu.memory_space<vmem>>, vector<2x10x24xf32>,
    %c0_150 = arith.constant 0 : index
    %c0_151 = arith.constant 0 : index
    %c0_152 = arith.constant 0 : index
    %c0_153 = arith.constant 0 : index
    %c13 = arith.constant 13 : index
    %69 = vector.load %arg1[%c0_150, %c0_151, %c0_152, %c0_153, %c13] : memref<2x2x2x10x38xf32, #tpu.memory_space<vmem>>, vector<2x1x1x10x24xf32>
    %70 = vector.shape_cast %69 : vector<2x1x1x10x24xf32> to vector<2x10x24xf32>
    %c0_154 = arith.constant 0 : index
    %c220 = arith.constant 220 : index
    %c0_155 = arith.constant 0 : index
    %71 = vector.load %arg5[%c0_154, %c220, %c0_155] : memref<2x250x24xf32, #tpu.memory_space<vmem>>, vector<2x10x24xf32>
    tpu.vector_store %arg5[%c0_154, %c220, %c0_155], %70 {strides = array<i32>} : memref<2x250x24xf32, #tpu.memory_space<vmem>>, vector<2x10x24xf32>,
    %c0_156 = arith.constant 0 : index
    %c0_157 = arith.constant 0 : index
    %c1_158 = arith.constant 1 : index
    %c0_159 = arith.constant 0 : index
    %c13_160 = arith.constant 13 : index
    %72 = vector.load %arg1[%c0_156, %c0_157, %c1_158, %c0_159, %c13_160] : memref<2x2x2x10x38xf32, #tpu.memory_space<vmem>>, vector<2x1x1x10x24xf32>
    %73 = vector.shape_cast %72 : vector<2x1x1x10x24xf32> to vector<2x10x24xf32>
    %c0_161 = arith.constant 0 : index
    %c230 = arith.constant 230 : index
    %c0_162 = arith.constant 0 : index
    %74 = vector.load %arg5[%c0_161, %c230, %c0_162] : memref<2x250x24xf32, #tpu.memory_space<vmem>>, vector<2x10x24xf32>
    tpu.vector_store %arg5[%c0_161, %c230, %c0_162], %73 {strides = array<i32>} : memref<2x250x24xf32, #tpu.memory_space<vmem>>, vector<2x10x24xf32>,
    %c0_163 = arith.constant 0 : index
    %c0_164 = arith.constant 0 : index
    %c0_165 = arith.constant 0 : index
    %c0_166 = arith.constant 0 : index
    %c14 = arith.constant 14 : index
    %75 = vector.load %arg1[%c0_163, %c0_164, %c0_165, %c0_166, %c14] : memref<2x2x2x10x38xf32, #tpu.memory_space<vmem>>, vector<2x1x1x10x24xf32>
    %76 = vector.shape_cast %75 : vector<2x1x1x10x24xf32> to vector<2x10x24xf32>
    %c0_167 = arith.constant 0 : index
    %c240 = arith.constant 240 : index
    %c0_168 = arith.constant 0 : index
    %77 = vector.load %arg5[%c0_167, %c240, %c0_168] : memref<2x250x24xf32, #tpu.memory_space<vmem>>, vector<2x10x24xf32>
    tpu.vector_store %arg5[%c0_167, %c240, %c0_168], %76 {strides = array<i32>} : memref<2x250x24xf32, #tpu.memory_space<vmem>>, vector<2x10x24xf32>,
    %c0_169 = arith.constant 0 : index
    %c0_170 = arith.constant 0 : index
    %c0_171 = arith.constant 0 : index
    %78 = vector.load %arg5[%c0_169, %c0_170, %c0_171] : memref<2x250x24xf32, #tpu.memory_space<vmem>>, vector<2x250x24xf32>
    "tpu.trace_start"() <{level = 10 : i32, message = "bok,bkl->bol"}> : () -> ()
    %cst = arith.constant dense<0.000000e+00> : vector<2x20x24xf32>
    %79 = tpu.matmul %2, %78, %cst {dimension_numbers = #tpu.dot_dimension_numbers<[2], [1], [1], [2], [0, 0, 0, 1, 1, 2], [0], [0]>} : vector<2x20x250xf32>, vector<2x250x24xf32>, vector<2x20x24xf32> -> vector<2x20x24xf32>
    "tpu.trace_stop"() : () -> ()
    %c0_172 = arith.constant 0 : index
    %c0_173 = arith.constant 0 : index
    %c1_174 = arith.constant 1 : index
    %c0_175 = arith.constant 0 : index
    %c0_176 = arith.constant 0 : index
    %80 = vector.load %arg1[%c0_172, %c0_173, %c1_174, %c0_175, %c0_176] : memref<2x2x2x10x38xf32, #tpu.memory_space<vmem>>, vector<2x1x1x10x24xf32>
    %81 = vector.shape_cast %80 : vector<2x1x1x10x24xf32> to vector<2x10x24xf32>
    %c0_177 = arith.constant 0 : index
    %c0_178 = arith.constant 0 : index
    %c0_179 = arith.constant 0 : index
    %82 = vector.load %arg5[%c0_177, %c0_178, %c0_179] : memref<2x250x24xf32, #tpu.memory_space<vmem>>, vector<2x10x24xf32>
    tpu.vector_store %arg5[%c0_177, %c0_178, %c0_179], %81 {strides = array<i32>} : memref<2x250x24xf32, #tpu.memory_space<vmem>>, vector<2x10x24xf32>,
    %c0_180 = arith.constant 0 : index
    %c0_181 = arith.constant 0 : index
    %c0_182 = arith.constant 0 : index
    %c0_183 = arith.constant 0 : index
    %c1_184 = arith.constant 1 : index
    %83 = vector.load %arg1[%c0_180, %c0_181, %c0_182, %c0_183, %c1_184] : memref<2x2x2x10x38xf32, #tpu.memory_space<vmem>>, vector<2x1x1x10x24xf32>
    %84 = vector.shape_cast %83 : vector<2x1x1x10x24xf32> to vector<2x10x24xf32>
    %c0_185 = arith.constant 0 : index
    %c10_186 = arith.constant 10 : index
    %c0_187 = arith.constant 0 : index
    %85 = vector.load %arg5[%c0_185, %c10_186, %c0_187] : memref<2x250x24xf32, #tpu.memory_space<vmem>>, vector<2x10x24xf32>
    tpu.vector_store %arg5[%c0_185, %c10_186, %c0_187], %84 {strides = array<i32>} : memref<2x250x24xf32, #tpu.memory_space<vmem>>, vector<2x10x24xf32>,
    %c0_188 = arith.constant 0 : index
    %c0_189 = arith.constant 0 : index
    %c1_190 = arith.constant 1 : index
    %c0_191 = arith.constant 0 : index
    %c1_192 = arith.constant 1 : index
    %86 = vector.load %arg1[%c0_188, %c0_189, %c1_190, %c0_191, %c1_192] : memref<2x2x2x10x38xf32, #tpu.memory_space<vmem>>, vector<2x1x1x10x24xf32>
    %87 = vector.shape_cast %86 : vector<2x1x1x10x24xf32> to vector<2x10x24xf32>
    %c0_193 = arith.constant 0 : index
    %c20_194 = arith.constant 20 : index
    %c0_195 = arith.constant 0 : index
    %88 = vector.load %arg5[%c0_193, %c20_194, %c0_195] : memref<2x250x24xf32, #tpu.memory_space<vmem>>, vector<2x10x24xf32>
    tpu.vector_store %arg5[%c0_193, %c20_194, %c0_195], %87 {strides = array<i32>} : memref<2x250x24xf32, #tpu.memory_space<vmem>>, vector<2x10x24xf32>,
    %c0_196 = arith.constant 0 : index
    %c0_197 = arith.constant 0 : index
    %c0_198 = arith.constant 0 : index
    %c0_199 = arith.constant 0 : index
    %c2_200 = arith.constant 2 : index
    %89 = vector.load %arg1[%c0_196, %c0_197, %c0_198, %c0_199, %c2_200] : memref<2x2x2x10x38xf32, #tpu.memory_space<vmem>>, vector<2x1x1x10x24xf32>
    %90 = vector.shape_cast %89 : vector<2x1x1x10x24xf32> to vector<2x10x24xf32>
    %c0_201 = arith.constant 0 : index
    %c30_202 = arith.constant 30 : index
    %c0_203 = arith.constant 0 : index
    %91 = vector.load %arg5[%c0_201, %c30_202, %c0_203] : memref<2x250x24xf32, #tpu.memory_space<vmem>>, vector<2x10x24xf32>
    tpu.vector_store %arg5[%c0_201, %c30_202, %c0_203], %90 {strides = array<i32>} : memref<2x250x24xf32, #tpu.memory_space<vmem>>, vector<2x10x24xf32>,
    %c0_204 = arith.constant 0 : index
    %c0_205 = arith.constant 0 : index
    %c1_206 = arith.constant 1 : index
    %c0_207 = arith.constant 0 : index
    %c2_208 = arith.constant 2 : index
    %92 = vector.load %arg1[%c0_204, %c0_205, %c1_206, %c0_207, %c2_208] : memref<2x2x2x10x38xf32, #tpu.memory_space<vmem>>, vector<2x1x1x10x24xf32>
    %93 = vector.shape_cast %92 : vector<2x1x1x10x24xf32> to vector<2x10x24xf32>
    %c0_209 = arith.constant 0 : index
    %c40_210 = arith.constant 40 : index
    %c0_211 = arith.constant 0 : index
    %94 = vector.load %arg5[%c0_209, %c40_210, %c0_211] : memref<2x250x24xf32, #tpu.memory_space<vmem>>, vector<2x10x24xf32>
    tpu.vector_store %arg5[%c0_209, %c40_210, %c0_211], %93 {strides = array<i32>} : memref<2x250x24xf32, #tpu.memory_space<vmem>>, vector<2x10x24xf32>,
    %c0_212 = arith.constant 0 : index
    %c1_213 = arith.constant 1 : index
    %c1_214 = arith.constant 1 : index
    %c0_215 = arith.constant 0 : index
    %c0_216 = arith.constant 0 : index
    %95 = vector.load %arg1[%c0_212, %c1_213, %c1_214, %c0_215, %c0_216] : memref<2x2x2x10x38xf32, #tpu.memory_space<vmem>>, vector<2x1x1x10x24xf32>
    %96 = vector.shape_cast %95 : vector<2x1x1x10x24xf32> to vector<2x10x24xf32>
    %c0_217 = arith.constant 0 : index
    %c50_218 = arith.constant 50 : index
    %c0_219 = arith.constant 0 : index
    %97 = vector.load %arg5[%c0_217, %c50_218, %c0_219] : memref<2x250x24xf32, #tpu.memory_space<vmem>>, vector<2x10x24xf32>
    tpu.vector_store %arg5[%c0_217, %c50_218, %c0_219], %96 {strides = array<i32>} : memref<2x250x24xf32, #tpu.memory_space<vmem>>, vector<2x10x24xf32>,
    %c0_220 = arith.constant 0 : index
    %c1_221 = arith.constant 1 : index
    %c0_222 = arith.constant 0 : index
    %c0_223 = arith.constant 0 : index
    %c1_224 = arith.constant 1 : index
    %98 = vector.load %arg1[%c0_220, %c1_221, %c0_222, %c0_223, %c1_224] : memref<2x2x2x10x38xf32, #tpu.memory_space<vmem>>, vector<2x1x1x10x24xf32>
    %99 = vector.shape_cast %98 : vector<2x1x1x10x24xf32> to vector<2x10x24xf32>
    %c0_225 = arith.constant 0 : index
    %c60_226 = arith.constant 60 : index
    %c0_227 = arith.constant 0 : index
    %100 = vector.load %arg5[%c0_225, %c60_226, %c0_227] : memref<2x250x24xf32, #tpu.memory_space<vmem>>, vector<2x10x24xf32>
    tpu.vector_store %arg5[%c0_225, %c60_226, %c0_227], %99 {strides = array<i32>} : memref<2x250x24xf32, #tpu.memory_space<vmem>>, vector<2x10x24xf32>,
    %c0_228 = arith.constant 0 : index
    %c1_229 = arith.constant 1 : index
    %c1_230 = arith.constant 1 : index
    %c0_231 = arith.constant 0 : index
    %c1_232 = arith.constant 1 : index
    %101 = vector.load %arg1[%c0_228, %c1_229, %c1_230, %c0_231, %c1_232] : memref<2x2x2x10x38xf32, #tpu.memory_space<vmem>>, vector<2x1x1x10x24xf32>
    %102 = vector.shape_cast %101 : vector<2x1x1x10x24xf32> to vector<2x10x24xf32>
    %c0_233 = arith.constant 0 : index
    %c70_234 = arith.constant 70 : index
    %c0_235 = arith.constant 0 : index
    %103 = vector.load %arg5[%c0_233, %c70_234, %c0_235] : memref<2x250x24xf32, #tpu.memory_space<vmem>>, vector<2x10x24xf32>
    tpu.vector_store %arg5[%c0_233, %c70_234, %c0_235], %102 {strides = array<i32>} : memref<2x250x24xf32, #tpu.memory_space<vmem>>, vector<2x10x24xf32>,
    %c0_236 = arith.constant 0 : index
    %c1_237 = arith.constant 1 : index
    %c0_238 = arith.constant 0 : index
    %c0_239 = arith.constant 0 : index
    %c2_240 = arith.constant 2 : index
    %104 = vector.load %arg1[%c0_236, %c1_237, %c0_238, %c0_239, %c2_240] : memref<2x2x2x10x38xf32, #tpu.memory_space<vmem>>, vector<2x1x1x10x24xf32>
    %105 = vector.shape_cast %104 : vector<2x1x1x10x24xf32> to vector<2x10x24xf32>
    %c0_241 = arith.constant 0 : index
    %c80_242 = arith.constant 80 : index
    %c0_243 = arith.constant 0 : index
    %106 = vector.load %arg5[%c0_241, %c80_242, %c0_243] : memref<2x250x24xf32, #tpu.memory_space<vmem>>, vector<2x10x24xf32>
    tpu.vector_store %arg5[%c0_241, %c80_242, %c0_243], %105 {strides = array<i32>} : memref<2x250x24xf32, #tpu.memory_space<vmem>>, vector<2x10x24xf32>,
    %c0_244 = arith.constant 0 : index
    %c1_245 = arith.constant 1 : index
    %c1_246 = arith.constant 1 : index
    %c0_247 = arith.constant 0 : index
    %c2_248 = arith.constant 2 : index
    %107 = vector.load %arg1[%c0_244, %c1_245, %c1_246, %c0_247, %c2_248] : memref<2x2x2x10x38xf32, #tpu.memory_space<vmem>>, vector<2x1x1x10x24xf32>
    %108 = vector.shape_cast %107 : vector<2x1x1x10x24xf32> to vector<2x10x24xf32>
    %c0_249 = arith.constant 0 : index
    %c90_250 = arith.constant 90 : index
    %c0_251 = arith.constant 0 : index
    %109 = vector.load %arg5[%c0_249, %c90_250, %c0_251] : memref<2x250x24xf32, #tpu.memory_space<vmem>>, vector<2x10x24xf32>
    tpu.vector_store %arg5[%c0_249, %c90_250, %c0_251], %108 {strides = array<i32>} : memref<2x250x24xf32, #tpu.memory_space<vmem>>, vector<2x10x24xf32>,
    %c0_252 = arith.constant 0 : index
    %c0_253 = arith.constant 0 : index
    %c1_254 = arith.constant 1 : index
    %c0_255 = arith.constant 0 : index
    %c6_256 = arith.constant 6 : index
    %110 = vector.load %arg1[%c0_252, %c0_253, %c1_254, %c0_255, %c6_256] : memref<2x2x2x10x38xf32, #tpu.memory_space<vmem>>, vector<2x1x1x10x24xf32>
    %111 = vector.shape_cast %110 : vector<2x1x1x10x24xf32> to vector<2x10x24xf32>
    %c0_257 = arith.constant 0 : index
    %c100_258 = arith.constant 100 : index
    %c0_259 = arith.constant 0 : index
    %112 = vector.load %arg5[%c0_257, %c100_258, %c0_259] : memref<2x250x24xf32, #tpu.memory_space<vmem>>, vector<2x10x24xf32>
    tpu.vector_store %arg5[%c0_257, %c100_258, %c0_259], %111 {strides = array<i32>} : memref<2x250x24xf32, #tpu.memory_space<vmem>>, vector<2x10x24xf32>,
    %c0_260 = arith.constant 0 : index
    %c0_261 = arith.constant 0 : index
    %c0_262 = arith.constant 0 : index
    %c0_263 = arith.constant 0 : index
    %c7_264 = arith.constant 7 : index
    %113 = vector.load %arg1[%c0_260, %c0_261, %c0_262, %c0_263, %c7_264] : memref<2x2x2x10x38xf32, #tpu.memory_space<vmem>>, vector<2x1x1x10x24xf32>
    %114 = vector.shape_cast %113 : vector<2x1x1x10x24xf32> to vector<2x10x24xf32>
    %c0_265 = arith.constant 0 : index
    %c110_266 = arith.constant 110 : index
    %c0_267 = arith.constant 0 : index
    %115 = vector.load %arg5[%c0_265, %c110_266, %c0_267] : memref<2x250x24xf32, #tpu.memory_space<vmem>>, vector<2x10x24xf32>
    tpu.vector_store %arg5[%c0_265, %c110_266, %c0_267], %114 {strides = array<i32>} : memref<2x250x24xf32, #tpu.memory_space<vmem>>, vector<2x10x24xf32>,
    %c0_268 = arith.constant 0 : index
    %c0_269 = arith.constant 0 : index
    %c1_270 = arith.constant 1 : index
    %c0_271 = arith.constant 0 : index
    %c7_272 = arith.constant 7 : index
    %116 = vector.load %arg1[%c0_268, %c0_269, %c1_270, %c0_271, %c7_272] : memref<2x2x2x10x38xf32, #tpu.memory_space<vmem>>, vector<2x1x1x10x24xf32>
    %117 = vector.shape_cast %116 : vector<2x1x1x10x24xf32> to vector<2x10x24xf32>
    %c0_273 = arith.constant 0 : index
    %c120_274 = arith.constant 120 : index
    %c0_275 = arith.constant 0 : index
    %118 = vector.load %arg5[%c0_273, %c120_274, %c0_275] : memref<2x250x24xf32, #tpu.memory_space<vmem>>, vector<2x10x24xf32>
    tpu.vector_store %arg5[%c0_273, %c120_274, %c0_275], %117 {strides = array<i32>} : memref<2x250x24xf32, #tpu.memory_space<vmem>>, vector<2x10x24xf32>,
    %c0_276 = arith.constant 0 : index
    %c0_277 = arith.constant 0 : index
    %c0_278 = arith.constant 0 : index
    %c0_279 = arith.constant 0 : index
    %c8_280 = arith.constant 8 : index
    %119 = vector.load %arg1[%c0_276, %c0_277, %c0_278, %c0_279, %c8_280] : memref<2x2x2x10x38xf32, #tpu.memory_space<vmem>>, vector<2x1x1x10x24xf32>
    %120 = vector.shape_cast %119 : vector<2x1x1x10x24xf32> to vector<2x10x24xf32>
    %c0_281 = arith.constant 0 : index
    %c130_282 = arith.constant 130 : index
    %c0_283 = arith.constant 0 : index
    %121 = vector.load %arg5[%c0_281, %c130_282, %c0_283] : memref<2x250x24xf32, #tpu.memory_space<vmem>>, vector<2x10x24xf32>
    tpu.vector_store %arg5[%c0_281, %c130_282, %c0_283], %120 {strides = array<i32>} : memref<2x250x24xf32, #tpu.memory_space<vmem>>, vector<2x10x24xf32>,
    %c0_284 = arith.constant 0 : index
    %c0_285 = arith.constant 0 : index
    %c1_286 = arith.constant 1 : index
    %c0_287 = arith.constant 0 : index
    %c8_288 = arith.constant 8 : index
    %122 = vector.load %arg1[%c0_284, %c0_285, %c1_286, %c0_287, %c8_288] : memref<2x2x2x10x38xf32, #tpu.memory_space<vmem>>, vector<2x1x1x10x24xf32>
    %123 = vector.shape_cast %122 : vector<2x1x1x10x24xf32> to vector<2x10x24xf32>
    %c0_289 = arith.constant 0 : index
    %c140_290 = arith.constant 140 : index
    %c0_291 = arith.constant 0 : index
    %124 = vector.load %arg5[%c0_289, %c140_290, %c0_291] : memref<2x250x24xf32, #tpu.memory_space<vmem>>, vector<2x10x24xf32>
    tpu.vector_store %arg5[%c0_289, %c140_290, %c0_291], %123 {strides = array<i32>} : memref<2x250x24xf32, #tpu.memory_space<vmem>>, vector<2x10x24xf32>,
    %c0_292 = arith.constant 0 : index
    %c1_293 = arith.constant 1 : index
    %c1_294 = arith.constant 1 : index
    %c0_295 = arith.constant 0 : index
    %c6_296 = arith.constant 6 : index
    %125 = vector.load %arg1[%c0_292, %c1_293, %c1_294, %c0_295, %c6_296] : memref<2x2x2x10x38xf32, #tpu.memory_space<vmem>>, vector<2x1x1x10x24xf32>
    %126 = vector.shape_cast %125 : vector<2x1x1x10x24xf32> to vector<2x10x24xf32>
    %c0_297 = arith.constant 0 : index
    %c150_298 = arith.constant 150 : index
    %c0_299 = arith.constant 0 : index
    %127 = vector.load %arg5[%c0_297, %c150_298, %c0_299] : memref<2x250x24xf32, #tpu.memory_space<vmem>>, vector<2x10x24xf32>
    tpu.vector_store %arg5[%c0_297, %c150_298, %c0_299], %126 {strides = array<i32>} : memref<2x250x24xf32, #tpu.memory_space<vmem>>, vector<2x10x24xf32>,
    %c0_300 = arith.constant 0 : index
    %c1_301 = arith.constant 1 : index
    %c0_302 = arith.constant 0 : index
    %c0_303 = arith.constant 0 : index
    %c7_304 = arith.constant 7 : index
    %128 = vector.load %arg1[%c0_300, %c1_301, %c0_302, %c0_303, %c7_304] : memref<2x2x2x10x38xf32, #tpu.memory_space<vmem>>, vector<2x1x1x10x24xf32>
    %129 = vector.shape_cast %128 : vector<2x1x1x10x24xf32> to vector<2x10x24xf32>
    %c0_305 = arith.constant 0 : index
    %c160_306 = arith.constant 160 : index
    %c0_307 = arith.constant 0 : index
    %130 = vector.load %arg5[%c0_305, %c160_306, %c0_307] : memref<2x250x24xf32, #tpu.memory_space<vmem>>, vector<2x10x24xf32>
    tpu.vector_store %arg5[%c0_305, %c160_306, %c0_307], %129 {strides = array<i32>} : memref<2x250x24xf32, #tpu.memory_space<vmem>>, vector<2x10x24xf32>,
    %c0_308 = arith.constant 0 : index
    %c1_309 = arith.constant 1 : index
    %c1_310 = arith.constant 1 : index
    %c0_311 = arith.constant 0 : index
    %c7_312 = arith.constant 7 : index
    %131 = vector.load %arg1[%c0_308, %c1_309, %c1_310, %c0_311, %c7_312] : memref<2x2x2x10x38xf32, #tpu.memory_space<vmem>>, vector<2x1x1x10x24xf32>
    %132 = vector.shape_cast %131 : vector<2x1x1x10x24xf32> to vector<2x10x24xf32>
    %c0_313 = arith.constant 0 : index
    %c170_314 = arith.constant 170 : index
    %c0_315 = arith.constant 0 : index
    %133 = vector.load %arg5[%c0_313, %c170_314, %c0_315] : memref<2x250x24xf32, #tpu.memory_space<vmem>>, vector<2x10x24xf32>
    tpu.vector_store %arg5[%c0_313, %c170_314, %c0_315], %132 {strides = array<i32>} : memref<2x250x24xf32, #tpu.memory_space<vmem>>, vector<2x10x24xf32>,
    %c0_316 = arith.constant 0 : index
    %c1_317 = arith.constant 1 : index
    %c0_318 = arith.constant 0 : index
    %c0_319 = arith.constant 0 : index
    %c8_320 = arith.constant 8 : index
    %134 = vector.load %arg1[%c0_316, %c1_317, %c0_318, %c0_319, %c8_320] : memref<2x2x2x10x38xf32, #tpu.memory_space<vmem>>, vector<2x1x1x10x24xf32>
    %135 = vector.shape_cast %134 : vector<2x1x1x10x24xf32> to vector<2x10x24xf32>
    %c0_321 = arith.constant 0 : index
    %c180_322 = arith.constant 180 : index
    %c0_323 = arith.constant 0 : index
    %136 = vector.load %arg5[%c0_321, %c180_322, %c0_323] : memref<2x250x24xf32, #tpu.memory_space<vmem>>, vector<2x10x24xf32>
    tpu.vector_store %arg5[%c0_321, %c180_322, %c0_323], %135 {strides = array<i32>} : memref<2x250x24xf32, #tpu.memory_space<vmem>>, vector<2x10x24xf32>,
    %c0_324 = arith.constant 0 : index
    %c1_325 = arith.constant 1 : index
    %c1_326 = arith.constant 1 : index
    %c0_327 = arith.constant 0 : index
    %c8_328 = arith.constant 8 : index
    %137 = vector.load %arg1[%c0_324, %c1_325, %c1_326, %c0_327, %c8_328] : memref<2x2x2x10x38xf32, #tpu.memory_space<vmem>>, vector<2x1x1x10x24xf32>
    %138 = vector.shape_cast %137 : vector<2x1x1x10x24xf32> to vector<2x10x24xf32>
    %c0_329 = arith.constant 0 : index
    %c190_330 = arith.constant 190 : index
    %c0_331 = arith.constant 0 : index
    %139 = vector.load %arg5[%c0_329, %c190_330, %c0_331] : memref<2x250x24xf32, #tpu.memory_space<vmem>>, vector<2x10x24xf32>
    tpu.vector_store %arg5[%c0_329, %c190_330, %c0_331], %138 {strides = array<i32>} : memref<2x250x24xf32, #tpu.memory_space<vmem>>, vector<2x10x24xf32>,
    %c0_332 = arith.constant 0 : index
    %c0_333 = arith.constant 0 : index
    %c1_334 = arith.constant 1 : index
    %c0_335 = arith.constant 0 : index
    %c12_336 = arith.constant 12 : index
    %140 = vector.load %arg1[%c0_332, %c0_333, %c1_334, %c0_335, %c12_336] : memref<2x2x2x10x38xf32, #tpu.memory_space<vmem>>, vector<2x1x1x10x24xf32>
    %141 = vector.shape_cast %140 : vector<2x1x1x10x24xf32> to vector<2x10x24xf32>
    %c0_337 = arith.constant 0 : index
    %c200_338 = arith.constant 200 : index
    %c0_339 = arith.constant 0 : index
    %142 = vector.load %arg5[%c0_337, %c200_338, %c0_339] : memref<2x250x24xf32, #tpu.memory_space<vmem>>, vector<2x10x24xf32>
    tpu.vector_store %arg5[%c0_337, %c200_338, %c0_339], %141 {strides = array<i32>} : memref<2x250x24xf32, #tpu.memory_space<vmem>>, vector<2x10x24xf32>,
    %c0_340 = arith.constant 0 : index
    %c0_341 = arith.constant 0 : index
    %c0_342 = arith.constant 0 : index
    %c0_343 = arith.constant 0 : index
    %c13_344 = arith.constant 13 : index
    %143 = vector.load %arg1[%c0_340, %c0_341, %c0_342, %c0_343, %c13_344] : memref<2x2x2x10x38xf32, #tpu.memory_space<vmem>>, vector<2x1x1x10x24xf32>
    %144 = vector.shape_cast %143 : vector<2x1x1x10x24xf32> to vector<2x10x24xf32>
    %c0_345 = arith.constant 0 : index
    %c210_346 = arith.constant 210 : index
    %c0_347 = arith.constant 0 : index
    %145 = vector.load %arg5[%c0_345, %c210_346, %c0_347] : memref<2x250x24xf32, #tpu.memory_space<vmem>>, vector<2x10x24xf32>
    tpu.vector_store %arg5[%c0_345, %c210_346, %c0_347], %144 {strides = array<i32>} : memref<2x250x24xf32, #tpu.memory_space<vmem>>, vector<2x10x24xf32>,
    %c0_348 = arith.constant 0 : index
    %c0_349 = arith.constant 0 : index
    %c1_350 = arith.constant 1 : index
    %c0_351 = arith.constant 0 : index
    %c13_352 = arith.constant 13 : index
    %146 = vector.load %arg1[%c0_348, %c0_349, %c1_350, %c0_351, %c13_352] : memref<2x2x2x10x38xf32, #tpu.memory_space<vmem>>, vector<2x1x1x10x24xf32>
    %147 = vector.shape_cast %146 : vector<2x1x1x10x24xf32> to vector<2x10x24xf32>
    %c0_353 = arith.constant 0 : index
    %c220_354 = arith.constant 220 : index
    %c0_355 = arith.constant 0 : index
    %148 = vector.load %arg5[%c0_353, %c220_354, %c0_355] : memref<2x250x24xf32, #tpu.memory_space<vmem>>, vector<2x10x24xf32>
    tpu.vector_store %arg5[%c0_353, %c220_354, %c0_355], %147 {strides = array<i32>} : memref<2x250x24xf32, #tpu.memory_space<vmem>>, vector<2x10x24xf32>,
    %c0_356 = arith.constant 0 : index
    %c0_357 = arith.constant 0 : index
    %c0_358 = arith.constant 0 : index
    %c0_359 = arith.constant 0 : index
    %c14_360 = arith.constant 14 : index
    %149 = vector.load %arg1[%c0_356, %c0_357, %c0_358, %c0_359, %c14_360] : memref<2x2x2x10x38xf32, #tpu.memory_space<vmem>>, vector<2x1x1x10x24xf32>
    %150 = vector.shape_cast %149 : vector<2x1x1x10x24xf32> to vector<2x10x24xf32>
    %c0_361 = arith.constant 0 : index
    %c230_362 = arith.constant 230 : index
    %c0_363 = arith.constant 0 : index
    %151 = vector.load %arg5[%c0_361, %c230_362, %c0_363] : memref<2x250x24xf32, #tpu.memory_space<vmem>>, vector<2x10x24xf32>
    tpu.vector_store %arg5[%c0_361, %c230_362, %c0_363], %150 {strides = array<i32>} : memref<2x250x24xf32, #tpu.memory_space<vmem>>, vector<2x10x24xf32>,
    %c0_364 = arith.constant 0 : index
    %c0_365 = arith.constant 0 : index
    %c1_366 = arith.constant 1 : index
    %c0_367 = arith.constant 0 : index
    %c14_368 = arith.constant 14 : index
    %152 = vector.load %arg1[%c0_364, %c0_365, %c1_366, %c0_367, %c14_368] : memref<2x2x2x10x38xf32, #tpu.memory_space<vmem>>, vector<2x1x1x10x24xf32>
    %153 = vector.shape_cast %152 : vector<2x1x1x10x24xf32> to vector<2x10x24xf32>
    %c0_369 = arith.constant 0 : index
    %c240_370 = arith.constant 240 : index
    %c0_371 = arith.constant 0 : index
    %154 = vector.load %arg5[%c0_369, %c240_370, %c0_371] : memref<2x250x24xf32, #tpu.memory_space<vmem>>, vector<2x10x24xf32>
    tpu.vector_store %arg5[%c0_369, %c240_370, %c0_371], %153 {strides = array<i32>} : memref<2x250x24xf32, #tpu.memory_space<vmem>>, vector<2x10x24xf32>,
    %c0_372 = arith.constant 0 : index
    %c0_373 = arith.constant 0 : index
    %c0_374 = arith.constant 0 : index
    %155 = vector.load %arg5[%c0_372, %c0_373, %c0_374] : memref<2x250x24xf32, #tpu.memory_space<vmem>>, vector<2x250x24xf32>
    "tpu.trace_start"() <{level = 10 : i32, message = "bok,bkl->bol"}> : () -> ()
    %cst_375 = arith.constant dense<0.000000e+00> : vector<2x20x24xf32>
    %156 = tpu.matmul %2, %155, %cst_375 {dimension_numbers = #tpu.dot_dimension_numbers<[2], [1], [1], [2], [0, 0, 0, 1, 1, 2], [0], [0]>} : vector<2x20x250xf32>, vector<2x250x24xf32>, vector<2x20x24xf32> -> vector<2x20x24xf32>
    "tpu.trace_stop"() : () -> ()
    %157 = arith.maximumf %79, %156 : vector<2x20x24xf32>
    %c0_376 = arith.constant 0 : index
    %c1_377 = arith.constant 1 : index
    %c0_378 = arith.constant 0 : index
    %c0_379 = arith.constant 0 : index
    %c0_380 = arith.constant 0 : index
    %158 = vector.load %arg1[%c0_376, %c1_377, %c0_378, %c0_379, %c0_380] : memref<2x2x2x10x38xf32, #tpu.memory_space<vmem>>, vector<2x1x1x10x24xf32>
    %159 = vector.shape_cast %158 : vector<2x1x1x10x24xf32> to vector<2x10x24xf32>
    %c0_381 = arith.constant 0 : index
    %c0_382 = arith.constant 0 : index
    %c0_383 = arith.constant 0 : index
    %160 = vector.load %arg5[%c0_381, %c0_382, %c0_383] : memref<2x250x24xf32, #tpu.memory_space<vmem>>, vector<2x10x24xf32>
    tpu.vector_store %arg5[%c0_381, %c0_382, %c0_383], %159 {strides = array<i32>} : memref<2x250x24xf32, #tpu.memory_space<vmem>>, vector<2x10x24xf32>,
    %c0_384 = arith.constant 0 : index
    %c1_385 = arith.constant 1 : index
    %c1_386 = arith.constant 1 : index
    %c0_387 = arith.constant 0 : index
    %c0_388 = arith.constant 0 : index
    %161 = vector.load %arg1[%c0_384, %c1_385, %c1_386, %c0_387, %c0_388] : memref<2x2x2x10x38xf32, #tpu.memory_space<vmem>>, vector<2x1x1x10x24xf32>
    %162 = vector.shape_cast %161 : vector<2x1x1x10x24xf32> to vector<2x10x24xf32>
    %c0_389 = arith.constant 0 : index
    %c10_390 = arith.constant 10 : index
    %c0_391 = arith.constant 0 : index
    %163 = vector.load %arg5[%c0_389, %c10_390, %c0_391] : memref<2x250x24xf32, #tpu.memory_space<vmem>>, vector<2x10x24xf32>
    tpu.vector_store %arg5[%c0_389, %c10_390, %c0_391], %162 {strides = array<i32>} : memref<2x250x24xf32, #tpu.memory_space<vmem>>, vector<2x10x24xf32>,
    %c0_392 = arith.constant 0 : index
    %c1_393 = arith.constant 1 : index
    %c0_394 = arith.constant 0 : index
    %c0_395 = arith.constant 0 : index
    %c1_396 = arith.constant 1 : index
    %164 = vector.load %arg1[%c0_392, %c1_393, %c0_394, %c0_395, %c1_396] : memref<2x2x2x10x38xf32, #tpu.memory_space<vmem>>, vector<2x1x1x10x24xf32>
    %165 = vector.shape_cast %164 : vector<2x1x1x10x24xf32> to vector<2x10x24xf32>
    %c0_397 = arith.constant 0 : index
    %c20_398 = arith.constant 20 : index
    %c0_399 = arith.constant 0 : index
    %166 = vector.load %arg5[%c0_397, %c20_398, %c0_399] : memref<2x250x24xf32, #tpu.memory_space<vmem>>, vector<2x10x24xf32>
    tpu.vector_store %arg5[%c0_397, %c20_398, %c0_399], %165 {strides = array<i32>} : memref<2x250x24xf32, #tpu.memory_space<vmem>>, vector<2x10x24xf32>,
    %c0_400 = arith.constant 0 : index
    %c1_401 = arith.constant 1 : index
    %c1_402 = arith.constant 1 : index
    %c0_403 = arith.constant 0 : index
    %c1_404 = arith.constant 1 : index
    %167 = vector.load %arg1[%c0_400, %c1_401, %c1_402, %c0_403, %c1_404] : memref<2x2x2x10x38xf32, #tpu.memory_space<vmem>>, vector<2x1x1x10x24xf32>
    %168 = vector.shape_cast %167 : vector<2x1x1x10x24xf32> to vector<2x10x24xf32>
    %c0_405 = arith.constant 0 : index
    %c30_406 = arith.constant 30 : index
    %c0_407 = arith.constant 0 : index
    %169 = vector.load %arg5[%c0_405, %c30_406, %c0_407] : memref<2x250x24xf32, #tpu.memory_space<vmem>>, vector<2x10x24xf32>
    tpu.vector_store %arg5[%c0_405, %c30_406, %c0_407], %168 {strides = array<i32>} : memref<2x250x24xf32, #tpu.memory_space<vmem>>, vector<2x10x24xf32>,
    %c0_408 = arith.constant 0 : index
    %c1_409 = arith.constant 1 : index
    %c0_410 = arith.constant 0 : index
    %c0_411 = arith.constant 0 : index
    %c2_412 = arith.constant 2 : index
    %170 = vector.load %arg1[%c0_408, %c1_409, %c0_410, %c0_411, %c2_412] : memref<2x2x2x10x38xf32, #tpu.memory_space<vmem>>, vector<2x1x1x10x24xf32>
    %171 = vector.shape_cast %170 : vector<2x1x1x10x24xf32> to vector<2x10x24xf32>
    %c0_413 = arith.constant 0 : index
    %c40_414 = arith.constant 40 : index
    %c0_415 = arith.constant 0 : index
    %172 = vector.load %arg5[%c0_413, %c40_414, %c0_415] : memref<2x250x24xf32, #tpu.memory_space<vmem>>, vector<2x10x24xf32>
    tpu.vector_store %arg5[%c0_413, %c40_414, %c0_415], %171 {strides = array<i32>} : memref<2x250x24xf32, #tpu.memory_space<vmem>>, vector<2x10x24xf32>,
    %c0_416 = arith.constant 0 : index
    %c0_417 = arith.constant 0 : index
    %c0_418 = arith.constant 0 : index
    %c0_419 = arith.constant 0 : index
    %c6_420 = arith.constant 6 : index
    %173 = vector.load %arg1[%c0_416, %c0_417, %c0_418, %c0_419, %c6_420] : memref<2x2x2x10x38xf32, #tpu.memory_space<vmem>>, vector<2x1x1x10x24xf32>
    %174 = vector.shape_cast %173 : vector<2x1x1x10x24xf32> to vector<2x10x24xf32>
    %c0_421 = arith.constant 0 : index
    %c50_422 = arith.constant 50 : index
    %c0_423 = arith.constant 0 : index
    %175 = vector.load %arg5[%c0_421, %c50_422, %c0_423] : memref<2x250x24xf32, #tpu.memory_space<vmem>>, vector<2x10x24xf32>
    tpu.vector_store %arg5[%c0_421, %c50_422, %c0_423], %174 {strides = array<i32>} : memref<2x250x24xf32, #tpu.memory_space<vmem>>, vector<2x10x24xf32>,
    %c0_424 = arith.constant 0 : index
    %c0_425 = arith.constant 0 : index
    %c1_426 = arith.constant 1 : index
    %c0_427 = arith.constant 0 : index
    %c6_428 = arith.constant 6 : index
    %176 = vector.load %arg1[%c0_424, %c0_425, %c1_426, %c0_427, %c6_428] : memref<2x2x2x10x38xf32, #tpu.memory_space<vmem>>, vector<2x1x1x10x24xf32>
    %177 = vector.shape_cast %176 : vector<2x1x1x10x24xf32> to vector<2x10x24xf32>
    %c0_429 = arith.constant 0 : index
    %c60_430 = arith.constant 60 : index
    %c0_431 = arith.constant 0 : index
    %178 = vector.load %arg5[%c0_429, %c60_430, %c0_431] : memref<2x250x24xf32, #tpu.memory_space<vmem>>, vector<2x10x24xf32>
    tpu.vector_store %arg5[%c0_429, %c60_430, %c0_431], %177 {strides = array<i32>} : memref<2x250x24xf32, #tpu.memory_space<vmem>>, vector<2x10x24xf32>,
    %c0_432 = arith.constant 0 : index
    %c0_433 = arith.constant 0 : index
    %c0_434 = arith.constant 0 : index
    %c0_435 = arith.constant 0 : index
    %c7_436 = arith.constant 7 : index
    %179 = vector.load %arg1[%c0_432, %c0_433, %c0_434, %c0_435, %c7_436] : memref<2x2x2x10x38xf32, #tpu.memory_space<vmem>>, vector<2x1x1x10x24xf32>
    %180 = vector.shape_cast %179 : vector<2x1x1x10x24xf32> to vector<2x10x24xf32>
    %c0_437 = arith.constant 0 : index
    %c70_438 = arith.constant 70 : index
    %c0_439 = arith.constant 0 : index
    %181 = vector.load %arg5[%c0_437, %c70_438, %c0_439] : memref<2x250x24xf32, #tpu.memory_space<vmem>>, vector<2x10x24xf32>
    tpu.vector_store %arg5[%c0_437, %c70_438, %c0_439], %180 {strides = array<i32>} : memref<2x250x24xf32, #tpu.memory_space<vmem>>, vector<2x10x24xf32>,
    %c0_440 = arith.constant 0 : index
    %c0_441 = arith.constant 0 : index
    %c1_442 = arith.constant 1 : index
    %c0_443 = arith.constant 0 : index
    %c7_444 = arith.constant 7 : index
    %182 = vector.load %arg1[%c0_440, %c0_441, %c1_442, %c0_443, %c7_444] : memref<2x2x2x10x38xf32, #tpu.memory_space<vmem>>, vector<2x1x1x10x24xf32>
    %183 = vector.shape_cast %182 : vector<2x1x1x10x24xf32> to vector<2x10x24xf32>
    %c0_445 = arith.constant 0 : index
    %c80_446 = arith.constant 80 : index
    %c0_447 = arith.constant 0 : index
    %184 = vector.load %arg5[%c0_445, %c80_446, %c0_447] : memref<2x250x24xf32, #tpu.memory_space<vmem>>, vector<2x10x24xf32>
    tpu.vector_store %arg5[%c0_445, %c80_446, %c0_447], %183 {strides = array<i32>} : memref<2x250x24xf32, #tpu.memory_space<vmem>>, vector<2x10x24xf32>,
    %c0_448 = arith.constant 0 : index
    %c0_449 = arith.constant 0 : index
    %c0_450 = arith.constant 0 : index
    %c0_451 = arith.constant 0 : index
    %c8_452 = arith.constant 8 : index
    %185 = vector.load %arg1[%c0_448, %c0_449, %c0_450, %c0_451, %c8_452] : memref<2x2x2x10x38xf32, #tpu.memory_space<vmem>>, vector<2x1x1x10x24xf32>
    %186 = vector.shape_cast %185 : vector<2x1x1x10x24xf32> to vector<2x10x24xf32>
    %c0_453 = arith.constant 0 : index
    %c90_454 = arith.constant 90 : index
    %c0_455 = arith.constant 0 : index
    %187 = vector.load %arg5[%c0_453, %c90_454, %c0_455] : memref<2x250x24xf32, #tpu.memory_space<vmem>>, vector<2x10x24xf32>
    tpu.vector_store %arg5[%c0_453, %c90_454, %c0_455], %186 {strides = array<i32>} : memref<2x250x24xf32, #tpu.memory_space<vmem>>, vector<2x10x24xf32>,
    %c0_456 = arith.constant 0 : index
    %c1_457 = arith.constant 1 : index
    %c0_458 = arith.constant 0 : index
    %c0_459 = arith.constant 0 : index
    %c6_460 = arith.constant 6 : index
    %188 = vector.load %arg1[%c0_456, %c1_457, %c0_458, %c0_459, %c6_460] : memref<2x2x2x10x38xf32, #tpu.memory_space<vmem>>, vector<2x1x1x10x24xf32>
    %189 = vector.shape_cast %188 : vector<2x1x1x10x24xf32> to vector<2x10x24xf32>
    %c0_461 = arith.constant 0 : index
    %c100_462 = arith.constant 100 : index
    %c0_463 = arith.constant 0 : index
    %190 = vector.load %arg5[%c0_461, %c100_462, %c0_463] : memref<2x250x24xf32, #tpu.memory_space<vmem>>, vector<2x10x24xf32>
    tpu.vector_store %arg5[%c0_461, %c100_462, %c0_463], %189 {strides = array<i32>} : memref<2x250x24xf32, #tpu.memory_space<vmem>>, vector<2x10x24xf32>,
    %c0_464 = arith.constant 0 : index
    %c1_465 = arith.constant 1 : index
    %c1_466 = arith.constant 1 : index
    %c0_467 = arith.constant 0 : index
    %c6_468 = arith.constant 6 : index
    %191 = vector.load %arg1[%c0_464, %c1_465, %c1_466, %c0_467, %c6_468] : memref<2x2x2x10x38xf32, #tpu.memory_space<vmem>>, vector<2x1x1x10x24xf32>
    %192 = vector.shape_cast %191 : vector<2x1x1x10x24xf32> to vector<2x10x24xf32>
    %c0_469 = arith.constant 0 : index
    %c110_470 = arith.constant 110 : index
    %c0_471 = arith.constant 0 : index
    %193 = vector.load %arg5[%c0_469, %c110_470, %c0_471] : memref<2x250x24xf32, #tpu.memory_space<vmem>>, vector<2x10x24xf32>
    tpu.vector_store %arg5[%c0_469, %c110_470, %c0_471], %192 {strides = array<i32>} : memref<2x250x24xf32, #tpu.memory_space<vmem>>, vector<2x10x24xf32>,
    %c0_472 = arith.constant 0 : index
    %c1_473 = arith.constant 1 : index
    %c0_474 = arith.constant 0 : index
    %c0_475 = arith.constant 0 : index
    %c7_476 = arith.constant 7 : index
    %194 = vector.load %arg1[%c0_472, %c1_473, %c0_474, %c0_475, %c7_476] : memref<2x2x2x10x38xf32, #tpu.memory_space<vmem>>, vector<2x1x1x10x24xf32>
    %195 = vector.shape_cast %194 : vector<2x1x1x10x24xf32> to vector<2x10x24xf32>
    %c0_477 = arith.constant 0 : index
    %c120_478 = arith.constant 120 : index
    %c0_479 = arith.constant 0 : index
    %196 = vector.load %arg5[%c0_477, %c120_478, %c0_479] : memref<2x250x24xf32, #tpu.memory_space<vmem>>, vector<2x10x24xf32>
    tpu.vector_store %arg5[%c0_477, %c120_478, %c0_479], %195 {strides = array<i32>} : memref<2x250x24xf32, #tpu.memory_space<vmem>>, vector<2x10x24xf32>,
    %c0_480 = arith.constant 0 : index
    %c1_481 = arith.constant 1 : index
    %c1_482 = arith.constant 1 : index
    %c0_483 = arith.constant 0 : index
    %c7_484 = arith.constant 7 : index
    %197 = vector.load %arg1[%c0_480, %c1_481, %c1_482, %c0_483, %c7_484] : memref<2x2x2x10x38xf32, #tpu.memory_space<vmem>>, vector<2x1x1x10x24xf32>
    %198 = vector.shape_cast %197 : vector<2x1x1x10x24xf32> to vector<2x10x24xf32>
    %c0_485 = arith.constant 0 : index
    %c130_486 = arith.constant 130 : index
    %c0_487 = arith.constant 0 : index
    %199 = vector.load %arg5[%c0_485, %c130_486, %c0_487] : memref<2x250x24xf32, #tpu.memory_space<vmem>>, vector<2x10x24xf32>
    tpu.vector_store %arg5[%c0_485, %c130_486, %c0_487], %198 {strides = array<i32>} : memref<2x250x24xf32, #tpu.memory_space<vmem>>, vector<2x10x24xf32>,
    %c0_488 = arith.constant 0 : index
    %c1_489 = arith.constant 1 : index
    %c0_490 = arith.constant 0 : index
    %c0_491 = arith.constant 0 : index
    %c8_492 = arith.constant 8 : index
    %200 = vector.load %arg1[%c0_488, %c1_489, %c0_490, %c0_491, %c8_492] : memref<2x2x2x10x38xf32, #tpu.memory_space<vmem>>, vector<2x1x1x10x24xf32>
    %201 = vector.shape_cast %200 : vector<2x1x1x10x24xf32> to vector<2x10x24xf32>
    %c0_493 = arith.constant 0 : index
    %c140_494 = arith.constant 140 : index
    %c0_495 = arith.constant 0 : index
    %202 = vector.load %arg5[%c0_493, %c140_494, %c0_495] : memref<2x250x24xf32, #tpu.memory_space<vmem>>, vector<2x10x24xf32>
    tpu.vector_store %arg5[%c0_493, %c140_494, %c0_495], %201 {strides = array<i32>} : memref<2x250x24xf32, #tpu.memory_space<vmem>>, vector<2x10x24xf32>,
    %c0_496 = arith.constant 0 : index
    %c0_497 = arith.constant 0 : index
    %c0_498 = arith.constant 0 : index
    %c0_499 = arith.constant 0 : index
    %c12_500 = arith.constant 12 : index
    %203 = vector.load %arg1[%c0_496, %c0_497, %c0_498, %c0_499, %c12_500] : memref<2x2x2x10x38xf32, #tpu.memory_space<vmem>>, vector<2x1x1x10x24xf32>
    %204 = vector.shape_cast %203 : vector<2x1x1x10x24xf32> to vector<2x10x24xf32>
    %c0_501 = arith.constant 0 : index
    %c150_502 = arith.constant 150 : index
    %c0_503 = arith.constant 0 : index
    %205 = vector.load %arg5[%c0_501, %c150_502, %c0_503] : memref<2x250x24xf32, #tpu.memory_space<vmem>>, vector<2x10x24xf32>
    tpu.vector_store %arg5[%c0_501, %c150_502, %c0_503], %204 {strides = array<i32>} : memref<2x250x24xf32, #tpu.memory_space<vmem>>, vector<2x10x24xf32>,
    %c0_504 = arith.constant 0 : index
    %c0_505 = arith.constant 0 : index
    %c1_506 = arith.constant 1 : index
    %c0_507 = arith.constant 0 : index
    %c12_508 = arith.constant 12 : index
    %206 = vector.load %arg1[%c0_504, %c0_505, %c1_506, %c0_507, %c12_508] : memref<2x2x2x10x38xf32, #tpu.memory_space<vmem>>, vector<2x1x1x10x24xf32>
    %207 = vector.shape_cast %206 : vector<2x1x1x10x24xf32> to vector<2x10x24xf32>
    %c0_509 = arith.constant 0 : index
    %c160_510 = arith.constant 160 : index
    %c0_511 = arith.constant 0 : index
    %208 = vector.load %arg5[%c0_509, %c160_510, %c0_511] : memref<2x250x24xf32, #tpu.memory_space<vmem>>, vector<2x10x24xf32>
    tpu.vector_store %arg5[%c0_509, %c160_510, %c0_511], %207 {strides = array<i32>} : memref<2x250x24xf32, #tpu.memory_space<vmem>>, vector<2x10x24xf32>,
    %c0_512 = arith.constant 0 : index
    %c0_513 = arith.constant 0 : index
    %c0_514 = arith.constant 0 : index
    %c0_515 = arith.constant 0 : index
    %c13_516 = arith.constant 13 : index
    %209 = vector.load %arg1[%c0_512, %c0_513, %c0_514, %c0_515, %c13_516] : memref<2x2x2x10x38xf32, #tpu.memory_space<vmem>>, vector<2x1x1x10x24xf32>
    %210 = vector.shape_cast %209 : vector<2x1x1x10x24xf32> to vector<2x10x24xf32>
    %c0_517 = arith.constant 0 : index
    %c170_518 = arith.constant 170 : index
    %c0_519 = arith.constant 0 : index
    %211 = vector.load %arg5[%c0_517, %c170_518, %c0_519] : memref<2x250x24xf32, #tpu.memory_space<vmem>>, vector<2x10x24xf32>
    tpu.vector_store %arg5[%c0_517, %c170_518, %c0_519], %210 {strides = array<i32>} : memref<2x250x24xf32, #tpu.memory_space<vmem>>, vector<2x10x24xf32>,
    %c0_520 = arith.constant 0 : index
    %c0_521 = arith.constant 0 : index
    %c1_522 = arith.constant 1 : index
    %c0_523 = arith.constant 0 : index
    %c13_524 = arith.constant 13 : index
    %212 = vector.load %arg1[%c0_520, %c0_521, %c1_522, %c0_523, %c13_524] : memref<2x2x2x10x38xf32, #tpu.memory_space<vmem>>, vector<2x1x1x10x24xf32>
    %213 = vector.shape_cast %212 : vector<2x1x1x10x24xf32> to vector<2x10x24xf32>
    %c0_525 = arith.constant 0 : index
    %c180_526 = arith.constant 180 : index
    %c0_527 = arith.constant 0 : index
    %214 = vector.load %arg5[%c0_525, %c180_526, %c0_527] : memref<2x250x24xf32, #tpu.memory_space<vmem>>, vector<2x10x24xf32>
    tpu.vector_store %arg5[%c0_525, %c180_526, %c0_527], %213 {strides = array<i32>} : memref<2x250x24xf32, #tpu.memory_space<vmem>>, vector<2x10x24xf32>,
    %c0_528 = arith.constant 0 : index
    %c0_529 = arith.constant 0 : index
    %c0_530 = arith.constant 0 : index
    %c0_531 = arith.constant 0 : index
    %c14_532 = arith.constant 14 : index
    %215 = vector.load %arg1[%c0_528, %c0_529, %c0_530, %c0_531, %c14_532] : memref<2x2x2x10x38xf32, #tpu.memory_space<vmem>>, vector<2x1x1x10x24xf32>
    %216 = vector.shape_cast %215 : vector<2x1x1x10x24xf32> to vector<2x10x24xf32>
    %c0_533 = arith.constant 0 : index
    %c190_534 = arith.constant 190 : index
    %c0_535 = arith.constant 0 : index
    %217 = vector.load %arg5[%c0_533, %c190_534, %c0_535] : memref<2x250x24xf32, #tpu.memory_space<vmem>>, vector<2x10x24xf32>
    tpu.vector_store %arg5[%c0_533, %c190_534, %c0_535], %216 {strides = array<i32>} : memref<2x250x24xf32, #tpu.memory_space<vmem>>, vector<2x10x24xf32>,
    %c0_536 = arith.constant 0 : index
    %c1_537 = arith.constant 1 : index
    %c0_538 = arith.constant 0 : index
    %c0_539 = arith.constant 0 : index
    %c12_540 = arith.constant 12 : index
    %218 = vector.load %arg1[%c0_536, %c1_537, %c0_538, %c0_539, %c12_540] : memref<2x2x2x10x38xf32, #tpu.memory_space<vmem>>, vector<2x1x1x10x24xf32>
    %219 = vector.shape_cast %218 : vector<2x1x1x10x24xf32> to vector<2x10x24xf32>
    %c0_541 = arith.constant 0 : index
    %c200_542 = arith.constant 200 : index
    %c0_543 = arith.constant 0 : index
    %220 = vector.load %arg5[%c0_541, %c200_542, %c0_543] : memref<2x250x24xf32, #tpu.memory_space<vmem>>, vector<2x10x24xf32>
    tpu.vector_store %arg5[%c0_541, %c200_542, %c0_543], %219 {strides = array<i32>} : memref<2x250x24xf32, #tpu.memory_space<vmem>>, vector<2x10x24xf32>,
    %c0_544 = arith.constant 0 : index
    %c1_545 = arith.constant 1 : index
    %c1_546 = arith.constant 1 : index
    %c0_547 = arith.constant 0 : index
    %c12_548 = arith.constant 12 : index
    %221 = vector.load %arg1[%c0_544, %c1_545, %c1_546, %c0_547, %c12_548] : memref<2x2x2x10x38xf32, #tpu.memory_space<vmem>>, vector<2x1x1x10x24xf32>
    %222 = vector.shape_cast %221 : vector<2x1x1x10x24xf32> to vector<2x10x24xf32>
    %c0_549 = arith.constant 0 : index
    %c210_550 = arith.constant 210 : index
    %c0_551 = arith.constant 0 : index
    %223 = vector.load %arg5[%c0_549, %c210_550, %c0_551] : memref<2x250x24xf32, #tpu.memory_space<vmem>>, vector<2x10x24xf32>
    tpu.vector_store %arg5[%c0_549, %c210_550, %c0_551], %222 {strides = array<i32>} : memref<2x250x24xf32, #tpu.memory_space<vmem>>, vector<2x10x24xf32>,
    %c0_552 = arith.constant 0 : index
    %c1_553 = arith.constant 1 : index
    %c0_554 = arith.constant 0 : index
    %c0_555 = arith.constant 0 : index
    %c13_556 = arith.constant 13 : index
    %224 = vector.load %arg1[%c0_552, %c1_553, %c0_554, %c0_555, %c13_556] : memref<2x2x2x10x38xf32, #tpu.memory_space<vmem>>, vector<2x1x1x10x24xf32>
    %225 = vector.shape_cast %224 : vector<2x1x1x10x24xf32> to vector<2x10x24xf32>
    %c0_557 = arith.constant 0 : index
    %c220_558 = arith.constant 220 : index
    %c0_559 = arith.constant 0 : index
    %226 = vector.load %arg5[%c0_557, %c220_558, %c0_559] : memref<2x250x24xf32, #tpu.memory_space<vmem>>, vector<2x10x24xf32>
    tpu.vector_store %arg5[%c0_557, %c220_558, %c0_559], %225 {strides = array<i32>} : memref<2x250x24xf32, #tpu.memory_space<vmem>>, vector<2x10x24xf32>,
    %c0_560 = arith.constant 0 : index
    %c1_561 = arith.constant 1 : index
    %c1_562 = arith.constant 1 : index
    %c0_563 = arith.constant 0 : index
    %c13_564 = arith.constant 13 : index
    %227 = vector.load %arg1[%c0_560, %c1_561, %c1_562, %c0_563, %c13_564] : memref<2x2x2x10x38xf32, #tpu.memory_space<vmem>>, vector<2x1x1x10x24xf32>
    %228 = vector.shape_cast %227 : vector<2x1x1x10x24xf32> to vector<2x10x24xf32>
    %c0_565 = arith.constant 0 : index
    %c230_566 = arith.constant 230 : index
    %c0_567 = arith.constant 0 : index
    %229 = vector.load %arg5[%c0_565, %c230_566, %c0_567] : memref<2x250x24xf32, #tpu.memory_space<vmem>>, vector<2x10x24xf32>
    tpu.vector_store %arg5[%c0_565, %c230_566, %c0_567], %228 {strides = array<i32>} : memref<2x250x24xf32, #tpu.memory_space<vmem>>, vector<2x10x24xf32>,
    %c0_568 = arith.constant 0 : index
    %c1_569 = arith.constant 1 : index
    %c0_570 = arith.constant 0 : index
    %c0_571 = arith.constant 0 : index
    %c14_572 = arith.constant 14 : index
    %230 = vector.load %arg1[%c0_568, %c1_569, %c0_570, %c0_571, %c14_572] : memref<2x2x2x10x38xf32, #tpu.memory_space<vmem>>, vector<2x1x1x10x24xf32>
    %231 = vector.shape_cast %230 : vector<2x1x1x10x24xf32> to vector<2x10x24xf32>
    %c0_573 = arith.constant 0 : index
    %c240_574 = arith.constant 240 : index
    %c0_575 = arith.constant 0 : index
    %232 = vector.load %arg5[%c0_573, %c240_574, %c0_575] : memref<2x250x24xf32, #tpu.memory_space<vmem>>, vector<2x10x24xf32>
    tpu.vector_store %arg5[%c0_573, %c240_574, %c0_575], %231 {strides = array<i32>} : memref<2x250x24xf32, #tpu.memory_space<vmem>>, vector<2x10x24xf32>,
    %c0_576 = arith.constant 0 : index
    %c0_577 = arith.constant 0 : index
    %c0_578 = arith.constant 0 : index
    %233 = vector.load %arg5[%c0_576, %c0_577, %c0_578] : memref<2x250x24xf32, #tpu.memory_space<vmem>>, vector<2x250x24xf32>
    "tpu.trace_start"() <{level = 10 : i32, message = "bok,bkl->bol"}> : () -> ()
    %cst_579 = arith.constant dense<0.000000e+00> : vector<2x20x24xf32>
    %234 = tpu.matmul %2, %233, %cst_579 {dimension_numbers = #tpu.dot_dimension_numbers<[2], [1], [1], [2], [0, 0, 0, 1, 1, 2], [0], [0]>} : vector<2x20x250xf32>, vector<2x250x24xf32>, vector<2x20x24xf32> -> vector<2x20x24xf32>
    "tpu.trace_stop"() : () -> ()
    %235 = arith.maximumf %157, %234 : vector<2x20x24xf32>
    %c0_580 = arith.constant 0 : index
    %c1_581 = arith.constant 1 : index
    %c1_582 = arith.constant 1 : index
    %c0_583 = arith.constant 0 : index
    %c0_584 = arith.constant 0 : index
    %236 = vector.load %arg1[%c0_580, %c1_581, %c1_582, %c0_583, %c0_584] : memref<2x2x2x10x38xf32, #tpu.memory_space<vmem>>, vector<2x1x1x10x24xf32>
    %237 = vector.shape_cast %236 : vector<2x1x1x10x24xf32> to vector<2x10x24xf32>
    %c0_585 = arith.constant 0 : index
    %c0_586 = arith.constant 0 : index
    %c0_587 = arith.constant 0 : index
    %238 = vector.load %arg5[%c0_585, %c0_586, %c0_587] : memref<2x250x24xf32, #tpu.memory_space<vmem>>, vector<2x10x24xf32>
    tpu.vector_store %arg5[%c0_585, %c0_586, %c0_587], %237 {strides = array<i32>} : memref<2x250x24xf32, #tpu.memory_space<vmem>>, vector<2x10x24xf32>,
    %c0_588 = arith.constant 0 : index
    %c1_589 = arith.constant 1 : index
    %c0_590 = arith.constant 0 : index
    %c0_591 = arith.constant 0 : index
    %c1_592 = arith.constant 1 : index
    %239 = vector.load %arg1[%c0_588, %c1_589, %c0_590, %c0_591, %c1_592] : memref<2x2x2x10x38xf32, #tpu.memory_space<vmem>>, vector<2x1x1x10x24xf32>
    %240 = vector.shape_cast %239 : vector<2x1x1x10x24xf32> to vector<2x10x24xf32>
    %c0_593 = arith.constant 0 : index
    %c10_594 = arith.constant 10 : index
    %c0_595 = arith.constant 0 : index
    %241 = vector.load %arg5[%c0_593, %c10_594, %c0_595] : memref<2x250x24xf32, #tpu.memory_space<vmem>>, vector<2x10x24xf32>
    tpu.vector_store %arg5[%c0_593, %c10_594, %c0_595], %240 {strides = array<i32>} : memref<2x250x24xf32, #tpu.memory_space<vmem>>, vector<2x10x24xf32>,
    %c0_596 = arith.constant 0 : index
    %c1_597 = arith.constant 1 : index
    %c1_598 = arith.constant 1 : index
    %c0_599 = arith.constant 0 : index
    %c1_600 = arith.constant 1 : index
    %242 = vector.load %arg1[%c0_596, %c1_597, %c1_598, %c0_599, %c1_600] : memref<2x2x2x10x38xf32, #tpu.memory_space<vmem>>, vector<2x1x1x10x24xf32>
    %243 = vector.shape_cast %242 : vector<2x1x1x10x24xf32> to vector<2x10x24xf32>
    %c0_601 = arith.constant 0 : index
    %c20_602 = arith.constant 20 : index
    %c0_603 = arith.constant 0 : index
    %244 = vector.load %arg5[%c0_601, %c20_602, %c0_603] : memref<2x250x24xf32, #tpu.memory_space<vmem>>, vector<2x10x24xf32>
    tpu.vector_store %arg5[%c0_601, %c20_602, %c0_603], %243 {strides = array<i32>} : memref<2x250x24xf32, #tpu.memory_space<vmem>>, vector<2x10x24xf32>,
    %c0_604 = arith.constant 0 : index
    %c1_605 = arith.constant 1 : index
    %c0_606 = arith.constant 0 : index
    %c0_607 = arith.constant 0 : index
    %c2_608 = arith.constant 2 : index
    %245 = vector.load %arg1[%c0_604, %c1_605, %c0_606, %c0_607, %c2_608] : memref<2x2x2x10x38xf32, #tpu.memory_space<vmem>>, vector<2x1x1x10x24xf32>
    %246 = vector.shape_cast %245 : vector<2x1x1x10x24xf32> to vector<2x10x24xf32>
    %c0_609 = arith.constant 0 : index
    %c30_610 = arith.constant 30 : index
    %c0_611 = arith.constant 0 : index
    %247 = vector.load %arg5[%c0_609, %c30_610, %c0_611] : memref<2x250x24xf32, #tpu.memory_space<vmem>>, vector<2x10x24xf32>
    tpu.vector_store %arg5[%c0_609, %c30_610, %c0_611], %246 {strides = array<i32>} : memref<2x250x24xf32, #tpu.memory_space<vmem>>, vector<2x10x24xf32>,
    %c0_612 = arith.constant 0 : index
    %c1_613 = arith.constant 1 : index
    %c1_614 = arith.constant 1 : index
    %c0_615 = arith.constant 0 : index
    %c2_616 = arith.constant 2 : index
    %248 = vector.load %arg1[%c0_612, %c1_613, %c1_614, %c0_615, %c2_616] : memref<2x2x2x10x38xf32, #tpu.memory_space<vmem>>, vector<2x1x1x10x24xf32>
    %249 = vector.shape_cast %248 : vector<2x1x1x10x24xf32> to vector<2x10x24xf32>
    %c0_617 = arith.constant 0 : index
    %c40_618 = arith.constant 40 : index
    %c0_619 = arith.constant 0 : index
    %250 = vector.load %arg5[%c0_617, %c40_618, %c0_619] : memref<2x250x24xf32, #tpu.memory_space<vmem>>, vector<2x10x24xf32>
    tpu.vector_store %arg5[%c0_617, %c40_618, %c0_619], %249 {strides = array<i32>} : memref<2x250x24xf32, #tpu.memory_space<vmem>>, vector<2x10x24xf32>,
    %c0_620 = arith.constant 0 : index
    %c0_621 = arith.constant 0 : index
    %c1_622 = arith.constant 1 : index
    %c0_623 = arith.constant 0 : index
    %c6_624 = arith.constant 6 : index
    %251 = vector.load %arg1[%c0_620, %c0_621, %c1_622, %c0_623, %c6_624] : memref<2x2x2x10x38xf32, #tpu.memory_space<vmem>>, vector<2x1x1x10x24xf32>
    %252 = vector.shape_cast %251 : vector<2x1x1x10x24xf32> to vector<2x10x24xf32>
    %c0_625 = arith.constant 0 : index
    %c50_626 = arith.constant 50 : index
    %c0_627 = arith.constant 0 : index
    %253 = vector.load %arg5[%c0_625, %c50_626, %c0_627] : memref<2x250x24xf32, #tpu.memory_space<vmem>>, vector<2x10x24xf32>
    tpu.vector_store %arg5[%c0_625, %c50_626, %c0_627], %252 {strides = array<i32>} : memref<2x250x24xf32, #tpu.memory_space<vmem>>, vector<2x10x24xf32>,
    %c0_628 = arith.constant 0 : index
    %c0_629 = arith.constant 0 : index
    %c0_630 = arith.constant 0 : index
    %c0_631 = arith.constant 0 : index
    %c7_632 = arith.constant 7 : index
    %254 = vector.load %arg1[%c0_628, %c0_629, %c0_630, %c0_631, %c7_632] : memref<2x2x2x10x38xf32, #tpu.memory_space<vmem>>, vector<2x1x1x10x24xf32>
    %255 = vector.shape_cast %254 : vector<2x1x1x10x24xf32> to vector<2x10x24xf32>
    %c0_633 = arith.constant 0 : index
    %c60_634 = arith.constant 60 : index
    %c0_635 = arith.constant 0 : index
    %256 = vector.load %arg5[%c0_633, %c60_634, %c0_635] : memref<2x250x24xf32, #tpu.memory_space<vmem>>, vector<2x10x24xf32>
    tpu.vector_store %arg5[%c0_633, %c60_634, %c0_635], %255 {strides = array<i32>} : memref<2x250x24xf32, #tpu.memory_space<vmem>>, vector<2x10x24xf32>,
    %c0_636 = arith.constant 0 : index
    %c0_637 = arith.constant 0 : index
    %c1_638 = arith.constant 1 : index
    %c0_639 = arith.constant 0 : index
    %c7_640 = arith.constant 7 : index
    %257 = vector.load %arg1[%c0_636, %c0_637, %c1_638, %c0_639, %c7_640] : memref<2x2x2x10x38xf32, #tpu.memory_space<vmem>>, vector<2x1x1x10x24xf32>
    %258 = vector.shape_cast %257 : vector<2x1x1x10x24xf32> to vector<2x10x24xf32>
    %c0_641 = arith.constant 0 : index
    %c70_642 = arith.constant 70 : index
    %c0_643 = arith.constant 0 : index
    %259 = vector.load %arg5[%c0_641, %c70_642, %c0_643] : memref<2x250x24xf32, #tpu.memory_space<vmem>>, vector<2x10x24xf32>
    tpu.vector_store %arg5[%c0_641, %c70_642, %c0_643], %258 {strides = array<i32>} : memref<2x250x24xf32, #tpu.memory_space<vmem>>, vector<2x10x24xf32>,
    %c0_644 = arith.constant 0 : index
    %c0_645 = arith.constant 0 : index
    %c0_646 = arith.constant 0 : index
    %c0_647 = arith.constant 0 : index
    %c8_648 = arith.constant 8 : index
    %260 = vector.load %arg1[%c0_644, %c0_645, %c0_646, %c0_647, %c8_648] : memref<2x2x2x10x38xf32, #tpu.memory_space<vmem>>, vector<2x1x1x10x24xf32>
    %261 = vector.shape_cast %260 : vector<2x1x1x10x24xf32> to vector<2x10x24xf32>
    %c0_649 = arith.constant 0 : index
    %c80_650 = arith.constant 80 : index
    %c0_651 = arith.constant 0 : index
    %262 = vector.load %arg5[%c0_649, %c80_650, %c0_651] : memref<2x250x24xf32, #tpu.memory_space<vmem>>, vector<2x10x24xf32>
    tpu.vector_store %arg5[%c0_649, %c80_650, %c0_651], %261 {strides = array<i32>} : memref<2x250x24xf32, #tpu.memory_space<vmem>>, vector<2x10x24xf32>,
    %c0_652 = arith.constant 0 : index
    %c0_653 = arith.constant 0 : index
    %c1_654 = arith.constant 1 : index
    %c0_655 = arith.constant 0 : index
    %c8_656 = arith.constant 8 : index
    %263 = vector.load %arg1[%c0_652, %c0_653, %c1_654, %c0_655, %c8_656] : memref<2x2x2x10x38xf32, #tpu.memory_space<vmem>>, vector<2x1x1x10x24xf32>
    %264 = vector.shape_cast %263 : vector<2x1x1x10x24xf32> to vector<2x10x24xf32>
    %c0_657 = arith.constant 0 : index
    %c90_658 = arith.constant 90 : index
    %c0_659 = arith.constant 0 : index
    %265 = vector.load %arg5[%c0_657, %c90_658, %c0_659] : memref<2x250x24xf32, #tpu.memory_space<vmem>>, vector<2x10x24xf32>
    tpu.vector_store %arg5[%c0_657, %c90_658, %c0_659], %264 {strides = array<i32>} : memref<2x250x24xf32, #tpu.memory_space<vmem>>, vector<2x10x24xf32>,
    %c0_660 = arith.constant 0 : index
    %c1_661 = arith.constant 1 : index
    %c1_662 = arith.constant 1 : index
    %c0_663 = arith.constant 0 : index
    %c6_664 = arith.constant 6 : index
    %266 = vector.load %arg1[%c0_660, %c1_661, %c1_662, %c0_663, %c6_664] : memref<2x2x2x10x38xf32, #tpu.memory_space<vmem>>, vector<2x1x1x10x24xf32>
    %267 = vector.shape_cast %266 : vector<2x1x1x10x24xf32> to vector<2x10x24xf32>
    %c0_665 = arith.constant 0 : index
    %c100_666 = arith.constant 100 : index
    %c0_667 = arith.constant 0 : index
    %268 = vector.load %arg5[%c0_665, %c100_666, %c0_667] : memref<2x250x24xf32, #tpu.memory_space<vmem>>, vector<2x10x24xf32>
    tpu.vector_store %arg5[%c0_665, %c100_666, %c0_667], %267 {strides = array<i32>} : memref<2x250x24xf32, #tpu.memory_space<vmem>>, vector<2x10x24xf32>,
    %c0_668 = arith.constant 0 : index
    %c1_669 = arith.constant 1 : index
    %c0_670 = arith.constant 0 : index
    %c0_671 = arith.constant 0 : index
    %c7_672 = arith.constant 7 : index
    %269 = vector.load %arg1[%c0_668, %c1_669, %c0_670, %c0_671, %c7_672] : memref<2x2x2x10x38xf32, #tpu.memory_space<vmem>>, vector<2x1x1x10x24xf32>
    %270 = vector.shape_cast %269 : vector<2x1x1x10x24xf32> to vector<2x10x24xf32>
    %c0_673 = arith.constant 0 : index
    %c110_674 = arith.constant 110 : index
    %c0_675 = arith.constant 0 : index
    %271 = vector.load %arg5[%c0_673, %c110_674, %c0_675] : memref<2x250x24xf32, #tpu.memory_space<vmem>>, vector<2x10x24xf32>
    tpu.vector_store %arg5[%c0_673, %c110_674, %c0_675], %270 {strides = array<i32>} : memref<2x250x24xf32, #tpu.memory_space<vmem>>, vector<2x10x24xf32>,
    %c0_676 = arith.constant 0 : index
    %c1_677 = arith.constant 1 : index
    %c1_678 = arith.constant 1 : index
    %c0_679 = arith.constant 0 : index
    %c7_680 = arith.constant 7 : index
    %272 = vector.load %arg1[%c0_676, %c1_677, %c1_678, %c0_679, %c7_680] : memref<2x2x2x10x38xf32, #tpu.memory_space<vmem>>, vector<2x1x1x10x24xf32>
    %273 = vector.shape_cast %272 : vector<2x1x1x10x24xf32> to vector<2x10x24xf32>
    %c0_681 = arith.constant 0 : index
    %c120_682 = arith.constant 120 : index
    %c0_683 = arith.constant 0 : index
    %274 = vector.load %arg5[%c0_681, %c120_682, %c0_683] : memref<2x250x24xf32, #tpu.memory_space<vmem>>, vector<2x10x24xf32>
    tpu.vector_store %arg5[%c0_681, %c120_682, %c0_683], %273 {strides = array<i32>} : memref<2x250x24xf32, #tpu.memory_space<vmem>>, vector<2x10x24xf32>,
    %c0_684 = arith.constant 0 : index
    %c1_685 = arith.constant 1 : index
    %c0_686 = arith.constant 0 : index
    %c0_687 = arith.constant 0 : index
    %c8_688 = arith.constant 8 : index
    %275 = vector.load %arg1[%c0_684, %c1_685, %c0_686, %c0_687, %c8_688] : memref<2x2x2x10x38xf32, #tpu.memory_space<vmem>>, vector<2x1x1x10x24xf32>
    %276 = vector.shape_cast %275 : vector<2x1x1x10x24xf32> to vector<2x10x24xf32>
    %c0_689 = arith.constant 0 : index
    %c130_690 = arith.constant 130 : index
    %c0_691 = arith.constant 0 : index
    %277 = vector.load %arg5[%c0_689, %c130_690, %c0_691] : memref<2x250x24xf32, #tpu.memory_space<vmem>>, vector<2x10x24xf32>
    tpu.vector_store %arg5[%c0_689, %c130_690, %c0_691], %276 {strides = array<i32>} : memref<2x250x24xf32, #tpu.memory_space<vmem>>, vector<2x10x24xf32>,
    %c0_692 = arith.constant 0 : index
    %c1_693 = arith.constant 1 : index
    %c1_694 = arith.constant 1 : index
    %c0_695 = arith.constant 0 : index
    %c8_696 = arith.constant 8 : index
    %278 = vector.load %arg1[%c0_692, %c1_693, %c1_694, %c0_695, %c8_696] : memref<2x2x2x10x38xf32, #tpu.memory_space<vmem>>, vector<2x1x1x10x24xf32>
    %279 = vector.shape_cast %278 : vector<2x1x1x10x24xf32> to vector<2x10x24xf32>
    %c0_697 = arith.constant 0 : index
    %c140_698 = arith.constant 140 : index
    %c0_699 = arith.constant 0 : index
    %280 = vector.load %arg5[%c0_697, %c140_698, %c0_699] : memref<2x250x24xf32, #tpu.memory_space<vmem>>, vector<2x10x24xf32>
    tpu.vector_store %arg5[%c0_697, %c140_698, %c0_699], %279 {strides = array<i32>} : memref<2x250x24xf32, #tpu.memory_space<vmem>>, vector<2x10x24xf32>,
    %c0_700 = arith.constant 0 : index
    %c0_701 = arith.constant 0 : index
    %c1_702 = arith.constant 1 : index
    %c0_703 = arith.constant 0 : index
    %c12_704 = arith.constant 12 : index
    %281 = vector.load %arg1[%c0_700, %c0_701, %c1_702, %c0_703, %c12_704] : memref<2x2x2x10x38xf32, #tpu.memory_space<vmem>>, vector<2x1x1x10x24xf32>
    %282 = vector.shape_cast %281 : vector<2x1x1x10x24xf32> to vector<2x10x24xf32>
    %c0_705 = arith.constant 0 : index
    %c150_706 = arith.constant 150 : index
    %c0_707 = arith.constant 0 : index
    %283 = vector.load %arg5[%c0_705, %c150_706, %c0_707] : memref<2x250x24xf32, #tpu.memory_space<vmem>>, vector<2x10x24xf32>
    tpu.vector_store %arg5[%c0_705, %c150_706, %c0_707], %282 {strides = array<i32>} : memref<2x250x24xf32, #tpu.memory_space<vmem>>, vector<2x10x24xf32>,
    %c0_708 = arith.constant 0 : index
    %c0_709 = arith.constant 0 : index
    %c0_710 = arith.constant 0 : index
    %c0_711 = arith.constant 0 : index
    %c13_712 = arith.constant 13 : index
    %284 = vector.load %arg1[%c0_708, %c0_709, %c0_710, %c0_711, %c13_712] : memref<2x2x2x10x38xf32, #tpu.memory_space<vmem>>, vector<2x1x1x10x24xf32>
    %285 = vector.shape_cast %284 : vector<2x1x1x10x24xf32> to vector<2x10x24xf32>
    %c0_713 = arith.constant 0 : index
    %c160_714 = arith.constant 160 : index
    %c0_715 = arith.constant 0 : index
    %286 = vector.load %arg5[%c0_713, %c160_714, %c0_715] : memref<2x250x24xf32, #tpu.memory_space<vmem>>, vector<2x10x24xf32>
    tpu.vector_store %arg5[%c0_713, %c160_714, %c0_715], %285 {strides = array<i32>} : memref<2x250x24xf32, #tpu.memory_space<vmem>>, vector<2x10x24xf32>,
    %c0_716 = arith.constant 0 : index
    %c0_717 = arith.constant 0 : index
    %c1_718 = arith.constant 1 : index
    %c0_719 = arith.constant 0 : index
    %c13_720 = arith.constant 13 : index
    %287 = vector.load %arg1[%c0_716, %c0_717, %c1_718, %c0_719, %c13_720] : memref<2x2x2x10x38xf32, #tpu.memory_space<vmem>>, vector<2x1x1x10x24xf32>
    %288 = vector.shape_cast %287 : vector<2x1x1x10x24xf32> to vector<2x10x24xf32>
    %c0_721 = arith.constant 0 : index
    %c170_722 = arith.constant 170 : index
    %c0_723 = arith.constant 0 : index
    %289 = vector.load %arg5[%c0_721, %c170_722, %c0_723] : memref<2x250x24xf32, #tpu.memory_space<vmem>>, vector<2x10x24xf32>
    tpu.vector_store %arg5[%c0_721, %c170_722, %c0_723], %288 {strides = array<i32>} : memref<2x250x24xf32, #tpu.memory_space<vmem>>, vector<2x10x24xf32>,
    %c0_724 = arith.constant 0 : index
    %c0_725 = arith.constant 0 : index
    %c0_726 = arith.constant 0 : index
    %c0_727 = arith.constant 0 : index
    %c14_728 = arith.constant 14 : index
    %290 = vector.load %arg1[%c0_724, %c0_725, %c0_726, %c0_727, %c14_728] : memref<2x2x2x10x38xf32, #tpu.memory_space<vmem>>, vector<2x1x1x10x24xf32>
    %291 = vector.shape_cast %290 : vector<2x1x1x10x24xf32> to vector<2x10x24xf32>
    %c0_729 = arith.constant 0 : index
    %c180_730 = arith.constant 180 : index
    %c0_731 = arith.constant 0 : index
    %292 = vector.load %arg5[%c0_729, %c180_730, %c0_731] : memref<2x250x24xf32, #tpu.memory_space<vmem>>, vector<2x10x24xf32>
    tpu.vector_store %arg5[%c0_729, %c180_730, %c0_731], %291 {strides = array<i32>} : memref<2x250x24xf32, #tpu.memory_space<vmem>>, vector<2x10x24xf32>,
    %c0_732 = arith.constant 0 : index
    %c0_733 = arith.constant 0 : index
    %c1_734 = arith.constant 1 : index
    %c0_735 = arith.constant 0 : index
    %c14_736 = arith.constant 14 : index
    %293 = vector.load %arg1[%c0_732, %c0_733, %c1_734, %c0_735, %c14_736] : memref<2x2x2x10x38xf32, #tpu.memory_space<vmem>>, vector<2x1x1x10x24xf32>
    %294 = vector.shape_cast %293 : vector<2x1x1x10x24xf32> to vector<2x10x24xf32>
    %c0_737 = arith.constant 0 : index
    %c190_738 = arith.constant 190 : index
    %c0_739 = arith.constant 0 : index
    %295 = vector.load %arg5[%c0_737, %c190_738, %c0_739] : memref<2x250x24xf32, #tpu.memory_space<vmem>>, vector<2x10x24xf32>
    tpu.vector_store %arg5[%c0_737, %c190_738, %c0_739], %294 {strides = array<i32>} : memref<2x250x24xf32, #tpu.memory_space<vmem>>, vector<2x10x24xf32>,
    %c0_740 = arith.constant 0 : index
    %c1_741 = arith.constant 1 : index
    %c1_742 = arith.constant 1 : index
    %c0_743 = arith.constant 0 : index
    %c12_744 = arith.constant 12 : index
    %296 = vector.load %arg1[%c0_740, %c1_741, %c1_742, %c0_743, %c12_744] : memref<2x2x2x10x38xf32, #tpu.memory_space<vmem>>, vector<2x1x1x10x24xf32>
    %297 = vector.shape_cast %296 : vector<2x1x1x10x24xf32> to vector<2x10x24xf32>
    %c0_745 = arith.constant 0 : index
    %c200_746 = arith.constant 200 : index
    %c0_747 = arith.constant 0 : index
    %298 = vector.load %arg5[%c0_745, %c200_746, %c0_747] : memref<2x250x24xf32, #tpu.memory_space<vmem>>, vector<2x10x24xf32>
    tpu.vector_store %arg5[%c0_745, %c200_746, %c0_747], %297 {strides = array<i32>} : memref<2x250x24xf32, #tpu.memory_space<vmem>>, vector<2x10x24xf32>,
    %c0_748 = arith.constant 0 : index
    %c1_749 = arith.constant 1 : index
    %c0_750 = arith.constant 0 : index
    %c0_751 = arith.constant 0 : index
    %c13_752 = arith.constant 13 : index
    %299 = vector.load %arg1[%c0_748, %c1_749, %c0_750, %c0_751, %c13_752] : memref<2x2x2x10x38xf32, #tpu.memory_space<vmem>>, vector<2x1x1x10x24xf32>
    %300 = vector.shape_cast %299 : vector<2x1x1x10x24xf32> to vector<2x10x24xf32>
    %c0_753 = arith.constant 0 : index
    %c210_754 = arith.constant 210 : index
    %c0_755 = arith.constant 0 : index
    %301 = vector.load %arg5[%c0_753, %c210_754, %c0_755] : memref<2x250x24xf32, #tpu.memory_space<vmem>>, vector<2x10x24xf32>
    tpu.vector_store %arg5[%c0_753, %c210_754, %c0_755], %300 {strides = array<i32>} : memref<2x250x24xf32, #tpu.memory_space<vmem>>, vector<2x10x24xf32>,
    %c0_756 = arith.constant 0 : index
    %c1_757 = arith.constant 1 : index
    %c1_758 = arith.constant 1 : index
    %c0_759 = arith.constant 0 : index
    %c13_760 = arith.constant 13 : index
    %302 = vector.load %arg1[%c0_756, %c1_757, %c1_758, %c0_759, %c13_760] : memref<2x2x2x10x38xf32, #tpu.memory_space<vmem>>, vector<2x1x1x10x24xf32>
    %303 = vector.shape_cast %302 : vector<2x1x1x10x24xf32> to vector<2x10x24xf32>
    %c0_761 = arith.constant 0 : index
    %c220_762 = arith.constant 220 : index
    %c0_763 = arith.constant 0 : index
    %304 = vector.load %arg5[%c0_761, %c220_762, %c0_763] : memref<2x250x24xf32, #tpu.memory_space<vmem>>, vector<2x10x24xf32>
    tpu.vector_store %arg5[%c0_761, %c220_762, %c0_763], %303 {strides = array<i32>} : memref<2x250x24xf32, #tpu.memory_space<vmem>>, vector<2x10x24xf32>,
    %c0_764 = arith.constant 0 : index
    %c1_765 = arith.constant 1 : index
    %c0_766 = arith.constant 0 : index
    %c0_767 = arith.constant 0 : index
    %c14_768 = arith.constant 14 : index
    %305 = vector.load %arg1[%c0_764, %c1_765, %c0_766, %c0_767, %c14_768] : memref<2x2x2x10x38xf32, #tpu.memory_space<vmem>>, vector<2x1x1x10x24xf32>
    %306 = vector.shape_cast %305 : vector<2x1x1x10x24xf32> to vector<2x10x24xf32>
    %c0_769 = arith.constant 0 : index
    %c230_770 = arith.constant 230 : index
    %c0_771 = arith.constant 0 : index
    %307 = vector.load %arg5[%c0_769, %c230_770, %c0_771] : memref<2x250x24xf32, #tpu.memory_space<vmem>>, vector<2x10x24xf32>
    tpu.vector_store %arg5[%c0_769, %c230_770, %c0_771], %306 {strides = array<i32>} : memref<2x250x24xf32, #tpu.memory_space<vmem>>, vector<2x10x24xf32>,
    %c0_772 = arith.constant 0 : index
    %c1_773 = arith.constant 1 : index
    %c1_774 = arith.constant 1 : index
    %c0_775 = arith.constant 0 : index
    %c14_776 = arith.constant 14 : index
    %308 = vector.load %arg1[%c0_772, %c1_773, %c1_774, %c0_775, %c14_776] : memref<2x2x2x10x38xf32, #tpu.memory_space<vmem>>, vector<2x1x1x10x24xf32>
    %309 = vector.shape_cast %308 : vector<2x1x1x10x24xf32> to vector<2x10x24xf32>
    %c0_777 = arith.constant 0 : index
    %c240_778 = arith.constant 240 : index
    %c0_779 = arith.constant 0 : index
    %310 = vector.load %arg5[%c0_777, %c240_778, %c0_779] : memref<2x250x24xf32, #tpu.memory_space<vmem>>, vector<2x10x24xf32>
    tpu.vector_store %arg5[%c0_777, %c240_778, %c0_779], %309 {strides = array<i32>} : memref<2x250x24xf32, #tpu.memory_space<vmem>>, vector<2x10x24xf32>,
    %c0_780 = arith.constant 0 : index
    %c0_781 = arith.constant 0 : index
    %c0_782 = arith.constant 0 : index
    %311 = vector.load %arg5[%c0_780, %c0_781, %c0_782] : memref<2x250x24xf32, #tpu.memory_space<vmem>>, vector<2x250x24xf32>
    "tpu.trace_start"() <{level = 10 : i32, message = "bok,bkl->bol"}> : () -> ()
    %cst_783 = arith.constant dense<0.000000e+00> : vector<2x20x24xf32>
    %312 = tpu.matmul %2, %311, %cst_783 {dimension_numbers = #tpu.dot_dimension_numbers<[2], [1], [1], [2], [0, 0, 0, 1, 1, 2], [0], [0]>} : vector<2x20x250xf32>, vector<2x250x24xf32>, vector<2x20x24xf32> -> vector<2x20x24xf32>
    "tpu.trace_stop"() : () -> ()
    %313 = arith.maximumf %235, %312 : vector<2x20x24xf32>
    %c0_784 = arith.constant 0 : index
    %c0_785 = arith.constant 0 : index
    %c0_786 = arith.constant 0 : index
    %314 = vector.load %arg3[%c0_784, %c0_785, %c0_786] : memref<1x20x1xf32, #tpu.memory_space<vmem>>, vector<1x20x1xf32>
    %315 = vector.broadcast %314 : vector<1x20x1xf32> to vector<2x20x24xf32>
    %316 = arith.addf %313, %315 : vector<2x20x24xf32>
    %cst_787 = arith.constant 0.000000e+00 : f32
    %317 = vector.broadcast %cst_787 : f32 to vector<2x20x24xf32>
    %318 = arith.maximumf %316, %317 : vector<2x20x24xf32>
    %c0_788 = arith.constant 0 : index
    %c0_789 = arith.constant 0 : index
    %c0_790 = arith.constant 0 : index
    %319 = vector.load %arg4[%c0_788, %c0_789, %c0_790] : memref<2x20x24xf32, #tpu.memory_space<vmem>>, vector<2x20x24xf32>
    tpu.vector_store %arg4[%c0_788, %c0_789, %c0_790], %318 {strides = array<i32>} : memref<2x20x24xf32, #tpu.memory_space<vmem>>, vector<2x20x24xf32>,
    return
  }
  func.func @transform_0(%arg0: i32) -> (i32, i32, i32, i32, i32) {
    %c0_i32 = arith.constant 0 : i32
    %c0_i32_0 = arith.constant 0 : i32
    %c0_i32_1 = arith.constant 0 : i32
    %c0_i32_2 = arith.constant 0 : i32
    %c0_i32_3 = arith.constant 0 : i32
    return %arg0, %c0_i32, %c0_i32_0, %c0_i32_1, %c0_i32_2 : i32, i32, i32, i32, i32
  }
  func.func @transform_1(%arg0: i32) -> (i32, i32) {
    %c0_i32 = arith.constant 0 : i32
    %c0_i32_0 = arith.constant 0 : i32
    %c0_i32_1 = arith.constant 0 : i32
    return %c0_i32, %c0_i32_0 : i32, i32
  }
  func.func @transform_2(%arg0: i32) -> (i32, i32, i32) {
    %c0_i32 = arith.constant 0 : i32
    %c0_i32_0 = arith.constant 0 : i32
    %c0_i32_1 = arith.constant 0 : i32
    %c0_i32_2 = arith.constant 0 : i32
    return %c0_i32, %c0_i32_0, %c0_i32_1 : i32, i32, i32
  }
  func.func @transform_3(%arg0: i32) -> (i32, i32, i32) {
    %c0_i32 = arith.constant 0 : i32
    %c0_i32_0 = arith.constant 0 : i32
    %c0_i32_1 = arith.constant 0 : i32
    return %arg0, %c0_i32, %c0_i32_0 : i32, i32, i32
  }
}

module attributes {stable_mosaic.version = 11 : i64} {
  func.func @_fc_head_kernel(%arg0: i32, %arg1: memref<2x320xf32, #tpu.memory_space<vmem>>, %arg2: memref<320x50xf32, #tpu.memory_space<vmem>>, %arg3: memref<1x50xf32, #tpu.memory_space<vmem>>, %arg4: memref<50x10xf32, #tpu.memory_space<vmem>>, %arg5: memref<1x10xf32, #tpu.memory_space<vmem>>, %arg6: memref<2x10xf32, #tpu.memory_space<vmem>>) attributes {dimension_semantics = [#tpu.dimension_semantics<parallel>], iteration_bounds = array<i64: 1>, scalar_prefetch = 0 : i64, scratch_operands = 0 : i64, tpu.core_type = #tpu.core_type<tc>, window_params = [{transform_indices = @transform_0, window_bounds = array<i64: 2, 320>}, {pipeline_mode = #tpu.pipeline_mode<synchronous>, transform_indices = @transform_1, window_bounds = array<i64: 320, 50>}, {pipeline_mode = #tpu.pipeline_mode<synchronous>, transform_indices = @transform_2, window_bounds = array<i64: 1, 50>}, {pipeline_mode = #tpu.pipeline_mode<synchronous>, transform_indices = @transform_3, window_bounds = array<i64: 50, 10>}, {pipeline_mode = #tpu.pipeline_mode<synchronous>, transform_indices = @transform_4, window_bounds = array<i64: 1, 10>}, {transform_indices = @transform_5, window_bounds = array<i64: 2, 10>}]} {
    %c0 = arith.constant 0 : index
    %c0_0 = arith.constant 0 : index
    %0 = vector.load %arg1[%c0, %c0_0] : memref<2x320xf32, #tpu.memory_space<vmem>>, vector<2x320xf32>
    %c0_1 = arith.constant 0 : index
    %c0_2 = arith.constant 0 : index
    %1 = vector.load %arg2[%c0_1, %c0_2] : memref<320x50xf32, #tpu.memory_space<vmem>>, vector<320x50xf32>
    %cst = arith.constant dense<0.000000e+00> : vector<2x50xf32>
    %2 = tpu.matmul %0, %1, %cst {dimension_numbers = #tpu.dot_dimension_numbers<[1], [0], [0], [1], [0, 0, 1, 1], [], []>} : vector<2x320xf32>, vector<320x50xf32>, vector<2x50xf32> -> vector<2x50xf32>
    %c0_3 = arith.constant 0 : index
    %c0_4 = arith.constant 0 : index
    %3 = vector.load %arg3[%c0_3, %c0_4] : memref<1x50xf32, #tpu.memory_space<vmem>>, vector<1x50xf32>
    %4 = vector.broadcast %3 : vector<1x50xf32> to vector<2x50xf32>
    %5 = arith.addf %2, %4 : vector<2x50xf32>
    %cst_5 = arith.constant 0.000000e+00 : f32
    %6 = vector.broadcast %cst_5 : f32 to vector<2x50xf32>
    %7 = arith.maximumf %5, %6 : vector<2x50xf32>
    %c0_6 = arith.constant 0 : index
    %c0_7 = arith.constant 0 : index
    %8 = vector.load %arg4[%c0_6, %c0_7] : memref<50x10xf32, #tpu.memory_space<vmem>>, vector<50x10xf32>
    %cst_8 = arith.constant dense<0.000000e+00> : vector<2x10xf32>
    %9 = tpu.matmul %7, %8, %cst_8 {dimension_numbers = #tpu.dot_dimension_numbers<[1], [0], [0], [1], [0, 0, 1, 1], [], []>} : vector<2x50xf32>, vector<50x10xf32>, vector<2x10xf32> -> vector<2x10xf32>
    %c0_9 = arith.constant 0 : index
    %c0_10 = arith.constant 0 : index
    %10 = vector.load %arg5[%c0_9, %c0_10] : memref<1x10xf32, #tpu.memory_space<vmem>>, vector<1x10xf32>
    %11 = vector.broadcast %10 : vector<1x10xf32> to vector<2x10xf32>
    %12 = arith.addf %9, %11 : vector<2x10xf32>
    %cst_11 = arith.constant dense<0xFF800000> : vector<2xf32>
    %13 = vector.multi_reduction <maximumf>, %12, %cst_11 [1] : vector<2x10xf32> to vector<2xf32>
    %14 = vector.shape_cast %13 : vector<2xf32> to vector<2x1xf32>
    %15 = vector.broadcast %14 : vector<2x1xf32> to vector<2x10xf32>
    %16 = arith.subf %12, %15 : vector<2x10xf32>
    %17 = math.exp %16 : vector<2x10xf32>
    %cst_12 = arith.constant dense<0.000000e+00> : vector<2xf32>
    %18 = vector.multi_reduction <add>, %17, %cst_12 [1] : vector<2x10xf32> to vector<2xf32>
    %19 = vector.shape_cast %18 : vector<2xf32> to vector<2x1xf32>
    %20 = math.log %19 : vector<2x1xf32>
    %21 = vector.broadcast %20 : vector<2x1xf32> to vector<2x10xf32>
    %22 = arith.subf %16, %21 : vector<2x10xf32>
    %c0_13 = arith.constant 0 : index
    %c0_14 = arith.constant 0 : index
    %23 = vector.load %arg6[%c0_13, %c0_14] : memref<2x10xf32, #tpu.memory_space<vmem>>, vector<2x10xf32>
    tpu.vector_store %arg6[%c0_13, %c0_14], %22 {strides = array<i32>} : memref<2x10xf32, #tpu.memory_space<vmem>>, vector<2x10xf32>,
    return
  }
  func.func @transform_0(%arg0: i32) -> (i32, i32) {
    %c0_i32 = arith.constant 0 : i32
    %c0_i32_0 = arith.constant 0 : i32
    return %arg0, %c0_i32 : i32, i32
  }
  func.func @transform_1(%arg0: i32) -> (i32, i32) {
    %c0_i32 = arith.constant 0 : i32
    %c0_i32_0 = arith.constant 0 : i32
    %c0_i32_1 = arith.constant 0 : i32
    return %c0_i32, %c0_i32_0 : i32, i32
  }
  func.func @transform_2(%arg0: i32) -> (i32, i32) {
    %c0_i32 = arith.constant 0 : i32
    %c0_i32_0 = arith.constant 0 : i32
    %c0_i32_1 = arith.constant 0 : i32
    return %c0_i32, %c0_i32_0 : i32, i32
  }
  func.func @transform_3(%arg0: i32) -> (i32, i32) {
    %c0_i32 = arith.constant 0 : i32
    %c0_i32_0 = arith.constant 0 : i32
    %c0_i32_1 = arith.constant 0 : i32
    return %c0_i32, %c0_i32_0 : i32, i32
  }
  func.func @transform_4(%arg0: i32) -> (i32, i32) {
    %c0_i32 = arith.constant 0 : i32
    %c0_i32_0 = arith.constant 0 : i32
    %c0_i32_1 = arith.constant 0 : i32
    return %c0_i32, %c0_i32_0 : i32, i32
  }
  func.func @transform_5(%arg0: i32) -> (i32, i32) {
    %c0_i32 = arith.constant 0 : i32
    %c0_i32_0 = arith.constant 0 : i32
    return %arg0, %c0_i32 : i32, i32
  }
}

</mosaic_0001>

<llo_original>
// kernel: network_forward.5
$region0: #{network_forward.5}
  #allocation0 [shape = 'u32[]', space=smem, size = 0x4, offset = 0x4, fixed_abs, tag = 'smem constant byte address 0x4 - core index']
  #allocation1 [shape = 'u32[144,128]{1,0:T(1,128)}', space=vmem, size = 0x12000, scoped, tag = 'internal scratch']
  %s0 = inlined_call_operand.vmem [shape: f32[2,320], index: 0, kind: input, shape index: {}]
  %s1 = inlined_call_operand.vmem [shape: f32[320,50], index: 1, kind: input, shape index: {}]
  %s2 = inlined_call_operand.vmem [shape: f32[1,50], index: 2, kind: input, shape index: {}]
  %s3 = inlined_call_operand.vmem [shape: f32[50,10], index: 3, kind: input, shape index: {}]
  %s4 = inlined_call_operand.vmem [shape: f32[1,10], index: 4, kind: input, shape index: {}]
  %s5 = inlined_call_operand.hbm [shape: f32[2,10], index: 5, kind: output, shape index: {}]
  %s6 = sld [smem:[#allocation0]]
  $region30: #{network_forward.5} parent=0
    _
  %s8 = ssub.s32 1, %s6
  %s9 = scalar_select 0, %s8, %s6
  $region1: #{network_forward.5} parent=0
    #allocation2 [shape = 'u8[1024]{0}', space=vmem, size = 0x400, scoped, tag = 'output window, operand 0, single buffered']
    #allocation3 [shape = 's32[1]{0}', space=sflag, size = 0x4, scoped, tag = 'scoped memory for network_forward.5']
    %10 = vsyncpa [#allocation3], 0
    // Predicated region
    $region2: #{network_forward.5} parent=1 // pred_check
      _
    $region3: #{network_forward.5} parent=1 // pred_check_branch
      %12 = sbr.rel (0) target = $region5
    $region4: #{network_forward.5} parent=1 // pred_region
      _
    $region5: #{network_forward.5} parent=1 // pred_fallthru
      _
    // Predicated region
    $region6: #{network_forward.5} parent=1 // pred_check
      _
    $region7: #{network_forward.5} parent=1 // pred_check_branch
      %14 = sbr.rel (0) target = $region9
    $region8: #{network_forward.5} parent=1 // pred_region
      _
    $region9: #{network_forward.5} parent=1 // pred_fallthru
      _
    // Predicated region
    $region10: #{network_forward.5} parent=1 // pred_check
      _
    $region11: #{network_forward.5} parent=1 // pred_check_branch
      %16 = sbr.rel (0) target = $region13
    $region12: #{network_forward.5} parent=1 // pred_region
      _
    $region13: #{network_forward.5} parent=1 // pred_fallthru
      _
    // Predicated region
    $region14: #{network_forward.5} parent=1 // pred_check
      _
    $region15: #{network_forward.5} parent=1 // pred_check_branch
      %18 = sbr.rel (0) target = $region17
    $region16: #{network_forward.5} parent=1 // pred_region
      _
    $region17: #{network_forward.5} parent=1 // pred_fallthru
      _
    // Predicated region
    $region18: #{network_forward.5} parent=1 // pred_check
      _
    $region19: #{network_forward.5} parent=1 // pred_check_branch
      %20 = sbr.rel (0) target = $region21
    $region20: #{network_forward.5} parent=1 // pred_region
      _
    $region21: #{network_forward.5} parent=1 // pred_fallthru
      _
    %v21 = vld [vmem:[%s0] sm:$0x3f]
    %v22 = vld [vmem:[%s1] sm:$0xff]
    %v23 = vld [vmem:[%s1 + $0x8] sm:$0xff]
    %v24 = vld [vmem:[%s1 + $0x10] sm:$0xff]
    %v25 = vld [vmem:[%s1 + $0x18] sm:$0xff]
    %v26 = vld [vmem:[%s1 + $0x20] sm:$0xff]
    %v27 = vld [vmem:[%s1 + $0x28] sm:$0xff]
    %v28 = vld [vmem:[%s1 + $0x30] sm:$0xff]
    %v29 = vld [vmem:[%s1 + $0x38] sm:$0xff]
    %v30 = vld [vmem:[%s1 + $0x40] sm:$0xff]
    %v31 = vld [vmem:[%s1 + $0x48] sm:$0xff]
    %v32 = vld [vmem:[%s1 + $0x50] sm:$0xff]
    %v33 = vld [vmem:[%s1 + $0x58] sm:$0xff]
    %v34 = vld [vmem:[%s1 + $0x60] sm:$0xff]
    %v35 = vld [vmem:[%s1 + $0x68] sm:$0xff]
    %v36 = vld [vmem:[%s1 + $0x70] sm:$0xff]
    %v37 = vld [vmem:[%s1 + $0x78] sm:$0xff]
    %v38 = vld [vmem:[%s1 + $0x80] sm:$0xff]
    %v39 = vld [vmem:[%s1 + $0x88] sm:$0xff]
    %v40 = vld [vmem:[%s1 + $0x90] sm:$0xff]
    %v41 = vld [vmem:[%s1 + $0x98] sm:$0xff]
    %v42 = vld [vmem:[%s1 + $0xa0] sm:$0xff]
    %v43 = vld [vmem:[%s1 + $0xa8] sm:$0xff]
    %v44 = vld [vmem:[%s1 + $0xb0] sm:$0xff]
    %v45 = vld [vmem:[%s1 + $0xb8] sm:$0xff]
    %v46 = vld [vmem:[%s1 + $0xc0] sm:$0xff]
    %v47 = vld [vmem:[%s1 + $0xc8] sm:$0xff]
    %v48 = vld [vmem:[%s1 + $0xd0] sm:$0xff]
    %v49 = vld [vmem:[%s1 + $0xd8] sm:$0xff]
    %v50 = vld [vmem:[%s1 + $0xe0] sm:$0xff]
    %v51 = vld [vmem:[%s1 + $0xe8] sm:$0xff]
    %v52 = vld [vmem:[%s1 + $0xf0] sm:$0xff]
    %v53 = vld [vmem:[%s1 + $0xf8] sm:$0xff]
    %v54 = vld [vmem:[%s1 + $0x100] sm:$0xff]
    %v55 = vld [vmem:[%s1 + $0x108] sm:$0xff]
    %v56 = vld [vmem:[%s1 + $0x110] sm:$0xff]
    %v57 = vld [vmem:[%s1 + $0x118] sm:$0xff]
    %v58 = vld [vmem:[%s1 + $0x120] sm:$0xff]
    %v59 = vld [vmem:[%s1 + $0x128] sm:$0xff]
    %v60 = vld [vmem:[%s1 + $0x130] sm:$0xff]
    %v61 = vld [vmem:[%s1 + $0x138] sm:$0xff]
    %v62 = vld [vmem:[%s2] sm:$0x1]
    %v64 = vlaneseq
    %v65 = vshrl.u32 %v64, 7
    %v66 = vsub.s32 0, %v65
    %v67 = vrot.slane %v62, %v66
    %v70 = vcombine.high %v21, %v21
    %v72 = vunpack.c.l.s4 1983009808
    %v73 = vunpack.c.0.s8 %v72
    %v74 = vlaneseq
    %v75 = vshrl.u32 %v74, 7
    %v76 = vsub.s32 %v73, %v75
    %v77 = vrot.slane %v21, %v76
    %v79 = vunpack.c.l.s4 1983009808
    %v80 = vunpack.c.0.s8 %v79
    %v81 = vlaneseq
    %v82 = vshrl.u32 %v81, 7
    %v83 = vsub.s32 %v80, %v82
    %v84 = vrot.slane %v70, %v83
    %v85 = vcombine.high %v77, %v77
    %vm88 = vcmask 523264
    %v89 = vsel %vm88, %v84, 0
    %91 = vmatprep.subr.mxu0 0.0
    %92 = vmatpush1.msra.mxu0 %v22
    %93 = vmatprep.subr.mxu0 0.0
    %94 = vmatpush1.msra.mxu0 %v23
    %95 = vmatprep.subr.mxu0 0.0
    %96 = vmatpush1.msra.mxu0 %v24
    %97 = vmatprep.subr.mxu0 0.0
    %98 = vmatpush1.msra.mxu0 %v25
    %99 = vmatprep.subr.mxu0 0.0
    %100 = vmatpush1.msra.mxu0 %v26
    %101 = vmatprep.subr.mxu0 0.0
    %102 = vmatpush1.msra.mxu0 %v27
    %103 = vmatprep.subr.mxu0 0.0
    %104 = vmatpush1.msra.mxu0 %v28
    %105 = vmatprep.subr.mxu0 0.0
    %106 = vmatpush1.msra.mxu0 %v29
    %107 = vmatprep.subr.mxu0 0.0
    %108 = vmatpush1.msra.mxu0 %v30
    %109 = vmatprep.subr.mxu0 0.0
    %110 = vmatpush1.msra.mxu0 %v31
    %111 = vmatprep.subr.mxu0 0.0
    %112 = vmatpush1.msra.mxu0 %v32
    %113 = vmatprep.subr.mxu0 0.0
    %114 = vmatpush1.msra.mxu0 %v33
    %115 = vmatprep.subr.mxu0 0.0
    %116 = vmatpush1.msra.mxu0 %v34
    %117 = vmatprep.subr.mxu0 0.0
    %118 = vmatpush1.msra.mxu0 %v35
    %119 = vmatprep.subr.mxu0 0.0
    %120 = vmatpush1.msra.mxu0 %v36
    %121 = vmatprep.subr.mxu0 0.0
    %122 = vmatpush1.msra.mxu0 %v37
    %123 = vmatprep.subr.mxu0 0.0
    %124 = vmatpush1.msra.mxu0 %v38
    %125 = vmatprep.subr.mxu0 0.0
    %126 = vmatpush1.msra.mxu0 %v39
    %127 = vmatprep.subr.mxu0 0.0
    %128 = vmatpush1.msra.mxu0 %v40
    %129 = vmatprep.subr.mxu0 0.0
    %130 = vmatpush1.msra.mxu0 %v41
    %131 = vmatprep.subr.mxu0 0.0
    %132 = vmatpush1.msra.mxu0 %v42
    %133 = vmatprep.subr.mxu0 0.0
    %134 = vmatpush1.msra.mxu0 %v43
    %135 = vmatprep.subr.mxu0 0.0
    %136 = vmatpush1.msra.mxu0 %v44
    %137 = vmatprep.subr.mxu0 0.0
    %138 = vmatpush1.msra.mxu0 %v45
    %139 = vmatprep.subr.mxu0 0.0
    %140 = vmatpush1.msra.mxu0 %v46
    %141 = vmatprep.subr.mxu0 0.0
    %142 = vmatpush1.msra.mxu0 %v47
    %143 = vmatprep.subr.mxu0 0.0
    %144 = vmatpush1.msra.mxu0 %v48
    %145 = vmatprep.subr.mxu0 0.0
    %146 = vmatpush1.msra.mxu0 %v49
    %147 = vmatprep.subr.mxu0 0.0
    %148 = vmatpush1.msra.mxu0 %v50
    %149 = vmatprep.subr.mxu0 0.0
    %150 = vmatpush1.msra.mxu0 %v51
    %151 = vmatprep.subr.mxu0 0.0
    %152 = vmatpush1.msra.mxu0 %v52
    %153 = vmatprep.subr.mxu0 0.0
    %154 = vmatpush1.msra.mxu0 %v53
    %155 = vmatprep.mubr.f32.mxu0 %v85
    %156 = vmatmul.mubr.f32.gmra.mrb[0].mxu0 %v77
    %v157 = vpop.f32.mrb[0].mxu0
    %v158 = vadd.f32 %v67, %v157
    %v159 = vpop.f32.mrb[0].mxu0
    %160 = vdwg.mxu0
    %161 = vmatprep.subr.mxu0 0.0
    %162 = vmatpush1.msra.mxu0 %v54
    %163 = vmatprep.subr.mxu0 0.0
    %164 = vmatpush1.msra.mxu0 %v55
    %165 = vmatprep.subr.mxu0 0.0
    %166 = vmatpush1.msra.mxu0 %v56
    %167 = vmatprep.subr.mxu0 0.0
    %168 = vmatpush1.msra.mxu0 %v57
    %169 = vmatprep.subr.mxu0 0.0
    %170 = vmatpush1.msra.mxu0 %v58
    %171 = vmatprep.subr.mxu0 0.0
    %172 = vmatpush1.msra.mxu0 %v59
    %173 = vmatprep.subr.mxu0 0.0
    %174 = vmatpush1.msra.mxu0 %v60
    %175 = vmatprep.subr.mxu0 0.0
    %176 = vmatpush1.msra.mxu0 %v61
    %177 = vmatprep.subr.mxu0 0.0
    %178 = vmatpush1.msra.mxu0 0.0
    %179 = vmatprep.subr.mxu0 0.0
    %180 = vmatpush1.msra.mxu0 0.0
    %181 = vmatprep.subr.mxu0 0.0
    %182 = vmatpush1.msra.mxu0 0.0
    %183 = vmatprep.subr.mxu0 0.0
    %184 = vmatpush1.msra.mxu0 0.0
    %185 = vmatprep.subr.mxu0 0.0
    %186 = vmatpush1.msra.mxu0 0.0
    %187 = vmatprep.subr.mxu0 0.0
    %188 = vmatpush1.msra.mxu0 0.0
    %189 = vmatprep.subr.mxu0 0.0
    %190 = vmatpush1.msra.mxu0 0.0
    %191 = vmatprep.subr.mxu0 0.0
    %192 = vmatpush1.msra.mxu0 0.0
    %193 = vmatprep.subr.mxu0 0.0
    %194 = vmatpush1.msra.mxu0 0.0
    %195 = vmatprep.subr.mxu0 0.0
    %196 = vmatpush1.msra.mxu0 0.0
    %197 = vmatprep.subr.mxu0 0.0
    %198 = vmatpush1.msra.mxu0 0.0
    %199 = vmatprep.subr.mxu0 0.0
    %200 = vmatpush1.msra.mxu0 0.0
    %201 = vmatprep.subr.mxu0 0.0
    %202 = vmatpush1.msra.mxu0 0.0
    %203 = vmatprep.subr.mxu0 0.0
    %204 = vmatpush1.msra.mxu0 0.0
    %205 = vmatprep.subr.mxu0 0.0
    %206 = vmatpush1.msra.mxu0 0.0
    %207 = vmatprep.subr.mxu0 0.0
    %208 = vmatpush1.msra.mxu0 0.0
    %209 = vmatprep.subr.mxu0 0.0
    %210 = vmatpush1.msra.mxu0 0.0
    %211 = vmatprep.subr.mxu0 0.0
    %212 = vmatpush1.msra.mxu0 0.0
    %213 = vmatprep.subr.mxu0 0.0
    %214 = vmatpush1.msra.mxu0 0.0
    %215 = vmatprep.subr.mxu0 0.0
    %216 = vmatpush1.msra.mxu0 0.0
    %217 = vmatprep.subr.mxu0 0.0
    %218 = vmatpush1.msra.mxu0 0.0
    %219 = vmatprep.subr.mxu0 0.0
    %220 = vmatpush1.msra.mxu0 0.0
    %221 = vmatprep.subr.mxu0 0.0
    %222 = vmatpush1.msra.mxu0 0.0
    %223 = vmatprep.subr.mxu0 0.0
    %224 = vmatpush1.msra.mxu0 0.0
    %225 = vmatprep.mubr.f32.mxu0 0.0
    %226 = vmatmul.mubr.f32.gmra.mrb[0].mxu0 %v89
    %v227 = vpop.f32.mrb[0].mxu0
    %v228 = vadd.f32 %v158, %v227
    %v229 = vpop.f32.mrb[0].mxu0
    %230 = vdwg.mxu0
    %v231 = vmax.f32 %v228, 0.0
    %v232 = vld [vmem:[%s3] sm:$0xff]
    %v233 = vld [vmem:[%s3 + $0x8] sm:$0xff]
    %v234 = vld [vmem:[%s3 + $0x10] sm:$0xff]
    %v235 = vld [vmem:[%s3 + $0x18] sm:$0xff]
    %v236 = vld [vmem:[%s3 + $0x20] sm:$0xff]
    %v237 = vld [vmem:[%s3 + $0x28] sm:$0xff]
    %v238 = vld [vmem:[%s3 + $0x30] sm:$0x3]
    %v239 = vld [vmem:[%s4] sm:$0x1]
    %v241 = vlaneseq
    %v242 = vshrl.u32 %v241, 7
    %v243 = vsub.s32 0, %v242
    %v244 = vrot.slane %v239, %v243
    %vm246 = vcmask 408576
    %v248 = vsel %vm246, %v231, 0
    %vm250 = vcmask 1041408
    %v252 = vsel %vm250, %v238, 0
    %254 = vmatprep.subr.mxu0 0.0
    %255 = vmatpush1.msra.mxu0 %v232
    %256 = vmatprep.subr.mxu0 0.0
    %257 = vmatpush1.msra.mxu0 %v233
    %258 = vmatprep.subr.mxu0 0.0
    %259 = vmatpush1.msra.mxu0 %v234
    %260 = vmatprep.subr.mxu0 0.0
    %261 = vmatpush1.msra.mxu0 %v235
    %262 = vmatprep.subr.mxu0 0.0
    %263 = vmatpush1.msra.mxu0 %v236
    %264 = vmatprep.subr.mxu0 0.0
    %265 = vmatpush1.msra.mxu0 %v237
    %266 = vmatprep.subr.mxu0 0.0
    %267 = vmatpush1.msra.mxu0 %v252
    %268 = vmatprep.subr.mxu0 0.0
    %269 = vmatpush1.msra.mxu0 0.0
    %270 = vmatprep.subr.mxu0 0.0
    %271 = vmatpush1.msra.mxu0 0.0
    %272 = vmatprep.subr.mxu0 0.0
    %273 = vmatpush1.msra.mxu0 0.0
    %274 = vmatprep.subr.mxu0 0.0
    %275 = vmatpush1.msra.mxu0 0.0
    %276 = vmatprep.subr.mxu0 0.0
    %277 = vmatpush1.msra.mxu0 0.0
    %278 = vmatprep.subr.mxu0 0.0
    %279 = vmatpush1.msra.mxu0 0.0
    %280 = vmatprep.subr.mxu0 0.0
    %281 = vmatpush1.msra.mxu0 0.0
    %282 = vmatprep.subr.mxu0 0.0
    %283 = vmatpush1.msra.mxu0 0.0
    %284 = vmatprep.subr.mxu0 0.0
    %285 = vmatpush1.msra.mxu0 0.0
    %286 = vmatprep.subr.mxu0 0.0
    %287 = vmatpush1.msra.mxu0 0.0
    %288 = vmatprep.subr.mxu0 0.0
    %289 = vmatpush1.msra.mxu0 0.0
    %290 = vmatprep.subr.mxu0 0.0
    %291 = vmatpush1.msra.mxu0 0.0
    %292 = vmatprep.subr.mxu0 0.0
    %293 = vmatpush1.msra.mxu0 0.0
    %294 = vmatprep.subr.mxu0 0.0
    %295 = vmatpush1.msra.mxu0 0.0
    %296 = vmatprep.subr.mxu0 0.0
    %297 = vmatpush1.msra.mxu0 0.0
    %298 = vmatprep.subr.mxu0 0.0
    %299 = vmatpush1.msra.mxu0 0.0
    %300 = vmatprep.subr.mxu0 0.0
    %301 = vmatpush1.msra.mxu0 0.0
    %302 = vmatprep.subr.mxu0 0.0
    %303 = vmatpush1.msra.mxu0 0.0
    %304 = vmatprep.subr.mxu0 0.0
    %305 = vmatpush1.msra.mxu0 0.0
    %306 = vmatprep.subr.mxu0 0.0
    %307 = vmatpush1.msra.mxu0 0.0
    %308 = vmatprep.subr.mxu0 0.0
    %309 = vmatpush1.msra.mxu0 0.0
    %310 = vmatprep.subr.mxu0 0.0
    %311 = vmatpush1.msra.mxu0 0.0
    %312 = vmatprep.subr.mxu0 0.0
    %313 = vmatpush1.msra.mxu0 0.0
    %314 = vmatprep.subr.mxu0 0.0
    %315 = vmatpush1.msra.mxu0 0.0
    %316 = vmatprep.subr.mxu0 0.0
    %317 = vmatpush1.msra.mxu0 0.0
    %318 = vmatprep.mubr.f32.mxu0 0.0
    %319 = vmatmul.mubr.f32.gmra.mrb[0].mxu0 %v248
    %v320 = vpop.f32.mrb[0].mxu0
    %v321 = vadd.f32 %v244, %v320
    %v322 = vpop.f32.mrb[0].mxu0
    %323 = vdwg.mxu0
    %vm324 = vcmask 74752
    %v325 = vsel %vm324, %v321, -inf
    %326 = vmax.xlane.f32.xlu0 %v325
    %v327 = vpop.xlane.xlu0 %326
    %v328 = vsub.f32 %v321, %v327
    %v329 = vmul.f32 %v328, 1.442695
    %v330 = vpow.pop %v329
    %v331 = vsel %vm324, %v330, 0.0
    %332 = vadd.xlane.f32.xlu0 %v331
    %v333 = vpop.xlane.xlu0 %332
    %v334 = vlog2.pop %v333
    %v335 = vmul.f32 %v334, 0.6931472
    %v336 = vsub.f32 %v328, %v335
    %337 = vst.msk [vmem:[#allocation2] sm:$0x3] %vm324, %v336
    // Predicated region
    $region22: #{network_forward.5} parent=1 // pred_check
      _
    $region23: #{network_forward.5} parent=1 // pred_check_branch
      %339 = sbr.rel (0) target = $region25
    $region24: #{network_forward.5} parent=1 // pred_region
      %s341 = ssub.s32 32, 32
      %342 = vsyncadd [#allocation3], %s341
      %s344 = sshll.u32 [#allocation2], 4
      %s345 = int_to_ptr.vmem [resolvable:$true] %s344
      %347 = dma.vmem_to_hbm [thread:$0]  %s345, 32, %s5, [#allocation3]
    $region25: #{network_forward.5} parent=1 // pred_fallthru
      _
    // Predicated region
    $region26: #{network_forward.5} parent=1 // pred_check
      _
    $region27: #{network_forward.5} parent=1 // pred_check_branch
      %349 = sbr.rel (0) target = $region29
    $region28: #{network_forward.5} parent=1 // pred_region
      %350 = dma.done [#allocation3], 32
    $region29: #{network_forward.5} parent=1 // pred_fallthru
      _
    %351 = vsyncpa [#allocation3], 1

// kernel: network_forward.3
$region0: #{network_forward.3}
  #allocation0 [shape = 'u32[]', space=smem, size = 0x4, offset = 0x4, fixed_abs, tag = 'smem constant byte address 0x4 - core index']
  #allocation1 [shape = 'u32[144,128]{1,0:T(1,128)}', space=vmem, size = 0x12000, scoped, tag = 'internal scratch']
  #allocation2 [shape = 'f32[2,25,168]{2,1,0:T(8,128)}', space=vmem, size = 0x10000, scoped, tag = 'scratch operand']
  %s0 = inlined_call_operand.vmem [shape: f32[2,2,2,1,198], index: 0, kind: input, shape index: {}]
  %s1 = inlined_call_operand.vmem [shape: f32[10,25], index: 1, kind: input, shape index: {}]
  %s2 = inlined_call_operand.vmem [shape: f32[1,10,1], index: 2, kind: input, shape index: {}]
  %s3 = inlined_call_operand.vmem [shape: f32[2,10,168], index: 3, kind: output, shape index: {}]
  %s4 = sld [smem:[#allocation0]]
  $region22: #{network_forward.3} parent=0
    _
  %s6 = ssub.s32 1, %s4
  %s7 = scalar_select 0, %s6, %s4
  // Predicated region
  $region2: #{network_forward.3} parent=0 // pred_check
    _
  $region3: #{network_forward.3} parent=0 // pred_check_branch
    %9 = sbr.rel (0) target = $region5
  $region4: #{network_forward.3} parent=0 // pred_region
    _
  $region5: #{network_forward.3} parent=0 // pred_fallthru
    _
  // Predicated region
  $region6: #{network_forward.3} parent=0 // pred_check
    _
  $region7: #{network_forward.3} parent=0 // pred_check_branch
    %11 = sbr.rel (0) target = $region9
  $region8: #{network_forward.3} parent=0 // pred_region
    _
  $region9: #{network_forward.3} parent=0 // pred_fallthru
    _
  // Predicated region
  $region10: #{network_forward.3} parent=0 // pred_check
    _
  $region11: #{network_forward.3} parent=0 // pred_check_branch
    %13 = sbr.rel (0) target = $region13
  $region12: #{network_forward.3} parent=0 // pred_region
    _
  $region13: #{network_forward.3} parent=0 // pred_fallthru
    _
  %v14 = vld [vmem:[%s1] sm:$0xff]
  %v15 = vld [vmem:[%s1 + $0x8] sm:$0x3]
  %v16 = vld [vmem:[%s0] sm:$0x3]
  %v17 = vld [vmem:[%s0 + $0x8] sm:$0x3]
  %v18 = vlaneseq
  %vm19 = vcmp.ge.s32.totalorder %v18, 0
  %vm20 = vcmp.lt.s32.totalorder %v18, 168
  %vm21 = vmand %vm19, %vm20
  %22 = vst.msk [vmem:[#allocation2] ss:$8 sm:$0x3] %vm21, %v16
  %23 = vst.msk [vmem:[#allocation2] ss:$8 sm:$0x0] %vm21, %v16
  %s24 = scalar_lea.vmem [#allocation2], 64
  %25 = vst.msk [vmem:[%s24] ss:$8 sm:$0x3] %vm21, %v17
  %26 = vst.msk [vmem:[%s24] ss:$8 sm:$0x0] %vm21, %v17
  %s27 = scalar_lea.vmem %s0, 2
  %v28 = vld [vmem:[%s27] sm:$0x3]
  %v29 = vld [vmem:[%s27 + $0x8] sm:$0x3]
  %s30 = scalar_lea.vmem [#allocation2], 1
  %31 = vst.msk [vmem:[%s30] ss:$8 sm:$0x3] %vm21, %v28
  %32 = vst.msk [vmem:[%s30] ss:$8 sm:$0x0] %vm21, %v28
  %s33 = scalar_lea.vmem [#allocation2], 65
  %34 = vst.msk [vmem:[%s33] ss:$8 sm:$0x3] %vm21, %v29
  %35 = vst.msk [vmem:[%s33] ss:$8 sm:$0x0] %vm21, %v29
  %v36 = vld [vmem:[%s0] sm:$0x3]
  %v37 = vld [vmem:[%s0 + $0x8] sm:$0x3]
  %40 = vrot.lane.b32.xlu0 %v36, 127
  %v41 = vpop.permute.xlu0 %40
  %42 = vrot.lane.b32.xlu0 %v37, 127
  %v43 = vpop.permute.xlu0 %42
  %v44 = vrot.slane %v41, 1
  %v45 = vrot.slane %v43, 1
  %vm46 = vcmask 1039360
  %v47 = vsel %vm46, %v41, %v44
  %v48 = vsel %vm46, %v43, %v45
  %s51 = scalar_lea.vmem [#allocation2], 2
  %52 = vst.msk [vmem:[%s51] ss:$8 sm:$0x3] %vm21, %v47
  %53 = vst.msk [vmem:[%s51] ss:$8 sm:$0x0] %vm21, %v47
  %s54 = scalar_lea.vmem [#allocation2], 66
  %55 = vst.msk [vmem:[%s54] ss:$8 sm:$0x3] %vm21, %v48
  %56 = vst.msk [vmem:[%s54] ss:$8 sm:$0x0] %vm21, %v48
  %v57 = vld [vmem:[%s27] sm:$0x3]
  %v58 = vld [vmem:[%s27 + $0x8] sm:$0x3]
  %61 = vrot.lane.b32.xlu0 %v57, 127
  %v62 = vpop.permute.xlu0 %61
  %63 = vrot.lane.b32.xlu0 %v58, 127
  %v64 = vpop.permute.xlu0 %63
  %v65 = vrot.slane %v62, 1
  %v66 = vrot.slane %v64, 1
  %v67 = vsel %vm46, %v62, %v65
  %v68 = vsel %vm46, %v64, %v66
  %s71 = scalar_lea.vmem [#allocation2], 3
  %72 = vst.msk [vmem:[%s71] ss:$8 sm:$0x3] %vm21, %v67
  %73 = vst.msk [vmem:[%s71] ss:$8 sm:$0x0] %vm21, %v67
  %s74 = scalar_lea.vmem [#allocation2], 67
  %75 = vst.msk [vmem:[%s74] ss:$8 sm:$0x3] %vm21, %v68
  %76 = vst.msk [vmem:[%s74] ss:$8 sm:$0x0] %vm21, %v68
  %v77 = vld [vmem:[%s0] sm:$0x3]
  %v78 = vld [vmem:[%s0 + $0x8] sm:$0x3]
  %81 = vrot.lane.b32.xlu0 %v77, 126
  %v82 = vpop.permute.xlu0 %81
  %83 = vrot.lane.b32.xlu0 %v78, 126
  %v84 = vpop.permute.xlu0 %83
  %v85 = vrot.slane %v82, 1
  %v86 = vrot.slane %v84, 1
  %vm87 = vcmask 1031168
  %v88 = vsel %vm87, %v82, %v85
  %v89 = vsel %vm87, %v84, %v86
  %s92 = scalar_lea.vmem [#allocation2], 4
  %93 = vst.msk [vmem:[%s92] ss:$8 sm:$0x3] %vm21, %v88
  %94 = vst.msk [vmem:[%s92] ss:$8 sm:$0x0] %vm21, %v88
  %s95 = scalar_lea.vmem [#allocation2], 68
  %96 = vst.msk [vmem:[%s95] ss:$8 sm:$0x3] %vm21, %v89
  %97 = vst.msk [vmem:[%s95] ss:$8 sm:$0x0] %vm21, %v89
  %s98 = scalar_lea.vmem %s0, 4
  %v99 = vld [vmem:[%s98] sm:$0x3]
  %v100 = vld [vmem:[%s98 + $0x8] sm:$0x3]
  %s101 = scalar_lea.vmem [#allocation2], 5
  %102 = vst.msk [vmem:[%s101] ss:$8 sm:$0x3] %vm21, %v99
  %103 = vst.msk [vmem:[%s101] ss:$8 sm:$0x0] %vm21, %v99
  %s104 = scalar_lea.vmem [#allocation2], 69
  %105 = vst.msk [vmem:[%s104] ss:$8 sm:$0x3] %vm21, %v100
  %106 = vst.msk [vmem:[%s104] ss:$8 sm:$0x0] %vm21, %v100
  %s107 = scalar_lea.vmem %s0, 6
  %v108 = vld [vmem:[%s107] sm:$0x3]
  %v109 = vld [vmem:[%s107 + $0x8] sm:$0x3]
  %s110 = scalar_lea.vmem [#allocation2], 6
  %111 = vst.msk [vmem:[%s110] ss:$8 sm:$0x3] %vm21, %v108
  %112 = vst.msk [vmem:[%s110] ss:$8 sm:$0x0] %vm21, %v108
  %s113 = scalar_lea.vmem [#allocation2], 70
  %114 = vst.msk [vmem:[%s113] ss:$8 sm:$0x3] %vm21, %v109
  %115 = vst.msk [vmem:[%s113] ss:$8 sm:$0x0] %vm21, %v109
  %v116 = vld [vmem:[%s98] sm:$0x3]
  %v117 = vld [vmem:[%s98 + $0x8] sm:$0x3]
  %120 = vrot.lane.b32.xlu0 %v116, 127
  %v121 = vpop.permute.xlu0 %120
  %122 = vrot.lane.b32.xlu0 %v117, 127
  %v123 = vpop.permute.xlu0 %122
  %v124 = vrot.slane %v121, 1
  %v125 = vrot.slane %v123, 1
  %v126 = vsel %vm46, %v121, %v124
  %v127 = vsel %vm46, %v123, %v125
  %s130 = scalar_lea.vmem [#allocation2], 7
  %131 = vst.msk [vmem:[%s130] ss:$8 sm:$0x3] %vm21, %v126
  %132 = vst.msk [vmem:[%s130] ss:$8 sm:$0x0] %vm21, %v126
  %s133 = scalar_lea.vmem [#allocation2], 71
  %134 = vst.msk [vmem:[%s133] ss:$8 sm:$0x3] %vm21, %v127
  %135 = vst.msk [vmem:[%s133] ss:$8 sm:$0x0] %vm21, %v127
  %v136 = vld [vmem:[%s107] sm:$0x3]
  %v137 = vld [vmem:[%s107 + $0x8] sm:$0x3]
  %140 = vrot.lane.b32.xlu0 %v136, 127
  %v141 = vpop.permute.xlu0 %140
  %142 = vrot.lane.b32.xlu0 %v137, 127
  %v143 = vpop.permute.xlu0 %142
  %v144 = vrot.slane %v141, 1
  %v145 = vrot.slane %v143, 1
  %v146 = vsel %vm46, %v141, %v144
  %v147 = vsel %vm46, %v143, %v145
  %s150 = scalar_lea.vmem [#allocation2], 16
  %151 = vst.msk [vmem:[%s150] ss:$8 sm:$0x3] %vm21, %v146
  %152 = vst.msk [vmem:[%s150] ss:$8 sm:$0x0] %vm21, %v146
  %s153 = scalar_lea.vmem [#allocation2], 80
  %154 = vst.msk [vmem:[%s153] ss:$8 sm:$0x3] %vm21, %v147
  %155 = vst.msk [vmem:[%s153] ss:$8 sm:$0x0] %vm21, %v147
  %v156 = vld [vmem:[%s98] sm:$0x3]
  %v157 = vld [vmem:[%s98 + $0x8] sm:$0x3]
  %160 = vrot.lane.b32.xlu0 %v156, 126
  %v161 = vpop.permute.xlu0 %160
  %162 = vrot.lane.b32.xlu0 %v157, 126
  %v163 = vpop.permute.xlu0 %162
  %v164 = vrot.slane %v161, 1
  %v165 = vrot.slane %v163, 1
  %v166 = vsel %vm87, %v161, %v164
  %v167 = vsel %vm87, %v163, %v165
  %s170 = scalar_lea.vmem [#allocation2], 17
  %171 = vst.msk [vmem:[%s170] ss:$8 sm:$0x3] %vm21, %v166
  %172 = vst.msk [vmem:[%s170] ss:$8 sm:$0x0] %vm21, %v166
  %s173 = scalar_lea.vmem [#allocation2], 81
  %174 = vst.msk [vmem:[%s173] ss:$8 sm:$0x3] %vm21, %v167
  %175 = vst.msk [vmem:[%s173] ss:$8 sm:$0x0] %vm21, %v167
  %v176 = vld [vmem:[%s0] sm:$0x3]
  %v177 = vld [vmem:[%s0 + $0x8] sm:$0x3]
  %180 = vrot.lane.b32.xlu0 %v176, 114
  %v181 = vpop.permute.xlu0 %180
  %182 = vrot.lane.b32.xlu0 %v177, 114
  %v183 = vpop.permute.xlu0 %182
  %v184 = vrot.slane %v181, 1
  %v185 = vrot.slane %v183, 1
  %vm186 = vcmask 932864
  %v187 = vsel %vm186, %v181, %v184
  %v188 = vsel %vm186, %v183, %v185
  %s191 = scalar_lea.vmem [#allocation2], 18
  %192 = vst.msk [vmem:[%s191] ss:$8 sm:$0x3] %vm21, %v187
  %193 = vst.msk [vmem:[%s191] ss:$8 sm:$0x0] %vm21, %v187
  %s194 = scalar_lea.vmem [#allocation2], 82
  %195 = vst.msk [vmem:[%s194] ss:$8 sm:$0x3] %vm21, %v188
  %196 = vst.msk [vmem:[%s194] ss:$8 sm:$0x0] %vm21, %v188
  %v197 = vld [vmem:[%s27] sm:$0x3]
  %v198 = vld [vmem:[%s27 + $0x8] sm:$0x3]
  %201 = vrot.lane.b32.xlu0 %v197, 114
  %v202 = vpop.permute.xlu0 %201
  %203 = vrot.lane.b32.xlu0 %v198, 114
  %v204 = vpop.permute.xlu0 %203
  %v205 = vrot.slane %v202, 1
  %v206 = vrot.slane %v204, 1
  %v207 = vsel %vm186, %v202, %v205
  %v208 = vsel %vm186, %v204, %v206
  %s211 = scalar_lea.vmem [#allocation2], 19
  %212 = vst.msk [vmem:[%s211] ss:$8 sm:$0x3] %vm21, %v207
  %213 = vst.msk [vmem:[%s211] ss:$8 sm:$0x0] %vm21, %v207
  %s214 = scalar_lea.vmem [#allocation2], 83
  %215 = vst.msk [vmem:[%s214] ss:$8 sm:$0x3] %vm21, %v208
  %216 = vst.msk [vmem:[%s214] ss:$8 sm:$0x0] %vm21, %v208
  %v217 = vld [vmem:[%s0] sm:$0x3]
  %v218 = vld [vmem:[%s0 + $0x8] sm:$0x3]
  %221 = vrot.lane.b32.xlu0 %v217, 113
  %v222 = vpop.permute.xlu0 %221
  %223 = vrot.lane.b32.xlu0 %v218, 113
  %v224 = vpop.permute.xlu0 %223
  %v225 = vrot.slane %v222, 1
  %v226 = vrot.slane %v224, 1
  %vm227 = vcmask 924672
  %v228 = vsel %vm227, %v222, %v225
  %v229 = vsel %vm227, %v224, %v226
  %s232 = scalar_lea.vmem [#allocation2], 20
  %233 = vst.msk [vmem:[%s232] ss:$8 sm:$0x3] %vm21, %v228
  %234 = vst.msk [vmem:[%s232] ss:$8 sm:$0x0] %vm21, %v228
  %s235 = scalar_lea.vmem [#allocation2], 84
  %236 = vst.msk [vmem:[%s235] ss:$8 sm:$0x3] %vm21, %v229
  %237 = vst.msk [vmem:[%s235] ss:$8 sm:$0x0] %vm21, %v229
  %v238 = vld [vmem:[%s27] sm:$0x3]
  %v239 = vld [vmem:[%s27 + $0x8] sm:$0x3]
  %242 = vrot.lane.b32.xlu0 %v238, 113
  %v243 = vpop.permute.xlu0 %242
  %244 = vrot.lane.b32.xlu0 %v239, 113
  %v245 = vpop.permute.xlu0 %244
  %v246 = vrot.slane %v243, 1
  %v247 = vrot.slane %v245, 1
  %v248 = vsel %vm227, %v243, %v246
  %v249 = vsel %vm227, %v245, %v247
  %s252 = scalar_lea.vmem [#allocation2], 21
  %253 = vst.msk [vmem:[%s252] ss:$8 sm:$0x3] %vm21, %v248
  %254 = vst.msk [vmem:[%s252] ss:$8 sm:$0x0] %vm21, %v248
  %s255 = scalar_lea.vmem [#allocation2], 85
  %256 = vst.msk [vmem:[%s255] ss:$8 sm:$0x3] %vm21, %v249
  %257 = vst.msk [vmem:[%s255] ss:$8 sm:$0x0] %vm21, %v249
  %v258 = vld [vmem:[%s0] sm:$0x3]
  %v259 = vld [vmem:[%s0 + $0x8] sm:$0x3]
  %262 = vrot.lane.b32.xlu0 %v258, 112
  %v263 = vpop.permute.xlu0 %262
  %264 = vrot.lane.b32.xlu0 %v259, 112
  %v265 = vpop.permute.xlu0 %264
  %v266 = vrot.slane %v263, 1
  %v267 = vrot.slane %v265, 1
  %vm268 = vcmask 916480
  %v269 = vsel %vm268, %v263, %v266
  %v270 = vsel %vm268, %v265, %v267
  %s273 = scalar_lea.vmem [#allocation2], 22
  %274 = vst.msk [vmem:[%s273] ss:$8 sm:$0x3] %vm21, %v269
  %275 = vst.msk [vmem:[%s273] ss:$8 sm:$0x0] %vm21, %v269
  %s276 = scalar_lea.vmem [#allocation2], 86
  %277 = vst.msk [vmem:[%s276] ss:$8 sm:$0x3] %vm21, %v270
  %278 = vst.msk [vmem:[%s276] ss:$8 sm:$0x0] %vm21, %v270
  %v279 = vld [vmem:[%s98] sm:$0x3]
  %v280 = vld [vmem:[%s98 + $0x8] sm:$0x3]
  %283 = vrot.lane.b32.xlu0 %v279, 114
  %v284 = vpop.permute.xlu0 %283
  %285 = vrot.lane.b32.xlu0 %v280, 114
  %v286 = vpop.permute.xlu0 %285
  %v287 = vrot.slane %v284, 1
  %v288 = vrot.slane %v286, 1
  %v289 = vsel %vm186, %v284, %v287
  %v290 = vsel %vm186, %v286, %v288
  %s293 = scalar_lea.vmem [#allocation2], 23
  %294 = vst.msk [vmem:[%s293] ss:$8 sm:$0x3] %vm21, %v289
  %295 = vst.msk [vmem:[%s293] ss:$8 sm:$0x0] %vm21, %v289
  %s296 = scalar_lea.vmem [#allocation2], 87
  %297 = vst.msk [vmem:[%s296] ss:$8 sm:$0x3] %vm21, %v290
  %298 = vst.msk [vmem:[%s296] ss:$8 sm:$0x0] %vm21, %v290
  %v299 = vld [vmem:[%s107] sm:$0x3]
  %v300 = vld [vmem:[%s107 + $0x8] sm:$0x3]
  %303 = vrot.lane.b32.xlu0 %v299, 114
  %v304 = vpop.permute.xlu0 %303
  %305 = vrot.lane.b32.xlu0 %v300, 114
  %v306 = vpop.permute.xlu0 %305
  %v307 = vrot.slane %v304, 1
  %v308 = vrot.slane %v306, 1
  %v309 = vsel %vm186, %v304, %v307
  %v310 = vsel %vm186, %v306, %v308
  %s313 = scalar_lea.vmem [#allocation2], 32
  %314 = vst.msk [vmem:[%s313] ss:$8 sm:$0x3] %vm21, %v309
  %315 = vst.msk [vmem:[%s313] ss:$8 sm:$0x0] %vm21, %v309
  %s316 = scalar_lea.vmem [#allocation2], 96
  %317 = vst.msk [vmem:[%s316] ss:$8 sm:$0x3] %vm21, %v310
  %318 = vst.msk [vmem:[%s316] ss:$8 sm:$0x0] %vm21, %v310
  %v319 = vld [vmem:[%s98] sm:$0x3]
  %v320 = vld [vmem:[%s98 + $0x8] sm:$0x3]
  %323 = vrot.lane.b32.xlu0 %v319, 113
  %v324 = vpop.permute.xlu0 %323
  %325 = vrot.lane.b32.xlu0 %v320, 113
  %v326 = vpop.permute.xlu0 %325
  %v327 = vrot.slane %v324, 1
  %v328 = vrot.slane %v326, 1
  %v329 = vsel %vm227, %v324, %v327
  %v330 = vsel %vm227, %v326, %v328
  %s333 = scalar_lea.vmem [#allocation2], 33
  %334 = vst.msk [vmem:[%s333] ss:$8 sm:$0x3] %vm21, %v329
  %335 = vst.msk [vmem:[%s333] ss:$8 sm:$0x0] %vm21, %v329
  %s336 = scalar_lea.vmem [#allocation2], 97
  %337 = vst.msk [vmem:[%s336] ss:$8 sm:$0x3] %vm21, %v330
  %338 = vst.msk [vmem:[%s336] ss:$8 sm:$0x0] %vm21, %v330
  %v339 = vld [vmem:[%s107] sm:$0x3]
  %v340 = vld [vmem:[%s107 + $0x8] sm:$0x3]
  %343 = vrot.lane.b32.xlu0 %v339, 113
  %v344 = vpop.permute.xlu0 %343
  %345 = vrot.lane.b32.xlu0 %v340, 113
  %v346 = vpop.permute.xlu0 %345
  %v347 = vrot.slane %v344, 1
  %v348 = vrot.slane %v346, 1
  %v349 = vsel %vm227, %v344, %v347
  %v350 = vsel %vm227, %v346, %v348
  %s353 = scalar_lea.vmem [#allocation2], 34
  %354 = vst.msk [vmem:[%s353] ss:$8 sm:$0x3] %vm21, %v349
  %355 = vst.msk [vmem:[%s353] ss:$8 sm:$0x0] %vm21, %v349
  %s356 = scalar_lea.vmem [#allocation2], 98
  %357 = vst.msk [vmem:[%s356] ss:$8 sm:$0x3] %vm21, %v350
  %358 = vst.msk [vmem:[%s356] ss:$8 sm:$0x0] %vm21, %v350
  %v359 = vld [vmem:[%s98] sm:$0x3]
  %v360 = vld [vmem:[%s98 + $0x8] sm:$0x3]
  %363 = vrot.lane.b32.xlu0 %v359, 112
  %v364 = vpop.permute.xlu0 %363
  %365 = vrot.lane.b32.xlu0 %v360, 112
  %v366 = vpop.permute.xlu0 %365
  %v367 = vrot.slane %v364, 1
  %v368 = vrot.slane %v366, 1
  %v369 = vsel %vm268, %v364, %v367
  %v370 = vsel %vm268, %v366, %v368
  %s373 = scalar_lea.vmem [#allocation2], 35
  %374 = vst.msk [vmem:[%s373] ss:$8 sm:$0x3] %vm21, %v369
  %375 = vst.msk [vmem:[%s373] ss:$8 sm:$0x0] %vm21, %v369
  %s376 = scalar_lea.vmem [#allocation2], 99
  %377 = vst.msk [vmem:[%s376] ss:$8 sm:$0x3] %vm21, %v370
  %378 = vst.msk [vmem:[%s376] ss:$8 sm:$0x0] %vm21, %v370
  %v379 = vld [vmem:[%s0] sm:$0x3]
  %v380 = vld [vmem:[%s0 + $0x8] sm:$0x3]
  %383 = vrot.lane.b32.xlu0 %v379, 100
  %v384 = vpop.permute.xlu0 %383
  %385 = vrot.lane.b32.xlu0 %v380, 100
  %v386 = vpop.permute.xlu0 %385
  %v387 = vrot.slane %v384, 1
  %v388 = vrot.slane %v386, 1
  %vm389 = vcmask 818176
  %v390 = vsel %vm389, %v384, %v387
  %v391 = vsel %vm389, %v386, %v388
  %s394 = scalar_lea.vmem [#allocation2], 36
  %395 = vst.msk [vmem:[%s394] ss:$8 sm:$0x3] %vm21, %v390
  %396 = vst.msk [vmem:[%s394] ss:$8 sm:$0x0] %vm21, %v390
  %s397 = scalar_lea.vmem [#allocation2], 100
  %398 = vst.msk [vmem:[%s397] ss:$8 sm:$0x3] %vm21, %v391
  %399 = vst.msk [vmem:[%s397] ss:$8 sm:$0x0] %vm21, %v391
  %v400 = vld [vmem:[%s27] sm:$0x3]
  %v401 = vld [vmem:[%s27 + $0x8] sm:$0x3]
  %404 = vrot.lane.b32.xlu0 %v400, 100
  %v405 = vpop.permute.xlu0 %404
  %406 = vrot.lane.b32.xlu0 %v401, 100
  %v407 = vpop.permute.xlu0 %406
  %v408 = vrot.slane %v405, 1
  %v409 = vrot.slane %v407, 1
  %v410 = vsel %vm389, %v405, %v408
  %v411 = vsel %vm389, %v407, %v409
  %s414 = scalar_lea.vmem [#allocation2], 37
  %415 = vst.msk [vmem:[%s414] ss:$8 sm:$0x3] %vm21, %v410
  %416 = vst.msk [vmem:[%s414] ss:$8 sm:$0x0] %vm21, %v410
  %s417 = scalar_lea.vmem [#allocation2], 101
  %418 = vst.msk [vmem:[%s417] ss:$8 sm:$0x3] %vm21, %v411
  %419 = vst.msk [vmem:[%s417] ss:$8 sm:$0x0] %vm21, %v411
  %v420 = vld [vmem:[%s0] sm:$0x3]
  %v421 = vld [vmem:[%s0 + $0x8] sm:$0x3]
  %424 = vrot.lane.b32.xlu0 %v420, 99
  %v425 = vpop.permute.xlu0 %424
  %426 = vrot.lane.b32.xlu0 %v421, 99
  %v427 = vpop.permute.xlu0 %426
  %v428 = vrot.slane %v425, 1
  %v429 = vrot.slane %v427, 1
  %vm430 = vcmask 809984
  %v431 = vsel %vm430, %v425, %v428
  %v432 = vsel %vm430, %v427, %v429
  %s435 = scalar_lea.vmem [#allocation2], 38
  %436 = vst.msk [vmem:[%s435] ss:$8 sm:$0x3] %vm21, %v431
  %437 = vst.msk [vmem:[%s435] ss:$8 sm:$0x0] %vm21, %v431
  %s438 = scalar_lea.vmem [#allocation2], 102
  %439 = vst.msk [vmem:[%s438] ss:$8 sm:$0x3] %vm21, %v432
  %440 = vst.msk [vmem:[%s438] ss:$8 sm:$0x0] %vm21, %v432
  %v441 = vld [vmem:[%s27] sm:$0x3]
  %v442 = vld [vmem:[%s27 + $0x8] sm:$0x3]
  %445 = vrot.lane.b32.xlu0 %v441, 99
  %v446 = vpop.permute.xlu0 %445
  %447 = vrot.lane.b32.xlu0 %v442, 99
  %v448 = vpop.permute.xlu0 %447
  %v449 = vrot.slane %v446, 1
  %v450 = vrot.slane %v448, 1
  %v451 = vsel %vm430, %v446, %v449
  %v452 = vsel %vm430, %v448, %v450
  %s455 = scalar_lea.vmem [#allocation2], 39
  %456 = vst.msk [vmem:[%s455] ss:$8 sm:$0x3] %vm21, %v451
  %457 = vst.msk [vmem:[%s455] ss:$8 sm:$0x0] %vm21, %v451
  %s458 = scalar_lea.vmem [#allocation2], 103
  %459 = vst.msk [vmem:[%s458] ss:$8 sm:$0x3] %vm21, %v452
  %460 = vst.msk [vmem:[%s458] ss:$8 sm:$0x0] %vm21, %v452
  %v461 = vld [vmem:[%s0] sm:$0x3]
  %v462 = vld [vmem:[%s0 + $0x8] sm:$0x3]
  %465 = vrot.lane.b32.xlu0 %v461, 98
  %v466 = vpop.permute.xlu0 %465
  %467 = vrot.lane.b32.xlu0 %v462, 98
  %v468 = vpop.permute.xlu0 %467
  %v469 = vrot.slane %v466, 1
  %v470 = vrot.slane %v468, 1
  %vm471 = vcmask 801792
  %v472 = vsel %vm471, %v466, %v469
  %v473 = vsel %vm471, %v468, %v470
  %s476 = scalar_lea.vmem [#allocation2], 48
  %477 = vst.msk [vmem:[%s476] ss:$8 sm:$0x3] %vm21, %v472
  %478 = vst.msk [vmem:[%s476] ss:$8 sm:$0x0] %vm21, %v472
  %s479 = scalar_lea.vmem [#allocation2], 112
  %480 = vst.msk [vmem:[%s479] ss:$8 sm:$0x3] %vm21, %v473
  %481 = vst.msk [vmem:[%s479] ss:$8 sm:$0x0] %vm21, %v473
  %v482 = vld [vmem:[#allocation2] sm:$0xff]
  %v483 = vld [vmem:[#allocation2 + $0x8] sm:$0xff]
  %v484 = vld [vmem:[#allocation2 + $0x10] sm:$0xff]
  %v485 = vld [vmem:[#allocation2 + $0x18] sm:$0xff]
  %v486 = vld [vmem:[#allocation2 + $0x20] sm:$0xff]
  %v487 = vld [vmem:[#allocation2 + $0x28] sm:$0xff]
  %v488 = vld [vmem:[#allocation2 + $0x30] sm:$0x1]
  %v489 = vld [vmem:[#allocation2 + $0x38] sm:$0x1]
  %v490 = vld [vmem:[#allocation2 + $0x40] sm:$0xff]
  %v491 = vld [vmem:[#allocation2 + $0x48] sm:$0xff]
  %v492 = vld [vmem:[#allocation2 + $0x50] sm:$0xff]
  %v493 = vld [vmem:[#allocation2 + $0x58] sm:$0xff]
  %v494 = vld [vmem:[#allocation2 + $0x60] sm:$0xff]
  %v495 = vld [vmem:[#allocation2 + $0x68] sm:$0xff]
  %v496 = vld [vmem:[#allocation2 + $0x70] sm:$0x1]
  %v497 = vld [vmem:[#allocation2 + $0x78] sm:$0x1]
  %vm498 = vcmask 203776
  %v500 = vsel %vm498, %v14, 0
  %v503 = vsel %vm498, %v15, 0
  %vm505 = vcmask 1040384
  %v507 = vsel %vm505, %v488, 0
  %v510 = vsel %vm505, %v489, 0
  %512 = vmatprep.subr.mxu0 %v483
  %513 = vmatpush1.msra.mxu0 %v482
  %514 = vmatprep.subr.mxu0 %v485
  %515 = vmatpush1.msra.mxu0 %v484
  %516 = vmatprep.subr.mxu0 %v487
  %517 = vmatpush1.msra.mxu0 %v486
  %518 = vmatprep.subr.mxu0 %v510
  %519 = vmatpush1.msra.mxu0 %v507
  %520 = vmatprep.subr.mxu0 0.0
  %521 = vmatpush1.msra.mxu0 0.0
  %522 = vmatprep.subr.mxu0 0.0
  %523 = vmatpush1.msra.mxu0 0.0
  %524 = vmatprep.subr.mxu0 0.0
  %525 = vmatpush1.msra.mxu0 0.0
  %526 = vmatprep.subr.mxu0 0.0
  %527 = vmatpush1.msra.mxu0 0.0
  %528 = vmatprep.subr.mxu0 0.0
  %529 = vmatpush1.msra.mxu0 0.0
  %530 = vmatprep.subr.mxu0 0.0
  %531 = vmatpush1.msra.mxu0 0.0
  %532 = vmatprep.subr.mxu0 0.0
  %533 = vmatpush1.msra.mxu0 0.0
  %534 = vmatprep.subr.mxu0 0.0
  %535 = vmatpush1.msra.mxu0 0.0
  %536 = vmatprep.subr.mxu0 0.0
  %537 = vmatpush1.msra.mxu0 0.0
  %538 = vmatprep.subr.mxu0 0.0
  %539 = vmatpush1.msra.mxu0 0.0
  %540 = vmatprep.subr.mxu0 0.0
  %541 = vmatpush1.msra.mxu0 0.0
  %542 = vmatprep.subr.mxu0 0.0
  %543 = vmatpush1.msra.mxu0 0.0
  %544 = vmatprep.subr.mxu0 0.0
  %545 = vmatpush1.msra.mxu0 0.0
  %546 = vmatprep.subr.mxu0 0.0
  %547 = vmatpush1.msra.mxu0 0.0
  %548 = vmatprep.subr.mxu0 0.0
  %549 = vmatpush1.msra.mxu0 0.0
  %550 = vmatprep.subr.mxu0 0.0
  %551 = vmatpush1.msra.mxu0 0.0
  %552 = vmatprep.subr.mxu0 0.0
  %553 = vmatpush1.msra.mxu0 0.0
  %554 = vmatprep.subr.mxu0 0.0
  %555 = vmatpush1.msra.mxu0 0.0
  %556 = vmatprep.subr.mxu0 0.0
  %557 = vmatpush1.msra.mxu0 0.0
  %558 = vmatprep.subr.mxu0 0.0
  %559 = vmatpush1.msra.mxu0 0.0
  %560 = vmatprep.subr.mxu0 0.0
  %561 = vmatpush1.msra.mxu0 0.0
  %562 = vmatprep.subr.mxu0 0.0
  %563 = vmatpush1.msra.mxu0 0.0
  %564 = vmatprep.subr.mxu0 0.0
  %565 = vmatpush1.msra.mxu0 0.0
  %566 = vmatprep.subr.mxu0 0.0
  %567 = vmatpush1.msra.mxu0 0.0
  %568 = vmatprep.subr.mxu0 0.0
  %569 = vmatpush1.msra.mxu0 0.0
  %570 = vmatprep.subr.mxu0 0.0
  %571 = vmatpush1.msra.mxu0 0.0
  %572 = vmatprep.subr.mxu0 0.0
  %573 = vmatpush1.msra.mxu0 0.0
  %574 = vmatprep.subr.mxu0 0.0
  %575 = vmatpush1.msra.mxu0 0.0
  %576 = vmatprep.mubr.f32.mxu0 0.0
  %577 = vmatmul.mubr.f32.gmra.mrb[0].mxu0 %v500
  %v578 = vpop.f32.mrb[0].mxu0
  %v579 = vadd.f32 0.0, %v578
  %v580 = vpop.f32.mrb[0].mxu0
  %v581 = vadd.f32 0.0, %v580
  %582 = vmatprep.mubr.f32.mxu0 0.0
  %583 = vmatmul.mubr.f32.gmra.mrb[0].mxu0 %v503
  %v584 = vpop.f32.mrb[0].mxu0
  %v585 = vadd.f32 0.0, %v584
  %v586 = vpop.f32.mrb[0].mxu0
  %v587 = vadd.f32 0.0, %v586
  %588 = vdwg.mxu0
  %v590 = vsel %vm505, %v496, 0
  %v593 = vsel %vm505, %v497, 0
  %595 = vmatprep.subr.mxu0 %v491
  %596 = vmatpush1.msra.mxu0 %v490
  %597 = vmatprep.subr.mxu0 %v493
  %598 = vmatpush1.msra.mxu0 %v492
  %599 = vmatprep.subr.mxu0 %v495
  %600 = vmatpush1.msra.mxu0 %v494
  %601 = vmatprep.subr.mxu0 %v593
  %602 = vmatpush1.msra.mxu0 %v590
  %603 = vmatprep.subr.mxu0 0.0
  %604 = vmatpush1.msra.mxu0 0.0
  %605 = vmatprep.subr.mxu0 0.0
  %606 = vmatpush1.msra.mxu0 0.0
  %607 = vmatprep.subr.mxu0 0.0
  %608 = vmatpush1.msra.mxu0 0.0
  %609 = vmatprep.subr.mxu0 0.0
  %610 = vmatpush1.msra.mxu0 0.0
  %611 = vmatprep.subr.mxu0 0.0
  %612 = vmatpush1.msra.mxu0 0.0
  %613 = vmatprep.subr.mxu0 0.0
  %614 = vmatpush1.msra.mxu0 0.0
  %615 = vmatprep.subr.mxu0 0.0
  %616 = vmatpush1.msra.mxu0 0.0
  %617 = vmatprep.subr.mxu0 0.0
  %618 = vmatpush1.msra.mxu0 0.0
  %619 = vmatprep.subr.mxu0 0.0
  %620 = vmatpush1.msra.mxu0 0.0
  %621 = vmatprep.subr.mxu0 0.0
  %622 = vmatpush1.msra.mxu0 0.0
  %623 = vmatprep.subr.mxu0 0.0
  %624 = vmatpush1.msra.mxu0 0.0
  %625 = vmatprep.subr.mxu0 0.0
  %626 = vmatpush1.msra.mxu0 0.0
  %627 = vmatprep.subr.mxu0 0.0
  %628 = vmatpush1.msra.mxu0 0.0
  %629 = vmatprep.subr.mxu0 0.0
  %630 = vmatpush1.msra.mxu0 0.0
  %631 = vmatprep.subr.mxu0 0.0
  %632 = vmatpush1.msra.mxu0 0.0
  %633 = vmatprep.subr.mxu0 0.0
  %634 = vmatpush1.msra.mxu0 0.0
  %635 = vmatprep.subr.mxu0 0.0
  %636 = vmatpush1.msra.mxu0 0.0
  %637 = vmatprep.subr.mxu0 0.0
  %638 = vmatpush1.msra.mxu0 0.0
  %639 = vmatprep.subr.mxu0 0.0
  %640 = vmatpush1.msra.mxu0 0.0
  %641 = vmatprep.subr.mxu0 0.0
  %642 = vmatpush1.msra.mxu0 0.0
  %643 = vmatprep.subr.mxu0 0.0
  %644 = vmatpush1.msra.mxu0 0.0
  %645 = vmatprep.subr.mxu0 0.0
  %646 = vmatpush1.msra.mxu0 0.0
  %647 = vmatprep.subr.mxu0 0.0
  %648 = vmatpush1.msra.mxu0 0.0
  %649 = vmatprep.subr.mxu0 0.0
  %650 = vmatpush1.msra.mxu0 0.0
  %651 = vmatprep.subr.mxu0 0.0
  %652 = vmatpush1.msra.mxu0 0.0
  %653 = vmatprep.subr.mxu0 0.0
  %654 = vmatpush1.msra.mxu0 0.0
  %655 = vmatprep.subr.mxu0 0.0
  %656 = vmatpush1.msra.mxu0 0.0
  %657 = vmatprep.subr.mxu0 0.0
  %658 = vmatpush1.msra.mxu0 0.0
  %659 = vmatprep.mubr.f32.mxu0 0.0
  %660 = vmatmul.mubr.f32.gmra.mrb[0].mxu0 %v500
  %v661 = vpop.f32.mrb[0].mxu0
  %v662 = vadd.f32 0.0, %v661
  %v663 = vpop.f32.mrb[0].mxu0
  %v664 = vadd.f32 0.0, %v663
  %665 = vmatprep.mubr.f32.mxu0 0.0
  %666 = vmatmul.mubr.f32.gmra.mrb[0].mxu0 %v503
  %v667 = vpop.f32.mrb[0].mxu0
  %v668 = vadd.f32 0.0, %v667
  %v669 = vpop.f32.mrb[0].mxu0
  %v670 = vadd.f32 0.0, %v669
  %671 = vdwg.mxu0
  %v672 = vld [vmem:[%s27] sm:$0x3]
  %v673 = vld [vmem:[%s27 + $0x8] sm:$0x3]
  %674 = vst.msk [vmem:[#allocation2] ss:$8 sm:$0x3] %vm21, %v672
  %675 = vst.msk [vmem:[#allocation2] ss:$8 sm:$0x0] %vm21, %v672
  %676 = vst.msk [vmem:[%s24] ss:$8 sm:$0x3] %vm21, %v673
  %677 = vst.msk [vmem:[%s24] ss:$8 sm:$0x0] %vm21, %v673
  %v678 = vld [vmem:[%s0] sm:$0x3]
  %v679 = vld [vmem:[%s0 + $0x8] sm:$0x3]
  %682 = vrot.lane.b32.xlu0 %v678, 127
  %v683 = vpop.permute.xlu0 %682
  %684 = vrot.lane.b32.xlu0 %v679, 127
  %v685 = vpop.permute.xlu0 %684
  %v686 = vrot.slane %v683, 1
  %v687 = vrot.slane %v685, 1
  %v688 = vsel %vm46, %v683, %v686
  %v689 = vsel %vm46, %v685, %v687
  %692 = vst.msk [vmem:[%s30] ss:$8 sm:$0x3] %vm21, %v688
  %693 = vst.msk [vmem:[%s30] ss:$8 sm:$0x0] %vm21, %v688
  %694 = vst.msk [vmem:[%s33] ss:$8 sm:$0x3] %vm21, %v689
  %695 = vst.msk [vmem:[%s33] ss:$8 sm:$0x0] %vm21, %v689
  %v696 = vld [vmem:[%s27] sm:$0x3]
  %v697 = vld [vmem:[%s27 + $0x8] sm:$0x3]
  %700 = vrot.lane.b32.xlu0 %v696, 127
  %v701 = vpop.permute.xlu0 %700
  %702 = vrot.lane.b32.xlu0 %v697, 127
  %v703 = vpop.permute.xlu0 %702
  %v704 = vrot.slane %v701, 1
  %v705 = vrot.slane %v703, 1
  %v706 = vsel %vm46, %v701, %v704
  %v707 = vsel %vm46, %v703, %v705
  %710 = vst.msk [vmem:[%s51] ss:$8 sm:$0x3] %vm21, %v706
  %711 = vst.msk [vmem:[%s51] ss:$8 sm:$0x0] %vm21, %v706
  %712 = vst.msk [vmem:[%s54] ss:$8 sm:$0x3] %vm21, %v707
  %713 = vst.msk [vmem:[%s54] ss:$8 sm:$0x0] %vm21, %v707
  %v714 = vld [vmem:[%s0] sm:$0x3]
  %v715 = vld [vmem:[%s0 + $0x8] sm:$0x3]
  %718 = vrot.lane.b32.xlu0 %v714, 126
  %v719 = vpop.permute.xlu0 %718
  %720 = vrot.lane.b32.xlu0 %v715, 126
  %v721 = vpop.permute.xlu0 %720
  %v722 = vrot.slane %v719, 1
  %v723 = vrot.slane %v721, 1
  %v724 = vsel %vm87, %v719, %v722
  %v725 = vsel %vm87, %v721, %v723
  %728 = vst.msk [vmem:[%s71] ss:$8 sm:$0x3] %vm21, %v724
  %729 = vst.msk [vmem:[%s71] ss:$8 sm:$0x0] %vm21, %v724
  %730 = vst.msk [vmem:[%s74] ss:$8 sm:$0x3] %vm21, %v725
  %731 = vst.msk [vmem:[%s74] ss:$8 sm:$0x0] %vm21, %v725
  %v732 = vld [vmem:[%s27] sm:$0x3]
  %v733 = vld [vmem:[%s27 + $0x8] sm:$0x3]
  %736 = vrot.lane.b32.xlu0 %v732, 126
  %v737 = vpop.permute.xlu0 %736
  %738 = vrot.lane.b32.xlu0 %v733, 126
  %v739 = vpop.permute.xlu0 %738
  %v740 = vrot.slane %v737, 1
  %v741 = vrot.slane %v739, 1
  %v742 = vsel %vm87, %v737, %v740
  %v743 = vsel %vm87, %v739, %v741
  %746 = vst.msk [vmem:[%s92] ss:$8 sm:$0x3] %vm21, %v742
  %747 = vst.msk [vmem:[%s92] ss:$8 sm:$0x0] %vm21, %v742
  %748 = vst.msk [vmem:[%s95] ss:$8 sm:$0x3] %vm21, %v743
  %749 = vst.msk [vmem:[%s95] ss:$8 sm:$0x0] %vm21, %v743
  %v750 = vld [vmem:[%s107] sm:$0x3]
  %v751 = vld [vmem:[%s107 + $0x8] sm:$0x3]
  %752 = vst.msk [vmem:[%s101] ss:$8 sm:$0x3] %vm21, %v750
  %753 = vst.msk [vmem:[%s101] ss:$8 sm:$0x0] %vm21, %v750
  %754 = vst.msk [vmem:[%s104] ss:$8 sm:$0x3] %vm21, %v751
  %755 = vst.msk [vmem:[%s104] ss:$8 sm:$0x0] %vm21, %v751
  %v756 = vld [vmem:[%s98] sm:$0x3]
  %v757 = vld [vmem:[%s98 + $0x8] sm:$0x3]
  %760 = vrot.lane.b32.xlu0 %v756, 127
  %v761 = vpop.permute.xlu0 %760
  %762 = vrot.lane.b32.xlu0 %v757, 127
  %v763 = vpop.permute.xlu0 %762
  %v764 = vrot.slane %v761, 1
  %v765 = vrot.slane %v763, 1
  %v766 = vsel %vm46, %v761, %v764
  %v767 = vsel %vm46, %v763, %v765
  %770 = vst.msk [vmem:[%s110] ss:$8 sm:$0x3] %vm21, %v766
  %771 = vst.msk [vmem:[%s110] ss:$8 sm:$0x0] %vm21, %v766
  %772 = vst.msk [vmem:[%s113] ss:$8 sm:$0x3] %vm21, %v767
  %773 = vst.msk [vmem:[%s113] ss:$8 sm:$0x0] %vm21, %v767
  %v774 = vld [vmem:[%s107] sm:$0x3]
  %v775 = vld [vmem:[%s107 + $0x8] sm:$0x3]
  %778 = vrot.lane.b32.xlu0 %v774, 127
  %v779 = vpop.permute.xlu0 %778
  %780 = vrot.lane.b32.xlu0 %v775, 127
  %v781 = vpop.permute.xlu0 %780
  %v782 = vrot.slane %v779, 1
  %v783 = vrot.slane %v781, 1
  %v784 = vsel %vm46, %v779, %v782
  %v785 = vsel %vm46, %v781, %v783
  %788 = vst.msk [vmem:[%s130] ss:$8 sm:$0x3] %vm21, %v784
  %789 = vst.msk [vmem:[%s130] ss:$8 sm:$0x0] %vm21, %v784
  %790 = vst.msk [vmem:[%s133] ss:$8 sm:$0x3] %vm21, %v785
  %791 = vst.msk [vmem:[%s133] ss:$8 sm:$0x0] %vm21, %v785
  %v792 = vld [vmem:[%s98] sm:$0x3]
  %v793 = vld [vmem:[%s98 + $0x8] sm:$0x3]
  %796 = vrot.lane.b32.xlu0 %v792, 126
  %v797 = vpop.permute.xlu0 %796
  %798 = vrot.lane.b32.xlu0 %v793, 126
  %v799 = vpop.permute.xlu0 %798
  %v800 = vrot.slane %v797, 1
  %v801 = vrot.slane %v799, 1
  %v802 = vsel %vm87, %v797, %v800
  %v803 = vsel %vm87, %v799, %v801
  %806 = vst.msk [vmem:[%s150] ss:$8 sm:$0x3] %vm21, %v802
  %807 = vst.msk [vmem:[%s150] ss:$8 sm:$0x0] %vm21, %v802
  %808 = vst.msk [vmem:[%s153] ss:$8 sm:$0x3] %vm21, %v803
  %809 = vst.msk [vmem:[%s153] ss:$8 sm:$0x0] %vm21, %v803
  %v810 = vld [vmem:[%s107] sm:$0x3]
  %v811 = vld [vmem:[%s107 + $0x8] sm:$0x3]
  %814 = vrot.lane.b32.xlu0 %v810, 126
  %v815 = vpop.permute.xlu0 %814
  %816 = vrot.lane.b32.xlu0 %v811, 126
  %v817 = vpop.permute.xlu0 %816
  %v818 = vrot.slane %v815, 1
  %v819 = vrot.slane %v817, 1
  %v820 = vsel %vm87, %v815, %v818
  %v821 = vsel %vm87, %v817, %v819
  %824 = vst.msk [vmem:[%s170] ss:$8 sm:$0x3] %vm21, %v820
  %825 = vst.msk [vmem:[%s170] ss:$8 sm:$0x0] %vm21, %v820
  %826 = vst.msk [vmem:[%s173] ss:$8 sm:$0x3] %vm21, %v821
  %827 = vst.msk [vmem:[%s173] ss:$8 sm:$0x0] %vm21, %v821
  %v828 = vld [vmem:[%s27] sm:$0x3]
  %v829 = vld [vmem:[%s27 + $0x8] sm:$0x3]
  %832 = vrot.lane.b32.xlu0 %v828, 114
  %v833 = vpop.permute.xlu0 %832
  %834 = vrot.lane.b32.xlu0 %v829, 114
  %v835 = vpop.permute.xlu0 %834
  %v836 = vrot.slane %v833, 1
  %v837 = vrot.slane %v835, 1
  %v838 = vsel %vm186, %v833, %v836
  %v839 = vsel %vm186, %v835, %v837
  %842 = vst.msk [vmem:[%s191] ss:$8 sm:$0x3] %vm21, %v838
  %843 = vst.msk [vmem:[%s191] ss:$8 sm:$0x0] %vm21, %v838
  %844 = vst.msk [vmem:[%s194] ss:$8 sm:$0x3] %vm21, %v839
  %845 = vst.msk [vmem:[%s194] ss:$8 sm:$0x0] %vm21, %v839
  %v846 = vld [vmem:[%s0] sm:$0x3]
  %v847 = vld [vmem:[%s0 + $0x8] sm:$0x3]
  %850 = vrot.lane.b32.xlu0 %v846, 113
  %v851 = vpop.permute.xlu0 %850
  %852 = vrot.lane.b32.xlu0 %v847, 113
  %v853 = vpop.permute.xlu0 %852
  %v854 = vrot.slane %v851, 1
  %v855 = vrot.slane %v853, 1
  %v856 = vsel %vm227, %v851, %v854
  %v857 = vsel %vm227, %v853, %v855
  %860 = vst.msk [vmem:[%s211] ss:$8 sm:$0x3] %vm21, %v856
  %861 = vst.msk [vmem:[%s211] ss:$8 sm:$0x0] %vm21, %v856
  %862 = vst.msk [vmem:[%s214] ss:$8 sm:$0x3] %vm21, %v857
  %863 = vst.msk [vmem:[%s214] ss:$8 sm:$0x0] %vm21, %v857
  %v864 = vld [vmem:[%s27] sm:$0x3]
  %v865 = vld [vmem:[%s27 + $0x8] sm:$0x3]
  %868 = vrot.lane.b32.xlu0 %v864, 113
  %v869 = vpop.permute.xlu0 %868
  %870 = vrot.lane.b32.xlu0 %v865, 113
  %v871 = vpop.permute.xlu0 %870
  %v872 = vrot.slane %v869, 1
  %v873 = vrot.slane %v871, 1
  %v874 = vsel %vm227, %v869, %v872
  %v875 = vsel %vm227, %v871, %v873
  %878 = vst.msk [vmem:[%s232] ss:$8 sm:$0x3] %vm21, %v874
  %879 = vst.msk [vmem:[%s232] ss:$8 sm:$0x0] %vm21, %v874
  %880 = vst.msk [vmem:[%s235] ss:$8 sm:$0x3] %vm21, %v875
  %881 = vst.msk [vmem:[%s235] ss:$8 sm:$0x0] %vm21, %v875
  %v882 = vld [vmem:[%s0] sm:$0x3]
  %v883 = vld [vmem:[%s0 + $0x8] sm:$0x3]
  %886 = vrot.lane.b32.xlu0 %v882, 112
  %v887 = vpop.permute.xlu0 %886
  %888 = vrot.lane.b32.xlu0 %v883, 112
  %v889 = vpop.permute.xlu0 %888
  %v890 = vrot.slane %v887, 1
  %v891 = vrot.slane %v889, 1
  %v892 = vsel %vm268, %v887, %v890
  %v893 = vsel %vm268, %v889, %v891
  %896 = vst.msk [vmem:[%s252] ss:$8 sm:$0x3] %vm21, %v892
  %897 = vst.msk [vmem:[%s252] ss:$8 sm:$0x0] %vm21, %v892
  %898 = vst.msk [vmem:[%s255] ss:$8 sm:$0x3] %vm21, %v893
  %899 = vst.msk [vmem:[%s255] ss:$8 sm:$0x0] %vm21, %v893
  %v900 = vld [vmem:[%s27] sm:$0x3]
  %v901 = vld [vmem:[%s27 + $0x8] sm:$0x3]
  %904 = vrot.lane.b32.xlu0 %v900, 112
  %v905 = vpop.permute.xlu0 %904
  %906 = vrot.lane.b32.xlu0 %v901, 112
  %v907 = vpop.permute.xlu0 %906
  %v908 = vrot.slane %v905, 1
  %v909 = vrot.slane %v907, 1
  %v910 = vsel %vm268, %v905, %v908
  %v911 = vsel %vm268, %v907, %v909
  %914 = vst.msk [vmem:[%s273] ss:$8 sm:$0x3] %vm21, %v910
  %915 = vst.msk [vmem:[%s273] ss:$8 sm:$0x0] %vm21, %v910
  %916 = vst.msk [vmem:[%s276] ss:$8 sm:$0x3] %vm21, %v911
  %917 = vst.msk [vmem:[%s276] ss:$8 sm:$0x0] %vm21, %v911
  %v918 = vld [vmem:[%s107] sm:$0x3]
  %v919 = vld [vmem:[%s107 + $0x8] sm:$0x3]
  %922 = vrot.lane.b32.xlu0 %v918, 114
  %v923 = vpop.permute.xlu0 %922
  %924 = vrot.lane.b32.xlu0 %v919, 114
  %v925 = vpop.permute.xlu0 %924
  %v926 = vrot.slane %v923, 1
  %v927 = vrot.slane %v925, 1
  %v928 = vsel %vm186, %v923, %v926
  %v929 = vsel %vm186, %v925, %v927
  %932 = vst.msk [vmem:[%s293] ss:$8 sm:$0x3] %vm21, %v928
  %933 = vst.msk [vmem:[%s293] ss:$8 sm:$0x0] %vm21, %v928
  %934 = vst.msk [vmem:[%s296] ss:$8 sm:$0x3] %vm21, %v929
  %935 = vst.msk [vmem:[%s296] ss:$8 sm:$0x0] %vm21, %v929
  %v936 = vld [vmem:[%s98] sm:$0x3]
  %v937 = vld [vmem:[%s98 + $0x8] sm:$0x3]
  %940 = vrot.lane.b32.xlu0 %v936, 113
  %v941 = vpop.permute.xlu0 %940
  %942 = vrot.lane.b32.xlu0 %v937, 113
  %v943 = vpop.permute.xlu0 %942
  %v944 = vrot.slane %v941, 1
  %v945 = vrot.slane %v943, 1
  %v946 = vsel %vm227, %v941, %v944
  %v947 = vsel %vm227, %v943, %v945
  %950 = vst.msk [vmem:[%s313] ss:$8 sm:$0x3] %vm21, %v946
  %951 = vst.msk [vmem:[%s313] ss:$8 sm:$0x0] %vm21, %v946
  %952 = vst.msk [vmem:[%s316] ss:$8 sm:$0x3] %vm21, %v947
  %953 = vst.msk [vmem:[%s316] ss:$8 sm:$0x0] %vm21, %v947
  %v954 = vld [vmem:[%s107] sm:$0x3]
  %v955 = vld [vmem:[%s107 + $0x8] sm:$0x3]
  %958 = vrot.lane.b32.xlu0 %v954, 113
  %v959 = vpop.permute.xlu0 %958
  %960 = vrot.lane.b32.xlu0 %v955, 113
  %v961 = vpop.permute.xlu0 %960
  %v962 = vrot.slane %v959, 1
  %v963 = vrot.slane %v961, 1
  %v964 = vsel %vm227, %v959, %v962
  %v965 = vsel %vm227, %v961, %v963
  %968 = vst.msk [vmem:[%s333] ss:$8 sm:$0x3] %vm21, %v964
  %969 = vst.msk [vmem:[%s333] ss:$8 sm:$0x0] %vm21, %v964
  %970 = vst.msk [vmem:[%s336] ss:$8 sm:$0x3] %vm21, %v965
  %971 = vst.msk [vmem:[%s336] ss:$8 sm:$0x0] %vm21, %v965
  %v972 = vld [vmem:[%s98] sm:$0x3]
  %v973 = vld [vmem:[%s98 + $0x8] sm:$0x3]
  %976 = vrot.lane.b32.xlu0 %v972, 112
  %v977 = vpop.permute.xlu0 %976
  %978 = vrot.lane.b32.xlu0 %v973, 112
  %v979 = vpop.permute.xlu0 %978
  %v980 = vrot.slane %v977, 1
  %v981 = vrot.slane %v979, 1
  %v982 = vsel %vm268, %v977, %v980
  %v983 = vsel %vm268, %v979, %v981
  %986 = vst.msk [vmem:[%s353] ss:$8 sm:$0x3] %vm21, %v982
  %987 = vst.msk [vmem:[%s353] ss:$8 sm:$0x0] %vm21, %v982
  %988 = vst.msk [vmem:[%s356] ss:$8 sm:$0x3] %vm21, %v983
  %989 = vst.msk [vmem:[%s356] ss:$8 sm:$0x0] %vm21, %v983
  %v990 = vld [vmem:[%s107] sm:$0x3]
  %v991 = vld [vmem:[%s107 + $0x8] sm:$0x3]
  %994 = vrot.lane.b32.xlu0 %v990, 112
  %v995 = vpop.permute.xlu0 %994
  %996 = vrot.lane.b32.xlu0 %v991, 112
  %v997 = vpop.permute.xlu0 %996
  %v998 = vrot.slane %v995, 1
  %v999 = vrot.slane %v997, 1
  %v1000 = vsel %vm268, %v995, %v998
  %v1001 = vsel %vm268, %v997, %v999
  %1004 = vst.msk [vmem:[%s373] ss:$8 sm:$0x3] %vm21, %v1000
  %1005 = vst.msk [vmem:[%s373] ss:$8 sm:$0x0] %vm21, %v1000
  %1006 = vst.msk [vmem:[%s376] ss:$8 sm:$0x3] %vm21, %v1001
  %1007 = vst.msk [vmem:[%s376] ss:$8 sm:$0x0] %vm21, %v1001
  %v1008 = vld [vmem:[%s27] sm:$0x3]
  %v1009 = vld [vmem:[%s27 + $0x8] sm:$0x3]
  %1012 = vrot.lane.b32.xlu0 %v1008, 100
  %v1013 = vpop.permute.xlu0 %1012
  %1014 = vrot.lane.b32.xlu0 %v1009, 100
  %v1015 = vpop.permute.xlu0 %1014
  %v1016 = vrot.slane %v1013, 1
  %v1017 = vrot.slane %v1015, 1
  %v1018 = vsel %vm389, %v1013, %v1016
  %v1019 = vsel %vm389, %v1015, %v1017
  %1022 = vst.msk [vmem:[%s394] ss:$8 sm:$0x3] %vm21, %v1018
  %1023 = vst.msk [vmem:[%s394] ss:$8 sm:$0x0] %vm21, %v1018
  %1024 = vst.msk [vmem:[%s397] ss:$8 sm:$0x3] %vm21, %v1019
  %1025 = vst.msk [vmem:[%s397] ss:$8 sm:$0x0] %vm21, %v1019
  %v1026 = vld [vmem:[%s0] sm:$0x3]
  %v1027 = vld [vmem:[%s0 + $0x8] sm:$0x3]
  %1030 = vrot.lane.b32.xlu0 %v1026, 99
  %v1031 = vpop.permute.xlu0 %1030
  %1032 = vrot.lane.b32.xlu0 %v1027, 99
  %v1033 = vpop.permute.xlu0 %1032
  %v1034 = vrot.slane %v1031, 1
  %v1035 = vrot.slane %v1033, 1
  %v1036 = vsel %vm430, %v1031, %v1034
  %v1037 = vsel %vm430, %v1033, %v1035
  %1040 = vst.msk [vmem:[%s414] ss:$8 sm:$0x3] %vm21, %v1036
  %1041 = vst.msk [vmem:[%s414] ss:$8 sm:$0x0] %vm21, %v1036
  %1042 = vst.msk [vmem:[%s417] ss:$8 sm:$0x3] %vm21, %v1037
  %1043 = vst.msk [vmem:[%s417] ss:$8 sm:$0x0] %vm21, %v1037
  %v1044 = vld [vmem:[%s27] sm:$0x3]
  %v1045 = vld [vmem:[%s27 + $0x8] sm:$0x3]
  %1048 = vrot.lane.b32.xlu0 %v1044, 99
  %v1049 = vpop.permute.xlu0 %1048
  %1050 = vrot.lane.b32.xlu0 %v1045, 99
  %v1051 = vpop.permute.xlu0 %1050
  %v1052 = vrot.slane %v1049, 1
  %v1053 = vrot.slane %v1051, 1
  %v1054 = vsel %vm430, %v1049, %v1052
  %v1055 = vsel %vm430, %v1051, %v1053
  %1058 = vst.msk [vmem:[%s435] ss:$8 sm:$0x3] %vm21, %v1054
  %1059 = vst.msk [vmem:[%s435] ss:$8 sm:$0x0] %vm21, %v1054
  %1060 = vst.msk [vmem:[%s438] ss:$8 sm:$0x3] %vm21, %v1055
  %1061 = vst.msk [vmem:[%s438] ss:$8 sm:$0x0] %vm21, %v1055
  %v1062 = vld [vmem:[%s0] sm:$0x3]
  %v1063 = vld [vmem:[%s0 + $0x8] sm:$0x3]
  %1066 = vrot.lane.b32.xlu0 %v1062, 98
  %v1067 = vpop.permute.xlu0 %1066
  %1068 = vrot.lane.b32.xlu0 %v1063, 98
  %v1069 = vpop.permute.xlu0 %1068
  %v1070 = vrot.slane %v1067, 1
  %v1071 = vrot.slane %v1069, 1
  %v1072 = vsel %vm471, %v1067, %v1070
  %v1073 = vsel %vm471, %v1069, %v1071
  %1076 = vst.msk [vmem:[%s455] ss:$8 sm:$0x3] %vm21, %v1072
  %1077 = vst.msk [vmem:[%s455] ss:$8 sm:$0x0] %vm21, %v1072
  %1078 = vst.msk [vmem:[%s458] ss:$8 sm:$0x3] %vm21, %v1073
  %1079 = vst.msk [vmem:[%s458] ss:$8 sm:$0x0] %vm21, %v1073
  %v1080 = vld [vmem:[%s27] sm:$0x3]
  %v1081 = vld [vmem:[%s27 + $0x8] sm:$0x3]
  %1084 = vrot.lane.b32.xlu0 %v1080, 98
  %v1085 = vpop.permute.xlu0 %1084
  %1086 = vrot.lane.b32.xlu0 %v1081, 98
  %v1087 = vpop.permute.xlu0 %1086
  %v1088 = vrot.slane %v1085, 1
  %v1089 = vrot.slane %v1087, 1
  %v1090 = vsel %vm471, %v1085, %v1088
  %v1091 = vsel %vm471, %v1087, %v1089
  %1094 = vst.msk [vmem:[%s476] ss:$8 sm:$0x3] %vm21, %v1090
  %1095 = vst.msk [vmem:[%s476] ss:$8 sm:$0x0] %vm21, %v1090
  %1096 = vst.msk [vmem:[%s479] ss:$8 sm:$0x3] %vm21, %v1091
  %1097 = vst.msk [vmem:[%s479] ss:$8 sm:$0x0] %vm21, %v1091
  %v1098 = vld [vmem:[#allocation2] sm:$0xff]
  %v1099 = vld [vmem:[#allocation2 + $0x8] sm:$0xff]
  %v1100 = vld [vmem:[#allocation2 + $0x10] sm:$0xff]
  %v1101 = vld [vmem:[#allocation2 + $0x18] sm:$0xff]
  %v1102 = vld [vmem:[#allocation2 + $0x20] sm:$0xff]
  %v1103 = vld [vmem:[#allocation2 + $0x28] sm:$0xff]
  %v1104 = vld [vmem:[#allocation2 + $0x30] sm:$0x1]
  %v1105 = vld [vmem:[#allocation2 + $0x38] sm:$0x1]
  %v1106 = vld [vmem:[#allocation2 + $0x40] sm:$0xff]
  %v1107 = vld [vmem:[#allocation2 + $0x48] sm:$0xff]
  %v1108 = vld [vmem:[#allocation2 + $0x50] sm:$0xff]
  %v1109 = vld [vmem:[#allocation2 + $0x58] sm:$0xff]
  %v1110 = vld [vmem:[#allocation2 + $0x60] sm:$0xff]
  %v1111 = vld [vmem:[#allocation2 + $0x68] sm:$0xff]
  %v1112 = vld [vmem:[#allocation2 + $0x70] sm:$0x1]
  %v1113 = vld [vmem:[#allocation2 + $0x78] sm:$0x1]
  %v1115 = vsel %vm505, %v1104, 0
  %v1118 = vsel %vm505, %v1105, 0
  %1120 = vmatprep.subr.mxu0 %v1099
  %1121 = vmatpush1.msra.mxu0 %v1098
  %1122 = vmatprep.subr.mxu0 %v1101
  %1123 = vmatpush1.msra.mxu0 %v1100
  %1124 = vmatprep.subr.mxu0 %v1103
  %1125 = vmatpush1.msra.mxu0 %v1102
  %1126 = vmatprep.subr.mxu0 %v1118
  %1127 = vmatpush1.msra.mxu0 %v1115
  %1128 = vmatprep.subr.mxu0 0.0
  %1129 = vmatpush1.msra.mxu0 0.0
  %1130 = vmatprep.subr.mxu0 0.0
  %1131 = vmatpush1.msra.mxu0 0.0
  %1132 = vmatprep.subr.mxu0 0.0
  %1133 = vmatpush1.msra.mxu0 0.0
  %1134 = vmatprep.subr.mxu0 0.0
  %1135 = vmatpush1.msra.mxu0 0.0
  %1136 = vmatprep.subr.mxu0 0.0
  %1137 = vmatpush1.msra.mxu0 0.0
  %1138 = vmatprep.subr.mxu0 0.0
  %1139 = vmatpush1.msra.mxu0 0.0
  %1140 = vmatprep.subr.mxu0 0.0
  %1141 = vmatpush1.msra.mxu0 0.0
  %1142 = vmatprep.subr.mxu0 0.0
  %1143 = vmatpush1.msra.mxu0 0.0
  %1144 = vmatprep.subr.mxu0 0.0
  %1145 = vmatpush1.msra.mxu0 0.0
  %1146 = vmatprep.subr.mxu0 0.0
  %1147 = vmatpush1.msra.mxu0 0.0
  %1148 = vmatprep.subr.mxu0 0.0
  %1149 = vmatpush1.msra.mxu0 0.0
  %1150 = vmatprep.subr.mxu0 0.0
  %1151 = vmatpush1.msra.mxu0 0.0
  %1152 = vmatprep.subr.mxu0 0.0
  %1153 = vmatpush1.msra.mxu0 0.0
  %1154 = vmatprep.subr.mxu0 0.0
  %1155 = vmatpush1.msra.mxu0 0.0
  %1156 = vmatprep.subr.mxu0 0.0
  %1157 = vmatpush1.msra.mxu0 0.0
  %1158 = vmatprep.subr.mxu0 0.0
  %1159 = vmatpush1.msra.mxu0 0.0
  %1160 = vmatprep.subr.mxu0 0.0
  %1161 = vmatpush1.msra.mxu0 0.0
  %1162 = vmatprep.subr.mxu0 0.0
  %1163 = vmatpush1.msra.mxu0 0.0
  %1164 = vmatprep.subr.mxu0 0.0
  %1165 = vmatpush1.msra.mxu0 0.0
  %1166 = vmatprep.subr.mxu0 0.0
  %1167 = vmatpush1.msra.mxu0 0.0
  %1168 = vmatprep.subr.mxu0 0.0
  %1169 = vmatpush1.msra.mxu0 0.0
  %1170 = vmatprep.subr.mxu0 0.0
  %1171 = vmatpush1.msra.mxu0 0.0
  %1172 = vmatprep.subr.mxu0 0.0
  %1173 = vmatpush1.msra.mxu0 0.0
  %1174 = vmatprep.subr.mxu0 0.0
  %1175 = vmatpush1.msra.mxu0 0.0
  %1176 = vmatprep.subr.mxu0 0.0
  %1177 = vmatpush1.msra.mxu0 0.0
  %1178 = vmatprep.subr.mxu0 0.0
  %1179 = vmatpush1.msra.mxu0 0.0
  %1180 = vmatprep.subr.mxu0 0.0
  %1181 = vmatpush1.msra.mxu0 0.0
  %1182 = vmatprep.subr.mxu0 0.0
  %1183 = vmatpush1.msra.mxu0 0.0
  %1184 = vmatprep.mubr.f32.mxu0 0.0
  %1185 = vmatmul.mubr.f32.gmra.mrb[0].mxu0 %v500
  %v1186 = vpop.f32.mrb[0].mxu0
  %v1187 = vadd.f32 0.0, %v1186
  %v1188 = vpop.f32.mrb[0].mxu0
  %v1189 = vadd.f32 0.0, %v1188
  %1190 = vmatprep.mubr.f32.mxu0 0.0
  %1191 = vmatmul.mubr.f32.gmra.mrb[0].mxu0 %v503
  %v1192 = vpop.f32.mrb[0].mxu0
  %v1193 = vadd.f32 0.0, %v1192
  %v1194 = vpop.f32.mrb[0].mxu0
  %v1195 = vadd.f32 0.0, %v1194
  %1196 = vdwg.mxu0
  %v1198 = vsel %vm505, %v1112, 0
  %v1201 = vsel %vm505, %v1113, 0
  %1203 = vmatprep.subr.mxu0 %v1107
  %1204 = vmatpush1.msra.mxu0 %v1106
  %1205 = vmatprep.subr.mxu0 %v1109
  %1206 = vmatpush1.msra.mxu0 %v1108
  %1207 = vmatprep.subr.mxu0 %v1111
  %1208 = vmatpush1.msra.mxu0 %v1110
  %1209 = vmatprep.subr.mxu0 %v1201
  %1210 = vmatpush1.msra.mxu0 %v1198
  %1211 = vmatprep.subr.mxu0 0.0
  %1212 = vmatpush1.msra.mxu0 0.0
  %1213 = vmatprep.subr.mxu0 0.0
  %1214 = vmatpush1.msra.mxu0 0.0
  %1215 = vmatprep.subr.mxu0 0.0
  %1216 = vmatpush1.msra.mxu0 0.0
  %1217 = vmatprep.subr.mxu0 0.0
  %1218 = vmatpush1.msra.mxu0 0.0
  %1219 = vmatprep.subr.mxu0 0.0
  %1220 = vmatpush1.msra.mxu0 0.0
  %1221 = vmatprep.subr.mxu0 0.0
  %1222 = vmatpush1.msra.mxu0 0.0
  %1223 = vmatprep.subr.mxu0 0.0
  %1224 = vmatpush1.msra.mxu0 0.0
  %1225 = vmatprep.subr.mxu0 0.0
  %1226 = vmatpush1.msra.mxu0 0.0
  %1227 = vmatprep.subr.mxu0 0.0
  %1228 = vmatpush1.msra.mxu0 0.0
  %1229 = vmatprep.subr.mxu0 0.0
  %1230 = vmatpush1.msra.mxu0 0.0
  %1231 = vmatprep.subr.mxu0 0.0
  %1232 = vmatpush1.msra.mxu0 0.0
  %1233 = vmatprep.subr.mxu0 0.0
  %1234 = vmatpush1.msra.mxu0 0.0
  %1235 = vmatprep.subr.mxu0 0.0
  %1236 = vmatpush1.msra.mxu0 0.0
  %1237 = vmatprep.subr.mxu0 0.0
  %1238 = vmatpush1.msra.mxu0 0.0
  %1239 = vmatprep.subr.mxu0 0.0
  %1240 = vmatpush1.msra.mxu0 0.0
  %1241 = vmatprep.subr.mxu0 0.0
  %1242 = vmatpush1.msra.mxu0 0.0
  %1243 = vmatprep.subr.mxu0 0.0
  %1244 = vmatpush1.msra.mxu0 0.0
  %1245 = vmatprep.subr.mxu0 0.0
  %1246 = vmatpush1.msra.mxu0 0.0
  %1247 = vmatprep.subr.mxu0 0.0
  %1248 = vmatpush1.msra.mxu0 0.0
  %1249 = vmatprep.subr.mxu0 0.0
  %1250 = vmatpush1.msra.mxu0 0.0
  %1251 = vmatprep.subr.mxu0 0.0
  %1252 = vmatpush1.msra.mxu0 0.0
  %1253 = vmatprep.subr.mxu0 0.0
  %1254 = vmatpush1.msra.mxu0 0.0
  %1255 = vmatprep.subr.mxu0 0.0
  %1256 = vmatpush1.msra.mxu0 0.0
  %1257 = vmatprep.subr.mxu0 0.0
  %1258 = vmatpush1.msra.mxu0 0.0
  %1259 = vmatprep.subr.mxu0 0.0
  %1260 = vmatpush1.msra.mxu0 0.0
  %1261 = vmatprep.subr.mxu0 0.0
  %1262 = vmatpush1.msra.mxu0 0.0
  %1263 = vmatprep.subr.mxu0 0.0
  %1264 = vmatpush1.msra.mxu0 0.0
  %1265 = vmatprep.subr.mxu0 0.0
  %1266 = vmatpush1.msra.mxu0 0.0
  %1267 = vmatprep.mubr.f32.mxu0 0.0
  %1268 = vmatmul.mubr.f32.gmra.mrb[0].mxu0 %v500
  %v1269 = vpop.f32.mrb[0].mxu0
  %v1270 = vadd.f32 0.0, %v1269
  %v1271 = vpop.f32.mrb[0].mxu0
  %v1272 = vadd.f32 0.0, %v1271
  %1273 = vmatprep.mubr.f32.mxu0 0.0
  %1274 = vmatmul.mubr.f32.gmra.mrb[0].mxu0 %v503
  %v1275 = vpop.f32.mrb[0].mxu0
  %v1276 = vadd.f32 0.0, %v1275
  %v1277 = vpop.f32.mrb[0].mxu0
  %v1278 = vadd.f32 0.0, %v1277
  %1279 = vdwg.mxu0
  %v1280 = vmax.f32 %v579, %v1187
  %v1281 = vmax.f32 %v581, %v1189
  %v1282 = vmax.f32 %v585, %v1193
  %v1283 = vmax.f32 %v587, %v1195
  %v1284 = vmax.f32 %v662, %v1270
  %v1285 = vmax.f32 %v664, %v1272
  %v1286 = vmax.f32 %v668, %v1276
  %v1287 = vmax.f32 %v670, %v1278
  %v1288 = vld [vmem:[%s98] sm:$0x3]
  %v1289 = vld [vmem:[%s98 + $0x8] sm:$0x3]
  %1290 = vst.msk [vmem:[#allocation2] ss:$8 sm:$0x3] %vm21, %v1288
  %1291 = vst.msk [vmem:[#allocation2] ss:$8 sm:$0x0] %vm21, %v1288
  %1292 = vst.msk [vmem:[%s24] ss:$8 sm:$0x3] %vm21, %v1289
  %1293 = vst.msk [vmem:[%s24] ss:$8 sm:$0x0] %vm21, %v1289
  %v1294 = vld [vmem:[%s107] sm:$0x3]
  %v1295 = vld [vmem:[%s107 + $0x8] sm:$0x3]
  %1296 = vst.msk [vmem:[%s30] ss:$8 sm:$0x3] %vm21, %v1294
  %1297 = vst.msk [vmem:[%s30] ss:$8 sm:$0x0] %vm21, %v1294
  %1298 = vst.msk [vmem:[%s33] ss:$8 sm:$0x3] %vm21, %v1295
  %1299 = vst.msk [vmem:[%s33] ss:$8 sm:$0x0] %vm21, %v1295
  %v1300 = vld [vmem:[%s98] sm:$0x3]
  %v1301 = vld [vmem:[%s98 + $0x8] sm:$0x3]
  %1304 = vrot.lane.b32.xlu0 %v1300, 127
  %v1305 = vpop.permute.xlu0 %1304
  %1306 = vrot.lane.b32.xlu0 %v1301, 127
  %v1307 = vpop.permute.xlu0 %1306
  %v1308 = vrot.slane %v1305, 1
  %v1309 = vrot.slane %v1307, 1
  %v1310 = vsel %vm46, %v1305, %v1308
  %v1311 = vsel %vm46, %v1307, %v1309
  %1314 = vst.msk [vmem:[%s51] ss:$8 sm:$0x3] %vm21, %v1310
  %1315 = vst.msk [vmem:[%s51] ss:$8 sm:$0x0] %vm21, %v1310
  %1316 = vst.msk [vmem:[%s54] ss:$8 sm:$0x3] %vm21, %v1311
  %1317 = vst.msk [vmem:[%s54] ss:$8 sm:$0x0] %vm21, %v1311
  %v1318 = vld [vmem:[%s107] sm:$0x3]
  %v1319 = vld [vmem:[%s107 + $0x8] sm:$0x3]
  %1322 = vrot.lane.b32.xlu0 %v1318, 127
  %v1323 = vpop.permute.xlu0 %1322
  %1324 = vrot.lane.b32.xlu0 %v1319, 127
  %v1325 = vpop.permute.xlu0 %1324
  %v1326 = vrot.slane %v1323, 1
  %v1327 = vrot.slane %v1325, 1
  %v1328 = vsel %vm46, %v1323, %v1326
  %v1329 = vsel %vm46, %v1325, %v1327
  %1332 = vst.msk [vmem:[%s71] ss:$8 sm:$0x3] %vm21, %v1328
  %1333 = vst.msk [vmem:[%s71] ss:$8 sm:$0x0] %vm21, %v1328
  %1334 = vst.msk [vmem:[%s74] ss:$8 sm:$0x3] %vm21, %v1329
  %1335 = vst.msk [vmem:[%s74] ss:$8 sm:$0x0] %vm21, %v1329
  %v1336 = vld [vmem:[%s98] sm:$0x3]
  %v1337 = vld [vmem:[%s98 + $0x8] sm:$0x3]
  %1340 = vrot.lane.b32.xlu0 %v1336, 126
  %v1341 = vpop.permute.xlu0 %1340
  %1342 = vrot.lane.b32.xlu0 %v1337, 126
  %v1343 = vpop.permute.xlu0 %1342
  %v1344 = vrot.slane %v1341, 1
  %v1345 = vrot.slane %v1343, 1
  %v1346 = vsel %vm87, %v1341, %v1344
  %v1347 = vsel %vm87, %v1343, %v1345
  %1350 = vst.msk [vmem:[%s92] ss:$8 sm:$0x3] %vm21, %v1346
  %1351 = vst.msk [vmem:[%s92] ss:$8 sm:$0x0] %vm21, %v1346
  %1352 = vst.msk [vmem:[%s95] ss:$8 sm:$0x3] %vm21, %v1347
  %1353 = vst.msk [vmem:[%s95] ss:$8 sm:$0x0] %vm21, %v1347
  %v1354 = vld [vmem:[%s0] sm:$0x3]
  %v1355 = vld [vmem:[%s0 + $0x8] sm:$0x3]
  %1358 = vrot.lane.b32.xlu0 %v1354, 114
  %v1359 = vpop.permute.xlu0 %1358
  %1360 = vrot.lane.b32.xlu0 %v1355, 114
  %v1361 = vpop.permute.xlu0 %1360
  %v1362 = vrot.slane %v1359, 1
  %v1363 = vrot.slane %v1361, 1
  %v1364 = vsel %vm186, %v1359, %v1362
  %v1365 = vsel %vm186, %v1361, %v1363
  %1368 = vst.msk [vmem:[%s101] ss:$8 sm:$0x3] %vm21, %v1364
  %1369 = vst.msk [vmem:[%s101] ss:$8 sm:$0x0] %vm21, %v1364
  %1370 = vst.msk [vmem:[%s104] ss:$8 sm:$0x3] %vm21, %v1365
  %1371 = vst.msk [vmem:[%s104] ss:$8 sm:$0x0] %vm21, %v1365
  %v1372 = vld [vmem:[%s27] sm:$0x3]
  %v1373 = vld [vmem:[%s27 + $0x8] sm:$0x3]
  %1376 = vrot.lane.b32.xlu0 %v1372, 114
  %v1377 = vpop.permute.xlu0 %1376
  %1378 = vrot.lane.b32.xlu0 %v1373, 114
  %v1379 = vpop.permute.xlu0 %1378
  %v1380 = vrot.slane %v1377, 1
  %v1381 = vrot.slane %v1379, 1
  %v1382 = vsel %vm186, %v1377, %v1380
  %v1383 = vsel %vm186, %v1379, %v1381
  %1386 = vst.msk [vmem:[%s110] ss:$8 sm:$0x3] %vm21, %v1382
  %1387 = vst.msk [vmem:[%s110] ss:$8 sm:$0x0] %vm21, %v1382
  %1388 = vst.msk [vmem:[%s113] ss:$8 sm:$0x3] %vm21, %v1383
  %1389 = vst.msk [vmem:[%s113] ss:$8 sm:$0x0] %vm21, %v1383
  %v1390 = vld [vmem:[%s0] sm:$0x3]
  %v1391 = vld [vmem:[%s0 + $0x8] sm:$0x3]
  %1394 = vrot.lane.b32.xlu0 %v1390, 113
  %v1395 = vpop.permute.xlu0 %1394
  %1396 = vrot.lane.b32.xlu0 %v1391, 113
  %v1397 = vpop.permute.xlu0 %1396
  %v1398 = vrot.slane %v1395, 1
  %v1399 = vrot.slane %v1397, 1
  %v1400 = vsel %vm227, %v1395, %v1398
  %v1401 = vsel %vm227, %v1397, %v1399
  %1404 = vst.msk [vmem:[%s130] ss:$8 sm:$0x3] %vm21, %v1400
  %1405 = vst.msk [vmem:[%s130] ss:$8 sm:$0x0] %vm21, %v1400
  %1406 = vst.msk [vmem:[%s133] ss:$8 sm:$0x3] %vm21, %v1401
  %1407 = vst.msk [vmem:[%s133] ss:$8 sm:$0x0] %vm21, %v1401
  %v1408 = vld [vmem:[%s27] sm:$0x3]
  %v1409 = vld [vmem:[%s27 + $0x8] sm:$0x3]
  %1412 = vrot.lane.b32.xlu0 %v1408, 113
  %v1413 = vpop.permute.xlu0 %1412
  %1414 = vrot.lane.b32.xlu0 %v1409, 113
  %v1415 = vpop.permute.xlu0 %1414
  %v1416 = vrot.slane %v1413, 1
  %v1417 = vrot.slane %v1415, 1
  %v1418 = vsel %vm227, %v1413, %v1416
  %v1419 = vsel %vm227, %v1415, %v1417
  %1422 = vst.msk [vmem:[%s150] ss:$8 sm:$0x3] %vm21, %v1418
  %1423 = vst.msk [vmem:[%s150] ss:$8 sm:$0x0] %vm21, %v1418
  %1424 = vst.msk [vmem:[%s153] ss:$8 sm:$0x3] %vm21, %v1419
  %1425 = vst.msk [vmem:[%s153] ss:$8 sm:$0x0] %vm21, %v1419
  %v1426 = vld [vmem:[%s0] sm:$0x3]
  %v1427 = vld [vmem:[%s0 + $0x8] sm:$0x3]
  %1430 = vrot.lane.b32.xlu0 %v1426, 112
  %v1431 = vpop.permute.xlu0 %1430
  %1432 = vrot.lane.b32.xlu0 %v1427, 112
  %v1433 = vpop.permute.xlu0 %1432
  %v1434 = vrot.slane %v1431, 1
  %v1435 = vrot.slane %v1433, 1
  %v1436 = vsel %vm268, %v1431, %v1434
  %v1437 = vsel %vm268, %v1433, %v1435
  %1440 = vst.msk [vmem:[%s170] ss:$8 sm:$0x3] %vm21, %v1436
  %1441 = vst.msk [vmem:[%s170] ss:$8 sm:$0x0] %vm21, %v1436
  %1442 = vst.msk [vmem:[%s173] ss:$8 sm:$0x3] %vm21, %v1437
  %1443 = vst.msk [vmem:[%s173] ss:$8 sm:$0x0] %vm21, %v1437
  %v1444 = vld [vmem:[%s98] sm:$0x3]
  %v1445 = vld [vmem:[%s98 + $0x8] sm:$0x3]
  %1448 = vrot.lane.b32.xlu0 %v1444, 114
  %v1449 = vpop.permute.xlu0 %1448
  %1450 = vrot.lane.b32.xlu0 %v1445, 114
  %v1451 = vpop.permute.xlu0 %1450
  %v1452 = vrot.slane %v1449, 1
  %v1453 = vrot.slane %v1451, 1
  %v1454 = vsel %vm186, %v1449, %v1452
  %v1455 = vsel %vm186, %v1451, %v1453
  %1458 = vst.msk [vmem:[%s191] ss:$8 sm:$0x3] %vm21, %v1454
  %1459 = vst.msk [vmem:[%s191] ss:$8 sm:$0x0] %vm21, %v1454
  %1460 = vst.msk [vmem:[%s194] ss:$8 sm:$0x3] %vm21, %v1455
  %1461 = vst.msk [vmem:[%s194] ss:$8 sm:$0x0] %vm21, %v1455
  %v1462 = vld [vmem:[%s107] sm:$0x3]
  %v1463 = vld [vmem:[%s107 + $0x8] sm:$0x3]
  %1466 = vrot.lane.b32.xlu0 %v1462, 114
  %v1467 = vpop.permute.xlu0 %1466
  %1468 = vrot.lane.b32.xlu0 %v1463, 114
  %v1469 = vpop.permute.xlu0 %1468
  %v1470 = vrot.slane %v1467, 1
  %v1471 = vrot.slane %v1469, 1
  %v1472 = vsel %vm186, %v1467, %v1470
  %v1473 = vsel %vm186, %v1469, %v1471
  %1476 = vst.msk [vmem:[%s211] ss:$8 sm:$0x3] %vm21, %v1472
  %1477 = vst.msk [vmem:[%s211] ss:$8 sm:$0x0] %vm21, %v1472
  %1478 = vst.msk [vmem:[%s214] ss:$8 sm:$0x3] %vm21, %v1473
  %1479 = vst.msk [vmem:[%s214] ss:$8 sm:$0x0] %vm21, %v1473
  %v1480 = vld [vmem:[%s98] sm:$0x3]
  %v1481 = vld [vmem:[%s98 + $0x8] sm:$0x3]
  %1484 = vrot.lane.b32.xlu0 %v1480, 113
  %v1485 = vpop.permute.xlu0 %1484
  %1486 = vrot.lane.b32.xlu0 %v1481, 113
  %v1487 = vpop.permute.xlu0 %1486
  %v1488 = vrot.slane %v1485, 1
  %v1489 = vrot.slane %v1487, 1
  %v1490 = vsel %vm227, %v1485, %v1488
  %v1491 = vsel %vm227, %v1487, %v1489
  %1494 = vst.msk [vmem:[%s232] ss:$8 sm:$0x3] %vm21, %v1490
  %1495 = vst.msk [vmem:[%s232] ss:$8 sm:$0x0] %vm21, %v1490
  %1496 = vst.msk [vmem:[%s235] ss:$8 sm:$0x3] %vm21, %v1491
  %1497 = vst.msk [vmem:[%s235] ss:$8 sm:$0x0] %vm21, %v1491
  %v1498 = vld [vmem:[%s107] sm:$0x3]
  %v1499 = vld [vmem:[%s107 + $0x8] sm:$0x3]
  %1502 = vrot.lane.b32.xlu0 %v1498, 113
  %v1503 = vpop.permute.xlu0 %1502
  %1504 = vrot.lane.b32.xlu0 %v1499, 113
  %v1505 = vpop.permute.xlu0 %1504
  %v1506 = vrot.slane %v1503, 1
  %v1507 = vrot.slane %v1505, 1
  %v1508 = vsel %vm227, %v1503, %v1506
  %v1509 = vsel %vm227, %v1505, %v1507
  %1512 = vst.msk [vmem:[%s252] ss:$8 sm:$0x3] %vm21, %v1508
  %1513 = vst.msk [vmem:[%s252] ss:$8 sm:$0x0] %vm21, %v1508
  %1514 = vst.msk [vmem:[%s255] ss:$8 sm:$0x3] %vm21, %v1509
  %1515 = vst.msk [vmem:[%s255] ss:$8 sm:$0x0] %vm21, %v1509
  %v1516 = vld [vmem:[%s98] sm:$0x3]
  %v1517 = vld [vmem:[%s98 + $0x8] sm:$0x3]
  %1520 = vrot.lane.b32.xlu0 %v1516, 112
  %v1521 = vpop.permute.xlu0 %1520
  %1522 = vrot.lane.b32.xlu0 %v1517, 112
  %v1523 = vpop.permute.xlu0 %1522
  %v1524 = vrot.slane %v1521, 1
  %v1525 = vrot.slane %v1523, 1
  %v1526 = vsel %vm268, %v1521, %v1524
  %v1527 = vsel %vm268, %v1523, %v1525
  %1530 = vst.msk [vmem:[%s273] ss:$8 sm:$0x3] %vm21, %v1526
  %1531 = vst.msk [vmem:[%s273] ss:$8 sm:$0x0] %vm21, %v1526
  %1532 = vst.msk [vmem:[%s276] ss:$8 sm:$0x3] %vm21, %v1527
  %1533 = vst.msk [vmem:[%s276] ss:$8 sm:$0x0] %vm21, %v1527
  %v1534 = vld [vmem:[%s0] sm:$0x3]
  %v1535 = vld [vmem:[%s0 + $0x8] sm:$0x3]
  %1538 = vrot.lane.b32.xlu0 %v1534, 100
  %v1539 = vpop.permute.xlu0 %1538
  %1540 = vrot.lane.b32.xlu0 %v1535, 100
  %v1541 = vpop.permute.xlu0 %1540
  %v1542 = vrot.slane %v1539, 1
  %v1543 = vrot.slane %v1541, 1
  %v1544 = vsel %vm389, %v1539, %v1542
  %v1545 = vsel %vm389, %v1541, %v1543
  %1548 = vst.msk [vmem:[%s293] ss:$8 sm:$0x3] %vm21, %v1544
  %1549 = vst.msk [vmem:[%s293] ss:$8 sm:$0x0] %vm21, %v1544
  %1550 = vst.msk [vmem:[%s296] ss:$8 sm:$0x3] %vm21, %v1545
  %1551 = vst.msk [vmem:[%s296] ss:$8 sm:$0x0] %vm21, %v1545
  %v1552 = vld [vmem:[%s27] sm:$0x3]
  %v1553 = vld [vmem:[%s27 + $0x8] sm:$0x3]
  %1556 = vrot.lane.b32.xlu0 %v1552, 100
  %v1557 = vpop.permute.xlu0 %1556
  %1558 = vrot.lane.b32.xlu0 %v1553, 100
  %v1559 = vpop.permute.xlu0 %1558
  %v1560 = vrot.slane %v1557, 1
  %v1561 = vrot.slane %v1559, 1
  %v1562 = vsel %vm389, %v1557, %v1560
  %v1563 = vsel %vm389, %v1559, %v1561
  %1566 = vst.msk [vmem:[%s313] ss:$8 sm:$0x3] %vm21, %v1562
  %1567 = vst.msk [vmem:[%s313] ss:$8 sm:$0x0] %vm21, %v1562
  %1568 = vst.msk [vmem:[%s316] ss:$8 sm:$0x3] %vm21, %v1563
  %1569 = vst.msk [vmem:[%s316] ss:$8 sm:$0x0] %vm21, %v1563
  %v1570 = vld [vmem:[%s0] sm:$0x3]
  %v1571 = vld [vmem:[%s0 + $0x8] sm:$0x3]
  %1574 = vrot.lane.b32.xlu0 %v1570, 99
  %v1575 = vpop.permute.xlu0 %1574
  %1576 = vrot.lane.b32.xlu0 %v1571, 99
  %v1577 = vpop.permute.xlu0 %1576
  %v1578 = vrot.slane %v1575, 1
  %v1579 = vrot.slane %v1577, 1
  %v1580 = vsel %vm430, %v1575, %v1578
  %v1581 = vsel %vm430, %v1577, %v1579
  %1584 = vst.msk [vmem:[%s333] ss:$8 sm:$0x3] %vm21, %v1580
  %1585 = vst.msk [vmem:[%s333] ss:$8 sm:$0x0] %vm21, %v1580
  %1586 = vst.msk [vmem:[%s336] ss:$8 sm:$0x3] %vm21, %v1581
  %1587 = vst.msk [vmem:[%s336] ss:$8 sm:$0x0] %vm21, %v1581
  %v1588 = vld [vmem:[%s27] sm:$0x3]
  %v1589 = vld [vmem:[%s27 + $0x8] sm:$0x3]
  %1592 = vrot.lane.b32.xlu0 %v1588, 99
  %v1593 = vpop.permute.xlu0 %1592
  %1594 = vrot.lane.b32.xlu0 %v1589, 99
  %v1595 = vpop.permute.xlu0 %1594
  %v1596 = vrot.slane %v1593, 1
  %v1597 = vrot.slane %v1595, 1
  %v1598 = vsel %vm430, %v1593, %v1596
  %v1599 = vsel %vm430, %v1595, %v1597
  %1602 = vst.msk [vmem:[%s353] ss:$8 sm:$0x3] %vm21, %v1598
  %1603 = vst.msk [vmem:[%s353] ss:$8 sm:$0x0] %vm21, %v1598
  %1604 = vst.msk [vmem:[%s356] ss:$8 sm:$0x3] %vm21, %v1599
  %1605 = vst.msk [vmem:[%s356] ss:$8 sm:$0x0] %vm21, %v1599
  %v1606 = vld [vmem:[%s0] sm:$0x3]
  %v1607 = vld [vmem:[%s0 + $0x8] sm:$0x3]
  %1610 = vrot.lane.b32.xlu0 %v1606, 98
  %v1611 = vpop.permute.xlu0 %1610
  %1612 = vrot.lane.b32.xlu0 %v1607, 98
  %v1613 = vpop.permute.xlu0 %1612
  %v1614 = vrot.slane %v1611, 1
  %v1615 = vrot.slane %v1613, 1
  %v1616 = vsel %vm471, %v1611, %v1614
  %v1617 = vsel %vm471, %v1613, %v1615
  %1620 = vst.msk [vmem:[%s373] ss:$8 sm:$0x3] %vm21, %v1616
  %1621 = vst.msk [vmem:[%s373] ss:$8 sm:$0x0] %vm21, %v1616
  %1622 = vst.msk [vmem:[%s376] ss:$8 sm:$0x3] %vm21, %v1617
  %1623 = vst.msk [vmem:[%s376] ss:$8 sm:$0x0] %vm21, %v1617
  %v1624 = vld [vmem:[%s98] sm:$0x3]
  %v1625 = vld [vmem:[%s98 + $0x8] sm:$0x3]
  %1628 = vrot.lane.b32.xlu0 %v1624, 100
  %v1629 = vpop.permute.xlu0 %1628
  %1630 = vrot.lane.b32.xlu0 %v1625, 100
  %v1631 = vpop.permute.xlu0 %1630
  %v1632 = vrot.slane %v1629, 1
  %v1633 = vrot.slane %v1631, 1
  %v1634 = vsel %vm389, %v1629, %v1632
  %v1635 = vsel %vm389, %v1631, %v1633
  %1638 = vst.msk [vmem:[%s394] ss:$8 sm:$0x3] %vm21, %v1634
  %1639 = vst.msk [vmem:[%s394] ss:$8 sm:$0x0] %vm21, %v1634
  %1640 = vst.msk [vmem:[%s397] ss:$8 sm:$0x3] %vm21, %v1635
  %1641 = vst.msk [vmem:[%s397] ss:$8 sm:$0x0] %vm21, %v1635
  %v1642 = vld [vmem:[%s107] sm:$0x3]
  %v1643 = vld [vmem:[%s107 + $0x8] sm:$0x3]
  %1646 = vrot.lane.b32.xlu0 %v1642, 100
  %v1647 = vpop.permute.xlu0 %1646
  %1648 = vrot.lane.b32.xlu0 %v1643, 100
  %v1649 = vpop.permute.xlu0 %1648
  %v1650 = vrot.slane %v1647, 1
  %v1651 = vrot.slane %v1649, 1
  %v1652 = vsel %vm389, %v1647, %v1650
  %v1653 = vsel %vm389, %v1649, %v1651
  %1656 = vst.msk [vmem:[%s414] ss:$8 sm:$0x3] %vm21, %v1652
  %1657 = vst.msk [vmem:[%s414] ss:$8 sm:$0x0] %vm21, %v1652
  %1658 = vst.msk [vmem:[%s417] ss:$8 sm:$0x3] %vm21, %v1653
  %1659 = vst.msk [vmem:[%s417] ss:$8 sm:$0x0] %vm21, %v1653
  %v1660 = vld [vmem:[%s98] sm:$0x3]
  %v1661 = vld [vmem:[%s98 + $0x8] sm:$0x3]
  %1664 = vrot.lane.b32.xlu0 %v1660, 99
  %v1665 = vpop.permute.xlu0 %1664
  %1666 = vrot.lane.b32.xlu0 %v1661, 99
  %v1667 = vpop.permute.xlu0 %1666
  %v1668 = vrot.slane %v1665, 1
  %v1669 = vrot.slane %v1667, 1
  %v1670 = vsel %vm430, %v1665, %v1668
  %v1671 = vsel %vm430, %v1667, %v1669
  %1674 = vst.msk [vmem:[%s435] ss:$8 sm:$0x3] %vm21, %v1670
  %1675 = vst.msk [vmem:[%s435] ss:$8 sm:$0x0] %vm21, %v1670
  %1676 = vst.msk [vmem:[%s438] ss:$8 sm:$0x3] %vm21, %v1671
  %1677 = vst.msk [vmem:[%s438] ss:$8 sm:$0x0] %vm21, %v1671
  %v1678 = vld [vmem:[%s107] sm:$0x3]
  %v1679 = vld [vmem:[%s107 + $0x8] sm:$0x3]
  %1682 = vrot.lane.b32.xlu0 %v1678, 99
  %v1683 = vpop.permute.xlu0 %1682
  %1684 = vrot.lane.b32.xlu0 %v1679, 99
  %v1685 = vpop.permute.xlu0 %1684
  %v1686 = vrot.slane %v1683, 1
  %v1687 = vrot.slane %v1685, 1
  %v1688 = vsel %vm430, %v1683, %v1686
  %v1689 = vsel %vm430, %v1685, %v1687
  %1692 = vst.msk [vmem:[%s455] ss:$8 sm:$0x3] %vm21, %v1688
  %1693 = vst.msk [vmem:[%s455] ss:$8 sm:$0x0] %vm21, %v1688
  %1694 = vst.msk [vmem:[%s458] ss:$8 sm:$0x3] %vm21, %v1689
  %1695 = vst.msk [vmem:[%s458] ss:$8 sm:$0x0] %vm21, %v1689
  %v1696 = vld [vmem:[%s98] sm:$0x3]
  %v1697 = vld [vmem:[%s98 + $0x8] sm:$0x3]
  %1700 = vrot.lane.b32.xlu0 %v1696, 98
  %v1701 = vpop.permute.xlu0 %1700
  %1702 = vrot.lane.b32.xlu0 %v1697, 98
  %v1703 = vpop.permute.xlu0 %1702
  %v1704 = vrot.slane %v1701, 1
  %v1705 = vrot.slane %v1703, 1
  %v1706 = vsel %vm471, %v1701, %v1704
  %v1707 = vsel %vm471, %v1703, %v1705
  %1710 = vst.msk [vmem:[%s476] ss:$8 sm:$0x3] %vm21, %v1706
  %1711 = vst.msk [vmem:[%s476] ss:$8 sm:$0x0] %vm21, %v1706
  %1712 = vst.msk [vmem:[%s479] ss:$8 sm:$0x3] %vm21, %v1707
  %1713 = vst.msk [vmem:[%s479] ss:$8 sm:$0x0] %vm21, %v1707
  %v1714 = vld [vmem:[#allocation2] sm:$0xff]
  %v1715 = vld [vmem:[#allocation2 + $0x8] sm:$0xff]
  %v1716 = vld [vmem:[#allocation2 + $0x10] sm:$0xff]
  %v1717 = vld [vmem:[#allocation2 + $0x18] sm:$0xff]
  %v1718 = vld [vmem:[#allocation2 + $0x20] sm:$0xff]
  %v1719 = vld [vmem:[#allocation2 + $0x28] sm:$0xff]
  %v1720 = vld [vmem:[#allocation2 + $0x30] sm:$0x1]
  %v1721 = vld [vmem:[#allocation2 + $0x38] sm:$0x1]
  %v1722 = vld [vmem:[#allocation2 + $0x40] sm:$0xff]
  %v1723 = vld [vmem:[#allocation2 + $0x48] sm:$0xff]
  %v1724 = vld [vmem:[#allocation2 + $0x50] sm:$0xff]
  %v1725 = vld [vmem:[#allocation2 + $0x58] sm:$0xff]
  %v1726 = vld [vmem:[#allocation2 + $0x60] sm:$0xff]
  %v1727 = vld [vmem:[#allocation2 + $0x68] sm:$0xff]
  %v1728 = vld [vmem:[#allocation2 + $0x70] sm:$0x1]
  %v1729 = vld [vmem:[#allocation2 + $0x78] sm:$0x1]
  %v1731 = vsel %vm505, %v1720, 0
  %v1734 = vsel %vm505, %v1721, 0
  %1736 = vmatprep.subr.mxu0 %v1715
  %1737 = vmatpush1.msra.mxu0 %v1714
  %1738 = vmatprep.subr.mxu0 %v1717
  %1739 = vmatpush1.msra.mxu0 %v1716
  %1740 = vmatprep.subr.mxu0 %v1719
  %1741 = vmatpush1.msra.mxu0 %v1718
  %1742 = vmatprep.subr.mxu0 %v1734
  %1743 = vmatpush1.msra.mxu0 %v1731
  %1744 = vmatprep.subr.mxu0 0.0
  %1745 = vmatpush1.msra.mxu0 0.0
  %1746 = vmatprep.subr.mxu0 0.0
  %1747 = vmatpush1.msra.mxu0 0.0
  %1748 = vmatprep.subr.mxu0 0.0
  %1749 = vmatpush1.msra.mxu0 0.0
  %1750 = vmatprep.subr.mxu0 0.0
  %1751 = vmatpush1.msra.mxu0 0.0
  %1752 = vmatprep.subr.mxu0 0.0
  %1753 = vmatpush1.msra.mxu0 0.0
  %1754 = vmatprep.subr.mxu0 0.0
  %1755 = vmatpush1.msra.mxu0 0.0
  %1756 = vmatprep.subr.mxu0 0.0
  %1757 = vmatpush1.msra.mxu0 0.0
  %1758 = vmatprep.subr.mxu0 0.0
  %1759 = vmatpush1.msra.mxu0 0.0
  %1760 = vmatprep.subr.mxu0 0.0
  %1761 = vmatpush1.msra.mxu0 0.0
  %1762 = vmatprep.subr.mxu0 0.0
  %1763 = vmatpush1.msra.mxu0 0.0
  %1764 = vmatprep.subr.mxu0 0.0
  %1765 = vmatpush1.msra.mxu0 0.0
  %1766 = vmatprep.subr.mxu0 0.0
  %1767 = vmatpush1.msra.mxu0 0.0
  %1768 = vmatprep.subr.mxu0 0.0
  %1769 = vmatpush1.msra.mxu0 0.0
  %1770 = vmatprep.subr.mxu0 0.0
  %1771 = vmatpush1.msra.mxu0 0.0
  %1772 = vmatprep.subr.mxu0 0.0
  %1773 = vmatpush1.msra.mxu0 0.0
  %1774 = vmatprep.subr.mxu0 0.0
  %1775 = vmatpush1.msra.mxu0 0.0
  %1776 = vmatprep.subr.mxu0 0.0
  %1777 = vmatpush1.msra.mxu0 0.0
  %1778 = vmatprep.subr.mxu0 0.0
  %1779 = vmatpush1.msra.mxu0 0.0
  %1780 = vmatprep.subr.mxu0 0.0
  %1781 = vmatpush1.msra.mxu0 0.0
  %1782 = vmatprep.subr.mxu0 0.0
  %1783 = vmatpush1.msra.mxu0 0.0
  %1784 = vmatprep.subr.mxu0 0.0
  %1785 = vmatpush1.msra.mxu0 0.0
  %1786 = vmatprep.subr.mxu0 0.0
  %1787 = vmatpush1.msra.mxu0 0.0
  %1788 = vmatprep.subr.mxu0 0.0
  %1789 = vmatpush1.msra.mxu0 0.0
  %1790 = vmatprep.subr.mxu0 0.0
  %1791 = vmatpush1.msra.mxu0 0.0
  %1792 = vmatprep.subr.mxu0 0.0
  %1793 = vmatpush1.msra.mxu0 0.0
  %1794 = vmatprep.subr.mxu0 0.0
  %1795 = vmatpush1.msra.mxu0 0.0
  %1796 = vmatprep.subr.mxu0 0.0
  %1797 = vmatpush1.msra.mxu0 0.0
  %1798 = vmatprep.subr.mxu0 0.0
  %1799 = vmatpush1.msra.mxu0 0.0
  %1800 = vmatprep.mubr.f32.mxu0 0.0
  %1801 = vmatmul.mubr.f32.gmra.mrb[0].mxu0 %v500
  %v1802 = vpop.f32.mrb[0].mxu0
  %v1803 = vadd.f32 0.0, %v1802
  %v1804 = vpop.f32.mrb[0].mxu0
  %v1805 = vadd.f32 0.0, %v1804
  %1806 = vmatprep.mubr.f32.mxu0 0.0
  %1807 = vmatmul.mubr.f32.gmra.mrb[0].mxu0 %v503
  %v1808 = vpop.f32.mrb[0].mxu0
  %v1809 = vadd.f32 0.0, %v1808
  %v1810 = vpop.f32.mrb[0].mxu0
  %v1811 = vadd.f32 0.0, %v1810
  %1812 = vdwg.mxu0
  %v1814 = vsel %vm505, %v1728, 0
  %v1817 = vsel %vm505, %v1729, 0
  %1819 = vmatprep.subr.mxu0 %v1723
  %1820 = vmatpush1.msra.mxu0 %v1722
  %1821 = vmatprep.subr.mxu0 %v1725
  %1822 = vmatpush1.msra.mxu0 %v1724
  %1823 = vmatprep.subr.mxu0 %v1727
  %1824 = vmatpush1.msra.mxu0 %v1726
  %1825 = vmatprep.subr.mxu0 %v1817
  %1826 = vmatpush1.msra.mxu0 %v1814
  %1827 = vmatprep.subr.mxu0 0.0
  %1828 = vmatpush1.msra.mxu0 0.0
  %1829 = vmatprep.subr.mxu0 0.0
  %1830 = vmatpush1.msra.mxu0 0.0
  %1831 = vmatprep.subr.mxu0 0.0
  %1832 = vmatpush1.msra.mxu0 0.0
  %1833 = vmatprep.subr.mxu0 0.0
  %1834 = vmatpush1.msra.mxu0 0.0
  %1835 = vmatprep.subr.mxu0 0.0
  %1836 = vmatpush1.msra.mxu0 0.0
  %1837 = vmatprep.subr.mxu0 0.0
  %1838 = vmatpush1.msra.mxu0 0.0
  %1839 = vmatprep.subr.mxu0 0.0
  %1840 = vmatpush1.msra.mxu0 0.0
  %1841 = vmatprep.subr.mxu0 0.0
  %1842 = vmatpush1.msra.mxu0 0.0
  %1843 = vmatprep.subr.mxu0 0.0
  %1844 = vmatpush1.msra.mxu0 0.0
  %1845 = vmatprep.subr.mxu0 0.0
  %1846 = vmatpush1.msra.mxu0 0.0
  %1847 = vmatprep.subr.mxu0 0.0
  %1848 = vmatpush1.msra.mxu0 0.0
  %1849 = vmatprep.subr.mxu0 0.0
  %1850 = vmatpush1.msra.mxu0 0.0
  %1851 = vmatprep.subr.mxu0 0.0
  %1852 = vmatpush1.msra.mxu0 0.0
  %1853 = vmatprep.subr.mxu0 0.0
  %1854 = vmatpush1.msra.mxu0 0.0
  %1855 = vmatprep.subr.mxu0 0.0
  %1856 = vmatpush1.msra.mxu0 0.0
  %1857 = vmatprep.subr.mxu0 0.0
  %1858 = vmatpush1.msra.mxu0 0.0
  %1859 = vmatprep.subr.mxu0 0.0
  %1860 = vmatpush1.msra.mxu0 0.0
  %1861 = vmatprep.subr.mxu0 0.0
  %1862 = vmatpush1.msra.mxu0 0.0
  %1863 = vmatprep.subr.mxu0 0.0
  %1864 = vmatpush1.msra.mxu0 0.0
  %1865 = vmatprep.subr.mxu0 0.0
  %1866 = vmatpush1.msra.mxu0 0.0
  %1867 = vmatprep.subr.mxu0 0.0
  %1868 = vmatpush1.msra.mxu0 0.0
  %1869 = vmatprep.subr.mxu0 0.0
  %1870 = vmatpush1.msra.mxu0 0.0
  %1871 = vmatprep.subr.mxu0 0.0
  %1872 = vmatpush1.msra.mxu0 0.0
  %1873 = vmatprep.subr.mxu0 0.0
  %1874 = vmatpush1.msra.mxu0 0.0
  %1875 = vmatprep.subr.mxu0 0.0
  %1876 = vmatpush1.msra.mxu0 0.0
  %1877 = vmatprep.subr.mxu0 0.0
  %1878 = vmatpush1.msra.mxu0 0.0
  %1879 = vmatprep.subr.mxu0 0.0
  %1880 = vmatpush1.msra.mxu0 0.0
  %1881 = vmatprep.subr.mxu0 0.0
  %1882 = vmatpush1.msra.mxu0 0.0
  %1883 = vmatprep.mubr.f32.mxu0 0.0
  %1884 = vmatmul.mubr.f32.gmra.mrb[0].mxu0 %v500
  %v1885 = vpop.f32.mrb[0].mxu0
  %v1886 = vadd.f32 0.0, %v1885
  %v1887 = vpop.f32.mrb[0].mxu0
  %v1888 = vadd.f32 0.0, %v1887
  %1889 = vmatprep.mubr.f32.mxu0 0.0
  %1890 = vmatmul.mubr.f32.gmra.mrb[0].mxu0 %v503
  %v1891 = vpop.f32.mrb[0].mxu0
  %v1892 = vadd.f32 0.0, %v1891
  %v1893 = vpop.f32.mrb[0].mxu0
  %v1894 = vadd.f32 0.0, %v1893
  %1895 = vdwg.mxu0
  %v1896 = vmax.f32 %v1280, %v1803
  %v1897 = vmax.f32 %v1281, %v1805
  %v1898 = vmax.f32 %v1282, %v1809
  %v1899 = vmax.f32 %v1283, %v1811
  %v1900 = vmax.f32 %v1284, %v1886
  %v1901 = vmax.f32 %v1285, %v1888
  %v1902 = vmax.f32 %v1286, %v1892
  %v1903 = vmax.f32 %v1287, %v1894
  %v1904 = vld [vmem:[%s107] sm:$0x3]
  %v1905 = vld [vmem:[%s107 + $0x8] sm:$0x3]
  %1906 = vst.msk [vmem:[#allocation2] ss:$8 sm:$0x3] %vm21, %v1904
  %1907 = vst.msk [vmem:[#allocation2] ss:$8 sm:$0x0] %vm21, %v1904
  %1908 = vst.msk [vmem:[%s24] ss:$8 sm:$0x3] %vm21, %v1905
  %1909 = vst.msk [vmem:[%s24] ss:$8 sm:$0x0] %vm21, %v1905
  %v1910 = vld [vmem:[%s98] sm:$0x3]
  %v1911 = vld [vmem:[%s98 + $0x8] sm:$0x3]
  %1914 = vrot.lane.b32.xlu0 %v1910, 127
  %v1915 = vpop.permute.xlu0 %1914
  %1916 = vrot.lane.b32.xlu0 %v1911, 127
  %v1917 = vpop.permute.xlu0 %1916
  %v1918 = vrot.slane %v1915, 1
  %v1919 = vrot.slane %v1917, 1
  %v1920 = vsel %vm46, %v1915, %v1918
  %v1921 = vsel %vm46, %v1917, %v1919
  %1924 = vst.msk [vmem:[%s30] ss:$8 sm:$0x3] %vm21, %v1920
  %1925 = vst.msk [vmem:[%s30] ss:$8 sm:$0x0] %vm21, %v1920
  %1926 = vst.msk [vmem:[%s33] ss:$8 sm:$0x3] %vm21, %v1921
  %1927 = vst.msk [vmem:[%s33] ss:$8 sm:$0x0] %vm21, %v1921
  %v1928 = vld [vmem:[%s107] sm:$0x3]
  %v1929 = vld [vmem:[%s107 + $0x8] sm:$0x3]
  %1932 = vrot.lane.b32.xlu0 %v1928, 127
  %v1933 = vpop.permute.xlu0 %1932
  %1934 = vrot.lane.b32.xlu0 %v1929, 127
  %v1935 = vpop.permute.xlu0 %1934
  %v1936 = vrot.slane %v1933, 1
  %v1937 = vrot.slane %v1935, 1
  %v1938 = vsel %vm46, %v1933, %v1936
  %v1939 = vsel %vm46, %v1935, %v1937
  %1942 = vst.msk [vmem:[%s51] ss:$8 sm:$0x3] %vm21, %v1938
  %1943 = vst.msk [vmem:[%s51] ss:$8 sm:$0x0] %vm21, %v1938
  %1944 = vst.msk [vmem:[%s54] ss:$8 sm:$0x3] %vm21, %v1939
  %1945 = vst.msk [vmem:[%s54] ss:$8 sm:$0x0] %vm21, %v1939
  %v1946 = vld [vmem:[%s98] sm:$0x3]
  %v1947 = vld [vmem:[%s98 + $0x8] sm:$0x3]
  %1950 = vrot.lane.b32.xlu0 %v1946, 126
  %v1951 = vpop.permute.xlu0 %1950
  %1952 = vrot.lane.b32.xlu0 %v1947, 126
  %v1953 = vpop.permute.xlu0 %1952
  %v1954 = vrot.slane %v1951, 1
  %v1955 = vrot.slane %v1953, 1
  %v1956 = vsel %vm87, %v1951, %v1954
  %v1957 = vsel %vm87, %v1953, %v1955
  %1960 = vst.msk [vmem:[%s71] ss:$8 sm:$0x3] %vm21, %v1956
  %1961 = vst.msk [vmem:[%s71] ss:$8 sm:$0x0] %vm21, %v1956
  %1962 = vst.msk [vmem:[%s74] ss:$8 sm:$0x3] %vm21, %v1957
  %1963 = vst.msk [vmem:[%s74] ss:$8 sm:$0x0] %vm21, %v1957
  %v1964 = vld [vmem:[%s107] sm:$0x3]
  %v1965 = vld [vmem:[%s107 + $0x8] sm:$0x3]
  %1968 = vrot.lane.b32.xlu0 %v1964, 126
  %v1969 = vpop.permute.xlu0 %1968
  %1970 = vrot.lane.b32.xlu0 %v1965, 126
  %v1971 = vpop.permute.xlu0 %1970
  %v1972 = vrot.slane %v1969, 1
  %v1973 = vrot.slane %v1971, 1
  %v1974 = vsel %vm87, %v1969, %v1972
  %v1975 = vsel %vm87, %v1971, %v1973
  %1978 = vst.msk [vmem:[%s92] ss:$8 sm:$0x3] %vm21, %v1974
  %1979 = vst.msk [vmem:[%s92] ss:$8 sm:$0x0] %vm21, %v1974
  %1980 = vst.msk [vmem:[%s95] ss:$8 sm:$0x3] %vm21, %v1975
  %1981 = vst.msk [vmem:[%s95] ss:$8 sm:$0x0] %vm21, %v1975
  %v1982 = vld [vmem:[%s27] sm:$0x3]
  %v1983 = vld [vmem:[%s27 + $0x8] sm:$0x3]
  %1986 = vrot.lane.b32.xlu0 %v1982, 114
  %v1987 = vpop.permute.xlu0 %1986
  %1988 = vrot.lane.b32.xlu0 %v1983, 114
  %v1989 = vpop.permute.xlu0 %1988
  %v1990 = vrot.slane %v1987, 1
  %v1991 = vrot.slane %v1989, 1
  %v1992 = vsel %vm186, %v1987, %v1990
  %v1993 = vsel %vm186, %v1989, %v1991
  %1996 = vst.msk [vmem:[%s101] ss:$8 sm:$0x3] %vm21, %v1992
  %1997 = vst.msk [vmem:[%s101] ss:$8 sm:$0x0] %vm21, %v1992
  %1998 = vst.msk [vmem:[%s104] ss:$8 sm:$0x3] %vm21, %v1993
  %1999 = vst.msk [vmem:[%s104] ss:$8 sm:$0x0] %vm21, %v1993
  %v2000 = vld [vmem:[%s0] sm:$0x3]
  %v2001 = vld [vmem:[%s0 + $0x8] sm:$0x3]
  %2004 = vrot.lane.b32.xlu0 %v2000, 113
  %v2005 = vpop.permute.xlu0 %2004
  %2006 = vrot.lane.b32.xlu0 %v2001, 113
  %v2007 = vpop.permute.xlu0 %2006
  %v2008 = vrot.slane %v2005, 1
  %v2009 = vrot.slane %v2007, 1
  %v2010 = vsel %vm227, %v2005, %v2008
  %v2011 = vsel %vm227, %v2007, %v2009
  %2014 = vst.msk [vmem:[%s110] ss:$8 sm:$0x3] %vm21, %v2010
  %2015 = vst.msk [vmem:[%s110] ss:$8 sm:$0x0] %vm21, %v2010
  %2016 = vst.msk [vmem:[%s113] ss:$8 sm:$0x3] %vm21, %v2011
  %2017 = vst.msk [vmem:[%s113] ss:$8 sm:$0x0] %vm21, %v2011
  %v2018 = vld [vmem:[%s27] sm:$0x3]
  %v2019 = vld [vmem:[%s27 + $0x8] sm:$0x3]
  %2022 = vrot.lane.b32.xlu0 %v2018, 113
  %v2023 = vpop.permute.xlu0 %2022
  %2024 = vrot.lane.b32.xlu0 %v2019, 113
  %v2025 = vpop.permute.xlu0 %2024
  %v2026 = vrot.slane %v2023, 1
  %v2027 = vrot.slane %v2025, 1
  %v2028 = vsel %vm227, %v2023, %v2026
  %v2029 = vsel %vm227, %v2025, %v2027
  %2032 = vst.msk [vmem:[%s130] ss:$8 sm:$0x3] %vm21, %v2028
  %2033 = vst.msk [vmem:[%s130] ss:$8 sm:$0x0] %vm21, %v2028
  %2034 = vst.msk [vmem:[%s133] ss:$8 sm:$0x3] %vm21, %v2029
  %2035 = vst.msk [vmem:[%s133] ss:$8 sm:$0x0] %vm21, %v2029
  %v2036 = vld [vmem:[%s0] sm:$0x3]
  %v2037 = vld [vmem:[%s0 + $0x8] sm:$0x3]
  %2040 = vrot.lane.b32.xlu0 %v2036, 112
  %v2041 = vpop.permute.xlu0 %2040
  %2042 = vrot.lane.b32.xlu0 %v2037, 112
  %v2043 = vpop.permute.xlu0 %2042
  %v2044 = vrot.slane %v2041, 1
  %v2045 = vrot.slane %v2043, 1
  %v2046 = vsel %vm268, %v2041, %v2044
  %v2047 = vsel %vm268, %v2043, %v2045
  %2050 = vst.msk [vmem:[%s150] ss:$8 sm:$0x3] %vm21, %v2046
  %2051 = vst.msk [vmem:[%s150] ss:$8 sm:$0x0] %vm21, %v2046
  %2052 = vst.msk [vmem:[%s153] ss:$8 sm:$0x3] %vm21, %v2047
  %2053 = vst.msk [vmem:[%s153] ss:$8 sm:$0x0] %vm21, %v2047
  %v2054 = vld [vmem:[%s27] sm:$0x3]
  %v2055 = vld [vmem:[%s27 + $0x8] sm:$0x3]
  %2058 = vrot.lane.b32.xlu0 %v2054, 112
  %v2059 = vpop.permute.xlu0 %2058
  %2060 = vrot.lane.b32.xlu0 %v2055, 112
  %v2061 = vpop.permute.xlu0 %2060
  %v2062 = vrot.slane %v2059, 1
  %v2063 = vrot.slane %v2061, 1
  %v2064 = vsel %vm268, %v2059, %v2062
  %v2065 = vsel %vm268, %v2061, %v2063
  %2068 = vst.msk [vmem:[%s170] ss:$8 sm:$0x3] %vm21, %v2064
  %2069 = vst.msk [vmem:[%s170] ss:$8 sm:$0x0] %vm21, %v2064
  %2070 = vst.msk [vmem:[%s173] ss:$8 sm:$0x3] %vm21, %v2065
  %2071 = vst.msk [vmem:[%s173] ss:$8 sm:$0x0] %vm21, %v2065
  %v2072 = vld [vmem:[%s107] sm:$0x3]
  %v2073 = vld [vmem:[%s107 + $0x8] sm:$0x3]
  %2076 = vrot.lane.b32.xlu0 %v2072, 114
  %v2077 = vpop.permute.xlu0 %2076
  %2078 = vrot.lane.b32.xlu0 %v2073, 114
  %v2079 = vpop.permute.xlu0 %2078
  %v2080 = vrot.slane %v2077, 1
  %v2081 = vrot.slane %v2079, 1
  %v2082 = vsel %vm186, %v2077, %v2080
  %v2083 = vsel %vm186, %v2079, %v2081
  %2086 = vst.msk [vmem:[%s191] ss:$8 sm:$0x3] %vm21, %v2082
  %2087 = vst.msk [vmem:[%s191] ss:$8 sm:$0x0] %vm21, %v2082
  %2088 = vst.msk [vmem:[%s194] ss:$8 sm:$0x3] %vm21, %v2083
  %2089 = vst.msk [vmem:[%s194] ss:$8 sm:$0x0] %vm21, %v2083
  %v2090 = vld [vmem:[%s98] sm:$0x3]
  %v2091 = vld [vmem:[%s98 + $0x8] sm:$0x3]
  %2094 = vrot.lane.b32.xlu0 %v2090, 113
  %v2095 = vpop.permute.xlu0 %2094
  %2096 = vrot.lane.b32.xlu0 %v2091, 113
  %v2097 = vpop.permute.xlu0 %2096
  %v2098 = vrot.slane %v2095, 1
  %v2099 = vrot.slane %v2097, 1
  %v2100 = vsel %vm227, %v2095, %v2098
  %v2101 = vsel %vm227, %v2097, %v2099
  %2104 = vst.msk [vmem:[%s211] ss:$8 sm:$0x3] %vm21, %v2100
  %2105 = vst.msk [vmem:[%s211] ss:$8 sm:$0x0] %vm21, %v2100
  %2106 = vst.msk [vmem:[%s214] ss:$8 sm:$0x3] %vm21, %v2101
  %2107 = vst.msk [vmem:[%s214] ss:$8 sm:$0x0] %vm21, %v2101
  %v2108 = vld [vmem:[%s107] sm:$0x3]
  %v2109 = vld [vmem:[%s107 + $0x8] sm:$0x3]
  %2112 = vrot.lane.b32.xlu0 %v2108, 113
  %v2113 = vpop.permute.xlu0 %2112
  %2114 = vrot.lane.b32.xlu0 %v2109, 113
  %v2115 = vpop.permute.xlu0 %2114
  %v2116 = vrot.slane %v2113, 1
  %v2117 = vrot.slane %v2115, 1
  %v2118 = vsel %vm227, %v2113, %v2116
  %v2119 = vsel %vm227, %v2115, %v2117
  %2122 = vst.msk [vmem:[%s232] ss:$8 sm:$0x3] %vm21, %v2118
  %2123 = vst.msk [vmem:[%s232] ss:$8 sm:$0x0] %vm21, %v2118
  %2124 = vst.msk [vmem:[%s235] ss:$8 sm:$0x3] %vm21, %v2119
  %2125 = vst.msk [vmem:[%s235] ss:$8 sm:$0x0] %vm21, %v2119
  %v2126 = vld [vmem:[%s98] sm:$0x3]
  %v2127 = vld [vmem:[%s98 + $0x8] sm:$0x3]
  %2130 = vrot.lane.b32.xlu0 %v2126, 112
  %v2131 = vpop.permute.xlu0 %2130
  %2132 = vrot.lane.b32.xlu0 %v2127, 112
  %v2133 = vpop.permute.xlu0 %2132
  %v2134 = vrot.slane %v2131, 1
  %v2135 = vrot.slane %v2133, 1
  %v2136 = vsel %vm268, %v2131, %v2134
  %v2137 = vsel %vm268, %v2133, %v2135
  %2140 = vst.msk [vmem:[%s252] ss:$8 sm:$0x3] %vm21, %v2136
  %2141 = vst.msk [vmem:[%s252] ss:$8 sm:$0x0] %vm21, %v2136
  %2142 = vst.msk [vmem:[%s255] ss:$8 sm:$0x3] %vm21, %v2137
  %2143 = vst.msk [vmem:[%s255] ss:$8 sm:$0x0] %vm21, %v2137
  %v2144 = vld [vmem:[%s107] sm:$0x3]
  %v2145 = vld [vmem:[%s107 + $0x8] sm:$0x3]
  %2148 = vrot.lane.b32.xlu0 %v2144, 112
  %v2149 = vpop.permute.xlu0 %2148
  %2150 = vrot.lane.b32.xlu0 %v2145, 112
  %v2151 = vpop.permute.xlu0 %2150
  %v2152 = vrot.slane %v2149, 1
  %v2153 = vrot.slane %v2151, 1
  %v2154 = vsel %vm268, %v2149, %v2152
  %v2155 = vsel %vm268, %v2151, %v2153
  %2158 = vst.msk [vmem:[%s273] ss:$8 sm:$0x3] %vm21, %v2154
  %2159 = vst.msk [vmem:[%s273] ss:$8 sm:$0x0] %vm21, %v2154
  %2160 = vst.msk [vmem:[%s276] ss:$8 sm:$0x3] %vm21, %v2155
  %2161 = vst.msk [vmem:[%s276] ss:$8 sm:$0x0] %vm21, %v2155
  %v2162 = vld [vmem:[%s27] sm:$0x3]
  %v2163 = vld [vmem:[%s27 + $0x8] sm:$0x3]
  %2166 = vrot.lane.b32.xlu0 %v2162, 100
  %v2167 = vpop.permute.xlu0 %2166
  %2168 = vrot.lane.b32.xlu0 %v2163, 100
  %v2169 = vpop.permute.xlu0 %2168
  %v2170 = vrot.slane %v2167, 1
  %v2171 = vrot.slane %v2169, 1
  %v2172 = vsel %vm389, %v2167, %v2170
  %v2173 = vsel %vm389, %v2169, %v2171
  %2176 = vst.msk [vmem:[%s293] ss:$8 sm:$0x3] %vm21, %v2172
  %2177 = vst.msk [vmem:[%s293] ss:$8 sm:$0x0] %vm21, %v2172
  %2178 = vst.msk [vmem:[%s296] ss:$8 sm:$0x3] %vm21, %v2173
  %2179 = vst.msk [vmem:[%s296] ss:$8 sm:$0x0] %vm21, %v2173
  %v2180 = vld [vmem:[%s0] sm:$0x3]
  %v2181 = vld [vmem:[%s0 + $0x8] sm:$0x3]
  %2184 = vrot.lane.b32.xlu0 %v2180, 99
  %v2185 = vpop.permute.xlu0 %2184
  %2186 = vrot.lane.b32.xlu0 %v2181, 99
  %v2187 = vpop.permute.xlu0 %2186
  %v2188 = vrot.slane %v2185, 1
  %v2189 = vrot.slane %v2187, 1
  %v2190 = vsel %vm430, %v2185, %v2188
  %v2191 = vsel %vm430, %v2187, %v2189
  %2194 = vst.msk [vmem:[%s313] ss:$8 sm:$0x3] %vm21, %v2190
  %2195 = vst.msk [vmem:[%s313] ss:$8 sm:$0x0] %vm21, %v2190
  %2196 = vst.msk [vmem:[%s316] ss:$8 sm:$0x3] %vm21, %v2191
  %2197 = vst.msk [vmem:[%s316] ss:$8 sm:$0x0] %vm21, %v2191
  %v2198 = vld [vmem:[%s27] sm:$0x3]
  %v2199 = vld [vmem:[%s27 + $0x8] sm:$0x3]
  %2202 = vrot.lane.b32.xlu0 %v2198, 99
  %v2203 = vpop.permute.xlu0 %2202
  %2204 = vrot.lane.b32.xlu0 %v2199, 99
  %v2205 = vpop.permute.xlu0 %2204
  %v2206 = vrot.slane %v2203, 1
  %v2207 = vrot.slane %v2205, 1
  %v2208 = vsel %vm430, %v2203, %v2206
  %v2209 = vsel %vm430, %v2205, %v2207
  %2212 = vst.msk [vmem:[%s333] ss:$8 sm:$0x3] %vm21, %v2208
  %2213 = vst.msk [vmem:[%s333] ss:$8 sm:$0x0] %vm21, %v2208
  %2214 = vst.msk [vmem:[%s336] ss:$8 sm:$0x3] %vm21, %v2209
  %2215 = vst.msk [vmem:[%s336] ss:$8 sm:$0x0] %vm21, %v2209
  %v2216 = vld [vmem:[%s0] sm:$0x3]
  %v2217 = vld [vmem:[%s0 + $0x8] sm:$0x3]
  %2220 = vrot.lane.b32.xlu0 %v2216, 98
  %v2221 = vpop.permute.xlu0 %2220
  %2222 = vrot.lane.b32.xlu0 %v2217, 98
  %v2223 = vpop.permute.xlu0 %2222
  %v2224 = vrot.slane %v2221, 1
  %v2225 = vrot.slane %v2223, 1
  %v2226 = vsel %vm471, %v2221, %v2224
  %v2227 = vsel %vm471, %v2223, %v2225
  %2230 = vst.msk [vmem:[%s353] ss:$8 sm:$0x3] %vm21, %v2226
  %2231 = vst.msk [vmem:[%s353] ss:$8 sm:$0x0] %vm21, %v2226
  %2232 = vst.msk [vmem:[%s356] ss:$8 sm:$0x3] %vm21, %v2227
  %2233 = vst.msk [vmem:[%s356] ss:$8 sm:$0x0] %vm21, %v2227
  %v2234 = vld [vmem:[%s27] sm:$0x3]
  %v2235 = vld [vmem:[%s27 + $0x8] sm:$0x3]
  %2238 = vrot.lane.b32.xlu0 %v2234, 98
  %v2239 = vpop.permute.xlu0 %2238
  %2240 = vrot.lane.b32.xlu0 %v2235, 98
  %v2241 = vpop.permute.xlu0 %2240
  %v2242 = vrot.slane %v2239, 1
  %v2243 = vrot.slane %v2241, 1
  %v2244 = vsel %vm471, %v2239, %v2242
  %v2245 = vsel %vm471, %v2241, %v2243
  %2248 = vst.msk [vmem:[%s373] ss:$8 sm:$0x3] %vm21, %v2244
  %2249 = vst.msk [vmem:[%s373] ss:$8 sm:$0x0] %vm21, %v2244
  %2250 = vst.msk [vmem:[%s376] ss:$8 sm:$0x3] %vm21, %v2245
  %2251 = vst.msk [vmem:[%s376] ss:$8 sm:$0x0] %vm21, %v2245
  %v2252 = vld [vmem:[%s107] sm:$0x3]
  %v2253 = vld [vmem:[%s107 + $0x8] sm:$0x3]
  %2256 = vrot.lane.b32.xlu0 %v2252, 100
  %v2257 = vpop.permute.xlu0 %2256
  %2258 = vrot.lane.b32.xlu0 %v2253, 100
  %v2259 = vpop.permute.xlu0 %2258
  %v2260 = vrot.slane %v2257, 1
  %v2261 = vrot.slane %v2259, 1
  %v2262 = vsel %vm389, %v2257, %v2260
  %v2263 = vsel %vm389, %v2259, %v2261
  %2266 = vst.msk [vmem:[%s394] ss:$8 sm:$0x3] %vm21, %v2262
  %2267 = vst.msk [vmem:[%s394] ss:$8 sm:$0x0] %vm21, %v2262
  %2268 = vst.msk [vmem:[%s397] ss:$8 sm:$0x3] %vm21, %v2263
  %2269 = vst.msk [vmem:[%s397] ss:$8 sm:$0x0] %vm21, %v2263
  %v2270 = vld [vmem:[%s98] sm:$0x3]
  %v2271 = vld [vmem:[%s98 + $0x8] sm:$0x3]
  %2274 = vrot.lane.b32.xlu0 %v2270, 99
  %v2275 = vpop.permute.xlu0 %2274
  %2276 = vrot.lane.b32.xlu0 %v2271, 99
  %v2277 = vpop.permute.xlu0 %2276
  %v2278 = vrot.slane %v2275, 1
  %v2279 = vrot.slane %v2277, 1
  %v2280 = vsel %vm430, %v2275, %v2278
  %v2281 = vsel %vm430, %v2277, %v2279
  %2284 = vst.msk [vmem:[%s414] ss:$8 sm:$0x3] %vm21, %v2280
  %2285 = vst.msk [vmem:[%s414] ss:$8 sm:$0x0] %vm21, %v2280
  %2286 = vst.msk [vmem:[%s417] ss:$8 sm:$0x3] %vm21, %v2281
  %2287 = vst.msk [vmem:[%s417] ss:$8 sm:$0x0] %vm21, %v2281
  %v2288 = vld [vmem:[%s107] sm:$0x3]
  %v2289 = vld [vmem:[%s107 + $0x8] sm:$0x3]
  %2292 = vrot.lane.b32.xlu0 %v2288, 99
  %v2293 = vpop.permute.xlu0 %2292
  %2294 = vrot.lane.b32.xlu0 %v2289, 99
  %v2295 = vpop.permute.xlu0 %2294
  %v2296 = vrot.slane %v2293, 1
  %v2297 = vrot.slane %v2295, 1
  %v2298 = vsel %vm430, %v2293, %v2296
  %v2299 = vsel %vm430, %v2295, %v2297
  %2302 = vst.msk [vmem:[%s435] ss:$8 sm:$0x3] %vm21, %v2298
  %2303 = vst.msk [vmem:[%s435] ss:$8 sm:$0x0] %vm21, %v2298
  %2304 = vst.msk [vmem:[%s438] ss:$8 sm:$0x3] %vm21, %v2299
  %2305 = vst.msk [vmem:[%s438] ss:$8 sm:$0x0] %vm21, %v2299
  %v2306 = vld [vmem:[%s98] sm:$0x3]
  %v2307 = vld [vmem:[%s98 + $0x8] sm:$0x3]
  %2310 = vrot.lane.b32.xlu0 %v2306, 98
  %v2311 = vpop.permute.xlu0 %2310
  %2312 = vrot.lane.b32.xlu0 %v2307, 98
  %v2313 = vpop.permute.xlu0 %2312
  %v2314 = vrot.slane %v2311, 1
  %v2315 = vrot.slane %v2313, 1
  %v2316 = vsel %vm471, %v2311, %v2314
  %v2317 = vsel %vm471, %v2313, %v2315
  %2320 = vst.msk [vmem:[%s455] ss:$8 sm:$0x3] %vm21, %v2316
  %2321 = vst.msk [vmem:[%s455] ss:$8 sm:$0x0] %vm21, %v2316
  %2322 = vst.msk [vmem:[%s458] ss:$8 sm:$0x3] %vm21, %v2317
  %2323 = vst.msk [vmem:[%s458] ss:$8 sm:$0x0] %vm21, %v2317
  %v2324 = vld [vmem:[%s107] sm:$0x3]
  %v2325 = vld [vmem:[%s107 + $0x8] sm:$0x3]
  %2328 = vrot.lane.b32.xlu0 %v2324, 98
  %v2329 = vpop.permute.xlu0 %2328
  %2330 = vrot.lane.b32.xlu0 %v2325, 98
  %v2331 = vpop.permute.xlu0 %2330
  %v2332 = vrot.slane %v2329, 1
  %v2333 = vrot.slane %v2331, 1
  %v2334 = vsel %vm471, %v2329, %v2332
  %v2335 = vsel %vm471, %v2331, %v2333
  %2338 = vst.msk [vmem:[%s476] ss:$8 sm:$0x3] %vm21, %v2334
  %2339 = vst.msk [vmem:[%s476] ss:$8 sm:$0x0] %vm21, %v2334
  %2340 = vst.msk [vmem:[%s479] ss:$8 sm:$0x3] %vm21, %v2335
  %2341 = vst.msk [vmem:[%s479] ss:$8 sm:$0x0] %vm21, %v2335
  %v2342 = vld [vmem:[#allocation2] sm:$0xff]
  %v2343 = vld [vmem:[#allocation2 + $0x8] sm:$0xff]
  %v2344 = vld [vmem:[#allocation2 + $0x10] sm:$0xff]
  %v2345 = vld [vmem:[#allocation2 + $0x18] sm:$0xff]
  %v2346 = vld [vmem:[#allocation2 + $0x20] sm:$0xff]
  %v2347 = vld [vmem:[#allocation2 + $0x28] sm:$0xff]
  %v2348 = vld [vmem:[#allocation2 + $0x30] sm:$0x1]
  %v2349 = vld [vmem:[#allocation2 + $0x38] sm:$0x1]
  %v2350 = vld [vmem:[#allocation2 + $0x40] sm:$0xff]
  %v2351 = vld [vmem:[#allocation2 + $0x48] sm:$0xff]
  %v2352 = vld [vmem:[#allocation2 + $0x50] sm:$0xff]
  %v2353 = vld [vmem:[#allocation2 + $0x58] sm:$0xff]
  %v2354 = vld [vmem:[#allocation2 + $0x60] sm:$0xff]
  %v2355 = vld [vmem:[#allocation2 + $0x68] sm:$0xff]
  %v2356 = vld [vmem:[#allocation2 + $0x70] sm:$0x1]
  %v2357 = vld [vmem:[#allocation2 + $0x78] sm:$0x1]
  %v2359 = vsel %vm505, %v2348, 0
  %v2362 = vsel %vm505, %v2349, 0
  %2364 = vmatprep.subr.mxu0 %v2343
  %2365 = vmatpush1.msra.mxu0 %v2342
  %2366 = vmatprep.subr.mxu0 %v2345
  %2367 = vmatpush1.msra.mxu0 %v2344
  %2368 = vmatprep.subr.mxu0 %v2347
  %2369 = vmatpush1.msra.mxu0 %v2346
  %2370 = vmatprep.subr.mxu0 %v2362
  %2371 = vmatpush1.msra.mxu0 %v2359
  %2372 = vmatprep.subr.mxu0 0.0
  %2373 = vmatpush1.msra.mxu0 0.0
  %2374 = vmatprep.subr.mxu0 0.0
  %2375 = vmatpush1.msra.mxu0 0.0
  %2376 = vmatprep.subr.mxu0 0.0
  %2377 = vmatpush1.msra.mxu0 0.0
  %2378 = vmatprep.subr.mxu0 0.0
  %2379 = vmatpush1.msra.mxu0 0.0
  %2380 = vmatprep.subr.mxu0 0.0
  %2381 = vmatpush1.msra.mxu0 0.0
  %2382 = vmatprep.subr.mxu0 0.0
  %2383 = vmatpush1.msra.mxu0 0.0
  %2384 = vmatprep.subr.mxu0 0.0
  %2385 = vmatpush1.msra.mxu0 0.0
  %2386 = vmatprep.subr.mxu0 0.0
  %2387 = vmatpush1.msra.mxu0 0.0
  %2388 = vmatprep.subr.mxu0 0.0
  %2389 = vmatpush1.msra.mxu0 0.0
  %2390 = vmatprep.subr.mxu0 0.0
  %2391 = vmatpush1.msra.mxu0 0.0
  %2392 = vmatprep.subr.mxu0 0.0
  %2393 = vmatpush1.msra.mxu0 0.0
  %2394 = vmatprep.subr.mxu0 0.0
  %2395 = vmatpush1.msra.mxu0 0.0
  %2396 = vmatprep.subr.mxu0 0.0
  %2397 = vmatpush1.msra.mxu0 0.0
  %2398 = vmatprep.subr.mxu0 0.0
  %2399 = vmatpush1.msra.mxu0 0.0
  %2400 = vmatprep.subr.mxu0 0.0
  %2401 = vmatpush1.msra.mxu0 0.0
  %2402 = vmatprep.subr.mxu0 0.0
  %2403 = vmatpush1.msra.mxu0 0.0
  %2404 = vmatprep.subr.mxu0 0.0
  %2405 = vmatpush1.msra.mxu0 0.0
  %2406 = vmatprep.subr.mxu0 0.0
  %2407 = vmatpush1.msra.mxu0 0.0
  %2408 = vmatprep.subr.mxu0 0.0
  %2409 = vmatpush1.msra.mxu0 0.0
  %2410 = vmatprep.subr.mxu0 0.0
  %2411 = vmatpush1.msra.mxu0 0.0
  %2412 = vmatprep.subr.mxu0 0.0
  %2413 = vmatpush1.msra.mxu0 0.0
  %2414 = vmatprep.subr.mxu0 0.0
  %2415 = vmatpush1.msra.mxu0 0.0
  %2416 = vmatprep.subr.mxu0 0.0
  %2417 = vmatpush1.msra.mxu0 0.0
  %2418 = vmatprep.subr.mxu0 0.0
  %2419 = vmatpush1.msra.mxu0 0.0
  %2420 = vmatprep.subr.mxu0 0.0
  %2421 = vmatpush1.msra.mxu0 0.0
  %2422 = vmatprep.subr.mxu0 0.0
  %2423 = vmatpush1.msra.mxu0 0.0
  %2424 = vmatprep.subr.mxu0 0.0
  %2425 = vmatpush1.msra.mxu0 0.0
  %2426 = vmatprep.subr.mxu0 0.0
  %2427 = vmatpush1.msra.mxu0 0.0
  %2428 = vmatprep.mubr.f32.mxu0 0.0
  %2429 = vmatmul.mubr.f32.gmra.mrb[0].mxu0 %v500
  %v2430 = vpop.f32.mrb[0].mxu0
  %v2431 = vadd.f32 0.0, %v2430
  %v2432 = vpop.f32.mrb[0].mxu0
  %v2433 = vadd.f32 0.0, %v2432
  %2434 = vmatprep.mubr.f32.mxu0 0.0
  %2435 = vmatmul.mubr.f32.gmra.mrb[0].mxu0 %v503
  %v2436 = vpop.f32.mrb[0].mxu0
  %v2437 = vadd.f32 0.0, %v2436
  %v2438 = vpop.f32.mrb[0].mxu0
  %v2439 = vadd.f32 0.0, %v2438
  %2440 = vdwg.mxu0
  %v2442 = vsel %vm505, %v2356, 0
  %v2445 = vsel %vm505, %v2357, 0
  %2447 = vmatprep.subr.mxu0 %v2351
  %2448 = vmatpush1.msra.mxu0 %v2350
  %2449 = vmatprep.subr.mxu0 %v2353
  %2450 = vmatpush1.msra.mxu0 %v2352
  %2451 = vmatprep.subr.mxu0 %v2355
  %2452 = vmatpush1.msra.mxu0 %v2354
  %2453 = vmatprep.subr.mxu0 %v2445
  %2454 = vmatpush1.msra.mxu0 %v2442
  %2455 = vmatprep.subr.mxu0 0.0
  %2456 = vmatpush1.msra.mxu0 0.0
  %2457 = vmatprep.subr.mxu0 0.0
  %2458 = vmatpush1.msra.mxu0 0.0
  %2459 = vmatprep.subr.mxu0 0.0
  %2460 = vmatpush1.msra.mxu0 0.0
  %2461 = vmatprep.subr.mxu0 0.0
  %2462 = vmatpush1.msra.mxu0 0.0
  %2463 = vmatprep.subr.mxu0 0.0
  %2464 = vmatpush1.msra.mxu0 0.0
  %2465 = vmatprep.subr.mxu0 0.0
  %2466 = vmatpush1.msra.mxu0 0.0
  %2467 = vmatprep.subr.mxu0 0.0
  %2468 = vmatpush1.msra.mxu0 0.0
  %2469 = vmatprep.subr.mxu0 0.0
  %2470 = vmatpush1.msra.mxu0 0.0
  %2471 = vmatprep.subr.mxu0 0.0
  %2472 = vmatpush1.msra.mxu0 0.0
  %2473 = vmatprep.subr.mxu0 0.0
  %2474 = vmatpush1.msra.mxu0 0.0
  %2475 = vmatprep.subr.mxu0 0.0
  %2476 = vmatpush1.msra.mxu0 0.0
  %2477 = vmatprep.subr.mxu0 0.0
  %2478 = vmatpush1.msra.mxu0 0.0
  %2479 = vmatprep.subr.mxu0 0.0
  %2480 = vmatpush1.msra.mxu0 0.0
  %2481 = vmatprep.subr.mxu0 0.0
  %2482 = vmatpush1.msra.mxu0 0.0
  %2483 = vmatprep.subr.mxu0 0.0
  %2484 = vmatpush1.msra.mxu0 0.0
  %2485 = vmatprep.subr.mxu0 0.0
  %2486 = vmatpush1.msra.mxu0 0.0
  %2487 = vmatprep.subr.mxu0 0.0
  %2488 = vmatpush1.msra.mxu0 0.0
  %2489 = vmatprep.subr.mxu0 0.0
  %2490 = vmatpush1.msra.mxu0 0.0
  %2491 = vmatprep.subr.mxu0 0.0
  %2492 = vmatpush1.msra.mxu0 0.0
  %2493 = vmatprep.subr.mxu0 0.0
  %2494 = vmatpush1.msra.mxu0 0.0
  %2495 = vmatprep.subr.mxu0 0.0
  %2496 = vmatpush1.msra.mxu0 0.0
  %2497 = vmatprep.subr.mxu0 0.0
  %2498 = vmatpush1.msra.mxu0 0.0
  %2499 = vmatprep.subr.mxu0 0.0
  %2500 = vmatpush1.msra.mxu0 0.0
  %2501 = vmatprep.subr.mxu0 0.0
  %2502 = vmatpush1.msra.mxu0 0.0
  %2503 = vmatprep.subr.mxu0 0.0
  %2504 = vmatpush1.msra.mxu0 0.0
  %2505 = vmatprep.subr.mxu0 0.0
  %2506 = vmatpush1.msra.mxu0 0.0
  %2507 = vmatprep.subr.mxu0 0.0
  %2508 = vmatpush1.msra.mxu0 0.0
  %2509 = vmatprep.subr.mxu0 0.0
  %2510 = vmatpush1.msra.mxu0 0.0
  %2511 = vmatprep.mubr.f32.mxu0 0.0
  %2512 = vmatmul.mubr.f32.gmra.mrb[0].mxu0 %v500
  %v2513 = vpop.f32.mrb[0].mxu0
  %v2514 = vadd.f32 0.0, %v2513
  %v2515 = vpop.f32.mrb[0].mxu0
  %v2516 = vadd.f32 0.0, %v2515
  %2517 = vmatprep.mubr.f32.mxu0 0.0
  %2518 = vmatmul.mubr.f32.gmra.mrb[0].mxu0 %v503
  %v2519 = vpop.f32.mrb[0].mxu0
  %v2520 = vadd.f32 0.0, %v2519
  %v2521 = vpop.f32.mrb[0].mxu0
  %v2522 = vadd.f32 0.0, %v2521
  %2523 = vdwg.mxu0
  %v2524 = vmax.f32 %v1896, %v2431
  %v2525 = vmax.f32 %v1897, %v2433
  %v2526 = vmax.f32 %v1898, %v2437
  %v2527 = vmax.f32 %v1899, %v2439
  %v2528 = vmax.f32 %v1900, %v2514
  %v2529 = vmax.f32 %v1901, %v2516
  %v2530 = vmax.f32 %v1902, %v2520
  %v2531 = vmax.f32 %v1903, %v2522
  %v2532 = vld [vmem:[%s2] sm:$0xff]
  %v2533 = vld [vmem:[%s2 + $0x8] sm:$0x3]
  %2535 = vset.pattern.permute.xlu0 0
  %2536 = vperm.xlu0 %2535, %v2532
  %v2537 = vpop.permute.xlu0 %2536
  %2540 = vset.pattern.permute.xlu0 0
  %2541 = vperm.xlu0 %2540, %v2533
  %v2542 = vpop.permute.xlu0 %2541
  %v2544 = vadd.f32 %v2524, %v2537
  %v2545 = vadd.f32 %v2525, %v2537
  %v2546 = vadd.f32 %v2526, %v2542
  %v2547 = vadd.f32 %v2527, %v2542
  %v2548 = vadd.f32 %v2528, %v2537
  %v2549 = vadd.f32 %v2529, %v2537
  %v2550 = vadd.f32 %v2530, %v2542
  %v2551 = vadd.f32 %v2531, %v2542
  %v2552 = vmax.f32 %v2544, 0.0
  %v2553 = vmax.f32 %v2545, 0.0
  %v2554 = vmax.f32 %v2546, 0.0
  %v2555 = vmax.f32 %v2547, 0.0
  %v2556 = vmax.f32 %v2548, 0.0
  %v2557 = vmax.f32 %v2549, 0.0
  %v2558 = vmax.f32 %v2550, 0.0
  %v2559 = vmax.f32 %v2551, 0.0
  %2560 = vst [vmem:[%s3] sm:$0xff] %v2552
  %vm2561 = vcmask 326656
  %2562 = vst.msk [vmem:[%s3 + $0x8] sm:$0xff] %vm2561, %v2553
  %2563 = vst [vmem:[%s3 + $0x10] sm:$0x3] %v2554
  %vm2564 = vcmask 320512
  %2565 = vst.msk [vmem:[%s3 + $0x18] sm:$0x3] %vm2564, %v2555
  %2566 = vst [vmem:[%s3 + $0x20] sm:$0xff] %v2556
  %2567 = vst.msk [vmem:[%s3 + $0x28] sm:$0xff] %vm2561, %v2557
  %2568 = vst [vmem:[%s3 + $0x30] sm:$0x3] %v2558
  %2569 = vst.msk [vmem:[%s3 + $0x38] sm:$0x3] %vm2564, %v2559
  // Predicated region
  $region14: #{network_forward.3} parent=0 // pred_check
    _
  $region15: #{network_forward.3} parent=0 // pred_check_branch
    %2571 = sbr.rel (0) target = $region17
  $region16: #{network_forward.3} parent=0 // pred_region
    _
  $region17: #{network_forward.3} parent=0 // pred_fallthru
    _
  // Predicated region
  $region18: #{network_forward.3} parent=0 // pred_check
    _
  $region19: #{network_forward.3} parent=0 // pred_check_branch
    %2573 = sbr.rel (0) target = $region21
  $region20: #{network_forward.3} parent=0 // pred_region
    _
  $region21: #{network_forward.3} parent=0 // pred_fallthru
    _

// kernel: network_forward.4
$region0: #{network_forward.4}
  #allocation0 [shape = 'u32[]', space=smem, size = 0x4, offset = 0x4, fixed_abs, tag = 'smem constant byte address 0x4 - core index']
  #allocation1 [shape = 'u32[144,128]{1,0:T(1,128)}', space=vmem, size = 0x12000, scoped, tag = 'internal scratch']
  #allocation2 [shape = 'f32[2,250,24]{2,1,0:T(8,128)}', space=vmem, size = 0x40000, scoped, tag = 'scratch operand']
  %s0 = inlined_call_operand.vmem [shape: f32[2,2,2,10,38], index: 0, kind: input, shape index: {}]
  %s1 = inlined_call_operand.vmem [shape: f32[20,250], index: 1, kind: input, shape index: {}]
  %s2 = inlined_call_operand.vmem [shape: f32[1,20,1], index: 2, kind: input, shape index: {}]
  %s3 = inlined_call_operand.vmem [shape: f32[2,20,24], index: 3, kind: output, shape index: {}]
  %s4 = sld [smem:[#allocation0]]
  $region22: #{network_forward.4} parent=0
    _
  %s6 = ssub.s32 1, %s4
  %s7 = scalar_select 0, %s6, %s4
  // Predicated region
  $region2: #{network_forward.4} parent=0 // pred_check
    _
  $region3: #{network_forward.4} parent=0 // pred_check_branch
    %9 = sbr.rel (0) target = $region5
  $region4: #{network_forward.4} parent=0 // pred_region
    _
  $region5: #{network_forward.4} parent=0 // pred_fallthru
    _
  // Predicated region
  $region6: #{network_forward.4} parent=0 // pred_check
    _
  $region7: #{network_forward.4} parent=0 // pred_check_branch
    %11 = sbr.rel (0) target = $region9
  $region8: #{network_forward.4} parent=0 // pred_region
    _
  $region9: #{network_forward.4} parent=0 // pred_fallthru
    _
  // Predicated region
  $region10: #{network_forward.4} parent=0 // pred_check
    _
  $region11: #{network_forward.4} parent=0 // pred_check_branch
    %13 = sbr.rel (0) target = $region13
  $region12: #{network_forward.4} parent=0 // pred_region
    _
  $region13: #{network_forward.4} parent=0 // pred_fallthru
    _
  %v14 = vld [vmem:[%s1] sm:$0xff]
  %v15 = vld [vmem:[%s1 + $0x8] sm:$0xff]
  %v16 = vld [vmem:[%s1 + $0x10] sm:$0xff]
  %v17 = vld [vmem:[%s1 + $0x18] sm:$0xff]
  %v18 = vld [vmem:[%s1 + $0x20] sm:$0xf]
  %v19 = vld [vmem:[%s1 + $0x28] sm:$0xf]
  %v20 = vld [vmem:[%s0] sm:$0xff]
  %v21 = vld [vmem:[%s0 + $0x8] sm:$0x3]
  %v22 = vld [vmem:[%s0 + $0x40] sm:$0xff]
  %v23 = vld [vmem:[%s0 + $0x48] sm:$0x3]
  %vm24 = vcmask 195584
  %25 = vst.msk [vmem:[#allocation2] sm:$0xff] %vm24, %v20
  %vm26 = vcmask 189440
  %27 = vst.msk [vmem:[#allocation2 + $0x8] sm:$0x3] %vm26, %v21
  %28 = vst.msk [vmem:[#allocation2 + $0x100] sm:$0xff] %vm24, %v22
  %29 = vst.msk [vmem:[#allocation2 + $0x108] sm:$0x3] %vm26, %v23
  %s30 = scalar_lea.vmem %s0, 16
  %v31 = vld [vmem:[%s30] sm:$0xff]
  %v32 = vld [vmem:[%s30 + $0x8] sm:$0x3]
  %v33 = vld [vmem:[%s30 + $0x40] sm:$0xff]
  %v34 = vld [vmem:[%s30 + $0x48] sm:$0x3]
  %35 = vst.msk [vmem:[#allocation2 + $0xa] sm:$0xff] %vm24, %v31
  %36 = vst.msk [vmem:[#allocation2 + $0x12] sm:$0x3] %vm26, %v32
  %37 = vst.msk [vmem:[#allocation2 + $0x10a] sm:$0xff] %vm24, %v33
  %38 = vst.msk [vmem:[#allocation2 + $0x112] sm:$0x3] %vm26, %v34
  %v39 = vld [vmem:[%s0] sm:$0xff]
  %v40 = vld [vmem:[%s0 + $0x8] sm:$0x3]
  %v41 = vld [vmem:[%s0 + $0x40] sm:$0xff]
  %v42 = vld [vmem:[%s0 + $0x48] sm:$0x3]
  %47 = vrot.lane.b32.xlu0 %v39, 127
  %v48 = vpop.permute.xlu0 %47
  %49 = vrot.lane.b32.xlu0 %v40, 127
  %v50 = vpop.permute.xlu0 %49
  %51 = vrot.lane.b32.xlu0 %v41, 127
  %v52 = vpop.permute.xlu0 %51
  %53 = vrot.lane.b32.xlu0 %v42, 127
  %v54 = vpop.permute.xlu0 %53
  %59 = vst.msk [vmem:[#allocation2 + $0x14] sm:$0xff] %vm24, %v48
  %60 = vst.msk [vmem:[#allocation2 + $0x1c] sm:$0x3] %vm26, %v50
  %61 = vst.msk [vmem:[#allocation2 + $0x114] sm:$0xff] %vm24, %v52
  %62 = vst.msk [vmem:[#allocation2 + $0x11c] sm:$0x3] %vm26, %v54
  %v63 = vld [vmem:[%s30] sm:$0xff]
  %v64 = vld [vmem:[%s30 + $0x8] sm:$0x3]
  %v65 = vld [vmem:[%s30 + $0x40] sm:$0xff]
  %v66 = vld [vmem:[%s30 + $0x48] sm:$0x3]
  %71 = vrot.lane.b32.xlu0 %v63, 127
  %v72 = vpop.permute.xlu0 %71
  %73 = vrot.lane.b32.xlu0 %v64, 127
  %v74 = vpop.permute.xlu0 %73
  %75 = vrot.lane.b32.xlu0 %v65, 127
  %v76 = vpop.permute.xlu0 %75
  %77 = vrot.lane.b32.xlu0 %v66, 127
  %v78 = vpop.permute.xlu0 %77
  %83 = vst.msk [vmem:[#allocation2 + $0x1e] sm:$0xff] %vm24, %v72
  %84 = vst.msk [vmem:[#allocation2 + $0x26] sm:$0x3] %vm26, %v74
  %85 = vst.msk [vmem:[#allocation2 + $0x11e] sm:$0xff] %vm24, %v76
  %86 = vst.msk [vmem:[#allocation2 + $0x126] sm:$0x3] %vm26, %v78
  %v87 = vld [vmem:[%s0] sm:$0xff]
  %v88 = vld [vmem:[%s0 + $0x8] sm:$0x3]
  %v89 = vld [vmem:[%s0 + $0x40] sm:$0xff]
  %v90 = vld [vmem:[%s0 + $0x48] sm:$0x3]
  %95 = vrot.lane.b32.xlu0 %v87, 126
  %v96 = vpop.permute.xlu0 %95
  %97 = vrot.lane.b32.xlu0 %v88, 126
  %v98 = vpop.permute.xlu0 %97
  %99 = vrot.lane.b32.xlu0 %v89, 126
  %v100 = vpop.permute.xlu0 %99
  %101 = vrot.lane.b32.xlu0 %v90, 126
  %v102 = vpop.permute.xlu0 %101
  %107 = vst.msk [vmem:[#allocation2 + $0x28] sm:$0xff] %vm24, %v96
  %108 = vst.msk [vmem:[#allocation2 + $0x30] sm:$0x3] %vm26, %v98
  %109 = vst.msk [vmem:[#allocation2 + $0x128] sm:$0xff] %vm24, %v100
  %110 = vst.msk [vmem:[#allocation2 + $0x130] sm:$0x3] %vm26, %v102
  %s111 = scalar_lea.vmem %s0, 32
  %v112 = vld [vmem:[%s111] sm:$0xff]
  %v113 = vld [vmem:[%s111 + $0x8] sm:$0x3]
  %v114 = vld [vmem:[%s111 + $0x40] sm:$0xff]
  %v115 = vld [vmem:[%s111 + $0x48] sm:$0x3]
  %116 = vst.msk [vmem:[#allocation2 + $0x32] sm:$0xff] %vm24, %v112
  %117 = vst.msk [vmem:[#allocation2 + $0x3a] sm:$0x3] %vm26, %v113
  %118 = vst.msk [vmem:[#allocation2 + $0x132] sm:$0xff] %vm24, %v114
  %119 = vst.msk [vmem:[#allocation2 + $0x13a] sm:$0x3] %vm26, %v115
  %s120 = scalar_lea.vmem %s0, 48
  %v121 = vld [vmem:[%s120] sm:$0xff]
  %v122 = vld [vmem:[%s120 + $0x8] sm:$0x3]
  %v123 = vld [vmem:[%s120 + $0x40] sm:$0xff]
  %v124 = vld [vmem:[%s120 + $0x48] sm:$0x3]
  %125 = vst.msk [vmem:[#allocation2 + $0x3c] sm:$0xff] %vm24, %v121
  %126 = vst.msk [vmem:[#allocation2 + $0x44] sm:$0x3] %vm26, %v122
  %127 = vst.msk [vmem:[#allocation2 + $0x13c] sm:$0xff] %vm24, %v123
  %128 = vst.msk [vmem:[#allocation2 + $0x144] sm:$0x3] %vm26, %v124
  %v129 = vld [vmem:[%s111] sm:$0xff]
  %v130 = vld [vmem:[%s111 + $0x8] sm:$0x3]
  %v131 = vld [vmem:[%s111 + $0x40] sm:$0xff]
  %v132 = vld [vmem:[%s111 + $0x48] sm:$0x3]
  %137 = vrot.lane.b32.xlu0 %v129, 127
  %v138 = vpop.permute.xlu0 %137
  %139 = vrot.lane.b32.xlu0 %v130, 127
  %v140 = vpop.permute.xlu0 %139
  %141 = vrot.lane.b32.xlu0 %v131, 127
  %v142 = vpop.permute.xlu0 %141
  %143 = vrot.lane.b32.xlu0 %v132, 127
  %v144 = vpop.permute.xlu0 %143
  %149 = vst.msk [vmem:[#allocation2 + $0x46] sm:$0xff] %vm24, %v138
  %150 = vst.msk [vmem:[#allocation2 + $0x4e] sm:$0x3] %vm26, %v140
  %151 = vst.msk [vmem:[#allocation2 + $0x146] sm:$0xff] %vm24, %v142
  %152 = vst.msk [vmem:[#allocation2 + $0x14e] sm:$0x3] %vm26, %v144
  %v153 = vld [vmem:[%s120] sm:$0xff]
  %v154 = vld [vmem:[%s120 + $0x8] sm:$0x3]
  %v155 = vld [vmem:[%s120 + $0x40] sm:$0xff]
  %v156 = vld [vmem:[%s120 + $0x48] sm:$0x3]
  %161 = vrot.lane.b32.xlu0 %v153, 127
  %v162 = vpop.permute.xlu0 %161
  %163 = vrot.lane.b32.xlu0 %v154, 127
  %v164 = vpop.permute.xlu0 %163
  %165 = vrot.lane.b32.xlu0 %v155, 127
  %v166 = vpop.permute.xlu0 %165
  %167 = vrot.lane.b32.xlu0 %v156, 127
  %v168 = vpop.permute.xlu0 %167
  %173 = vst.msk [vmem:[#allocation2 + $0x50] sm:$0xff] %vm24, %v162
  %174 = vst.msk [vmem:[#allocation2 + $0x58] sm:$0x3] %vm26, %v164
  %175 = vst.msk [vmem:[#allocation2 + $0x150] sm:$0xff] %vm24, %v166
  %176 = vst.msk [vmem:[#allocation2 + $0x158] sm:$0x3] %vm26, %v168
  %v177 = vld [vmem:[%s111] sm:$0xff]
  %v178 = vld [vmem:[%s111 + $0x8] sm:$0x3]
  %v179 = vld [vmem:[%s111 + $0x40] sm:$0xff]
  %v180 = vld [vmem:[%s111 + $0x48] sm:$0x3]
  %185 = vrot.lane.b32.xlu0 %v177, 126
  %v186 = vpop.permute.xlu0 %185
  %187 = vrot.lane.b32.xlu0 %v178, 126
  %v188 = vpop.permute.xlu0 %187
  %189 = vrot.lane.b32.xlu0 %v179, 126
  %v190 = vpop.permute.xlu0 %189
  %191 = vrot.lane.b32.xlu0 %v180, 126
  %v192 = vpop.permute.xlu0 %191
  %197 = vst.msk [vmem:[#allocation2 + $0x5a] sm:$0xff] %vm24, %v186
  %198 = vst.msk [vmem:[#allocation2 + $0x62] sm:$0x3] %vm26, %v188
  %199 = vst.msk [vmem:[#allocation2 + $0x15a] sm:$0xff] %vm24, %v190
  %200 = vst.msk [vmem:[#allocation2 + $0x162] sm:$0x3] %vm26, %v192
  %v201 = vld [vmem:[%s0] sm:$0xff]
  %v202 = vld [vmem:[%s0 + $0x8] sm:$0x3]
  %v203 = vld [vmem:[%s0 + $0x40] sm:$0xff]
  %v204 = vld [vmem:[%s0 + $0x48] sm:$0x3]
  %209 = vrot.lane.b32.xlu0 %v201, 122
  %v210 = vpop.permute.xlu0 %209
  %211 = vrot.lane.b32.xlu0 %v202, 122
  %v212 = vpop.permute.xlu0 %211
  %213 = vrot.lane.b32.xlu0 %v203, 122
  %v214 = vpop.permute.xlu0 %213
  %215 = vrot.lane.b32.xlu0 %v204, 122
  %v216 = vpop.permute.xlu0 %215
  %221 = vst.msk [vmem:[#allocation2 + $0x64] sm:$0xff] %vm24, %v210
  %222 = vst.msk [vmem:[#allocation2 + $0x6c] sm:$0x3] %vm26, %v212
  %223 = vst.msk [vmem:[#allocation2 + $0x164] sm:$0xff] %vm24, %v214
  %224 = vst.msk [vmem:[#allocation2 + $0x16c] sm:$0x3] %vm26, %v216
  %v225 = vld [vmem:[%s30] sm:$0xff]
  %v226 = vld [vmem:[%s30 + $0x8] sm:$0x3]
  %v227 = vld [vmem:[%s30 + $0x40] sm:$0xff]
  %v228 = vld [vmem:[%s30 + $0x48] sm:$0x3]
  %233 = vrot.lane.b32.xlu0 %v225, 122
  %v234 = vpop.permute.xlu0 %233
  %235 = vrot.lane.b32.xlu0 %v226, 122
  %v236 = vpop.permute.xlu0 %235
  %237 = vrot.lane.b32.xlu0 %v227, 122
  %v238 = vpop.permute.xlu0 %237
  %239 = vrot.lane.b32.xlu0 %v228, 122
  %v240 = vpop.permute.xlu0 %239
  %245 = vst.msk [vmem:[#allocation2 + $0x6e] sm:$0xff] %vm24, %v234
  %246 = vst.msk [vmem:[#allocation2 + $0x76] sm:$0x3] %vm26, %v236
  %247 = vst.msk [vmem:[#allocation2 + $0x16e] sm:$0xff] %vm24, %v238
  %248 = vst.msk [vmem:[#allocation2 + $0x176] sm:$0x3] %vm26, %v240
  %v249 = vld [vmem:[%s0] sm:$0xff]
  %v250 = vld [vmem:[%s0 + $0x8] sm:$0x3]
  %v251 = vld [vmem:[%s0 + $0x40] sm:$0xff]
  %v252 = vld [vmem:[%s0 + $0x48] sm:$0x3]
  %257 = vrot.lane.b32.xlu0 %v249, 121
  %v258 = vpop.permute.xlu0 %257
  %259 = vrot.lane.b32.xlu0 %v250, 121
  %v260 = vpop.permute.xlu0 %259
  %261 = vrot.lane.b32.xlu0 %v251, 121
  %v262 = vpop.permute.xlu0 %261
  %263 = vrot.lane.b32.xlu0 %v252, 121
  %v264 = vpop.permute.xlu0 %263
  %269 = vst.msk [vmem:[#allocation2 + $0x78] sm:$0xff] %vm24, %v258
  %270 = vst.msk [vmem:[#allocation2 + $0x80] sm:$0x3] %vm26, %v260
  %271 = vst.msk [vmem:[#allocation2 + $0x178] sm:$0xff] %vm24, %v262
  %272 = vst.msk [vmem:[#allocation2 + $0x180] sm:$0x3] %vm26, %v264
  %v273 = vld [vmem:[%s30] sm:$0xff]
  %v274 = vld [vmem:[%s30 + $0x8] sm:$0x3]
  %v275 = vld [vmem:[%s30 + $0x40] sm:$0xff]
  %v276 = vld [vmem:[%s30 + $0x48] sm:$0x3]
  %281 = vrot.lane.b32.xlu0 %v273, 121
  %v282 = vpop.permute.xlu0 %281
  %283 = vrot.lane.b32.xlu0 %v274, 121
  %v284 = vpop.permute.xlu0 %283
  %285 = vrot.lane.b32.xlu0 %v275, 121
  %v286 = vpop.permute.xlu0 %285
  %287 = vrot.lane.b32.xlu0 %v276, 121
  %v288 = vpop.permute.xlu0 %287
  %293 = vst.msk [vmem:[#allocation2 + $0x82] sm:$0xff] %vm24, %v282
  %294 = vst.msk [vmem:[#allocation2 + $0x8a] sm:$0x3] %vm26, %v284
  %295 = vst.msk [vmem:[#allocation2 + $0x182] sm:$0xff] %vm24, %v286
  %296 = vst.msk [vmem:[#allocation2 + $0x18a] sm:$0x3] %vm26, %v288
  %v297 = vld [vmem:[%s0] sm:$0xff]
  %v298 = vld [vmem:[%s0 + $0x8] sm:$0x3]
  %v299 = vld [vmem:[%s0 + $0x40] sm:$0xff]
  %v300 = vld [vmem:[%s0 + $0x48] sm:$0x3]
  %305 = vrot.lane.b32.xlu0 %v297, 120
  %v306 = vpop.permute.xlu0 %305
  %307 = vrot.lane.b32.xlu0 %v298, 120
  %v308 = vpop.permute.xlu0 %307
  %309 = vrot.lane.b32.xlu0 %v299, 120
  %v310 = vpop.permute.xlu0 %309
  %311 = vrot.lane.b32.xlu0 %v300, 120
  %v312 = vpop.permute.xlu0 %311
  %317 = vst.msk [vmem:[#allocation2 + $0x8c] sm:$0xff] %vm24, %v306
  %318 = vst.msk [vmem:[#allocation2 + $0x94] sm:$0x3] %vm26, %v308
  %319 = vst.msk [vmem:[#allocation2 + $0x18c] sm:$0xff] %vm24, %v310
  %320 = vst.msk [vmem:[#allocation2 + $0x194] sm:$0x3] %vm26, %v312
  %v321 = vld [vmem:[%s111] sm:$0xff]
  %v322 = vld [vmem:[%s111 + $0x8] sm:$0x3]
  %v323 = vld [vmem:[%s111 + $0x40] sm:$0xff]
  %v324 = vld [vmem:[%s111 + $0x48] sm:$0x3]
  %329 = vrot.lane.b32.xlu0 %v321, 122
  %v330 = vpop.permute.xlu0 %329
  %331 = vrot.lane.b32.xlu0 %v322, 122
  %v332 = vpop.permute.xlu0 %331
  %333 = vrot.lane.b32.xlu0 %v323, 122
  %v334 = vpop.permute.xlu0 %333
  %335 = vrot.lane.b32.xlu0 %v324, 122
  %v336 = vpop.permute.xlu0 %335
  %341 = vst.msk [vmem:[#allocation2 + $0x96] sm:$0xff] %vm24, %v330
  %342 = vst.msk [vmem:[#allocation2 + $0x9e] sm:$0x3] %vm26, %v332
  %343 = vst.msk [vmem:[#allocation2 + $0x196] sm:$0xff] %vm24, %v334
  %344 = vst.msk [vmem:[#allocation2 + $0x19e] sm:$0x3] %vm26, %v336
  %v345 = vld [vmem:[%s120] sm:$0xff]
  %v346 = vld [vmem:[%s120 + $0x8] sm:$0x3]
  %v347 = vld [vmem:[%s120 + $0x40] sm:$0xff]
  %v348 = vld [vmem:[%s120 + $0x48] sm:$0x3]
  %353 = vrot.lane.b32.xlu0 %v345, 122
  %v354 = vpop.permute.xlu0 %353
  %355 = vrot.lane.b32.xlu0 %v346, 122
  %v356 = vpop.permute.xlu0 %355
  %357 = vrot.lane.b32.xlu0 %v347, 122
  %v358 = vpop.permute.xlu0 %357
  %359 = vrot.lane.b32.xlu0 %v348, 122
  %v360 = vpop.permute.xlu0 %359
  %365 = vst.msk [vmem:[#allocation2 + $0xa0] sm:$0xff] %vm24, %v354
  %366 = vst.msk [vmem:[#allocation2 + $0xa8] sm:$0x3] %vm26, %v356
  %367 = vst.msk [vmem:[#allocation2 + $0x1a0] sm:$0xff] %vm24, %v358
  %368 = vst.msk [vmem:[#allocation2 + $0x1a8] sm:$0x3] %vm26, %v360
  %v369 = vld [vmem:[%s111] sm:$0xff]
  %v370 = vld [vmem:[%s111 + $0x8] sm:$0x3]
  %v371 = vld [vmem:[%s111 + $0x40] sm:$0xff]
  %v372 = vld [vmem:[%s111 + $0x48] sm:$0x3]
  %377 = vrot.lane.b32.xlu0 %v369, 121
  %v378 = vpop.permute.xlu0 %377
  %379 = vrot.lane.b32.xlu0 %v370, 121
  %v380 = vpop.permute.xlu0 %379
  %381 = vrot.lane.b32.xlu0 %v371, 121
  %v382 = vpop.permute.xlu0 %381
  %383 = vrot.lane.b32.xlu0 %v372, 121
  %v384 = vpop.permute.xlu0 %383
  %389 = vst.msk [vmem:[#allocation2 + $0xaa] sm:$0xff] %vm24, %v378
  %390 = vst.msk [vmem:[#allocation2 + $0xb2] sm:$0x3] %vm26, %v380
  %391 = vst.msk [vmem:[#allocation2 + $0x1aa] sm:$0xff] %vm24, %v382
  %392 = vst.msk [vmem:[#allocation2 + $0x1b2] sm:$0x3] %vm26, %v384
  %v393 = vld [vmem:[%s120] sm:$0xff]
  %v394 = vld [vmem:[%s120 + $0x8] sm:$0x3]
  %v395 = vld [vmem:[%s120 + $0x40] sm:$0xff]
  %v396 = vld [vmem:[%s120 + $0x48] sm:$0x3]
  %401 = vrot.lane.b32.xlu0 %v393, 121
  %v402 = vpop.permute.xlu0 %401
  %403 = vrot.lane.b32.xlu0 %v394, 121
  %v404 = vpop.permute.xlu0 %403
  %405 = vrot.lane.b32.xlu0 %v395, 121
  %v406 = vpop.permute.xlu0 %405
  %407 = vrot.lane.b32.xlu0 %v396, 121
  %v408 = vpop.permute.xlu0 %407
  %413 = vst.msk [vmem:[#allocation2 + $0xb4] sm:$0xff] %vm24, %v402
  %414 = vst.msk [vmem:[#allocation2 + $0xbc] sm:$0x3] %vm26, %v404
  %415 = vst.msk [vmem:[#allocation2 + $0x1b4] sm:$0xff] %vm24, %v406
  %416 = vst.msk [vmem:[#allocation2 + $0x1bc] sm:$0x3] %vm26, %v408
  %v417 = vld [vmem:[%s111] sm:$0xff]
  %v418 = vld [vmem:[%s111 + $0x8] sm:$0x3]
  %v419 = vld [vmem:[%s111 + $0x40] sm:$0xff]
  %v420 = vld [vmem:[%s111 + $0x48] sm:$0x3]
  %425 = vrot.lane.b32.xlu0 %v417, 120
  %v426 = vpop.permute.xlu0 %425
  %427 = vrot.lane.b32.xlu0 %v418, 120
  %v428 = vpop.permute.xlu0 %427
  %429 = vrot.lane.b32.xlu0 %v419, 120
  %v430 = vpop.permute.xlu0 %429
  %431 = vrot.lane.b32.xlu0 %v420, 120
  %v432 = vpop.permute.xlu0 %431
  %437 = vst.msk [vmem:[#allocation2 + $0xbe] sm:$0xff] %vm24, %v426
  %438 = vst.msk [vmem:[#allocation2 + $0xc6] sm:$0x3] %vm26, %v428
  %439 = vst.msk [vmem:[#allocation2 + $0x1be] sm:$0xff] %vm24, %v430
  %440 = vst.msk [vmem:[#allocation2 + $0x1c6] sm:$0x3] %vm26, %v432
  %v441 = vld [vmem:[%s0] sm:$0xff]
  %v442 = vld [vmem:[%s0 + $0x8] sm:$0x3]
  %v443 = vld [vmem:[%s0 + $0x40] sm:$0xff]
  %v444 = vld [vmem:[%s0 + $0x48] sm:$0x3]
  %449 = vrot.lane.b32.xlu0 %v441, 116
  %v450 = vpop.permute.xlu0 %449
  %451 = vrot.lane.b32.xlu0 %v442, 116
  %v452 = vpop.permute.xlu0 %451
  %453 = vrot.lane.b32.xlu0 %v443, 116
  %v454 = vpop.permute.xlu0 %453
  %455 = vrot.lane.b32.xlu0 %v444, 116
  %v456 = vpop.permute.xlu0 %455
  %461 = vst.msk [vmem:[#allocation2 + $0xc8] sm:$0xff] %vm24, %v450
  %462 = vst.msk [vmem:[#allocation2 + $0xd0] sm:$0x3] %vm26, %v452
  %463 = vst.msk [vmem:[#allocation2 + $0x1c8] sm:$0xff] %vm24, %v454
  %464 = vst.msk [vmem:[#allocation2 + $0x1d0] sm:$0x3] %vm26, %v456
  %v465 = vld [vmem:[%s30] sm:$0xff]
  %v466 = vld [vmem:[%s30 + $0x8] sm:$0x3]
  %v467 = vld [vmem:[%s30 + $0x40] sm:$0xff]
  %v468 = vld [vmem:[%s30 + $0x48] sm:$0x3]
  %473 = vrot.lane.b32.xlu0 %v465, 116
  %v474 = vpop.permute.xlu0 %473
  %475 = vrot.lane.b32.xlu0 %v466, 116
  %v476 = vpop.permute.xlu0 %475
  %477 = vrot.lane.b32.xlu0 %v467, 116
  %v478 = vpop.permute.xlu0 %477
  %479 = vrot.lane.b32.xlu0 %v468, 116
  %v480 = vpop.permute.xlu0 %479
  %485 = vst.msk [vmem:[#allocation2 + $0xd2] sm:$0xff] %vm24, %v474
  %486 = vst.msk [vmem:[#allocation2 + $0xda] sm:$0x3] %vm26, %v476
  %487 = vst.msk [vmem:[#allocation2 + $0x1d2] sm:$0xff] %vm24, %v478
  %488 = vst.msk [vmem:[#allocation2 + $0x1da] sm:$0x3] %vm26, %v480
  %v489 = vld [vmem:[%s0] sm:$0xff]
  %v490 = vld [vmem:[%s0 + $0x8] sm:$0x3]
  %v491 = vld [vmem:[%s0 + $0x40] sm:$0xff]
  %v492 = vld [vmem:[%s0 + $0x48] sm:$0x3]
  %497 = vrot.lane.b32.xlu0 %v489, 115
  %v498 = vpop.permute.xlu0 %497
  %499 = vrot.lane.b32.xlu0 %v490, 115
  %v500 = vpop.permute.xlu0 %499
  %501 = vrot.lane.b32.xlu0 %v491, 115
  %v502 = vpop.permute.xlu0 %501
  %503 = vrot.lane.b32.xlu0 %v492, 115
  %v504 = vpop.permute.xlu0 %503
  %509 = vst.msk [vmem:[#allocation2 + $0xdc] sm:$0xff] %vm24, %v498
  %510 = vst.msk [vmem:[#allocation2 + $0xe4] sm:$0x3] %vm26, %v500
  %511 = vst.msk [vmem:[#allocation2 + $0x1dc] sm:$0xff] %vm24, %v502
  %512 = vst.msk [vmem:[#allocation2 + $0x1e4] sm:$0x3] %vm26, %v504
  %v513 = vld [vmem:[%s30] sm:$0xff]
  %v514 = vld [vmem:[%s30 + $0x8] sm:$0x3]
  %v515 = vld [vmem:[%s30 + $0x40] sm:$0xff]
  %v516 = vld [vmem:[%s30 + $0x48] sm:$0x3]
  %521 = vrot.lane.b32.xlu0 %v513, 115
  %v522 = vpop.permute.xlu0 %521
  %523 = vrot.lane.b32.xlu0 %v514, 115
  %v524 = vpop.permute.xlu0 %523
  %525 = vrot.lane.b32.xlu0 %v515, 115
  %v526 = vpop.permute.xlu0 %525
  %527 = vrot.lane.b32.xlu0 %v516, 115
  %v528 = vpop.permute.xlu0 %527
  %533 = vst.msk [vmem:[#allocation2 + $0xe6] sm:$0xff] %vm24, %v522
  %534 = vst.msk [vmem:[#allocation2 + $0xee] sm:$0x3] %vm26, %v524
  %535 = vst.msk [vmem:[#allocation2 + $0x1e6] sm:$0xff] %vm24, %v526
  %536 = vst.msk [vmem:[#allocation2 + $0x1ee] sm:$0x3] %vm26, %v528
  %v537 = vld [vmem:[%s0] sm:$0xff]
  %v538 = vld [vmem:[%s0 + $0x8] sm:$0x3]
  %v539 = vld [vmem:[%s0 + $0x40] sm:$0xff]
  %v540 = vld [vmem:[%s0 + $0x48] sm:$0x3]
  %545 = vrot.lane.b32.xlu0 %v537, 114
  %v546 = vpop.permute.xlu0 %545
  %547 = vrot.lane.b32.xlu0 %v538, 114
  %v548 = vpop.permute.xlu0 %547
  %549 = vrot.lane.b32.xlu0 %v539, 114
  %v550 = vpop.permute.xlu0 %549
  %551 = vrot.lane.b32.xlu0 %v540, 114
  %v552 = vpop.permute.xlu0 %551
  %557 = vst.msk [vmem:[#allocation2 + $0xf0] sm:$0xff] %vm24, %v546
  %558 = vst.msk [vmem:[#allocation2 + $0xf8] sm:$0x3] %vm26, %v548
  %559 = vst.msk [vmem:[#allocation2 + $0x1f0] sm:$0xff] %vm24, %v550
  %560 = vst.msk [vmem:[#allocation2 + $0x1f8] sm:$0x3] %vm26, %v552
  %v561 = vld [vmem:[#allocation2] sm:$0xff]
  %v562 = vld [vmem:[#allocation2 + $0x8] sm:$0xff]
  %v563 = vld [vmem:[#allocation2 + $0x10] sm:$0xff]
  %v564 = vld [vmem:[#allocation2 + $0x18] sm:$0xff]
  %v565 = vld [vmem:[#allocation2 + $0x20] sm:$0xff]
  %v566 = vld [vmem:[#allocation2 + $0x28] sm:$0xff]
  %v567 = vld [vmem:[#allocation2 + $0x30] sm:$0xff]
  %v568 = vld [vmem:[#allocation2 + $0x38] sm:$0xff]
  %v569 = vld [vmem:[#allocation2 + $0x40] sm:$0xff]
  %v570 = vld [vmem:[#allocation2 + $0x48] sm:$0xff]
  %v571 = vld [vmem:[#allocation2 + $0x50] sm:$0xff]
  %v572 = vld [vmem:[#allocation2 + $0x58] sm:$0xff]
  %v573 = vld [vmem:[#allocation2 + $0x60] sm:$0xff]
  %v574 = vld [vmem:[#allocation2 + $0x68] sm:$0xff]
  %v575 = vld [vmem:[#allocation2 + $0x70] sm:$0xff]
  %v576 = vld [vmem:[#allocation2 + $0x78] sm:$0xff]
  %v577 = vld [vmem:[#allocation2 + $0x80] sm:$0xff]
  %v578 = vld [vmem:[#allocation2 + $0x88] sm:$0xff]
  %v579 = vld [vmem:[#allocation2 + $0x90] sm:$0xff]
  %v580 = vld [vmem:[#allocation2 + $0x98] sm:$0xff]
  %v581 = vld [vmem:[#allocation2 + $0xa0] sm:$0xff]
  %v582 = vld [vmem:[#allocation2 + $0xa8] sm:$0xff]
  %v583 = vld [vmem:[#allocation2 + $0xb0] sm:$0xff]
  %v584 = vld [vmem:[#allocation2 + $0xb8] sm:$0xff]
  %v585 = vld [vmem:[#allocation2 + $0xc0] sm:$0xff]
  %v586 = vld [vmem:[#allocation2 + $0xc8] sm:$0xff]
  %v587 = vld [vmem:[#allocation2 + $0xd0] sm:$0xff]
  %v588 = vld [vmem:[#allocation2 + $0xd8] sm:$0xff]
  %v589 = vld [vmem:[#allocation2 + $0xe0] sm:$0xff]
  %v590 = vld [vmem:[#allocation2 + $0xe8] sm:$0xff]
  %v591 = vld [vmem:[#allocation2 + $0xf0] sm:$0xff]
  %v592 = vld [vmem:[#allocation2 + $0xf8] sm:$0x3]
  %v593 = vld [vmem:[#allocation2 + $0x100] sm:$0xff]
  %v594 = vld [vmem:[#allocation2 + $0x108] sm:$0xff]
  %v595 = vld [vmem:[#allocation2 + $0x110] sm:$0xff]
  %v596 = vld [vmem:[#allocation2 + $0x118] sm:$0xff]
  %v597 = vld [vmem:[#allocation2 + $0x120] sm:$0xff]
  %v598 = vld [vmem:[#allocation2 + $0x128] sm:$0xff]
  %v599 = vld [vmem:[#allocation2 + $0x130] sm:$0xff]
  %v600 = vld [vmem:[#allocation2 + $0x138] sm:$0xff]
  %v601 = vld [vmem:[#allocation2 + $0x140] sm:$0xff]
  %v602 = vld [vmem:[#allocation2 + $0x148] sm:$0xff]
  %v603 = vld [vmem:[#allocation2 + $0x150] sm:$0xff]
  %v604 = vld [vmem:[#allocation2 + $0x158] sm:$0xff]
  %v605 = vld [vmem:[#allocation2 + $0x160] sm:$0xff]
  %v606 = vld [vmem:[#allocation2 + $0x168] sm:$0xff]
  %v607 = vld [vmem:[#allocation2 + $0x170] sm:$0xff]
  %v608 = vld [vmem:[#allocation2 + $0x178] sm:$0xff]
  %v609 = vld [vmem:[#allocation2 + $0x180] sm:$0xff]
  %v610 = vld [vmem:[#allocation2 + $0x188] sm:$0xff]
  %v611 = vld [vmem:[#allocation2 + $0x190] sm:$0xff]
  %v612 = vld [vmem:[#allocation2 + $0x198] sm:$0xff]
  %v613 = vld [vmem:[#allocation2 + $0x1a0] sm:$0xff]
  %v614 = vld [vmem:[#allocation2 + $0x1a8] sm:$0xff]
  %v615 = vld [vmem:[#allocation2 + $0x1b0] sm:$0xff]
  %v616 = vld [vmem:[#allocation2 + $0x1b8] sm:$0xff]
  %v617 = vld [vmem:[#allocation2 + $0x1c0] sm:$0xff]
  %v618 = vld [vmem:[#allocation2 + $0x1c8] sm:$0xff]
  %v619 = vld [vmem:[#allocation2 + $0x1d0] sm:$0xff]
  %v620 = vld [vmem:[#allocation2 + $0x1d8] sm:$0xff]
  %v621 = vld [vmem:[#allocation2 + $0x1e0] sm:$0xff]
  %v622 = vld [vmem:[#allocation2 + $0x1e8] sm:$0xff]
  %v623 = vld [vmem:[#allocation2 + $0x1f0] sm:$0xff]
  %v624 = vld [vmem:[#allocation2 + $0x1f8] sm:$0x3]
  %vm625 = vcmask 998400
  %v627 = vsel %vm625, %v15, 0
  %v630 = vsel %vm625, %v17, 0
  %v633 = vsel %vm625, %v19, 0
  %vm635 = vcmask 1041408
  %v637 = vsel %vm635, %v592, 0
  %639 = vmatprep.subr.mxu0 0.0
  %640 = vmatpush1.msra.mxu0 %v561
  %641 = vmatprep.subr.mxu0 0.0
  %642 = vmatpush1.msra.mxu0 %v562
  %643 = vmatprep.subr.mxu0 0.0
  %644 = vmatpush1.msra.mxu0 %v563
  %645 = vmatprep.subr.mxu0 0.0
  %646 = vmatpush1.msra.mxu0 %v564
  %647 = vmatprep.subr.mxu0 0.0
  %648 = vmatpush1.msra.mxu0 %v565
  %649 = vmatprep.subr.mxu0 0.0
  %650 = vmatpush1.msra.mxu0 %v566
  %651 = vmatprep.subr.mxu0 0.0
  %652 = vmatpush1.msra.mxu0 %v567
  %653 = vmatprep.subr.mxu0 0.0
  %654 = vmatpush1.msra.mxu0 %v568
  %655 = vmatprep.subr.mxu0 0.0
  %656 = vmatpush1.msra.mxu0 %v569
  %657 = vmatprep.subr.mxu0 0.0
  %658 = vmatpush1.msra.mxu0 %v570
  %659 = vmatprep.subr.mxu0 0.0
  %660 = vmatpush1.msra.mxu0 %v571
  %661 = vmatprep.subr.mxu0 0.0
  %662 = vmatpush1.msra.mxu0 %v572
  %663 = vmatprep.subr.mxu0 0.0
  %664 = vmatpush1.msra.mxu0 %v573
  %665 = vmatprep.subr.mxu0 0.0
  %666 = vmatpush1.msra.mxu0 %v574
  %667 = vmatprep.subr.mxu0 0.0
  %668 = vmatpush1.msra.mxu0 %v575
  %669 = vmatprep.subr.mxu0 0.0
  %670 = vmatpush1.msra.mxu0 %v576
  %671 = vmatprep.subr.mxu0 0.0
  %672 = vmatpush1.msra.mxu0 %v577
  %673 = vmatprep.subr.mxu0 0.0
  %674 = vmatpush1.msra.mxu0 %v578
  %675 = vmatprep.subr.mxu0 0.0
  %676 = vmatpush1.msra.mxu0 %v579
  %677 = vmatprep.subr.mxu0 0.0
  %678 = vmatpush1.msra.mxu0 %v580
  %679 = vmatprep.subr.mxu0 0.0
  %680 = vmatpush1.msra.mxu0 %v581
  %681 = vmatprep.subr.mxu0 0.0
  %682 = vmatpush1.msra.mxu0 %v582
  %683 = vmatprep.subr.mxu0 0.0
  %684 = vmatpush1.msra.mxu0 %v583
  %685 = vmatprep.subr.mxu0 0.0
  %686 = vmatpush1.msra.mxu0 %v584
  %687 = vmatprep.subr.mxu0 0.0
  %688 = vmatpush1.msra.mxu0 %v585
  %689 = vmatprep.subr.mxu0 0.0
  %690 = vmatpush1.msra.mxu0 %v586
  %691 = vmatprep.subr.mxu0 0.0
  %692 = vmatpush1.msra.mxu0 %v587
  %693 = vmatprep.subr.mxu0 0.0
  %694 = vmatpush1.msra.mxu0 %v588
  %695 = vmatprep.subr.mxu0 0.0
  %696 = vmatpush1.msra.mxu0 %v589
  %697 = vmatprep.subr.mxu0 0.0
  %698 = vmatpush1.msra.mxu0 %v590
  %699 = vmatprep.subr.mxu0 0.0
  %700 = vmatpush1.msra.mxu0 %v591
  %701 = vmatprep.subr.mxu0 0.0
  %702 = vmatpush1.msra.mxu0 %v637
  %703 = vmatprep.mubr.f32.mxu0 %v627
  %704 = vmatmul.mubr.f32.gmra.mrb[0].mxu0 %v14
  %v705 = vpop.f32.mrb[0].mxu0
  %v706 = vadd.f32 0.0, %v705
  %v707 = vpop.f32.mrb[0].mxu0
  %708 = vmatprep.mubr.f32.mxu0 %v630
  %709 = vmatmul.mubr.f32.gmra.mrb[0].mxu0 %v16
  %v710 = vpop.f32.mrb[0].mxu0
  %v711 = vadd.f32 0.0, %v710
  %v712 = vpop.f32.mrb[0].mxu0
  %713 = vmatprep.mubr.f32.mxu0 %v633
  %714 = vmatmul.mubr.f32.gmra.mrb[0].mxu0 %v18
  %v715 = vpop.f32.mrb[0].mxu0
  %v716 = vadd.f32 0.0, %v715
  %v717 = vpop.f32.mrb[0].mxu0
  %718 = vdwg.mxu0
  %v720 = vsel %vm635, %v624, 0
  %722 = vmatprep.subr.mxu0 0.0
  %723 = vmatpush1.msra.mxu0 %v593
  %724 = vmatprep.subr.mxu0 0.0
  %725 = vmatpush1.msra.mxu0 %v594
  %726 = vmatprep.subr.mxu0 0.0
  %727 = vmatpush1.msra.mxu0 %v595
  %728 = vmatprep.subr.mxu0 0.0
  %729 = vmatpush1.msra.mxu0 %v596
  %730 = vmatprep.subr.mxu0 0.0
  %731 = vmatpush1.msra.mxu0 %v597
  %732 = vmatprep.subr.mxu0 0.0
  %733 = vmatpush1.msra.mxu0 %v598
  %734 = vmatprep.subr.mxu0 0.0
  %735 = vmatpush1.msra.mxu0 %v599
  %736 = vmatprep.subr.mxu0 0.0
  %737 = vmatpush1.msra.mxu0 %v600
  %738 = vmatprep.subr.mxu0 0.0
  %739 = vmatpush1.msra.mxu0 %v601
  %740 = vmatprep.subr.mxu0 0.0
  %741 = vmatpush1.msra.mxu0 %v602
  %742 = vmatprep.subr.mxu0 0.0
  %743 = vmatpush1.msra.mxu0 %v603
  %744 = vmatprep.subr.mxu0 0.0
  %745 = vmatpush1.msra.mxu0 %v604
  %746 = vmatprep.subr.mxu0 0.0
  %747 = vmatpush1.msra.mxu0 %v605
  %748 = vmatprep.subr.mxu0 0.0
  %749 = vmatpush1.msra.mxu0 %v606
  %750 = vmatprep.subr.mxu0 0.0
  %751 = vmatpush1.msra.mxu0 %v607
  %752 = vmatprep.subr.mxu0 0.0
  %753 = vmatpush1.msra.mxu0 %v608
  %754 = vmatprep.subr.mxu0 0.0
  %755 = vmatpush1.msra.mxu0 %v609
  %756 = vmatprep.subr.mxu0 0.0
  %757 = vmatpush1.msra.mxu0 %v610
  %758 = vmatprep.subr.mxu0 0.0
  %759 = vmatpush1.msra.mxu0 %v611
  %760 = vmatprep.subr.mxu0 0.0
  %761 = vmatpush1.msra.mxu0 %v612
  %762 = vmatprep.subr.mxu0 0.0
  %763 = vmatpush1.msra.mxu0 %v613
  %764 = vmatprep.subr.mxu0 0.0
  %765 = vmatpush1.msra.mxu0 %v614
  %766 = vmatprep.subr.mxu0 0.0
  %767 = vmatpush1.msra.mxu0 %v615
  %768 = vmatprep.subr.mxu0 0.0
  %769 = vmatpush1.msra.mxu0 %v616
  %770 = vmatprep.subr.mxu0 0.0
  %771 = vmatpush1.msra.mxu0 %v617
  %772 = vmatprep.subr.mxu0 0.0
  %773 = vmatpush1.msra.mxu0 %v618
  %774 = vmatprep.subr.mxu0 0.0
  %775 = vmatpush1.msra.mxu0 %v619
  %776 = vmatprep.subr.mxu0 0.0
  %777 = vmatpush1.msra.mxu0 %v620
  %778 = vmatprep.subr.mxu0 0.0
  %779 = vmatpush1.msra.mxu0 %v621
  %780 = vmatprep.subr.mxu0 0.0
  %781 = vmatpush1.msra.mxu0 %v622
  %782 = vmatprep.subr.mxu0 0.0
  %783 = vmatpush1.msra.mxu0 %v623
  %784 = vmatprep.subr.mxu0 0.0
  %785 = vmatpush1.msra.mxu0 %v720
  %786 = vmatprep.mubr.f32.mxu0 %v627
  %787 = vmatmul.mubr.f32.gmra.mrb[0].mxu0 %v14
  %v788 = vpop.f32.mrb[0].mxu0
  %v789 = vadd.f32 0.0, %v788
  %v790 = vpop.f32.mrb[0].mxu0
  %791 = vmatprep.mubr.f32.mxu0 %v630
  %792 = vmatmul.mubr.f32.gmra.mrb[0].mxu0 %v16
  %v793 = vpop.f32.mrb[0].mxu0
  %v794 = vadd.f32 0.0, %v793
  %v795 = vpop.f32.mrb[0].mxu0
  %796 = vmatprep.mubr.f32.mxu0 %v633
  %797 = vmatmul.mubr.f32.gmra.mrb[0].mxu0 %v18
  %v798 = vpop.f32.mrb[0].mxu0
  %v799 = vadd.f32 0.0, %v798
  %v800 = vpop.f32.mrb[0].mxu0
  %801 = vdwg.mxu0
  %v802 = vld [vmem:[%s30] sm:$0xff]
  %v803 = vld [vmem:[%s30 + $0x8] sm:$0x3]
  %v804 = vld [vmem:[%s30 + $0x40] sm:$0xff]
  %v805 = vld [vmem:[%s30 + $0x48] sm:$0x3]
  %806 = vst.msk [vmem:[#allocation2] sm:$0xff] %vm24, %v802
  %807 = vst.msk [vmem:[#allocation2 + $0x8] sm:$0x3] %vm26, %v803
  %808 = vst.msk [vmem:[#allocation2 + $0x100] sm:$0xff] %vm24, %v804
  %809 = vst.msk [vmem:[#allocation2 + $0x108] sm:$0x3] %vm26, %v805
  %v810 = vld [vmem:[%s0] sm:$0xff]
  %v811 = vld [vmem:[%s0 + $0x8] sm:$0x3]
  %v812 = vld [vmem:[%s0 + $0x40] sm:$0xff]
  %v813 = vld [vmem:[%s0 + $0x48] sm:$0x3]
  %818 = vrot.lane.b32.xlu0 %v810, 127
  %v819 = vpop.permute.xlu0 %818
  %820 = vrot.lane.b32.xlu0 %v811, 127
  %v821 = vpop.permute.xlu0 %820
  %822 = vrot.lane.b32.xlu0 %v812, 127
  %v823 = vpop.permute.xlu0 %822
  %824 = vrot.lane.b32.xlu0 %v813, 127
  %v825 = vpop.permute.xlu0 %824
  %830 = vst.msk [vmem:[#allocation2 + $0xa] sm:$0xff] %vm24, %v819
  %831 = vst.msk [vmem:[#allocation2 + $0x12] sm:$0x3] %vm26, %v821
  %832 = vst.msk [vmem:[#allocation2 + $0x10a] sm:$0xff] %vm24, %v823
  %833 = vst.msk [vmem:[#allocation2 + $0x112] sm:$0x3] %vm26, %v825
  %v834 = vld [vmem:[%s30] sm:$0xff]
  %v835 = vld [vmem:[%s30 + $0x8] sm:$0x3]
  %v836 = vld [vmem:[%s30 + $0x40] sm:$0xff]
  %v837 = vld [vmem:[%s30 + $0x48] sm:$0x3]
  %842 = vrot.lane.b32.xlu0 %v834, 127
  %v843 = vpop.permute.xlu0 %842
  %844 = vrot.lane.b32.xlu0 %v835, 127
  %v845 = vpop.permute.xlu0 %844
  %846 = vrot.lane.b32.xlu0 %v836, 127
  %v847 = vpop.permute.xlu0 %846
  %848 = vrot.lane.b32.xlu0 %v837, 127
  %v849 = vpop.permute.xlu0 %848
  %854 = vst.msk [vmem:[#allocation2 + $0x14] sm:$0xff] %vm24, %v843
  %855 = vst.msk [vmem:[#allocation2 + $0x1c] sm:$0x3] %vm26, %v845
  %856 = vst.msk [vmem:[#allocation2 + $0x114] sm:$0xff] %vm24, %v847
  %857 = vst.msk [vmem:[#allocation2 + $0x11c] sm:$0x3] %vm26, %v849
  %v858 = vld [vmem:[%s0] sm:$0xff]
  %v859 = vld [vmem:[%s0 + $0x8] sm:$0x3]
  %v860 = vld [vmem:[%s0 + $0x40] sm:$0xff]
  %v861 = vld [vmem:[%s0 + $0x48] sm:$0x3]
  %866 = vrot.lane.b32.xlu0 %v858, 126
  %v867 = vpop.permute.xlu0 %866
  %868 = vrot.lane.b32.xlu0 %v859, 126
  %v869 = vpop.permute.xlu0 %868
  %870 = vrot.lane.b32.xlu0 %v860, 126
  %v871 = vpop.permute.xlu0 %870
  %872 = vrot.lane.b32.xlu0 %v861, 126
  %v873 = vpop.permute.xlu0 %872
  %878 = vst.msk [vmem:[#allocation2 + $0x1e] sm:$0xff] %vm24, %v867
  %879 = vst.msk [vmem:[#allocation2 + $0x26] sm:$0x3] %vm26, %v869
  %880 = vst.msk [vmem:[#allocation2 + $0x11e] sm:$0xff] %vm24, %v871
  %881 = vst.msk [vmem:[#allocation2 + $0x126] sm:$0x3] %vm26, %v873
  %v882 = vld [vmem:[%s30] sm:$0xff]
  %v883 = vld [vmem:[%s30 + $0x8] sm:$0x3]
  %v884 = vld [vmem:[%s30 + $0x40] sm:$0xff]
  %v885 = vld [vmem:[%s30 + $0x48] sm:$0x3]
  %890 = vrot.lane.b32.xlu0 %v882, 126
  %v891 = vpop.permute.xlu0 %890
  %892 = vrot.lane.b32.xlu0 %v883, 126
  %v893 = vpop.permute.xlu0 %892
  %894 = vrot.lane.b32.xlu0 %v884, 126
  %v895 = vpop.permute.xlu0 %894
  %896 = vrot.lane.b32.xlu0 %v885, 126
  %v897 = vpop.permute.xlu0 %896
  %902 = vst.msk [vmem:[#allocation2 + $0x28] sm:$0xff] %vm24, %v891
  %903 = vst.msk [vmem:[#allocation2 + $0x30] sm:$0x3] %vm26, %v893
  %904 = vst.msk [vmem:[#allocation2 + $0x128] sm:$0xff] %vm24, %v895
  %905 = vst.msk [vmem:[#allocation2 + $0x130] sm:$0x3] %vm26, %v897
  %v906 = vld [vmem:[%s120] sm:$0xff]
  %v907 = vld [vmem:[%s120 + $0x8] sm:$0x3]
  %v908 = vld [vmem:[%s120 + $0x40] sm:$0xff]
  %v909 = vld [vmem:[%s120 + $0x48] sm:$0x3]
  %910 = vst.msk [vmem:[#allocation2 + $0x32] sm:$0xff] %vm24, %v906
  %911 = vst.msk [vmem:[#allocation2 + $0x3a] sm:$0x3] %vm26, %v907
  %912 = vst.msk [vmem:[#allocation2 + $0x132] sm:$0xff] %vm24, %v908
  %913 = vst.msk [vmem:[#allocation2 + $0x13a] sm:$0x3] %vm26, %v909
  %v914 = vld [vmem:[%s111] sm:$0xff]
  %v915 = vld [vmem:[%s111 + $0x8] sm:$0x3]
  %v916 = vld [vmem:[%s111 + $0x40] sm:$0xff]
  %v917 = vld [vmem:[%s111 + $0x48] sm:$0x3]
  %922 = vrot.lane.b32.xlu0 %v914, 127
  %v923 = vpop.permute.xlu0 %922
  %924 = vrot.lane.b32.xlu0 %v915, 127
  %v925 = vpop.permute.xlu0 %924
  %926 = vrot.lane.b32.xlu0 %v916, 127
  %v927 = vpop.permute.xlu0 %926
  %928 = vrot.lane.b32.xlu0 %v917, 127
  %v929 = vpop.permute.xlu0 %928
  %934 = vst.msk [vmem:[#allocation2 + $0x3c] sm:$0xff] %vm24, %v923
  %935 = vst.msk [vmem:[#allocation2 + $0x44] sm:$0x3] %vm26, %v925
  %936 = vst.msk [vmem:[#allocation2 + $0x13c] sm:$0xff] %vm24, %v927
  %937 = vst.msk [vmem:[#allocation2 + $0x144] sm:$0x3] %vm26, %v929
  %v938 = vld [vmem:[%s120] sm:$0xff]
  %v939 = vld [vmem:[%s120 + $0x8] sm:$0x3]
  %v940 = vld [vmem:[%s120 + $0x40] sm:$0xff]
  %v941 = vld [vmem:[%s120 + $0x48] sm:$0x3]
  %946 = vrot.lane.b32.xlu0 %v938, 127
  %v947 = vpop.permute.xlu0 %946
  %948 = vrot.lane.b32.xlu0 %v939, 127
  %v949 = vpop.permute.xlu0 %948
  %950 = vrot.lane.b32.xlu0 %v940, 127
  %v951 = vpop.permute.xlu0 %950
  %952 = vrot.lane.b32.xlu0 %v941, 127
  %v953 = vpop.permute.xlu0 %952
  %958 = vst.msk [vmem:[#allocation2 + $0x46] sm:$0xff] %vm24, %v947
  %959 = vst.msk [vmem:[#allocation2 + $0x4e] sm:$0x3] %vm26, %v949
  %960 = vst.msk [vmem:[#allocation2 + $0x146] sm:$0xff] %vm24, %v951
  %961 = vst.msk [vmem:[#allocation2 + $0x14e] sm:$0x3] %vm26, %v953
  %v962 = vld [vmem:[%s111] sm:$0xff]
  %v963 = vld [vmem:[%s111 + $0x8] sm:$0x3]
  %v964 = vld [vmem:[%s111 + $0x40] sm:$0xff]
  %v965 = vld [vmem:[%s111 + $0x48] sm:$0x3]
  %970 = vrot.lane.b32.xlu0 %v962, 126
  %v971 = vpop.permute.xlu0 %970
  %972 = vrot.lane.b32.xlu0 %v963, 126
  %v973 = vpop.permute.xlu0 %972
  %974 = vrot.lane.b32.xlu0 %v964, 126
  %v975 = vpop.permute.xlu0 %974
  %976 = vrot.lane.b32.xlu0 %v965, 126
  %v977 = vpop.permute.xlu0 %976
  %982 = vst.msk [vmem:[#allocation2 + $0x50] sm:$0xff] %vm24, %v971
  %983 = vst.msk [vmem:[#allocation2 + $0x58] sm:$0x3] %vm26, %v973
  %984 = vst.msk [vmem:[#allocation2 + $0x150] sm:$0xff] %vm24, %v975
  %985 = vst.msk [vmem:[#allocation2 + $0x158] sm:$0x3] %vm26, %v977
  %v986 = vld [vmem:[%s120] sm:$0xff]
  %v987 = vld [vmem:[%s120 + $0x8] sm:$0x3]
  %v988 = vld [vmem:[%s120 + $0x40] sm:$0xff]
  %v989 = vld [vmem:[%s120 + $0x48] sm:$0x3]
  %994 = vrot.lane.b32.xlu0 %v986, 126
  %v995 = vpop.permute.xlu0 %994
  %996 = vrot.lane.b32.xlu0 %v987, 126
  %v997 = vpop.permute.xlu0 %996
  %998 = vrot.lane.b32.xlu0 %v988, 126
  %v999 = vpop.permute.xlu0 %998
  %1000 = vrot.lane.b32.xlu0 %v989, 126
  %v1001 = vpop.permute.xlu0 %1000
  %1006 = vst.msk [vmem:[#allocation2 + $0x5a] sm:$0xff] %vm24, %v995
  %1007 = vst.msk [vmem:[#allocation2 + $0x62] sm:$0x3] %vm26, %v997
  %1008 = vst.msk [vmem:[#allocation2 + $0x15a] sm:$0xff] %vm24, %v999
  %1009 = vst.msk [vmem:[#allocation2 + $0x162] sm:$0x3] %vm26, %v1001
  %v1010 = vld [vmem:[%s30] sm:$0xff]
  %v1011 = vld [vmem:[%s30 + $0x8] sm:$0x3]
  %v1012 = vld [vmem:[%s30 + $0x40] sm:$0xff]
  %v1013 = vld [vmem:[%s30 + $0x48] sm:$0x3]
  %1018 = vrot.lane.b32.xlu0 %v1010, 122
  %v1019 = vpop.permute.xlu0 %1018
  %1020 = vrot.lane.b32.xlu0 %v1011, 122
  %v1021 = vpop.permute.xlu0 %1020
  %1022 = vrot.lane.b32.xlu0 %v1012, 122
  %v1023 = vpop.permute.xlu0 %1022
  %1024 = vrot.lane.b32.xlu0 %v1013, 122
  %v1025 = vpop.permute.xlu0 %1024
  %1030 = vst.msk [vmem:[#allocation2 + $0x64] sm:$0xff] %vm24, %v1019
  %1031 = vst.msk [vmem:[#allocation2 + $0x6c] sm:$0x3] %vm26, %v1021
  %1032 = vst.msk [vmem:[#allocation2 + $0x164] sm:$0xff] %vm24, %v1023
  %1033 = vst.msk [vmem:[#allocation2 + $0x16c] sm:$0x3] %vm26, %v1025
  %v1034 = vld [vmem:[%s0] sm:$0xff]
  %v1035 = vld [vmem:[%s0 + $0x8] sm:$0x3]
  %v1036 = vld [vmem:[%s0 + $0x40] sm:$0xff]
  %v1037 = vld [vmem:[%s0 + $0x48] sm:$0x3]
  %1042 = vrot.lane.b32.xlu0 %v1034, 121
  %v1043 = vpop.permute.xlu0 %1042
  %1044 = vrot.lane.b32.xlu0 %v1035, 121
  %v1045 = vpop.permute.xlu0 %1044
  %1046 = vrot.lane.b32.xlu0 %v1036, 121
  %v1047 = vpop.permute.xlu0 %1046
  %1048 = vrot.lane.b32.xlu0 %v1037, 121
  %v1049 = vpop.permute.xlu0 %1048
  %1054 = vst.msk [vmem:[#allocation2 + $0x6e] sm:$0xff] %vm24, %v1043
  %1055 = vst.msk [vmem:[#allocation2 + $0x76] sm:$0x3] %vm26, %v1045
  %1056 = vst.msk [vmem:[#allocation2 + $0x16e] sm:$0xff] %vm24, %v1047
  %1057 = vst.msk [vmem:[#allocation2 + $0x176] sm:$0x3] %vm26, %v1049
  %v1058 = vld [vmem:[%s30] sm:$0xff]
  %v1059 = vld [vmem:[%s30 + $0x8] sm:$0x3]
  %v1060 = vld [vmem:[%s30 + $0x40] sm:$0xff]
  %v1061 = vld [vmem:[%s30 + $0x48] sm:$0x3]
  %1066 = vrot.lane.b32.xlu0 %v1058, 121
  %v1067 = vpop.permute.xlu0 %1066
  %1068 = vrot.lane.b32.xlu0 %v1059, 121
  %v1069 = vpop.permute.xlu0 %1068
  %1070 = vrot.lane.b32.xlu0 %v1060, 121
  %v1071 = vpop.permute.xlu0 %1070
  %1072 = vrot.lane.b32.xlu0 %v1061, 121
  %v1073 = vpop.permute.xlu0 %1072
  %1078 = vst.msk [vmem:[#allocation2 + $0x78] sm:$0xff] %vm24, %v1067
  %1079 = vst.msk [vmem:[#allocation2 + $0x80] sm:$0x3] %vm26, %v1069
  %1080 = vst.msk [vmem:[#allocation2 + $0x178] sm:$0xff] %vm24, %v1071
  %1081 = vst.msk [vmem:[#allocation2 + $0x180] sm:$0x3] %vm26, %v1073
  %v1082 = vld [vmem:[%s0] sm:$0xff]
  %v1083 = vld [vmem:[%s0 + $0x8] sm:$0x3]
  %v1084 = vld [vmem:[%s0 + $0x40] sm:$0xff]
  %v1085 = vld [vmem:[%s0 + $0x48] sm:$0x3]
  %1090 = vrot.lane.b32.xlu0 %v1082, 120
  %v1091 = vpop.permute.xlu0 %1090
  %1092 = vrot.lane.b32.xlu0 %v1083, 120
  %v1093 = vpop.permute.xlu0 %1092
  %1094 = vrot.lane.b32.xlu0 %v1084, 120
  %v1095 = vpop.permute.xlu0 %1094
  %1096 = vrot.lane.b32.xlu0 %v1085, 120
  %v1097 = vpop.permute.xlu0 %1096
  %1102 = vst.msk [vmem:[#allocation2 + $0x82] sm:$0xff] %vm24, %v1091
  %1103 = vst.msk [vmem:[#allocation2 + $0x8a] sm:$0x3] %vm26, %v1093
  %1104 = vst.msk [vmem:[#allocation2 + $0x182] sm:$0xff] %vm24, %v1095
  %1105 = vst.msk [vmem:[#allocation2 + $0x18a] sm:$0x3] %vm26, %v1097
  %v1106 = vld [vmem:[%s30] sm:$0xff]
  %v1107 = vld [vmem:[%s30 + $0x8] sm:$0x3]
  %v1108 = vld [vmem:[%s30 + $0x40] sm:$0xff]
  %v1109 = vld [vmem:[%s30 + $0x48] sm:$0x3]
  %1114 = vrot.lane.b32.xlu0 %v1106, 120
  %v1115 = vpop.permute.xlu0 %1114
  %1116 = vrot.lane.b32.xlu0 %v1107, 120
  %v1117 = vpop.permute.xlu0 %1116
  %1118 = vrot.lane.b32.xlu0 %v1108, 120
  %v1119 = vpop.permute.xlu0 %1118
  %1120 = vrot.lane.b32.xlu0 %v1109, 120
  %v1121 = vpop.permute.xlu0 %1120
  %1126 = vst.msk [vmem:[#allocation2 + $0x8c] sm:$0xff] %vm24, %v1115
  %1127 = vst.msk [vmem:[#allocation2 + $0x94] sm:$0x3] %vm26, %v1117
  %1128 = vst.msk [vmem:[#allocation2 + $0x18c] sm:$0xff] %vm24, %v1119
  %1129 = vst.msk [vmem:[#allocation2 + $0x194] sm:$0x3] %vm26, %v1121
  %v1130 = vld [vmem:[%s120] sm:$0xff]
  %v1131 = vld [vmem:[%s120 + $0x8] sm:$0x3]
  %v1132 = vld [vmem:[%s120 + $0x40] sm:$0xff]
  %v1133 = vld [vmem:[%s120 + $0x48] sm:$0x3]
  %1138 = vrot.lane.b32.xlu0 %v1130, 122
  %v1139 = vpop.permute.xlu0 %1138
  %1140 = vrot.lane.b32.xlu0 %v1131, 122
  %v1141 = vpop.permute.xlu0 %1140
  %1142 = vrot.lane.b32.xlu0 %v1132, 122
  %v1143 = vpop.permute.xlu0 %1142
  %1144 = vrot.lane.b32.xlu0 %v1133, 122
  %v1145 = vpop.permute.xlu0 %1144
  %1150 = vst.msk [vmem:[#allocation2 + $0x96] sm:$0xff] %vm24, %v1139
  %1151 = vst.msk [vmem:[#allocation2 + $0x9e] sm:$0x3] %vm26, %v1141
  %1152 = vst.msk [vmem:[#allocation2 + $0x196] sm:$0xff] %vm24, %v1143
  %1153 = vst.msk [vmem:[#allocation2 + $0x19e] sm:$0x3] %vm26, %v1145
  %v1154 = vld [vmem:[%s111] sm:$0xff]
  %v1155 = vld [vmem:[%s111 + $0x8] sm:$0x3]
  %v1156 = vld [vmem:[%s111 + $0x40] sm:$0xff]
  %v1157 = vld [vmem:[%s111 + $0x48] sm:$0x3]
  %1162 = vrot.lane.b32.xlu0 %v1154, 121
  %v1163 = vpop.permute.xlu0 %1162
  %1164 = vrot.lane.b32.xlu0 %v1155, 121
  %v1165 = vpop.permute.xlu0 %1164
  %1166 = vrot.lane.b32.xlu0 %v1156, 121
  %v1167 = vpop.permute.xlu0 %1166
  %1168 = vrot.lane.b32.xlu0 %v1157, 121
  %v1169 = vpop.permute.xlu0 %1168
  %1174 = vst.msk [vmem:[#allocation2 + $0xa0] sm:$0xff] %vm24, %v1163
  %1175 = vst.msk [vmem:[#allocation2 + $0xa8] sm:$0x3] %vm26, %v1165
  %1176 = vst.msk [vmem:[#allocation2 + $0x1a0] sm:$0xff] %vm24, %v1167
  %1177 = vst.msk [vmem:[#allocation2 + $0x1a8] sm:$0x3] %vm26, %v1169
  %v1178 = vld [vmem:[%s120] sm:$0xff]
  %v1179 = vld [vmem:[%s120 + $0x8] sm:$0x3]
  %v1180 = vld [vmem:[%s120 + $0x40] sm:$0xff]
  %v1181 = vld [vmem:[%s120 + $0x48] sm:$0x3]
  %1186 = vrot.lane.b32.xlu0 %v1178, 121
  %v1187 = vpop.permute.xlu0 %1186
  %1188 = vrot.lane.b32.xlu0 %v1179, 121
  %v1189 = vpop.permute.xlu0 %1188
  %1190 = vrot.lane.b32.xlu0 %v1180, 121
  %v1191 = vpop.permute.xlu0 %1190
  %1192 = vrot.lane.b32.xlu0 %v1181, 121
  %v1193 = vpop.permute.xlu0 %1192
  %1198 = vst.msk [vmem:[#allocation2 + $0xaa] sm:$0xff] %vm24, %v1187
  %1199 = vst.msk [vmem:[#allocation2 + $0xb2] sm:$0x3] %vm26, %v1189
  %1200 = vst.msk [vmem:[#allocation2 + $0x1aa] sm:$0xff] %vm24, %v1191
  %1201 = vst.msk [vmem:[#allocation2 + $0x1b2] sm:$0x3] %vm26, %v1193
  %v1202 = vld [vmem:[%s111] sm:$0xff]
  %v1203 = vld [vmem:[%s111 + $0x8] sm:$0x3]
  %v1204 = vld [vmem:[%s111 + $0x40] sm:$0xff]
  %v1205 = vld [vmem:[%s111 + $0x48] sm:$0x3]
  %1210 = vrot.lane.b32.xlu0 %v1202, 120
  %v1211 = vpop.permute.xlu0 %1210
  %1212 = vrot.lane.b32.xlu0 %v1203, 120
  %v1213 = vpop.permute.xlu0 %1212
  %1214 = vrot.lane.b32.xlu0 %v1204, 120
  %v1215 = vpop.permute.xlu0 %1214
  %1216 = vrot.lane.b32.xlu0 %v1205, 120
  %v1217 = vpop.permute.xlu0 %1216
  %1222 = vst.msk [vmem:[#allocation2 + $0xb4] sm:$0xff] %vm24, %v1211
  %1223 = vst.msk [vmem:[#allocation2 + $0xbc] sm:$0x3] %vm26, %v1213
  %1224 = vst.msk [vmem:[#allocation2 + $0x1b4] sm:$0xff] %vm24, %v1215
  %1225 = vst.msk [vmem:[#allocation2 + $0x1bc] sm:$0x3] %vm26, %v1217
  %v1226 = vld [vmem:[%s120] sm:$0xff]
  %v1227 = vld [vmem:[%s120 + $0x8] sm:$0x3]
  %v1228 = vld [vmem:[%s120 + $0x40] sm:$0xff]
  %v1229 = vld [vmem:[%s120 + $0x48] sm:$0x3]
  %1234 = vrot.lane.b32.xlu0 %v1226, 120
  %v1235 = vpop.permute.xlu0 %1234
  %1236 = vrot.lane.b32.xlu0 %v1227, 120
  %v1237 = vpop.permute.xlu0 %1236
  %1238 = vrot.lane.b32.xlu0 %v1228, 120
  %v1239 = vpop.permute.xlu0 %1238
  %1240 = vrot.lane.b32.xlu0 %v1229, 120
  %v1241 = vpop.permute.xlu0 %1240
  %1246 = vst.msk [vmem:[#allocation2 + $0xbe] sm:$0xff] %vm24, %v1235
  %1247 = vst.msk [vmem:[#allocation2 + $0xc6] sm:$0x3] %vm26, %v1237
  %1248 = vst.msk [vmem:[#allocation2 + $0x1be] sm:$0xff] %vm24, %v1239
  %1249 = vst.msk [vmem:[#allocation2 + $0x1c6] sm:$0x3] %vm26, %v1241
  %v1250 = vld [vmem:[%s30] sm:$0xff]
  %v1251 = vld [vmem:[%s30 + $0x8] sm:$0x3]
  %v1252 = vld [vmem:[%s30 + $0x40] sm:$0xff]
  %v1253 = vld [vmem:[%s30 + $0x48] sm:$0x3]
  %1258 = vrot.lane.b32.xlu0 %v1250, 116
  %v1259 = vpop.permute.xlu0 %1258
  %1260 = vrot.lane.b32.xlu0 %v1251, 116
  %v1261 = vpop.permute.xlu0 %1260
  %1262 = vrot.lane.b32.xlu0 %v1252, 116
  %v1263 = vpop.permute.xlu0 %1262
  %1264 = vrot.lane.b32.xlu0 %v1253, 116
  %v1265 = vpop.permute.xlu0 %1264
  %1270 = vst.msk [vmem:[#allocation2 + $0xc8] sm:$0xff] %vm24, %v1259
  %1271 = vst.msk [vmem:[#allocation2 + $0xd0] sm:$0x3] %vm26, %v1261
  %1272 = vst.msk [vmem:[#allocation2 + $0x1c8] sm:$0xff] %vm24, %v1263
  %1273 = vst.msk [vmem:[#allocation2 + $0x1d0] sm:$0x3] %vm26, %v1265
  %v1274 = vld [vmem:[%s0] sm:$0xff]
  %v1275 = vld [vmem:[%s0 + $0x8] sm:$0x3]
  %v1276 = vld [vmem:[%s0 + $0x40] sm:$0xff]
  %v1277 = vld [vmem:[%s0 + $0x48] sm:$0x3]
  %1282 = vrot.lane.b32.xlu0 %v1274, 115
  %v1283 = vpop.permute.xlu0 %1282
  %1284 = vrot.lane.b32.xlu0 %v1275, 115
  %v1285 = vpop.permute.xlu0 %1284
  %1286 = vrot.lane.b32.xlu0 %v1276, 115
  %v1287 = vpop.permute.xlu0 %1286
  %1288 = vrot.lane.b32.xlu0 %v1277, 115
  %v1289 = vpop.permute.xlu0 %1288
  %1294 = vst.msk [vmem:[#allocation2 + $0xd2] sm:$0xff] %vm24, %v1283
  %1295 = vst.msk [vmem:[#allocation2 + $0xda] sm:$0x3] %vm26, %v1285
  %1296 = vst.msk [vmem:[#allocation2 + $0x1d2] sm:$0xff] %vm24, %v1287
  %1297 = vst.msk [vmem:[#allocation2 + $0x1da] sm:$0x3] %vm26, %v1289
  %v1298 = vld [vmem:[%s30] sm:$0xff]
  %v1299 = vld [vmem:[%s30 + $0x8] sm:$0x3]
  %v1300 = vld [vmem:[%s30 + $0x40] sm:$0xff]
  %v1301 = vld [vmem:[%s30 + $0x48] sm:$0x3]
  %1306 = vrot.lane.b32.xlu0 %v1298, 115
  %v1307 = vpop.permute.xlu0 %1306
  %1308 = vrot.lane.b32.xlu0 %v1299, 115
  %v1309 = vpop.permute.xlu0 %1308
  %1310 = vrot.lane.b32.xlu0 %v1300, 115
  %v1311 = vpop.permute.xlu0 %1310
  %1312 = vrot.lane.b32.xlu0 %v1301, 115
  %v1313 = vpop.permute.xlu0 %1312
  %1318 = vst.msk [vmem:[#allocation2 + $0xdc] sm:$0xff] %vm24, %v1307
  %1319 = vst.msk [vmem:[#allocation2 + $0xe4] sm:$0x3] %vm26, %v1309
  %1320 = vst.msk [vmem:[#allocation2 + $0x1dc] sm:$0xff] %vm24, %v1311
  %1321 = vst.msk [vmem:[#allocation2 + $0x1e4] sm:$0x3] %vm26, %v1313
  %v1322 = vld [vmem:[%s0] sm:$0xff]
  %v1323 = vld [vmem:[%s0 + $0x8] sm:$0x3]
  %v1324 = vld [vmem:[%s0 + $0x40] sm:$0xff]
  %v1325 = vld [vmem:[%s0 + $0x48] sm:$0x3]
  %1330 = vrot.lane.b32.xlu0 %v1322, 114
  %v1331 = vpop.permute.xlu0 %1330
  %1332 = vrot.lane.b32.xlu0 %v1323, 114
  %v1333 = vpop.permute.xlu0 %1332
  %1334 = vrot.lane.b32.xlu0 %v1324, 114
  %v1335 = vpop.permute.xlu0 %1334
  %1336 = vrot.lane.b32.xlu0 %v1325, 114
  %v1337 = vpop.permute.xlu0 %1336
  %1342 = vst.msk [vmem:[#allocation2 + $0xe6] sm:$0xff] %vm24, %v1331
  %1343 = vst.msk [vmem:[#allocation2 + $0xee] sm:$0x3] %vm26, %v1333
  %1344 = vst.msk [vmem:[#allocation2 + $0x1e6] sm:$0xff] %vm24, %v1335
  %1345 = vst.msk [vmem:[#allocation2 + $0x1ee] sm:$0x3] %vm26, %v1337
  %v1346 = vld [vmem:[%s30] sm:$0xff]
  %v1347 = vld [vmem:[%s30 + $0x8] sm:$0x3]
  %v1348 = vld [vmem:[%s30 + $0x40] sm:$0xff]
  %v1349 = vld [vmem:[%s30 + $0x48] sm:$0x3]
  %1354 = vrot.lane.b32.xlu0 %v1346, 114
  %v1355 = vpop.permute.xlu0 %1354
  %1356 = vrot.lane.b32.xlu0 %v1347, 114
  %v1357 = vpop.permute.xlu0 %1356
  %1358 = vrot.lane.b32.xlu0 %v1348, 114
  %v1359 = vpop.permute.xlu0 %1358
  %1360 = vrot.lane.b32.xlu0 %v1349, 114
  %v1361 = vpop.permute.xlu0 %1360
  %1366 = vst.msk [vmem:[#allocation2 + $0xf0] sm:$0xff] %vm24, %v1355
  %1367 = vst.msk [vmem:[#allocation2 + $0xf8] sm:$0x3] %vm26, %v1357
  %1368 = vst.msk [vmem:[#allocation2 + $0x1f0] sm:$0xff] %vm24, %v1359
  %1369 = vst.msk [vmem:[#allocation2 + $0x1f8] sm:$0x3] %vm26, %v1361
  %v1370 = vld [vmem:[#allocation2] sm:$0xff]
  %v1371 = vld [vmem:[#allocation2 + $0x8] sm:$0xff]
  %v1372 = vld [vmem:[#allocation2 + $0x10] sm:$0xff]
  %v1373 = vld [vmem:[#allocation2 + $0x18] sm:$0xff]
  %v1374 = vld [vmem:[#allocation2 + $0x20] sm:$0xff]
  %v1375 = vld [vmem:[#allocation2 + $0x28] sm:$0xff]
  %v1376 = vld [vmem:[#allocation2 + $0x30] sm:$0xff]
  %v1377 = vld [vmem:[#allocation2 + $0x38] sm:$0xff]
  %v1378 = vld [vmem:[#allocation2 + $0x40] sm:$0xff]
  %v1379 = vld [vmem:[#allocation2 + $0x48] sm:$0xff]
  %v1380 = vld [vmem:[#allocation2 + $0x50] sm:$0xff]
  %v1381 = vld [vmem:[#allocation2 + $0x58] sm:$0xff]
  %v1382 = vld [vmem:[#allocation2 + $0x60] sm:$0xff]
  %v1383 = vld [vmem:[#allocation2 + $0x68] sm:$0xff]
  %v1384 = vld [vmem:[#allocation2 + $0x70] sm:$0xff]
  %v1385 = vld [vmem:[#allocation2 + $0x78] sm:$0xff]
  %v1386 = vld [vmem:[#allocation2 + $0x80] sm:$0xff]
  %v1387 = vld [vmem:[#allocation2 + $0x88] sm:$0xff]
  %v1388 = vld [vmem:[#allocation2 + $0x90] sm:$0xff]
  %v1389 = vld [vmem:[#allocation2 + $0x98] sm:$0xff]
  %v1390 = vld [vmem:[#allocation2 + $0xa0] sm:$0xff]
  %v1391 = vld [vmem:[#allocation2 + $0xa8] sm:$0xff]
  %v1392 = vld [vmem:[#allocation2 + $0xb0] sm:$0xff]
  %v1393 = vld [vmem:[#allocation2 + $0xb8] sm:$0xff]
  %v1394 = vld [vmem:[#allocation2 + $0xc0] sm:$0xff]
  %v1395 = vld [vmem:[#allocation2 + $0xc8] sm:$0xff]
  %v1396 = vld [vmem:[#allocation2 + $0xd0] sm:$0xff]
  %v1397 = vld [vmem:[#allocation2 + $0xd8] sm:$0xff]
  %v1398 = vld [vmem:[#allocation2 + $0xe0] sm:$0xff]
  %v1399 = vld [vmem:[#allocation2 + $0xe8] sm:$0xff]
  %v1400 = vld [vmem:[#allocation2 + $0xf0] sm:$0xff]
  %v1401 = vld [vmem:[#allocation2 + $0xf8] sm:$0x3]
  %v1402 = vld [vmem:[#allocation2 + $0x100] sm:$0xff]
  %v1403 = vld [vmem:[#allocation2 + $0x108] sm:$0xff]
  %v1404 = vld [vmem:[#allocation2 + $0x110] sm:$0xff]
  %v1405 = vld [vmem:[#allocation2 + $0x118] sm:$0xff]
  %v1406 = vld [vmem:[#allocation2 + $0x120] sm:$0xff]
  %v1407 = vld [vmem:[#allocation2 + $0x128] sm:$0xff]
  %v1408 = vld [vmem:[#allocation2 + $0x130] sm:$0xff]
  %v1409 = vld [vmem:[#allocation2 + $0x138] sm:$0xff]
  %v1410 = vld [vmem:[#allocation2 + $0x140] sm:$0xff]
  %v1411 = vld [vmem:[#allocation2 + $0x148] sm:$0xff]
  %v1412 = vld [vmem:[#allocation2 + $0x150] sm:$0xff]
  %v1413 = vld [vmem:[#allocation2 + $0x158] sm:$0xff]
  %v1414 = vld [vmem:[#allocation2 + $0x160] sm:$0xff]
  %v1415 = vld [vmem:[#allocation2 + $0x168] sm:$0xff]
  %v1416 = vld [vmem:[#allocation2 + $0x170] sm:$0xff]
  %v1417 = vld [vmem:[#allocation2 + $0x178] sm:$0xff]
  %v1418 = vld [vmem:[#allocation2 + $0x180] sm:$0xff]
  %v1419 = vld [vmem:[#allocation2 + $0x188] sm:$0xff]
  %v1420 = vld [vmem:[#allocation2 + $0x190] sm:$0xff]
  %v1421 = vld [vmem:[#allocation2 + $0x198] sm:$0xff]
  %v1422 = vld [vmem:[#allocation2 + $0x1a0] sm:$0xff]
  %v1423 = vld [vmem:[#allocation2 + $0x1a8] sm:$0xff]
  %v1424 = vld [vmem:[#allocation2 + $0x1b0] sm:$0xff]
  %v1425 = vld [vmem:[#allocation2 + $0x1b8] sm:$0xff]
  %v1426 = vld [vmem:[#allocation2 + $0x1c0] sm:$0xff]
  %v1427 = vld [vmem:[#allocation2 + $0x1c8] sm:$0xff]
  %v1428 = vld [vmem:[#allocation2 + $0x1d0] sm:$0xff]
  %v1429 = vld [vmem:[#allocation2 + $0x1d8] sm:$0xff]
  %v1430 = vld [vmem:[#allocation2 + $0x1e0] sm:$0xff]
  %v1431 = vld [vmem:[#allocation2 + $0x1e8] sm:$0xff]
  %v1432 = vld [vmem:[#allocation2 + $0x1f0] sm:$0xff]
  %v1433 = vld [vmem:[#allocation2 + $0x1f8] sm:$0x3]
  %v1435 = vsel %vm635, %v1401, 0
  %1437 = vmatprep.subr.mxu0 0.0
  %1438 = vmatpush1.msra.mxu0 %v1370
  %1439 = vmatprep.subr.mxu0 0.0
  %1440 = vmatpush1.msra.mxu0 %v1371
  %1441 = vmatprep.subr.mxu0 0.0
  %1442 = vmatpush1.msra.mxu0 %v1372
  %1443 = vmatprep.subr.mxu0 0.0
  %1444 = vmatpush1.msra.mxu0 %v1373
  %1445 = vmatprep.subr.mxu0 0.0
  %1446 = vmatpush1.msra.mxu0 %v1374
  %1447 = vmatprep.subr.mxu0 0.0
  %1448 = vmatpush1.msra.mxu0 %v1375
  %1449 = vmatprep.subr.mxu0 0.0
  %1450 = vmatpush1.msra.mxu0 %v1376
  %1451 = vmatprep.subr.mxu0 0.0
  %1452 = vmatpush1.msra.mxu0 %v1377
  %1453 = vmatprep.subr.mxu0 0.0
  %1454 = vmatpush1.msra.mxu0 %v1378
  %1455 = vmatprep.subr.mxu0 0.0
  %1456 = vmatpush1.msra.mxu0 %v1379
  %1457 = vmatprep.subr.mxu0 0.0
  %1458 = vmatpush1.msra.mxu0 %v1380
  %1459 = vmatprep.subr.mxu0 0.0
  %1460 = vmatpush1.msra.mxu0 %v1381
  %1461 = vmatprep.subr.mxu0 0.0
  %1462 = vmatpush1.msra.mxu0 %v1382
  %1463 = vmatprep.subr.mxu0 0.0
  %1464 = vmatpush1.msra.mxu0 %v1383
  %1465 = vmatprep.subr.mxu0 0.0
  %1466 = vmatpush1.msra.mxu0 %v1384
  %1467 = vmatprep.subr.mxu0 0.0
  %1468 = vmatpush1.msra.mxu0 %v1385
  %1469 = vmatprep.subr.mxu0 0.0
  %1470 = vmatpush1.msra.mxu0 %v1386
  %1471 = vmatprep.subr.mxu0 0.0
  %1472 = vmatpush1.msra.mxu0 %v1387
  %1473 = vmatprep.subr.mxu0 0.0
  %1474 = vmatpush1.msra.mxu0 %v1388
  %1475 = vmatprep.subr.mxu0 0.0
  %1476 = vmatpush1.msra.mxu0 %v1389
  %1477 = vmatprep.subr.mxu0 0.0
  %1478 = vmatpush1.msra.mxu0 %v1390
  %1479 = vmatprep.subr.mxu0 0.0
  %1480 = vmatpush1.msra.mxu0 %v1391
  %1481 = vmatprep.subr.mxu0 0.0
  %1482 = vmatpush1.msra.mxu0 %v1392
  %1483 = vmatprep.subr.mxu0 0.0
  %1484 = vmatpush1.msra.mxu0 %v1393
  %1485 = vmatprep.subr.mxu0 0.0
  %1486 = vmatpush1.msra.mxu0 %v1394
  %1487 = vmatprep.subr.mxu0 0.0
  %1488 = vmatpush1.msra.mxu0 %v1395
  %1489 = vmatprep.subr.mxu0 0.0
  %1490 = vmatpush1.msra.mxu0 %v1396
  %1491 = vmatprep.subr.mxu0 0.0
  %1492 = vmatpush1.msra.mxu0 %v1397
  %1493 = vmatprep.subr.mxu0 0.0
  %1494 = vmatpush1.msra.mxu0 %v1398
  %1495 = vmatprep.subr.mxu0 0.0
  %1496 = vmatpush1.msra.mxu0 %v1399
  %1497 = vmatprep.subr.mxu0 0.0
  %1498 = vmatpush1.msra.mxu0 %v1400
  %1499 = vmatprep.subr.mxu0 0.0
  %1500 = vmatpush1.msra.mxu0 %v1435
  %1501 = vmatprep.mubr.f32.mxu0 %v627
  %1502 = vmatmul.mubr.f32.gmra.mrb[0].mxu0 %v14
  %v1503 = vpop.f32.mrb[0].mxu0
  %v1504 = vadd.f32 0.0, %v1503
  %v1505 = vpop.f32.mrb[0].mxu0
  %1506 = vmatprep.mubr.f32.mxu0 %v630
  %1507 = vmatmul.mubr.f32.gmra.mrb[0].mxu0 %v16
  %v1508 = vpop.f32.mrb[0].mxu0
  %v1509 = vadd.f32 0.0, %v1508
  %v1510 = vpop.f32.mrb[0].mxu0
  %1511 = vmatprep.mubr.f32.mxu0 %v633
  %1512 = vmatmul.mubr.f32.gmra.mrb[0].mxu0 %v18
  %v1513 = vpop.f32.mrb[0].mxu0
  %v1514 = vadd.f32 0.0, %v1513
  %v1515 = vpop.f32.mrb[0].mxu0
  %1516 = vdwg.mxu0
  %v1518 = vsel %vm635, %v1433, 0
  %1520 = vmatprep.subr.mxu0 0.0
  %1521 = vmatpush1.msra.mxu0 %v1402
  %1522 = vmatprep.subr.mxu0 0.0
  %1523 = vmatpush1.msra.mxu0 %v1403
  %1524 = vmatprep.subr.mxu0 0.0
  %1525 = vmatpush1.msra.mxu0 %v1404
  %1526 = vmatprep.subr.mxu0 0.0
  %1527 = vmatpush1.msra.mxu0 %v1405
  %1528 = vmatprep.subr.mxu0 0.0
  %1529 = vmatpush1.msra.mxu0 %v1406
  %1530 = vmatprep.subr.mxu0 0.0
  %1531 = vmatpush1.msra.mxu0 %v1407
  %1532 = vmatprep.subr.mxu0 0.0
  %1533 = vmatpush1.msra.mxu0 %v1408
  %1534 = vmatprep.subr.mxu0 0.0
  %1535 = vmatpush1.msra.mxu0 %v1409
  %1536 = vmatprep.subr.mxu0 0.0
  %1537 = vmatpush1.msra.mxu0 %v1410
  %1538 = vmatprep.subr.mxu0 0.0
  %1539 = vmatpush1.msra.mxu0 %v1411
  %1540 = vmatprep.subr.mxu0 0.0
  %1541 = vmatpush1.msra.mxu0 %v1412
  %1542 = vmatprep.subr.mxu0 0.0
  %1543 = vmatpush1.msra.mxu0 %v1413
  %1544 = vmatprep.subr.mxu0 0.0
  %1545 = vmatpush1.msra.mxu0 %v1414
  %1546 = vmatprep.subr.mxu0 0.0
  %1547 = vmatpush1.msra.mxu0 %v1415
  %1548 = vmatprep.subr.mxu0 0.0
  %1549 = vmatpush1.msra.mxu0 %v1416
  %1550 = vmatprep.subr.mxu0 0.0
  %1551 = vmatpush1.msra.mxu0 %v1417
  %1552 = vmatprep.subr.mxu0 0.0
  %1553 = vmatpush1.msra.mxu0 %v1418
  %1554 = vmatprep.subr.mxu0 0.0
  %1555 = vmatpush1.msra.mxu0 %v1419
  %1556 = vmatprep.subr.mxu0 0.0
  %1557 = vmatpush1.msra.mxu0 %v1420
  %1558 = vmatprep.subr.mxu0 0.0
  %1559 = vmatpush1.msra.mxu0 %v1421
  %1560 = vmatprep.subr.mxu0 0.0
  %1561 = vmatpush1.msra.mxu0 %v1422
  %1562 = vmatprep.subr.mxu0 0.0
  %1563 = vmatpush1.msra.mxu0 %v1423
  %1564 = vmatprep.subr.mxu0 0.0
  %1565 = vmatpush1.msra.mxu0 %v1424
  %1566 = vmatprep.subr.mxu0 0.0
  %1567 = vmatpush1.msra.mxu0 %v1425
  %1568 = vmatprep.subr.mxu0 0.0
  %1569 = vmatpush1.msra.mxu0 %v1426
  %1570 = vmatprep.subr.mxu0 0.0
  %1571 = vmatpush1.msra.mxu0 %v1427
  %1572 = vmatprep.subr.mxu0 0.0
  %1573 = vmatpush1.msra.mxu0 %v1428
  %1574 = vmatprep.subr.mxu0 0.0
  %1575 = vmatpush1.msra.mxu0 %v1429
  %1576 = vmatprep.subr.mxu0 0.0
  %1577 = vmatpush1.msra.mxu0 %v1430
  %1578 = vmatprep.subr.mxu0 0.0
  %1579 = vmatpush1.msra.mxu0 %v1431
  %1580 = vmatprep.subr.mxu0 0.0
  %1581 = vmatpush1.msra.mxu0 %v1432
  %1582 = vmatprep.subr.mxu0 0.0
  %1583 = vmatpush1.msra.mxu0 %v1518
  %1584 = vmatprep.mubr.f32.mxu0 %v627
  %1585 = vmatmul.mubr.f32.gmra.mrb[0].mxu0 %v14
  %v1586 = vpop.f32.mrb[0].mxu0
  %v1587 = vadd.f32 0.0, %v1586
  %v1588 = vpop.f32.mrb[0].mxu0
  %1589 = vmatprep.mubr.f32.mxu0 %v630
  %1590 = vmatmul.mubr.f32.gmra.mrb[0].mxu0 %v16
  %v1591 = vpop.f32.mrb[0].mxu0
  %v1592 = vadd.f32 0.0, %v1591
  %v1593 = vpop.f32.mrb[0].mxu0
  %1594 = vmatprep.mubr.f32.mxu0 %v633
  %1595 = vmatmul.mubr.f32.gmra.mrb[0].mxu0 %v18
  %v1596 = vpop.f32.mrb[0].mxu0
  %v1597 = vadd.f32 0.0, %v1596
  %v1598 = vpop.f32.mrb[0].mxu0
  %1599 = vdwg.mxu0
  %v1600 = vmax.f32 %v706, %v1504
  %v1601 = vmax.f32 %v711, %v1509
  %v1602 = vmax.f32 %v716, %v1514
  %v1603 = vmax.f32 %v789, %v1587
  %v1604 = vmax.f32 %v794, %v1592
  %v1605 = vmax.f32 %v799, %v1597
  %v1606 = vld [vmem:[%s111] sm:$0xff]
  %v1607 = vld [vmem:[%s111 + $0x8] sm:$0x3]
  %v1608 = vld [vmem:[%s111 + $0x40] sm:$0xff]
  %v1609 = vld [vmem:[%s111 + $0x48] sm:$0x3]
  %1610 = vst.msk [vmem:[#allocation2] sm:$0xff] %vm24, %v1606
  %1611 = vst.msk [vmem:[#allocation2 + $0x8] sm:$0x3] %vm26, %v1607
  %1612 = vst.msk [vmem:[#allocation2 + $0x100] sm:$0xff] %vm24, %v1608
  %1613 = vst.msk [vmem:[#allocation2 + $0x108] sm:$0x3] %vm26, %v1609
  %v1614 = vld [vmem:[%s120] sm:$0xff]
  %v1615 = vld [vmem:[%s120 + $0x8] sm:$0x3]
  %v1616 = vld [vmem:[%s120 + $0x40] sm:$0xff]
  %v1617 = vld [vmem:[%s120 + $0x48] sm:$0x3]
  %1618 = vst.msk [vmem:[#allocation2 + $0xa] sm:$0xff] %vm24, %v1614
  %1619 = vst.msk [vmem:[#allocation2 + $0x12] sm:$0x3] %vm26, %v1615
  %1620 = vst.msk [vmem:[#allocation2 + $0x10a] sm:$0xff] %vm24, %v1616
  %1621 = vst.msk [vmem:[#allocation2 + $0x112] sm:$0x3] %vm26, %v1617
  %v1622 = vld [vmem:[%s111] sm:$0xff]
  %v1623 = vld [vmem:[%s111 + $0x8] sm:$0x3]
  %v1624 = vld [vmem:[%s111 + $0x40] sm:$0xff]
  %v1625 = vld [vmem:[%s111 + $0x48] sm:$0x3]
  %1630 = vrot.lane.b32.xlu0 %v1622, 127
  %v1631 = vpop.permute.xlu0 %1630
  %1632 = vrot.lane.b32.xlu0 %v1623, 127
  %v1633 = vpop.permute.xlu0 %1632
  %1634 = vrot.lane.b32.xlu0 %v1624, 127
  %v1635 = vpop.permute.xlu0 %1634
  %1636 = vrot.lane.b32.xlu0 %v1625, 127
  %v1637 = vpop.permute.xlu0 %1636
  %1642 = vst.msk [vmem:[#allocation2 + $0x14] sm:$0xff] %vm24, %v1631
  %1643 = vst.msk [vmem:[#allocation2 + $0x1c] sm:$0x3] %vm26, %v1633
  %1644 = vst.msk [vmem:[#allocation2 + $0x114] sm:$0xff] %vm24, %v1635
  %1645 = vst.msk [vmem:[#allocation2 + $0x11c] sm:$0x3] %vm26, %v1637
  %v1646 = vld [vmem:[%s120] sm:$0xff]
  %v1647 = vld [vmem:[%s120 + $0x8] sm:$0x3]
  %v1648 = vld [vmem:[%s120 + $0x40] sm:$0xff]
  %v1649 = vld [vmem:[%s120 + $0x48] sm:$0x3]
  %1654 = vrot.lane.b32.xlu0 %v1646, 127
  %v1655 = vpop.permute.xlu0 %1654
  %1656 = vrot.lane.b32.xlu0 %v1647, 127
  %v1657 = vpop.permute.xlu0 %1656
  %1658 = vrot.lane.b32.xlu0 %v1648, 127
  %v1659 = vpop.permute.xlu0 %1658
  %1660 = vrot.lane.b32.xlu0 %v1649, 127
  %v1661 = vpop.permute.xlu0 %1660
  %1666 = vst.msk [vmem:[#allocation2 + $0x1e] sm:$0xff] %vm24, %v1655
  %1667 = vst.msk [vmem:[#allocation2 + $0x26] sm:$0x3] %vm26, %v1657
  %1668 = vst.msk [vmem:[#allocation2 + $0x11e] sm:$0xff] %vm24, %v1659
  %1669 = vst.msk [vmem:[#allocation2 + $0x126] sm:$0x3] %vm26, %v1661
  %v1670 = vld [vmem:[%s111] sm:$0xff]
  %v1671 = vld [vmem:[%s111 + $0x8] sm:$0x3]
  %v1672 = vld [vmem:[%s111 + $0x40] sm:$0xff]
  %v1673 = vld [vmem:[%s111 + $0x48] sm:$0x3]
  %1678 = vrot.lane.b32.xlu0 %v1670, 126
  %v1679 = vpop.permute.xlu0 %1678
  %1680 = vrot.lane.b32.xlu0 %v1671, 126
  %v1681 = vpop.permute.xlu0 %1680
  %1682 = vrot.lane.b32.xlu0 %v1672, 126
  %v1683 = vpop.permute.xlu0 %1682
  %1684 = vrot.lane.b32.xlu0 %v1673, 126
  %v1685 = vpop.permute.xlu0 %1684
  %1690 = vst.msk [vmem:[#allocation2 + $0x28] sm:$0xff] %vm24, %v1679
  %1691 = vst.msk [vmem:[#allocation2 + $0x30] sm:$0x3] %vm26, %v1681
  %1692 = vst.msk [vmem:[#allocation2 + $0x128] sm:$0xff] %vm24, %v1683
  %1693 = vst.msk [vmem:[#allocation2 + $0x130] sm:$0x3] %vm26, %v1685
  %v1694 = vld [vmem:[%s0] sm:$0xff]
  %v1695 = vld [vmem:[%s0 + $0x8] sm:$0x3]
  %v1696 = vld [vmem:[%s0 + $0x40] sm:$0xff]
  %v1697 = vld [vmem:[%s0 + $0x48] sm:$0x3]
  %1702 = vrot.lane.b32.xlu0 %v1694, 122
  %v1703 = vpop.permute.xlu0 %1702
  %1704 = vrot.lane.b32.xlu0 %v1695, 122
  %v1705 = vpop.permute.xlu0 %1704
  %1706 = vrot.lane.b32.xlu0 %v1696, 122
  %v1707 = vpop.permute.xlu0 %1706
  %1708 = vrot.lane.b32.xlu0 %v1697, 122
  %v1709 = vpop.permute.xlu0 %1708
  %1714 = vst.msk [vmem:[#allocation2 + $0x32] sm:$0xff] %vm24, %v1703
  %1715 = vst.msk [vmem:[#allocation2 + $0x3a] sm:$0x3] %vm26, %v1705
  %1716 = vst.msk [vmem:[#allocation2 + $0x132] sm:$0xff] %vm24, %v1707
  %1717 = vst.msk [vmem:[#allocation2 + $0x13a] sm:$0x3] %vm26, %v1709
  %v1718 = vld [vmem:[%s30] sm:$0xff]
  %v1719 = vld [vmem:[%s30 + $0x8] sm:$0x3]
  %v1720 = vld [vmem:[%s30 + $0x40] sm:$0xff]
  %v1721 = vld [vmem:[%s30 + $0x48] sm:$0x3]
  %1726 = vrot.lane.b32.xlu0 %v1718, 122
  %v1727 = vpop.permute.xlu0 %1726
  %1728 = vrot.lane.b32.xlu0 %v1719, 122
  %v1729 = vpop.permute.xlu0 %1728
  %1730 = vrot.lane.b32.xlu0 %v1720, 122
  %v1731 = vpop.permute.xlu0 %1730
  %1732 = vrot.lane.b32.xlu0 %v1721, 122
  %v1733 = vpop.permute.xlu0 %1732
  %1738 = vst.msk [vmem:[#allocation2 + $0x3c] sm:$0xff] %vm24, %v1727
  %1739 = vst.msk [vmem:[#allocation2 + $0x44] sm:$0x3] %vm26, %v1729
  %1740 = vst.msk [vmem:[#allocation2 + $0x13c] sm:$0xff] %vm24, %v1731
  %1741 = vst.msk [vmem:[#allocation2 + $0x144] sm:$0x3] %vm26, %v1733
  %v1742 = vld [vmem:[%s0] sm:$0xff]
  %v1743 = vld [vmem:[%s0 + $0x8] sm:$0x3]
  %v1744 = vld [vmem:[%s0 + $0x40] sm:$0xff]
  %v1745 = vld [vmem:[%s0 + $0x48] sm:$0x3]
  %1750 = vrot.lane.b32.xlu0 %v1742, 121
  %v1751 = vpop.permute.xlu0 %1750
  %1752 = vrot.lane.b32.xlu0 %v1743, 121
  %v1753 = vpop.permute.xlu0 %1752
  %1754 = vrot.lane.b32.xlu0 %v1744, 121
  %v1755 = vpop.permute.xlu0 %1754
  %1756 = vrot.lane.b32.xlu0 %v1745, 121
  %v1757 = vpop.permute.xlu0 %1756
  %1762 = vst.msk [vmem:[#allocation2 + $0x46] sm:$0xff] %vm24, %v1751
  %1763 = vst.msk [vmem:[#allocation2 + $0x4e] sm:$0x3] %vm26, %v1753
  %1764 = vst.msk [vmem:[#allocation2 + $0x146] sm:$0xff] %vm24, %v1755
  %1765 = vst.msk [vmem:[#allocation2 + $0x14e] sm:$0x3] %vm26, %v1757
  %v1766 = vld [vmem:[%s30] sm:$0xff]
  %v1767 = vld [vmem:[%s30 + $0x8] sm:$0x3]
  %v1768 = vld [vmem:[%s30 + $0x40] sm:$0xff]
  %v1769 = vld [vmem:[%s30 + $0x48] sm:$0x3]
  %1774 = vrot.lane.b32.xlu0 %v1766, 121
  %v1775 = vpop.permute.xlu0 %1774
  %1776 = vrot.lane.b32.xlu0 %v1767, 121
  %v1777 = vpop.permute.xlu0 %1776
  %1778 = vrot.lane.b32.xlu0 %v1768, 121
  %v1779 = vpop.permute.xlu0 %1778
  %1780 = vrot.lane.b32.xlu0 %v1769, 121
  %v1781 = vpop.permute.xlu0 %1780
  %1786 = vst.msk [vmem:[#allocation2 + $0x50] sm:$0xff] %vm24, %v1775
  %1787 = vst.msk [vmem:[#allocation2 + $0x58] sm:$0x3] %vm26, %v1777
  %1788 = vst.msk [vmem:[#allocation2 + $0x150] sm:$0xff] %vm24, %v1779
  %1789 = vst.msk [vmem:[#allocation2 + $0x158] sm:$0x3] %vm26, %v1781
  %v1790 = vld [vmem:[%s0] sm:$0xff]
  %v1791 = vld [vmem:[%s0 + $0x8] sm:$0x3]
  %v1792 = vld [vmem:[%s0 + $0x40] sm:$0xff]
  %v1793 = vld [vmem:[%s0 + $0x48] sm:$0x3]
  %1798 = vrot.lane.b32.xlu0 %v1790, 120
  %v1799 = vpop.permute.xlu0 %1798
  %1800 = vrot.lane.b32.xlu0 %v1791, 120
  %v1801 = vpop.permute.xlu0 %1800
  %1802 = vrot.lane.b32.xlu0 %v1792, 120
  %v1803 = vpop.permute.xlu0 %1802
  %1804 = vrot.lane.b32.xlu0 %v1793, 120
  %v1805 = vpop.permute.xlu0 %1804
  %1810 = vst.msk [vmem:[#allocation2 + $0x5a] sm:$0xff] %vm24, %v1799
  %1811 = vst.msk [vmem:[#allocation2 + $0x62] sm:$0x3] %vm26, %v1801
  %1812 = vst.msk [vmem:[#allocation2 + $0x15a] sm:$0xff] %vm24, %v1803
  %1813 = vst.msk [vmem:[#allocation2 + $0x162] sm:$0x3] %vm26, %v1805
  %v1814 = vld [vmem:[%s111] sm:$0xff]
  %v1815 = vld [vmem:[%s111 + $0x8] sm:$0x3]
  %v1816 = vld [vmem:[%s111 + $0x40] sm:$0xff]
  %v1817 = vld [vmem:[%s111 + $0x48] sm:$0x3]
  %1822 = vrot.lane.b32.xlu0 %v1814, 122
  %v1823 = vpop.permute.xlu0 %1822
  %1824 = vrot.lane.b32.xlu0 %v1815, 122
  %v1825 = vpop.permute.xlu0 %1824
  %1826 = vrot.lane.b32.xlu0 %v1816, 122
  %v1827 = vpop.permute.xlu0 %1826
  %1828 = vrot.lane.b32.xlu0 %v1817, 122
  %v1829 = vpop.permute.xlu0 %1828
  %1834 = vst.msk [vmem:[#allocation2 + $0x64] sm:$0xff] %vm24, %v1823
  %1835 = vst.msk [vmem:[#allocation2 + $0x6c] sm:$0x3] %vm26, %v1825
  %1836 = vst.msk [vmem:[#allocation2 + $0x164] sm:$0xff] %vm24, %v1827
  %1837 = vst.msk [vmem:[#allocation2 + $0x16c] sm:$0x3] %vm26, %v1829
  %v1838 = vld [vmem:[%s120] sm:$0xff]
  %v1839 = vld [vmem:[%s120 + $0x8] sm:$0x3]
  %v1840 = vld [vmem:[%s120 + $0x40] sm:$0xff]
  %v1841 = vld [vmem:[%s120 + $0x48] sm:$0x3]
  %1846 = vrot.lane.b32.xlu0 %v1838, 122
  %v1847 = vpop.permute.xlu0 %1846
  %1848 = vrot.lane.b32.xlu0 %v1839, 122
  %v1849 = vpop.permute.xlu0 %1848
  %1850 = vrot.lane.b32.xlu0 %v1840, 122
  %v1851 = vpop.permute.xlu0 %1850
  %1852 = vrot.lane.b32.xlu0 %v1841, 122
  %v1853 = vpop.permute.xlu0 %1852
  %1858 = vst.msk [vmem:[#allocation2 + $0x6e] sm:$0xff] %vm24, %v1847
  %1859 = vst.msk [vmem:[#allocation2 + $0x76] sm:$0x3] %vm26, %v1849
  %1860 = vst.msk [vmem:[#allocation2 + $0x16e] sm:$0xff] %vm24, %v1851
  %1861 = vst.msk [vmem:[#allocation2 + $0x176] sm:$0x3] %vm26, %v1853
  %v1862 = vld [vmem:[%s111] sm:$0xff]
  %v1863 = vld [vmem:[%s111 + $0x8] sm:$0x3]
  %v1864 = vld [vmem:[%s111 + $0x40] sm:$0xff]
  %v1865 = vld [vmem:[%s111 + $0x48] sm:$0x3]
  %1870 = vrot.lane.b32.xlu0 %v1862, 121
  %v1871 = vpop.permute.xlu0 %1870
  %1872 = vrot.lane.b32.xlu0 %v1863, 121
  %v1873 = vpop.permute.xlu0 %1872
  %1874 = vrot.lane.b32.xlu0 %v1864, 121
  %v1875 = vpop.permute.xlu0 %1874
  %1876 = vrot.lane.b32.xlu0 %v1865, 121
  %v1877 = vpop.permute.xlu0 %1876
  %1882 = vst.msk [vmem:[#allocation2 + $0x78] sm:$0xff] %vm24, %v1871
  %1883 = vst.msk [vmem:[#allocation2 + $0x80] sm:$0x3] %vm26, %v1873
  %1884 = vst.msk [vmem:[#allocation2 + $0x178] sm:$0xff] %vm24, %v1875
  %1885 = vst.msk [vmem:[#allocation2 + $0x180] sm:$0x3] %vm26, %v1877
  %v1886 = vld [vmem:[%s120] sm:$0xff]
  %v1887 = vld [vmem:[%s120 + $0x8] sm:$0x3]
  %v1888 = vld [vmem:[%s120 + $0x40] sm:$0xff]
  %v1889 = vld [vmem:[%s120 + $0x48] sm:$0x3]
  %1894 = vrot.lane.b32.xlu0 %v1886, 121
  %v1895 = vpop.permute.xlu0 %1894
  %1896 = vrot.lane.b32.xlu0 %v1887, 121
  %v1897 = vpop.permute.xlu0 %1896
  %1898 = vrot.lane.b32.xlu0 %v1888, 121
  %v1899 = vpop.permute.xlu0 %1898
  %1900 = vrot.lane.b32.xlu0 %v1889, 121
  %v1901 = vpop.permute.xlu0 %1900
  %1906 = vst.msk [vmem:[#allocation2 + $0x82] sm:$0xff] %vm24, %v1895
  %1907 = vst.msk [vmem:[#allocation2 + $0x8a] sm:$0x3] %vm26, %v1897
  %1908 = vst.msk [vmem:[#allocation2 + $0x182] sm:$0xff] %vm24, %v1899
  %1909 = vst.msk [vmem:[#allocation2 + $0x18a] sm:$0x3] %vm26, %v1901
  %v1910 = vld [vmem:[%s111] sm:$0xff]
  %v1911 = vld [vmem:[%s111 + $0x8] sm:$0x3]
  %v1912 = vld [vmem:[%s111 + $0x40] sm:$0xff]
  %v1913 = vld [vmem:[%s111 + $0x48] sm:$0x3]
  %1918 = vrot.lane.b32.xlu0 %v1910, 120
  %v1919 = vpop.permute.xlu0 %1918
  %1920 = vrot.lane.b32.xlu0 %v1911, 120
  %v1921 = vpop.permute.xlu0 %1920
  %1922 = vrot.lane.b32.xlu0 %v1912, 120
  %v1923 = vpop.permute.xlu0 %1922
  %1924 = vrot.lane.b32.xlu0 %v1913, 120
  %v1925 = vpop.permute.xlu0 %1924
  %1930 = vst.msk [vmem:[#allocation2 + $0x8c] sm:$0xff] %vm24, %v1919
  %1931 = vst.msk [vmem:[#allocation2 + $0x94] sm:$0x3] %vm26, %v1921
  %1932 = vst.msk [vmem:[#allocation2 + $0x18c] sm:$0xff] %vm24, %v1923
  %1933 = vst.msk [vmem:[#allocation2 + $0x194] sm:$0x3] %vm26, %v1925
  %v1934 = vld [vmem:[%s0] sm:$0xff]
  %v1935 = vld [vmem:[%s0 + $0x8] sm:$0x3]
  %v1936 = vld [vmem:[%s0 + $0x40] sm:$0xff]
  %v1937 = vld [vmem:[%s0 + $0x48] sm:$0x3]
  %1942 = vrot.lane.b32.xlu0 %v1934, 116
  %v1943 = vpop.permute.xlu0 %1942
  %1944 = vrot.lane.b32.xlu0 %v1935, 116
  %v1945 = vpop.permute.xlu0 %1944
  %1946 = vrot.lane.b32.xlu0 %v1936, 116
  %v1947 = vpop.permute.xlu0 %1946
  %1948 = vrot.lane.b32.xlu0 %v1937, 116
  %v1949 = vpop.permute.xlu0 %1948
  %1954 = vst.msk [vmem:[#allocation2 + $0x96] sm:$0xff] %vm24, %v1943
  %1955 = vst.msk [vmem:[#allocation2 + $0x9e] sm:$0x3] %vm26, %v1945
  %1956 = vst.msk [vmem:[#allocation2 + $0x196] sm:$0xff] %vm24, %v1947
  %1957 = vst.msk [vmem:[#allocation2 + $0x19e] sm:$0x3] %vm26, %v1949
  %v1958 = vld [vmem:[%s30] sm:$0xff]
  %v1959 = vld [vmem:[%s30 + $0x8] sm:$0x3]
  %v1960 = vld [vmem:[%s30 + $0x40] sm:$0xff]
  %v1961 = vld [vmem:[%s30 + $0x48] sm:$0x3]
  %1966 = vrot.lane.b32.xlu0 %v1958, 116
  %v1967 = vpop.permute.xlu0 %1966
  %1968 = vrot.lane.b32.xlu0 %v1959, 116
  %v1969 = vpop.permute.xlu0 %1968
  %1970 = vrot.lane.b32.xlu0 %v1960, 116
  %v1971 = vpop.permute.xlu0 %1970
  %1972 = vrot.lane.b32.xlu0 %v1961, 116
  %v1973 = vpop.permute.xlu0 %1972
  %1978 = vst.msk [vmem:[#allocation2 + $0xa0] sm:$0xff] %vm24, %v1967
  %1979 = vst.msk [vmem:[#allocation2 + $0xa8] sm:$0x3] %vm26, %v1969
  %1980 = vst.msk [vmem:[#allocation2 + $0x1a0] sm:$0xff] %vm24, %v1971
  %1981 = vst.msk [vmem:[#allocation2 + $0x1a8] sm:$0x3] %vm26, %v1973
  %v1982 = vld [vmem:[%s0] sm:$0xff]
  %v1983 = vld [vmem:[%s0 + $0x8] sm:$0x3]
  %v1984 = vld [vmem:[%s0 + $0x40] sm:$0xff]
  %v1985 = vld [vmem:[%s0 + $0x48] sm:$0x3]
  %1990 = vrot.lane.b32.xlu0 %v1982, 115
  %v1991 = vpop.permute.xlu0 %1990
  %1992 = vrot.lane.b32.xlu0 %v1983, 115
  %v1993 = vpop.permute.xlu0 %1992
  %1994 = vrot.lane.b32.xlu0 %v1984, 115
  %v1995 = vpop.permute.xlu0 %1994
  %1996 = vrot.lane.b32.xlu0 %v1985, 115
  %v1997 = vpop.permute.xlu0 %1996
  %2002 = vst.msk [vmem:[#allocation2 + $0xaa] sm:$0xff] %vm24, %v1991
  %2003 = vst.msk [vmem:[#allocation2 + $0xb2] sm:$0x3] %vm26, %v1993
  %2004 = vst.msk [vmem:[#allocation2 + $0x1aa] sm:$0xff] %vm24, %v1995
  %2005 = vst.msk [vmem:[#allocation2 + $0x1b2] sm:$0x3] %vm26, %v1997
  %v2006 = vld [vmem:[%s30] sm:$0xff]
  %v2007 = vld [vmem:[%s30 + $0x8] sm:$0x3]
  %v2008 = vld [vmem:[%s30 + $0x40] sm:$0xff]
  %v2009 = vld [vmem:[%s30 + $0x48] sm:$0x3]
  %2014 = vrot.lane.b32.xlu0 %v2006, 115
  %v2015 = vpop.permute.xlu0 %2014
  %2016 = vrot.lane.b32.xlu0 %v2007, 115
  %v2017 = vpop.permute.xlu0 %2016
  %2018 = vrot.lane.b32.xlu0 %v2008, 115
  %v2019 = vpop.permute.xlu0 %2018
  %2020 = vrot.lane.b32.xlu0 %v2009, 115
  %v2021 = vpop.permute.xlu0 %2020
  %2026 = vst.msk [vmem:[#allocation2 + $0xb4] sm:$0xff] %vm24, %v2015
  %2027 = vst.msk [vmem:[#allocation2 + $0xbc] sm:$0x3] %vm26, %v2017
  %2028 = vst.msk [vmem:[#allocation2 + $0x1b4] sm:$0xff] %vm24, %v2019
  %2029 = vst.msk [vmem:[#allocation2 + $0x1bc] sm:$0x3] %vm26, %v2021
  %v2030 = vld [vmem:[%s0] sm:$0xff]
  %v2031 = vld [vmem:[%s0 + $0x8] sm:$0x3]
  %v2032 = vld [vmem:[%s0 + $0x40] sm:$0xff]
  %v2033 = vld [vmem:[%s0 + $0x48] sm:$0x3]
  %2038 = vrot.lane.b32.xlu0 %v2030, 114
  %v2039 = vpop.permute.xlu0 %2038
  %2040 = vrot.lane.b32.xlu0 %v2031, 114
  %v2041 = vpop.permute.xlu0 %2040
  %2042 = vrot.lane.b32.xlu0 %v2032, 114
  %v2043 = vpop.permute.xlu0 %2042
  %2044 = vrot.lane.b32.xlu0 %v2033, 114
  %v2045 = vpop.permute.xlu0 %2044
  %2050 = vst.msk [vmem:[#allocation2 + $0xbe] sm:$0xff] %vm24, %v2039
  %2051 = vst.msk [vmem:[#allocation2 + $0xc6] sm:$0x3] %vm26, %v2041
  %2052 = vst.msk [vmem:[#allocation2 + $0x1be] sm:$0xff] %vm24, %v2043
  %2053 = vst.msk [vmem:[#allocation2 + $0x1c6] sm:$0x3] %vm26, %v2045
  %v2054 = vld [vmem:[%s111] sm:$0xff]
  %v2055 = vld [vmem:[%s111 + $0x8] sm:$0x3]
  %v2056 = vld [vmem:[%s111 + $0x40] sm:$0xff]
  %v2057 = vld [vmem:[%s111 + $0x48] sm:$0x3]
  %2062 = vrot.lane.b32.xlu0 %v2054, 116
  %v2063 = vpop.permute.xlu0 %2062
  %2064 = vrot.lane.b32.xlu0 %v2055, 116
  %v2065 = vpop.permute.xlu0 %2064
  %2066 = vrot.lane.b32.xlu0 %v2056, 116
  %v2067 = vpop.permute.xlu0 %2066
  %2068 = vrot.lane.b32.xlu0 %v2057, 116
  %v2069 = vpop.permute.xlu0 %2068
  %2074 = vst.msk [vmem:[#allocation2 + $0xc8] sm:$0xff] %vm24, %v2063
  %2075 = vst.msk [vmem:[#allocation2 + $0xd0] sm:$0x3] %vm26, %v2065
  %2076 = vst.msk [vmem:[#allocation2 + $0x1c8] sm:$0xff] %vm24, %v2067
  %2077 = vst.msk [vmem:[#allocation2 + $0x1d0] sm:$0x3] %vm26, %v2069
  %v2078 = vld [vmem:[%s120] sm:$0xff]
  %v2079 = vld [vmem:[%s120 + $0x8] sm:$0x3]
  %v2080 = vld [vmem:[%s120 + $0x40] sm:$0xff]
  %v2081 = vld [vmem:[%s120 + $0x48] sm:$0x3]
  %2086 = vrot.lane.b32.xlu0 %v2078, 116
  %v2087 = vpop.permute.xlu0 %2086
  %2088 = vrot.lane.b32.xlu0 %v2079, 116
  %v2089 = vpop.permute.xlu0 %2088
  %2090 = vrot.lane.b32.xlu0 %v2080, 116
  %v2091 = vpop.permute.xlu0 %2090
  %2092 = vrot.lane.b32.xlu0 %v2081, 116
  %v2093 = vpop.permute.xlu0 %2092
  %2098 = vst.msk [vmem:[#allocation2 + $0xd2] sm:$0xff] %vm24, %v2087
  %2099 = vst.msk [vmem:[#allocation2 + $0xda] sm:$0x3] %vm26, %v2089
  %2100 = vst.msk [vmem:[#allocation2 + $0x1d2] sm:$0xff] %vm24, %v2091
  %2101 = vst.msk [vmem:[#allocation2 + $0x1da] sm:$0x3] %vm26, %v2093
  %v2102 = vld [vmem:[%s111] sm:$0xff]
  %v2103 = vld [vmem:[%s111 + $0x8] sm:$0x3]
  %v2104 = vld [vmem:[%s111 + $0x40] sm:$0xff]
  %v2105 = vld [vmem:[%s111 + $0x48] sm:$0x3]
  %2110 = vrot.lane.b32.xlu0 %v2102, 115
  %v2111 = vpop.permute.xlu0 %2110
  %2112 = vrot.lane.b32.xlu0 %v2103, 115
  %v2113 = vpop.permute.xlu0 %2112
  %2114 = vrot.lane.b32.xlu0 %v2104, 115
  %v2115 = vpop.permute.xlu0 %2114
  %2116 = vrot.lane.b32.xlu0 %v2105, 115
  %v2117 = vpop.permute.xlu0 %2116
  %2122 = vst.msk [vmem:[#allocation2 + $0xdc] sm:$0xff] %vm24, %v2111
  %2123 = vst.msk [vmem:[#allocation2 + $0xe4] sm:$0x3] %vm26, %v2113
  %2124 = vst.msk [vmem:[#allocation2 + $0x1dc] sm:$0xff] %vm24, %v2115
  %2125 = vst.msk [vmem:[#allocation2 + $0x1e4] sm:$0x3] %vm26, %v2117
  %v2126 = vld [vmem:[%s120] sm:$0xff]
  %v2127 = vld [vmem:[%s120 + $0x8] sm:$0x3]
  %v2128 = vld [vmem:[%s120 + $0x40] sm:$0xff]
  %v2129 = vld [vmem:[%s120 + $0x48] sm:$0x3]
  %2134 = vrot.lane.b32.xlu0 %v2126, 115
  %v2135 = vpop.permute.xlu0 %2134
  %2136 = vrot.lane.b32.xlu0 %v2127, 115
  %v2137 = vpop.permute.xlu0 %2136
  %2138 = vrot.lane.b32.xlu0 %v2128, 115
  %v2139 = vpop.permute.xlu0 %2138
  %2140 = vrot.lane.b32.xlu0 %v2129, 115
  %v2141 = vpop.permute.xlu0 %2140
  %2146 = vst.msk [vmem:[#allocation2 + $0xe6] sm:$0xff] %vm24, %v2135
  %2147 = vst.msk [vmem:[#allocation2 + $0xee] sm:$0x3] %vm26, %v2137
  %2148 = vst.msk [vmem:[#allocation2 + $0x1e6] sm:$0xff] %vm24, %v2139
  %2149 = vst.msk [vmem:[#allocation2 + $0x1ee] sm:$0x3] %vm26, %v2141
  %v2150 = vld [vmem:[%s111] sm:$0xff]
  %v2151 = vld [vmem:[%s111 + $0x8] sm:$0x3]
  %v2152 = vld [vmem:[%s111 + $0x40] sm:$0xff]
  %v2153 = vld [vmem:[%s111 + $0x48] sm:$0x3]
  %2158 = vrot.lane.b32.xlu0 %v2150, 114
  %v2159 = vpop.permute.xlu0 %2158
  %2160 = vrot.lane.b32.xlu0 %v2151, 114
  %v2161 = vpop.permute.xlu0 %2160
  %2162 = vrot.lane.b32.xlu0 %v2152, 114
  %v2163 = vpop.permute.xlu0 %2162
  %2164 = vrot.lane.b32.xlu0 %v2153, 114
  %v2165 = vpop.permute.xlu0 %2164
  %2170 = vst.msk [vmem:[#allocation2 + $0xf0] sm:$0xff] %vm24, %v2159
  %2171 = vst.msk [vmem:[#allocation2 + $0xf8] sm:$0x3] %vm26, %v2161
  %2172 = vst.msk [vmem:[#allocation2 + $0x1f0] sm:$0xff] %vm24, %v2163
  %2173 = vst.msk [vmem:[#allocation2 + $0x1f8] sm:$0x3] %vm26, %v2165
  %v2174 = vld [vmem:[#allocation2] sm:$0xff]
  %v2175 = vld [vmem:[#allocation2 + $0x8] sm:$0xff]
  %v2176 = vld [vmem:[#allocation2 + $0x10] sm:$0xff]
  %v2177 = vld [vmem:[#allocation2 + $0x18] sm:$0xff]
  %v2178 = vld [vmem:[#allocation2 + $0x20] sm:$0xff]
  %v2179 = vld [vmem:[#allocation2 + $0x28] sm:$0xff]
  %v2180 = vld [vmem:[#allocation2 + $0x30] sm:$0xff]
  %v2181 = vld [vmem:[#allocation2 + $0x38] sm:$0xff]
  %v2182 = vld [vmem:[#allocation2 + $0x40] sm:$0xff]
  %v2183 = vld [vmem:[#allocation2 + $0x48] sm:$0xff]
  %v2184 = vld [vmem:[#allocation2 + $0x50] sm:$0xff]
  %v2185 = vld [vmem:[#allocation2 + $0x58] sm:$0xff]
  %v2186 = vld [vmem:[#allocation2 + $0x60] sm:$0xff]
  %v2187 = vld [vmem:[#allocation2 + $0x68] sm:$0xff]
  %v2188 = vld [vmem:[#allocation2 + $0x70] sm:$0xff]
  %v2189 = vld [vmem:[#allocation2 + $0x78] sm:$0xff]
  %v2190 = vld [vmem:[#allocation2 + $0x80] sm:$0xff]
  %v2191 = vld [vmem:[#allocation2 + $0x88] sm:$0xff]
  %v2192 = vld [vmem:[#allocation2 + $0x90] sm:$0xff]
  %v2193 = vld [vmem:[#allocation2 + $0x98] sm:$0xff]
  %v2194 = vld [vmem:[#allocation2 + $0xa0] sm:$0xff]
  %v2195 = vld [vmem:[#allocation2 + $0xa8] sm:$0xff]
  %v2196 = vld [vmem:[#allocation2 + $0xb0] sm:$0xff]
  %v2197 = vld [vmem:[#allocation2 + $0xb8] sm:$0xff]
  %v2198 = vld [vmem:[#allocation2 + $0xc0] sm:$0xff]
  %v2199 = vld [vmem:[#allocation2 + $0xc8] sm:$0xff]
  %v2200 = vld [vmem:[#allocation2 + $0xd0] sm:$0xff]
  %v2201 = vld [vmem:[#allocation2 + $0xd8] sm:$0xff]
  %v2202 = vld [vmem:[#allocation2 + $0xe0] sm:$0xff]
  %v2203 = vld [vmem:[#allocation2 + $0xe8] sm:$0xff]
  %v2204 = vld [vmem:[#allocation2 + $0xf0] sm:$0xff]
  %v2205 = vld [vmem:[#allocation2 + $0xf8] sm:$0x3]
  %v2206 = vld [vmem:[#allocation2 + $0x100] sm:$0xff]
  %v2207 = vld [vmem:[#allocation2 + $0x108] sm:$0xff]
  %v2208 = vld [vmem:[#allocation2 + $0x110] sm:$0xff]
  %v2209 = vld [vmem:[#allocation2 + $0x118] sm:$0xff]
  %v2210 = vld [vmem:[#allocation2 + $0x120] sm:$0xff]
  %v2211 = vld [vmem:[#allocation2 + $0x128] sm:$0xff]
  %v2212 = vld [vmem:[#allocation2 + $0x130] sm:$0xff]
  %v2213 = vld [vmem:[#allocation2 + $0x138] sm:$0xff]
  %v2214 = vld [vmem:[#allocation2 + $0x140] sm:$0xff]
  %v2215 = vld [vmem:[#allocation2 + $0x148] sm:$0xff]
  %v2216 = vld [vmem:[#allocation2 + $0x150] sm:$0xff]
  %v2217 = vld [vmem:[#allocation2 + $0x158] sm:$0xff]
  %v2218 = vld [vmem:[#allocation2 + $0x160] sm:$0xff]
  %v2219 = vld [vmem:[#allocation2 + $0x168] sm:$0xff]
  %v2220 = vld [vmem:[#allocation2 + $0x170] sm:$0xff]
  %v2221 = vld [vmem:[#allocation2 + $0x178] sm:$0xff]
  %v2222 = vld [vmem:[#allocation2 + $0x180] sm:$0xff]
  %v2223 = vld [vmem:[#allocation2 + $0x188] sm:$0xff]
  %v2224 = vld [vmem:[#allocation2 + $0x190] sm:$0xff]
  %v2225 = vld [vmem:[#allocation2 + $0x198] sm:$0xff]
  %v2226 = vld [vmem:[#allocation2 + $0x1a0] sm:$0xff]
  %v2227 = vld [vmem:[#allocation2 + $0x1a8] sm:$0xff]
  %v2228 = vld [vmem:[#allocation2 + $0x1b0] sm:$0xff]
  %v2229 = vld [vmem:[#allocation2 + $0x1b8] sm:$0xff]
  %v2230 = vld [vmem:[#allocation2 + $0x1c0] sm:$0xff]
  %v2231 = vld [vmem:[#allocation2 + $0x1c8] sm:$0xff]
  %v2232 = vld [vmem:[#allocation2 + $0x1d0] sm:$0xff]
  %v2233 = vld [vmem:[#allocation2 + $0x1d8] sm:$0xff]
  %v2234 = vld [vmem:[#allocation2 + $0x1e0] sm:$0xff]
  %v2235 = vld [vmem:[#allocation2 + $0x1e8] sm:$0xff]
  %v2236 = vld [vmem:[#allocation2 + $0x1f0] sm:$0xff]
  %v2237 = vld [vmem:[#allocation2 + $0x1f8] sm:$0x3]
  %v2239 = vsel %vm635, %v2205, 0
  %2241 = vmatprep.subr.mxu0 0.0
  %2242 = vmatpush1.msra.mxu0 %v2174
  %2243 = vmatprep.subr.mxu0 0.0
  %2244 = vmatpush1.msra.mxu0 %v2175
  %2245 = vmatprep.subr.mxu0 0.0
  %2246 = vmatpush1.msra.mxu0 %v2176
  %2247 = vmatprep.subr.mxu0 0.0
  %2248 = vmatpush1.msra.mxu0 %v2177
  %2249 = vmatprep.subr.mxu0 0.0
  %2250 = vmatpush1.msra.mxu0 %v2178
  %2251 = vmatprep.subr.mxu0 0.0
  %2252 = vmatpush1.msra.mxu0 %v2179
  %2253 = vmatprep.subr.mxu0 0.0
  %2254 = vmatpush1.msra.mxu0 %v2180
  %2255 = vmatprep.subr.mxu0 0.0
  %2256 = vmatpush1.msra.mxu0 %v2181
  %2257 = vmatprep.subr.mxu0 0.0
  %2258 = vmatpush1.msra.mxu0 %v2182
  %2259 = vmatprep.subr.mxu0 0.0
  %2260 = vmatpush1.msra.mxu0 %v2183
  %2261 = vmatprep.subr.mxu0 0.0
  %2262 = vmatpush1.msra.mxu0 %v2184
  %2263 = vmatprep.subr.mxu0 0.0
  %2264 = vmatpush1.msra.mxu0 %v2185
  %2265 = vmatprep.subr.mxu0 0.0
  %2266 = vmatpush1.msra.mxu0 %v2186
  %2267 = vmatprep.subr.mxu0 0.0
  %2268 = vmatpush1.msra.mxu0 %v2187
  %2269 = vmatprep.subr.mxu0 0.0
  %2270 = vmatpush1.msra.mxu0 %v2188
  %2271 = vmatprep.subr.mxu0 0.0
  %2272 = vmatpush1.msra.mxu0 %v2189
  %2273 = vmatprep.subr.mxu0 0.0
  %2274 = vmatpush1.msra.mxu0 %v2190
  %2275 = vmatprep.subr.mxu0 0.0
  %2276 = vmatpush1.msra.mxu0 %v2191
  %2277 = vmatprep.subr.mxu0 0.0
  %2278 = vmatpush1.msra.mxu0 %v2192
  %2279 = vmatprep.subr.mxu0 0.0
  %2280 = vmatpush1.msra.mxu0 %v2193
  %2281 = vmatprep.subr.mxu0 0.0
  %2282 = vmatpush1.msra.mxu0 %v2194
  %2283 = vmatprep.subr.mxu0 0.0
  %2284 = vmatpush1.msra.mxu0 %v2195
  %2285 = vmatprep.subr.mxu0 0.0
  %2286 = vmatpush1.msra.mxu0 %v2196
  %2287 = vmatprep.subr.mxu0 0.0
  %2288 = vmatpush1.msra.mxu0 %v2197
  %2289 = vmatprep.subr.mxu0 0.0
  %2290 = vmatpush1.msra.mxu0 %v2198
  %2291 = vmatprep.subr.mxu0 0.0
  %2292 = vmatpush1.msra.mxu0 %v2199
  %2293 = vmatprep.subr.mxu0 0.0
  %2294 = vmatpush1.msra.mxu0 %v2200
  %2295 = vmatprep.subr.mxu0 0.0
  %2296 = vmatpush1.msra.mxu0 %v2201
  %2297 = vmatprep.subr.mxu0 0.0
  %2298 = vmatpush1.msra.mxu0 %v2202
  %2299 = vmatprep.subr.mxu0 0.0
  %2300 = vmatpush1.msra.mxu0 %v2203
  %2301 = vmatprep.subr.mxu0 0.0
  %2302 = vmatpush1.msra.mxu0 %v2204
  %2303 = vmatprep.subr.mxu0 0.0
  %2304 = vmatpush1.msra.mxu0 %v2239
  %2305 = vmatprep.mubr.f32.mxu0 %v627
  %2306 = vmatmul.mubr.f32.gmra.mrb[0].mxu0 %v14
  %v2307 = vpop.f32.mrb[0].mxu0
  %v2308 = vadd.f32 0.0, %v2307
  %v2309 = vpop.f32.mrb[0].mxu0
  %2310 = vmatprep.mubr.f32.mxu0 %v630
  %2311 = vmatmul.mubr.f32.gmra.mrb[0].mxu0 %v16
  %v2312 = vpop.f32.mrb[0].mxu0
  %v2313 = vadd.f32 0.0, %v2312
  %v2314 = vpop.f32.mrb[0].mxu0
  %2315 = vmatprep.mubr.f32.mxu0 %v633
  %2316 = vmatmul.mubr.f32.gmra.mrb[0].mxu0 %v18
  %v2317 = vpop.f32.mrb[0].mxu0
  %v2318 = vadd.f32 0.0, %v2317
  %v2319 = vpop.f32.mrb[0].mxu0
  %2320 = vdwg.mxu0
  %v2322 = vsel %vm635, %v2237, 0
  %2324 = vmatprep.subr.mxu0 0.0
  %2325 = vmatpush1.msra.mxu0 %v2206
  %2326 = vmatprep.subr.mxu0 0.0
  %2327 = vmatpush1.msra.mxu0 %v2207
  %2328 = vmatprep.subr.mxu0 0.0
  %2329 = vmatpush1.msra.mxu0 %v2208
  %2330 = vmatprep.subr.mxu0 0.0
  %2331 = vmatpush1.msra.mxu0 %v2209
  %2332 = vmatprep.subr.mxu0 0.0
  %2333 = vmatpush1.msra.mxu0 %v2210
  %2334 = vmatprep.subr.mxu0 0.0
  %2335 = vmatpush1.msra.mxu0 %v2211
  %2336 = vmatprep.subr.mxu0 0.0
  %2337 = vmatpush1.msra.mxu0 %v2212
  %2338 = vmatprep.subr.mxu0 0.0
  %2339 = vmatpush1.msra.mxu0 %v2213
  %2340 = vmatprep.subr.mxu0 0.0
  %2341 = vmatpush1.msra.mxu0 %v2214
  %2342 = vmatprep.subr.mxu0 0.0
  %2343 = vmatpush1.msra.mxu0 %v2215
  %2344 = vmatprep.subr.mxu0 0.0
  %2345 = vmatpush1.msra.mxu0 %v2216
  %2346 = vmatprep.subr.mxu0 0.0
  %2347 = vmatpush1.msra.mxu0 %v2217
  %2348 = vmatprep.subr.mxu0 0.0
  %2349 = vmatpush1.msra.mxu0 %v2218
  %2350 = vmatprep.subr.mxu0 0.0
  %2351 = vmatpush1.msra.mxu0 %v2219
  %2352 = vmatprep.subr.mxu0 0.0
  %2353 = vmatpush1.msra.mxu0 %v2220
  %2354 = vmatprep.subr.mxu0 0.0
  %2355 = vmatpush1.msra.mxu0 %v2221
  %2356 = vmatprep.subr.mxu0 0.0
  %2357 = vmatpush1.msra.mxu0 %v2222
  %2358 = vmatprep.subr.mxu0 0.0
  %2359 = vmatpush1.msra.mxu0 %v2223
  %2360 = vmatprep.subr.mxu0 0.0
  %2361 = vmatpush1.msra.mxu0 %v2224
  %2362 = vmatprep.subr.mxu0 0.0
  %2363 = vmatpush1.msra.mxu0 %v2225
  %2364 = vmatprep.subr.mxu0 0.0
  %2365 = vmatpush1.msra.mxu0 %v2226
  %2366 = vmatprep.subr.mxu0 0.0
  %2367 = vmatpush1.msra.mxu0 %v2227
  %2368 = vmatprep.subr.mxu0 0.0
  %2369 = vmatpush1.msra.mxu0 %v2228
  %2370 = vmatprep.subr.mxu0 0.0
  %2371 = vmatpush1.msra.mxu0 %v2229
  %2372 = vmatprep.subr.mxu0 0.0
  %2373 = vmatpush1.msra.mxu0 %v2230
  %2374 = vmatprep.subr.mxu0 0.0
  %2375 = vmatpush1.msra.mxu0 %v2231
  %2376 = vmatprep.subr.mxu0 0.0
  %2377 = vmatpush1.msra.mxu0 %v2232
  %2378 = vmatprep.subr.mxu0 0.0
  %2379 = vmatpush1.msra.mxu0 %v2233
  %2380 = vmatprep.subr.mxu0 0.0
  %2381 = vmatpush1.msra.mxu0 %v2234
  %2382 = vmatprep.subr.mxu0 0.0
  %2383 = vmatpush1.msra.mxu0 %v2235
  %2384 = vmatprep.subr.mxu0 0.0
  %2385 = vmatpush1.msra.mxu0 %v2236
  %2386 = vmatprep.subr.mxu0 0.0
  %2387 = vmatpush1.msra.mxu0 %v2322
  %2388 = vmatprep.mubr.f32.mxu0 %v627
  %2389 = vmatmul.mubr.f32.gmra.mrb[0].mxu0 %v14
  %v2390 = vpop.f32.mrb[0].mxu0
  %v2391 = vadd.f32 0.0, %v2390
  %v2392 = vpop.f32.mrb[0].mxu0
  %2393 = vmatprep.mubr.f32.mxu0 %v630
  %2394 = vmatmul.mubr.f32.gmra.mrb[0].mxu0 %v16
  %v2395 = vpop.f32.mrb[0].mxu0
  %v2396 = vadd.f32 0.0, %v2395
  %v2397 = vpop.f32.mrb[0].mxu0
  %2398 = vmatprep.mubr.f32.mxu0 %v633
  %2399 = vmatmul.mubr.f32.gmra.mrb[0].mxu0 %v18
  %v2400 = vpop.f32.mrb[0].mxu0
  %v2401 = vadd.f32 0.0, %v2400
  %v2402 = vpop.f32.mrb[0].mxu0
  %2403 = vdwg.mxu0
  %v2404 = vmax.f32 %v1600, %v2308
  %v2405 = vmax.f32 %v1601, %v2313
  %v2406 = vmax.f32 %v1602, %v2318
  %v2407 = vmax.f32 %v1603, %v2391
  %v2408 = vmax.f32 %v1604, %v2396
  %v2409 = vmax.f32 %v1605, %v2401
  %v2410 = vld [vmem:[%s120] sm:$0xff]
  %v2411 = vld [vmem:[%s120 + $0x8] sm:$0x3]
  %v2412 = vld [vmem:[%s120 + $0x40] sm:$0xff]
  %v2413 = vld [vmem:[%s120 + $0x48] sm:$0x3]
  %2414 = vst.msk [vmem:[#allocation2] sm:$0xff] %vm24, %v2410
  %2415 = vst.msk [vmem:[#allocation2 + $0x8] sm:$0x3] %vm26, %v2411
  %2416 = vst.msk [vmem:[#allocation2 + $0x100] sm:$0xff] %vm24, %v2412
  %2417 = vst.msk [vmem:[#allocation2 + $0x108] sm:$0x3] %vm26, %v2413
  %v2418 = vld [vmem:[%s111] sm:$0xff]
  %v2419 = vld [vmem:[%s111 + $0x8] sm:$0x3]
  %v2420 = vld [vmem:[%s111 + $0x40] sm:$0xff]
  %v2421 = vld [vmem:[%s111 + $0x48] sm:$0x3]
  %2426 = vrot.lane.b32.xlu0 %v2418, 127
  %v2427 = vpop.permute.xlu0 %2426
  %2428 = vrot.lane.b32.xlu0 %v2419, 127
  %v2429 = vpop.permute.xlu0 %2428
  %2430 = vrot.lane.b32.xlu0 %v2420, 127
  %v2431 = vpop.permute.xlu0 %2430
  %2432 = vrot.lane.b32.xlu0 %v2421, 127
  %v2433 = vpop.permute.xlu0 %2432
  %2438 = vst.msk [vmem:[#allocation2 + $0xa] sm:$0xff] %vm24, %v2427
  %2439 = vst.msk [vmem:[#allocation2 + $0x12] sm:$0x3] %vm26, %v2429
  %2440 = vst.msk [vmem:[#allocation2 + $0x10a] sm:$0xff] %vm24, %v2431
  %2441 = vst.msk [vmem:[#allocation2 + $0x112] sm:$0x3] %vm26, %v2433
  %v2442 = vld [vmem:[%s120] sm:$0xff]
  %v2443 = vld [vmem:[%s120 + $0x8] sm:$0x3]
  %v2444 = vld [vmem:[%s120 + $0x40] sm:$0xff]
  %v2445 = vld [vmem:[%s120 + $0x48] sm:$0x3]
  %2450 = vrot.lane.b32.xlu0 %v2442, 127
  %v2451 = vpop.permute.xlu0 %2450
  %2452 = vrot.lane.b32.xlu0 %v2443, 127
  %v2453 = vpop.permute.xlu0 %2452
  %2454 = vrot.lane.b32.xlu0 %v2444, 127
  %v2455 = vpop.permute.xlu0 %2454
  %2456 = vrot.lane.b32.xlu0 %v2445, 127
  %v2457 = vpop.permute.xlu0 %2456
  %2462 = vst.msk [vmem:[#allocation2 + $0x14] sm:$0xff] %vm24, %v2451
  %2463 = vst.msk [vmem:[#allocation2 + $0x1c] sm:$0x3] %vm26, %v2453
  %2464 = vst.msk [vmem:[#allocation2 + $0x114] sm:$0xff] %vm24, %v2455
  %2465 = vst.msk [vmem:[#allocation2 + $0x11c] sm:$0x3] %vm26, %v2457
  %v2466 = vld [vmem:[%s111] sm:$0xff]
  %v2467 = vld [vmem:[%s111 + $0x8] sm:$0x3]
  %v2468 = vld [vmem:[%s111 + $0x40] sm:$0xff]
  %v2469 = vld [vmem:[%s111 + $0x48] sm:$0x3]
  %2474 = vrot.lane.b32.xlu0 %v2466, 126
  %v2475 = vpop.permute.xlu0 %2474
  %2476 = vrot.lane.b32.xlu0 %v2467, 126
  %v2477 = vpop.permute.xlu0 %2476
  %2478 = vrot.lane.b32.xlu0 %v2468, 126
  %v2479 = vpop.permute.xlu0 %2478
  %2480 = vrot.lane.b32.xlu0 %v2469, 126
  %v2481 = vpop.permute.xlu0 %2480
  %2486 = vst.msk [vmem:[#allocation2 + $0x1e] sm:$0xff] %vm24, %v2475
  %2487 = vst.msk [vmem:[#allocation2 + $0x26] sm:$0x3] %vm26, %v2477
  %2488 = vst.msk [vmem:[#allocation2 + $0x11e] sm:$0xff] %vm24, %v2479
  %2489 = vst.msk [vmem:[#allocation2 + $0x126] sm:$0x3] %vm26, %v2481
  %v2490 = vld [vmem:[%s120] sm:$0xff]
  %v2491 = vld [vmem:[%s120 + $0x8] sm:$0x3]
  %v2492 = vld [vmem:[%s120 + $0x40] sm:$0xff]
  %v2493 = vld [vmem:[%s120 + $0x48] sm:$0x3]
  %2498 = vrot.lane.b32.xlu0 %v2490, 126
  %v2499 = vpop.permute.xlu0 %2498
  %2500 = vrot.lane.b32.xlu0 %v2491, 126
  %v2501 = vpop.permute.xlu0 %2500
  %2502 = vrot.lane.b32.xlu0 %v2492, 126
  %v2503 = vpop.permute.xlu0 %2502
  %2504 = vrot.lane.b32.xlu0 %v2493, 126
  %v2505 = vpop.permute.xlu0 %2504
  %2510 = vst.msk [vmem:[#allocation2 + $0x28] sm:$0xff] %vm24, %v2499
  %2511 = vst.msk [vmem:[#allocation2 + $0x30] sm:$0x3] %vm26, %v2501
  %2512 = vst.msk [vmem:[#allocation2 + $0x128] sm:$0xff] %vm24, %v2503
  %2513 = vst.msk [vmem:[#allocation2 + $0x130] sm:$0x3] %vm26, %v2505
  %v2514 = vld [vmem:[%s30] sm:$0xff]
  %v2515 = vld [vmem:[%s30 + $0x8] sm:$0x3]
  %v2516 = vld [vmem:[%s30 + $0x40] sm:$0xff]
  %v2517 = vld [vmem:[%s30 + $0x48] sm:$0x3]
  %2522 = vrot.lane.b32.xlu0 %v2514, 122
  %v2523 = vpop.permute.xlu0 %2522
  %2524 = vrot.lane.b32.xlu0 %v2515, 122
  %v2525 = vpop.permute.xlu0 %2524
  %2526 = vrot.lane.b32.xlu0 %v2516, 122
  %v2527 = vpop.permute.xlu0 %2526
  %2528 = vrot.lane.b32.xlu0 %v2517, 122
  %v2529 = vpop.permute.xlu0 %2528
  %2534 = vst.msk [vmem:[#allocation2 + $0x32] sm:$0xff] %vm24, %v2523
  %2535 = vst.msk [vmem:[#allocation2 + $0x3a] sm:$0x3] %vm26, %v2525
  %2536 = vst.msk [vmem:[#allocation2 + $0x132] sm:$0xff] %vm24, %v2527
  %2537 = vst.msk [vmem:[#allocation2 + $0x13a] sm:$0x3] %vm26, %v2529
  %v2538 = vld [vmem:[%s0] sm:$0xff]
  %v2539 = vld [vmem:[%s0 + $0x8] sm:$0x3]
  %v2540 = vld [vmem:[%s0 + $0x40] sm:$0xff]
  %v2541 = vld [vmem:[%s0 + $0x48] sm:$0x3]
  %2546 = vrot.lane.b32.xlu0 %v2538, 121
  %v2547 = vpop.permute.xlu0 %2546
  %2548 = vrot.lane.b32.xlu0 %v2539, 121
  %v2549 = vpop.permute.xlu0 %2548
  %2550 = vrot.lane.b32.xlu0 %v2540, 121
  %v2551 = vpop.permute.xlu0 %2550
  %2552 = vrot.lane.b32.xlu0 %v2541, 121
  %v2553 = vpop.permute.xlu0 %2552
  %2558 = vst.msk [vmem:[#allocation2 + $0x3c] sm:$0xff] %vm24, %v2547
  %2559 = vst.msk [vmem:[#allocation2 + $0x44] sm:$0x3] %vm26, %v2549
  %2560 = vst.msk [vmem:[#allocation2 + $0x13c] sm:$0xff] %vm24, %v2551
  %2561 = vst.msk [vmem:[#allocation2 + $0x144] sm:$0x3] %vm26, %v2553
  %v2562 = vld [vmem:[%s30] sm:$0xff]
  %v2563 = vld [vmem:[%s30 + $0x8] sm:$0x3]
  %v2564 = vld [vmem:[%s30 + $0x40] sm:$0xff]
  %v2565 = vld [vmem:[%s30 + $0x48] sm:$0x3]
  %2570 = vrot.lane.b32.xlu0 %v2562, 121
  %v2571 = vpop.permute.xlu0 %2570
  %2572 = vrot.lane.b32.xlu0 %v2563, 121
  %v2573 = vpop.permute.xlu0 %2572
  %2574 = vrot.lane.b32.xlu0 %v2564, 121
  %v2575 = vpop.permute.xlu0 %2574
  %2576 = vrot.lane.b32.xlu0 %v2565, 121
  %v2577 = vpop.permute.xlu0 %2576
  %2582 = vst.msk [vmem:[#allocation2 + $0x46] sm:$0xff] %vm24, %v2571
  %2583 = vst.msk [vmem:[#allocation2 + $0x4e] sm:$0x3] %vm26, %v2573
  %2584 = vst.msk [vmem:[#allocation2 + $0x146] sm:$0xff] %vm24, %v2575
  %2585 = vst.msk [vmem:[#allocation2 + $0x14e] sm:$0x3] %vm26, %v2577
  %v2586 = vld [vmem:[%s0] sm:$0xff]
  %v2587 = vld [vmem:[%s0 + $0x8] sm:$0x3]
  %v2588 = vld [vmem:[%s0 + $0x40] sm:$0xff]
  %v2589 = vld [vmem:[%s0 + $0x48] sm:$0x3]
  %2594 = vrot.lane.b32.xlu0 %v2586, 120
  %v2595 = vpop.permute.xlu0 %2594
  %2596 = vrot.lane.b32.xlu0 %v2587, 120
  %v2597 = vpop.permute.xlu0 %2596
  %2598 = vrot.lane.b32.xlu0 %v2588, 120
  %v2599 = vpop.permute.xlu0 %2598
  %2600 = vrot.lane.b32.xlu0 %v2589, 120
  %v2601 = vpop.permute.xlu0 %2600
  %2606 = vst.msk [vmem:[#allocation2 + $0x50] sm:$0xff] %vm24, %v2595
  %2607 = vst.msk [vmem:[#allocation2 + $0x58] sm:$0x3] %vm26, %v2597
  %2608 = vst.msk [vmem:[#allocation2 + $0x150] sm:$0xff] %vm24, %v2599
  %2609 = vst.msk [vmem:[#allocation2 + $0x158] sm:$0x3] %vm26, %v2601
  %v2610 = vld [vmem:[%s30] sm:$0xff]
  %v2611 = vld [vmem:[%s30 + $0x8] sm:$0x3]
  %v2612 = vld [vmem:[%s30 + $0x40] sm:$0xff]
  %v2613 = vld [vmem:[%s30 + $0x48] sm:$0x3]
  %2618 = vrot.lane.b32.xlu0 %v2610, 120
  %v2619 = vpop.permute.xlu0 %2618
  %2620 = vrot.lane.b32.xlu0 %v2611, 120
  %v2621 = vpop.permute.xlu0 %2620
  %2622 = vrot.lane.b32.xlu0 %v2612, 120
  %v2623 = vpop.permute.xlu0 %2622
  %2624 = vrot.lane.b32.xlu0 %v2613, 120
  %v2625 = vpop.permute.xlu0 %2624
  %2630 = vst.msk [vmem:[#allocation2 + $0x5a] sm:$0xff] %vm24, %v2619
  %2631 = vst.msk [vmem:[#allocation2 + $0x62] sm:$0x3] %vm26, %v2621
  %2632 = vst.msk [vmem:[#allocation2 + $0x15a] sm:$0xff] %vm24, %v2623
  %2633 = vst.msk [vmem:[#allocation2 + $0x162] sm:$0x3] %vm26, %v2625
  %v2634 = vld [vmem:[%s120] sm:$0xff]
  %v2635 = vld [vmem:[%s120 + $0x8] sm:$0x3]
  %v2636 = vld [vmem:[%s120 + $0x40] sm:$0xff]
  %v2637 = vld [vmem:[%s120 + $0x48] sm:$0x3]
  %2642 = vrot.lane.b32.xlu0 %v2634, 122
  %v2643 = vpop.permute.xlu0 %2642
  %2644 = vrot.lane.b32.xlu0 %v2635, 122
  %v2645 = vpop.permute.xlu0 %2644
  %2646 = vrot.lane.b32.xlu0 %v2636, 122
  %v2647 = vpop.permute.xlu0 %2646
  %2648 = vrot.lane.b32.xlu0 %v2637, 122
  %v2649 = vpop.permute.xlu0 %2648
  %2654 = vst.msk [vmem:[#allocation2 + $0x64] sm:$0xff] %vm24, %v2643
  %2655 = vst.msk [vmem:[#allocation2 + $0x6c] sm:$0x3] %vm26, %v2645
  %2656 = vst.msk [vmem:[#allocation2 + $0x164] sm:$0xff] %vm24, %v2647
  %2657 = vst.msk [vmem:[#allocation2 + $0x16c] sm:$0x3] %vm26, %v2649
  %v2658 = vld [vmem:[%s111] sm:$0xff]
  %v2659 = vld [vmem:[%s111 + $0x8] sm:$0x3]
  %v2660 = vld [vmem:[%s111 + $0x40] sm:$0xff]
  %v2661 = vld [vmem:[%s111 + $0x48] sm:$0x3]
  %2666 = vrot.lane.b32.xlu0 %v2658, 121
  %v2667 = vpop.permute.xlu0 %2666
  %2668 = vrot.lane.b32.xlu0 %v2659, 121
  %v2669 = vpop.permute.xlu0 %2668
  %2670 = vrot.lane.b32.xlu0 %v2660, 121
  %v2671 = vpop.permute.xlu0 %2670
  %2672 = vrot.lane.b32.xlu0 %v2661, 121
  %v2673 = vpop.permute.xlu0 %2672
  %2678 = vst.msk [vmem:[#allocation2 + $0x6e] sm:$0xff] %vm24, %v2667
  %2679 = vst.msk [vmem:[#allocation2 + $0x76] sm:$0x3] %vm26, %v2669
  %2680 = vst.msk [vmem:[#allocation2 + $0x16e] sm:$0xff] %vm24, %v2671
  %2681 = vst.msk [vmem:[#allocation2 + $0x176] sm:$0x3] %vm26, %v2673
  %v2682 = vld [vmem:[%s120] sm:$0xff]
  %v2683 = vld [vmem:[%s120 + $0x8] sm:$0x3]
  %v2684 = vld [vmem:[%s120 + $0x40] sm:$0xff]
  %v2685 = vld [vmem:[%s120 + $0x48] sm:$0x3]
  %2690 = vrot.lane.b32.xlu0 %v2682, 121
  %v2691 = vpop.permute.xlu0 %2690
  %2692 = vrot.lane.b32.xlu0 %v2683, 121
  %v2693 = vpop.permute.xlu0 %2692
  %2694 = vrot.lane.b32.xlu0 %v2684, 121
  %v2695 = vpop.permute.xlu0 %2694
  %2696 = vrot.lane.b32.xlu0 %v2685, 121
  %v2697 = vpop.permute.xlu0 %2696
  %2702 = vst.msk [vmem:[#allocation2 + $0x78] sm:$0xff] %vm24, %v2691
  %2703 = vst.msk [vmem:[#allocation2 + $0x80] sm:$0x3] %vm26, %v2693
  %2704 = vst.msk [vmem:[#allocation2 + $0x178] sm:$0xff] %vm24, %v2695
  %2705 = vst.msk [vmem:[#allocation2 + $0x180] sm:$0x3] %vm26, %v2697
  %v2706 = vld [vmem:[%s111] sm:$0xff]
  %v2707 = vld [vmem:[%s111 + $0x8] sm:$0x3]
  %v2708 = vld [vmem:[%s111 + $0x40] sm:$0xff]
  %v2709 = vld [vmem:[%s111 + $0x48] sm:$0x3]
  %2714 = vrot.lane.b32.xlu0 %v2706, 120
  %v2715 = vpop.permute.xlu0 %2714
  %2716 = vrot.lane.b32.xlu0 %v2707, 120
  %v2717 = vpop.permute.xlu0 %2716
  %2718 = vrot.lane.b32.xlu0 %v2708, 120
  %v2719 = vpop.permute.xlu0 %2718
  %2720 = vrot.lane.b32.xlu0 %v2709, 120
  %v2721 = vpop.permute.xlu0 %2720
  %2726 = vst.msk [vmem:[#allocation2 + $0x82] sm:$0xff] %vm24, %v2715
  %2727 = vst.msk [vmem:[#allocation2 + $0x8a] sm:$0x3] %vm26, %v2717
  %2728 = vst.msk [vmem:[#allocation2 + $0x182] sm:$0xff] %vm24, %v2719
  %2729 = vst.msk [vmem:[#allocation2 + $0x18a] sm:$0x3] %vm26, %v2721
  %v2730 = vld [vmem:[%s120] sm:$0xff]
  %v2731 = vld [vmem:[%s120 + $0x8] sm:$0x3]
  %v2732 = vld [vmem:[%s120 + $0x40] sm:$0xff]
  %v2733 = vld [vmem:[%s120 + $0x48] sm:$0x3]
  %2738 = vrot.lane.b32.xlu0 %v2730, 120
  %v2739 = vpop.permute.xlu0 %2738
  %2740 = vrot.lane.b32.xlu0 %v2731, 120
  %v2741 = vpop.permute.xlu0 %2740
  %2742 = vrot.lane.b32.xlu0 %v2732, 120
  %v2743 = vpop.permute.xlu0 %2742
  %2744 = vrot.lane.b32.xlu0 %v2733, 120
  %v2745 = vpop.permute.xlu0 %2744
  %2750 = vst.msk [vmem:[#allocation2 + $0x8c] sm:$0xff] %vm24, %v2739
  %2751 = vst.msk [vmem:[#allocation2 + $0x94] sm:$0x3] %vm26, %v2741
  %2752 = vst.msk [vmem:[#allocation2 + $0x18c] sm:$0xff] %vm24, %v2743
  %2753 = vst.msk [vmem:[#allocation2 + $0x194] sm:$0x3] %vm26, %v2745
  %v2754 = vld [vmem:[%s30] sm:$0xff]
  %v2755 = vld [vmem:[%s30 + $0x8] sm:$0x3]
  %v2756 = vld [vmem:[%s30 + $0x40] sm:$0xff]
  %v2757 = vld [vmem:[%s30 + $0x48] sm:$0x3]
  %2762 = vrot.lane.b32.xlu0 %v2754, 116
  %v2763 = vpop.permute.xlu0 %2762
  %2764 = vrot.lane.b32.xlu0 %v2755, 116
  %v2765 = vpop.permute.xlu0 %2764
  %2766 = vrot.lane.b32.xlu0 %v2756, 116
  %v2767 = vpop.permute.xlu0 %2766
  %2768 = vrot.lane.b32.xlu0 %v2757, 116
  %v2769 = vpop.permute.xlu0 %2768
  %2774 = vst.msk [vmem:[#allocation2 + $0x96] sm:$0xff] %vm24, %v2763
  %2775 = vst.msk [vmem:[#allocation2 + $0x9e] sm:$0x3] %vm26, %v2765
  %2776 = vst.msk [vmem:[#allocation2 + $0x196] sm:$0xff] %vm24, %v2767
  %2777 = vst.msk [vmem:[#allocation2 + $0x19e] sm:$0x3] %vm26, %v2769
  %v2778 = vld [vmem:[%s0] sm:$0xff]
  %v2779 = vld [vmem:[%s0 + $0x8] sm:$0x3]
  %v2780 = vld [vmem:[%s0 + $0x40] sm:$0xff]
  %v2781 = vld [vmem:[%s0 + $0x48] sm:$0x3]
  %2786 = vrot.lane.b32.xlu0 %v2778, 115
  %v2787 = vpop.permute.xlu0 %2786
  %2788 = vrot.lane.b32.xlu0 %v2779, 115
  %v2789 = vpop.permute.xlu0 %2788
  %2790 = vrot.lane.b32.xlu0 %v2780, 115
  %v2791 = vpop.permute.xlu0 %2790
  %2792 = vrot.lane.b32.xlu0 %v2781, 115
  %v2793 = vpop.permute.xlu0 %2792
  %2798 = vst.msk [vmem:[#allocation2 + $0xa0] sm:$0xff] %vm24, %v2787
  %2799 = vst.msk [vmem:[#allocation2 + $0xa8] sm:$0x3] %vm26, %v2789
  %2800 = vst.msk [vmem:[#allocation2 + $0x1a0] sm:$0xff] %vm24, %v2791
  %2801 = vst.msk [vmem:[#allocation2 + $0x1a8] sm:$0x3] %vm26, %v2793
  %v2802 = vld [vmem:[%s30] sm:$0xff]
  %v2803 = vld [vmem:[%s30 + $0x8] sm:$0x3]
  %v2804 = vld [vmem:[%s30 + $0x40] sm:$0xff]
  %v2805 = vld [vmem:[%s30 + $0x48] sm:$0x3]
  %2810 = vrot.lane.b32.xlu0 %v2802, 115
  %v2811 = vpop.permute.xlu0 %2810
  %2812 = vrot.lane.b32.xlu0 %v2803, 115
  %v2813 = vpop.permute.xlu0 %2812
  %2814 = vrot.lane.b32.xlu0 %v2804, 115
  %v2815 = vpop.permute.xlu0 %2814
  %2816 = vrot.lane.b32.xlu0 %v2805, 115
  %v2817 = vpop.permute.xlu0 %2816
  %2822 = vst.msk [vmem:[#allocation2 + $0xaa] sm:$0xff] %vm24, %v2811
  %2823 = vst.msk [vmem:[#allocation2 + $0xb2] sm:$0x3] %vm26, %v2813
  %2824 = vst.msk [vmem:[#allocation2 + $0x1aa] sm:$0xff] %vm24, %v2815
  %2825 = vst.msk [vmem:[#allocation2 + $0x1b2] sm:$0x3] %vm26, %v2817
  %v2826 = vld [vmem:[%s0] sm:$0xff]
  %v2827 = vld [vmem:[%s0 + $0x8] sm:$0x3]
  %v2828 = vld [vmem:[%s0 + $0x40] sm:$0xff]
  %v2829 = vld [vmem:[%s0 + $0x48] sm:$0x3]
  %2834 = vrot.lane.b32.xlu0 %v2826, 114
  %v2835 = vpop.permute.xlu0 %2834
  %2836 = vrot.lane.b32.xlu0 %v2827, 114
  %v2837 = vpop.permute.xlu0 %2836
  %2838 = vrot.lane.b32.xlu0 %v2828, 114
  %v2839 = vpop.permute.xlu0 %2838
  %2840 = vrot.lane.b32.xlu0 %v2829, 114
  %v2841 = vpop.permute.xlu0 %2840
  %2846 = vst.msk [vmem:[#allocation2 + $0xb4] sm:$0xff] %vm24, %v2835
  %2847 = vst.msk [vmem:[#allocation2 + $0xbc] sm:$0x3] %vm26, %v2837
  %2848 = vst.msk [vmem:[#allocation2 + $0x1b4] sm:$0xff] %vm24, %v2839
  %2849 = vst.msk [vmem:[#allocation2 + $0x1bc] sm:$0x3] %vm26, %v2841
  %v2850 = vld [vmem:[%s30] sm:$0xff]
  %v2851 = vld [vmem:[%s30 + $0x8] sm:$0x3]
  %v2852 = vld [vmem:[%s30 + $0x40] sm:$0xff]
  %v2853 = vld [vmem:[%s30 + $0x48] sm:$0x3]
  %2858 = vrot.lane.b32.xlu0 %v2850, 114
  %v2859 = vpop.permute.xlu0 %2858
  %2860 = vrot.lane.b32.xlu0 %v2851, 114
  %v2861 = vpop.permute.xlu0 %2860
  %2862 = vrot.lane.b32.xlu0 %v2852, 114
  %v2863 = vpop.permute.xlu0 %2862
  %2864 = vrot.lane.b32.xlu0 %v2853, 114
  %v2865 = vpop.permute.xlu0 %2864
  %2870 = vst.msk [vmem:[#allocation2 + $0xbe] sm:$0xff] %vm24, %v2859
  %2871 = vst.msk [vmem:[#allocation2 + $0xc6] sm:$0x3] %vm26, %v2861
  %2872 = vst.msk [vmem:[#allocation2 + $0x1be] sm:$0xff] %vm24, %v2863
  %2873 = vst.msk [vmem:[#allocation2 + $0x1c6] sm:$0x3] %vm26, %v2865
  %v2874 = vld [vmem:[%s120] sm:$0xff]
  %v2875 = vld [vmem:[%s120 + $0x8] sm:$0x3]
  %v2876 = vld [vmem:[%s120 + $0x40] sm:$0xff]
  %v2877 = vld [vmem:[%s120 + $0x48] sm:$0x3]
  %2882 = vrot.lane.b32.xlu0 %v2874, 116
  %v2883 = vpop.permute.xlu0 %2882
  %2884 = vrot.lane.b32.xlu0 %v2875, 116
  %v2885 = vpop.permute.xlu0 %2884
  %2886 = vrot.lane.b32.xlu0 %v2876, 116
  %v2887 = vpop.permute.xlu0 %2886
  %2888 = vrot.lane.b32.xlu0 %v2877, 116
  %v2889 = vpop.permute.xlu0 %2888
  %2894 = vst.msk [vmem:[#allocation2 + $0xc8] sm:$0xff] %vm24, %v2883
  %2895 = vst.msk [vmem:[#allocation2 + $0xd0] sm:$0x3] %vm26, %v2885
  %2896 = vst.msk [vmem:[#allocation2 + $0x1c8] sm:$0xff] %vm24, %v2887
  %2897 = vst.msk [vmem:[#allocation2 + $0x1d0] sm:$0x3] %vm26, %v2889
  %v2898 = vld [vmem:[%s111] sm:$0xff]
  %v2899 = vld [vmem:[%s111 + $0x8] sm:$0x3]
  %v2900 = vld [vmem:[%s111 + $0x40] sm:$0xff]
  %v2901 = vld [vmem:[%s111 + $0x48] sm:$0x3]
  %2906 = vrot.lane.b32.xlu0 %v2898, 115
  %v2907 = vpop.permute.xlu0 %2906
  %2908 = vrot.lane.b32.xlu0 %v2899, 115
  %v2909 = vpop.permute.xlu0 %2908
  %2910 = vrot.lane.b32.xlu0 %v2900, 115
  %v2911 = vpop.permute.xlu0 %2910
  %2912 = vrot.lane.b32.xlu0 %v2901, 115
  %v2913 = vpop.permute.xlu0 %2912
  %2918 = vst.msk [vmem:[#allocation2 + $0xd2] sm:$0xff] %vm24, %v2907
  %2919 = vst.msk [vmem:[#allocation2 + $0xda] sm:$0x3] %vm26, %v2909
  %2920 = vst.msk [vmem:[#allocation2 + $0x1d2] sm:$0xff] %vm24, %v2911
  %2921 = vst.msk [vmem:[#allocation2 + $0x1da] sm:$0x3] %vm26, %v2913
  %v2922 = vld [vmem:[%s120] sm:$0xff]
  %v2923 = vld [vmem:[%s120 + $0x8] sm:$0x3]
  %v2924 = vld [vmem:[%s120 + $0x40] sm:$0xff]
  %v2925 = vld [vmem:[%s120 + $0x48] sm:$0x3]
  %2930 = vrot.lane.b32.xlu0 %v2922, 115
  %v2931 = vpop.permute.xlu0 %2930
  %2932 = vrot.lane.b32.xlu0 %v2923, 115
  %v2933 = vpop.permute.xlu0 %2932
  %2934 = vrot.lane.b32.xlu0 %v2924, 115
  %v2935 = vpop.permute.xlu0 %2934
  %2936 = vrot.lane.b32.xlu0 %v2925, 115
  %v2937 = vpop.permute.xlu0 %2936
  %2942 = vst.msk [vmem:[#allocation2 + $0xdc] sm:$0xff] %vm24, %v2931
  %2943 = vst.msk [vmem:[#allocation2 + $0xe4] sm:$0x3] %vm26, %v2933
  %2944 = vst.msk [vmem:[#allocation2 + $0x1dc] sm:$0xff] %vm24, %v2935
  %2945 = vst.msk [vmem:[#allocation2 + $0x1e4] sm:$0x3] %vm26, %v2937
  %v2946 = vld [vmem:[%s111] sm:$0xff]
  %v2947 = vld [vmem:[%s111 + $0x8] sm:$0x3]
  %v2948 = vld [vmem:[%s111 + $0x40] sm:$0xff]
  %v2949 = vld [vmem:[%s111 + $0x48] sm:$0x3]
  %2954 = vrot.lane.b32.xlu0 %v2946, 114
  %v2955 = vpop.permute.xlu0 %2954
  %2956 = vrot.lane.b32.xlu0 %v2947, 114
  %v2957 = vpop.permute.xlu0 %2956
  %2958 = vrot.lane.b32.xlu0 %v2948, 114
  %v2959 = vpop.permute.xlu0 %2958
  %2960 = vrot.lane.b32.xlu0 %v2949, 114
  %v2961 = vpop.permute.xlu0 %2960
  %2966 = vst.msk [vmem:[#allocation2 + $0xe6] sm:$0xff] %vm24, %v2955
  %2967 = vst.msk [vmem:[#allocation2 + $0xee] sm:$0x3] %vm26, %v2957
  %2968 = vst.msk [vmem:[#allocation2 + $0x1e6] sm:$0xff] %vm24, %v2959
  %2969 = vst.msk [vmem:[#allocation2 + $0x1ee] sm:$0x3] %vm26, %v2961
  %v2970 = vld [vmem:[%s120] sm:$0xff]
  %v2971 = vld [vmem:[%s120 + $0x8] sm:$0x3]
  %v2972 = vld [vmem:[%s120 + $0x40] sm:$0xff]
  %v2973 = vld [vmem:[%s120 + $0x48] sm:$0x3]
  %2978 = vrot.lane.b32.xlu0 %v2970, 114
  %v2979 = vpop.permute.xlu0 %2978
  %2980 = vrot.lane.b32.xlu0 %v2971, 114
  %v2981 = vpop.permute.xlu0 %2980
  %2982 = vrot.lane.b32.xlu0 %v2972, 114
  %v2983 = vpop.permute.xlu0 %2982
  %2984 = vrot.lane.b32.xlu0 %v2973, 114
  %v2985 = vpop.permute.xlu0 %2984
  %2990 = vst.msk [vmem:[#allocation2 + $0xf0] sm:$0xff] %vm24, %v2979
  %2991 = vst.msk [vmem:[#allocation2 + $0xf8] sm:$0x3] %vm26, %v2981
  %2992 = vst.msk [vmem:[#allocation2 + $0x1f0] sm:$0xff] %vm24, %v2983
  %2993 = vst.msk [vmem:[#allocation2 + $0x1f8] sm:$0x3] %vm26, %v2985
  %v2994 = vld [vmem:[#allocation2] sm:$0xff]
  %v2995 = vld [vmem:[#allocation2 + $0x8] sm:$0xff]
  %v2996 = vld [vmem:[#allocation2 + $0x10] sm:$0xff]
  %v2997 = vld [vmem:[#allocation2 + $0x18] sm:$0xff]
  %v2998 = vld [vmem:[#allocation2 + $0x20] sm:$0xff]
  %v2999 = vld [vmem:[#allocation2 + $0x28] sm:$0xff]
  %v3000 = vld [vmem:[#allocation2 + $0x30] sm:$0xff]
  %v3001 = vld [vmem:[#allocation2 + $0x38] sm:$0xff]
  %v3002 = vld [vmem:[#allocation2 + $0x40] sm:$0xff]
  %v3003 = vld [vmem:[#allocation2 + $0x48] sm:$0xff]
  %v3004 = vld [vmem:[#allocation2 + $0x50] sm:$0xff]
  %v3005 = vld [vmem:[#allocation2 + $0x58] sm:$0xff]
  %v3006 = vld [vmem:[#allocation2 + $0x60] sm:$0xff]
  %v3007 = vld [vmem:[#allocation2 + $0x68] sm:$0xff]
  %v3008 = vld [vmem:[#allocation2 + $0x70] sm:$0xff]
  %v3009 = vld [vmem:[#allocation2 + $0x78] sm:$0xff]
  %v3010 = vld [vmem:[#allocation2 + $0x80] sm:$0xff]
  %v3011 = vld [vmem:[#allocation2 + $0x88] sm:$0xff]
  %v3012 = vld [vmem:[#allocation2 + $0x90] sm:$0xff]
  %v3013 = vld [vmem:[#allocation2 + $0x98] sm:$0xff]
  %v3014 = vld [vmem:[#allocation2 + $0xa0] sm:$0xff]
  %v3015 = vld [vmem:[#allocation2 + $0xa8] sm:$0xff]
  %v3016 = vld [vmem:[#allocation2 + $0xb0] sm:$0xff]
  %v3017 = vld [vmem:[#allocation2 + $0xb8] sm:$0xff]
  %v3018 = vld [vmem:[#allocation2 + $0xc0] sm:$0xff]
  %v3019 = vld [vmem:[#allocation2 + $0xc8] sm:$0xff]
  %v3020 = vld [vmem:[#allocation2 + $0xd0] sm:$0xff]
  %v3021 = vld [vmem:[#allocation2 + $0xd8] sm:$0xff]
  %v3022 = vld [vmem:[#allocation2 + $0xe0] sm:$0xff]
  %v3023 = vld [vmem:[#allocation2 + $0xe8] sm:$0xff]
  %v3024 = vld [vmem:[#allocation2 + $0xf0] sm:$0xff]
  %v3025 = vld [vmem:[#allocation2 + $0xf8] sm:$0x3]
  %v3026 = vld [vmem:[#allocation2 + $0x100] sm:$0xff]
  %v3027 = vld [vmem:[#allocation2 + $0x108] sm:$0xff]
  %v3028 = vld [vmem:[#allocation2 + $0x110] sm:$0xff]
  %v3029 = vld [vmem:[#allocation2 + $0x118] sm:$0xff]
  %v3030 = vld [vmem:[#allocation2 + $0x120] sm:$0xff]
  %v3031 = vld [vmem:[#allocation2 + $0x128] sm:$0xff]
  %v3032 = vld [vmem:[#allocation2 + $0x130] sm:$0xff]
  %v3033 = vld [vmem:[#allocation2 + $0x138] sm:$0xff]
  %v3034 = vld [vmem:[#allocation2 + $0x140] sm:$0xff]
  %v3035 = vld [vmem:[#allocation2 + $0x148] sm:$0xff]
  %v3036 = vld [vmem:[#allocation2 + $0x150] sm:$0xff]
  %v3037 = vld [vmem:[#allocation2 + $0x158] sm:$0xff]
  %v3038 = vld [vmem:[#allocation2 + $0x160] sm:$0xff]
  %v3039 = vld [vmem:[#allocation2 + $0x168] sm:$0xff]
  %v3040 = vld [vmem:[#allocation2 + $0x170] sm:$0xff]
  %v3041 = vld [vmem:[#allocation2 + $0x178] sm:$0xff]
  %v3042 = vld [vmem:[#allocation2 + $0x180] sm:$0xff]
  %v3043 = vld [vmem:[#allocation2 + $0x188] sm:$0xff]
  %v3044 = vld [vmem:[#allocation2 + $0x190] sm:$0xff]
  %v3045 = vld [vmem:[#allocation2 + $0x198] sm:$0xff]
  %v3046 = vld [vmem:[#allocation2 + $0x1a0] sm:$0xff]
  %v3047 = vld [vmem:[#allocation2 + $0x1a8] sm:$0xff]
  %v3048 = vld [vmem:[#allocation2 + $0x1b0] sm:$0xff]
  %v3049 = vld [vmem:[#allocation2 + $0x1b8] sm:$0xff]
  %v3050 = vld [vmem:[#allocation2 + $0x1c0] sm:$0xff]
  %v3051 = vld [vmem:[#allocation2 + $0x1c8] sm:$0xff]
  %v3052 = vld [vmem:[#allocation2 + $0x1d0] sm:$0xff]
  %v3053 = vld [vmem:[#allocation2 + $0x1d8] sm:$0xff]
  %v3054 = vld [vmem:[#allocation2 + $0x1e0] sm:$0xff]
  %v3055 = vld [vmem:[#allocation2 + $0x1e8] sm:$0xff]
  %v3056 = vld [vmem:[#allocation2 + $0x1f0] sm:$0xff]
  %v3057 = vld [vmem:[#allocation2 + $0x1f8] sm:$0x3]
  %v3059 = vsel %vm635, %v3025, 0
  %3061 = vmatprep.subr.mxu0 0.0
  %3062 = vmatpush1.msra.mxu0 %v2994
  %3063 = vmatprep.subr.mxu0 0.0
  %3064 = vmatpush1.msra.mxu0 %v2995
  %3065 = vmatprep.subr.mxu0 0.0
  %3066 = vmatpush1.msra.mxu0 %v2996
  %3067 = vmatprep.subr.mxu0 0.0
  %3068 = vmatpush1.msra.mxu0 %v2997
  %3069 = vmatprep.subr.mxu0 0.0
  %3070 = vmatpush1.msra.mxu0 %v2998
  %3071 = vmatprep.subr.mxu0 0.0
  %3072 = vmatpush1.msra.mxu0 %v2999
  %3073 = vmatprep.subr.mxu0 0.0
  %3074 = vmatpush1.msra.mxu0 %v3000
  %3075 = vmatprep.subr.mxu0 0.0
  %3076 = vmatpush1.msra.mxu0 %v3001
  %3077 = vmatprep.subr.mxu0 0.0
  %3078 = vmatpush1.msra.mxu0 %v3002
  %3079 = vmatprep.subr.mxu0 0.0
  %3080 = vmatpush1.msra.mxu0 %v3003
  %3081 = vmatprep.subr.mxu0 0.0
  %3082 = vmatpush1.msra.mxu0 %v3004
  %3083 = vmatprep.subr.mxu0 0.0
  %3084 = vmatpush1.msra.mxu0 %v3005
  %3085 = vmatprep.subr.mxu0 0.0
  %3086 = vmatpush1.msra.mxu0 %v3006
  %3087 = vmatprep.subr.mxu0 0.0
  %3088 = vmatpush1.msra.mxu0 %v3007
  %3089 = vmatprep.subr.mxu0 0.0
  %3090 = vmatpush1.msra.mxu0 %v3008
  %3091 = vmatprep.subr.mxu0 0.0
  %3092 = vmatpush1.msra.mxu0 %v3009
  %3093 = vmatprep.subr.mxu0 0.0
  %3094 = vmatpush1.msra.mxu0 %v3010
  %3095 = vmatprep.subr.mxu0 0.0
  %3096 = vmatpush1.msra.mxu0 %v3011
  %3097 = vmatprep.subr.mxu0 0.0
  %3098 = vmatpush1.msra.mxu0 %v3012
  %3099 = vmatprep.subr.mxu0 0.0
  %3100 = vmatpush1.msra.mxu0 %v3013
  %3101 = vmatprep.subr.mxu0 0.0
  %3102 = vmatpush1.msra.mxu0 %v3014
  %3103 = vmatprep.subr.mxu0 0.0
  %3104 = vmatpush1.msra.mxu0 %v3015
  %3105 = vmatprep.subr.mxu0 0.0
  %3106 = vmatpush1.msra.mxu0 %v3016
  %3107 = vmatprep.subr.mxu0 0.0
  %3108 = vmatpush1.msra.mxu0 %v3017
  %3109 = vmatprep.subr.mxu0 0.0
  %3110 = vmatpush1.msra.mxu0 %v3018
  %3111 = vmatprep.subr.mxu0 0.0
  %3112 = vmatpush1.msra.mxu0 %v3019
  %3113 = vmatprep.subr.mxu0 0.0
  %3114 = vmatpush1.msra.mxu0 %v3020
  %3115 = vmatprep.subr.mxu0 0.0
  %3116 = vmatpush1.msra.mxu0 %v3021
  %3117 = vmatprep.subr.mxu0 0.0
  %3118 = vmatpush1.msra.mxu0 %v3022
  %3119 = vmatprep.subr.mxu0 0.0
  %3120 = vmatpush1.msra.mxu0 %v3023
  %3121 = vmatprep.subr.mxu0 0.0
  %3122 = vmatpush1.msra.mxu0 %v3024
  %3123 = vmatprep.subr.mxu0 0.0
  %3124 = vmatpush1.msra.mxu0 %v3059
  %3125 = vmatprep.mubr.f32.mxu0 %v627
  %3126 = vmatmul.mubr.f32.gmra.mrb[0].mxu0 %v14
  %v3127 = vpop.f32.mrb[0].mxu0
  %v3128 = vadd.f32 0.0, %v3127
  %v3129 = vpop.f32.mrb[0].mxu0
  %3130 = vmatprep.mubr.f32.mxu0 %v630
  %3131 = vmatmul.mubr.f32.gmra.mrb[0].mxu0 %v16
  %v3132 = vpop.f32.mrb[0].mxu0
  %v3133 = vadd.f32 0.0, %v3132
  %v3134 = vpop.f32.mrb[0].mxu0
  %3135 = vmatprep.mubr.f32.mxu0 %v633
  %3136 = vmatmul.mubr.f32.gmra.mrb[0].mxu0 %v18
  %v3137 = vpop.f32.mrb[0].mxu0
  %v3138 = vadd.f32 0.0, %v3137
  %v3139 = vpop.f32.mrb[0].mxu0
  %3140 = vdwg.mxu0
  %v3142 = vsel %vm635, %v3057, 0
  %3144 = vmatprep.subr.mxu0 0.0
  %3145 = vmatpush1.msra.mxu0 %v3026
  %3146 = vmatprep.subr.mxu0 0.0
  %3147 = vmatpush1.msra.mxu0 %v3027
  %3148 = vmatprep.subr.mxu0 0.0
  %3149 = vmatpush1.msra.mxu0 %v3028
  %3150 = vmatprep.subr.mxu0 0.0
  %3151 = vmatpush1.msra.mxu0 %v3029
  %3152 = vmatprep.subr.mxu0 0.0
  %3153 = vmatpush1.msra.mxu0 %v3030
  %3154 = vmatprep.subr.mxu0 0.0
  %3155 = vmatpush1.msra.mxu0 %v3031
  %3156 = vmatprep.subr.mxu0 0.0
  %3157 = vmatpush1.msra.mxu0 %v3032
  %3158 = vmatprep.subr.mxu0 0.0
  %3159 = vmatpush1.msra.mxu0 %v3033
  %3160 = vmatprep.subr.mxu0 0.0
  %3161 = vmatpush1.msra.mxu0 %v3034
  %3162 = vmatprep.subr.mxu0 0.0
  %3163 = vmatpush1.msra.mxu0 %v3035
  %3164 = vmatprep.subr.mxu0 0.0
  %3165 = vmatpush1.msra.mxu0 %v3036
  %3166 = vmatprep.subr.mxu0 0.0
  %3167 = vmatpush1.msra.mxu0 %v3037
  %3168 = vmatprep.subr.mxu0 0.0
  %3169 = vmatpush1.msra.mxu0 %v3038
  %3170 = vmatprep.subr.mxu0 0.0
  %3171 = vmatpush1.msra.mxu0 %v3039
  %3172 = vmatprep.subr.mxu0 0.0
  %3173 = vmatpush1.msra.mxu0 %v3040
  %3174 = vmatprep.subr.mxu0 0.0
  %3175 = vmatpush1.msra.mxu0 %v3041
  %3176 = vmatprep.subr.mxu0 0.0
  %3177 = vmatpush1.msra.mxu0 %v3042
  %3178 = vmatprep.subr.mxu0 0.0
  %3179 = vmatpush1.msra.mxu0 %v3043
  %3180 = vmatprep.subr.mxu0 0.0
  %3181 = vmatpush1.msra.mxu0 %v3044
  %3182 = vmatprep.subr.mxu0 0.0
  %3183 = vmatpush1.msra.mxu0 %v3045
  %3184 = vmatprep.subr.mxu0 0.0
  %3185 = vmatpush1.msra.mxu0 %v3046
  %3186 = vmatprep.subr.mxu0 0.0
  %3187 = vmatpush1.msra.mxu0 %v3047
  %3188 = vmatprep.subr.mxu0 0.0
  %3189 = vmatpush1.msra.mxu0 %v3048
  %3190 = vmatprep.subr.mxu0 0.0
  %3191 = vmatpush1.msra.mxu0 %v3049
  %3192 = vmatprep.subr.mxu0 0.0
  %3193 = vmatpush1.msra.mxu0 %v3050
  %3194 = vmatprep.subr.mxu0 0.0
  %3195 = vmatpush1.msra.mxu0 %v3051
  %3196 = vmatprep.subr.mxu0 0.0
  %3197 = vmatpush1.msra.mxu0 %v3052
  %3198 = vmatprep.subr.mxu0 0.0
  %3199 = vmatpush1.msra.mxu0 %v3053
  %3200 = vmatprep.subr.mxu0 0.0
  %3201 = vmatpush1.msra.mxu0 %v3054
  %3202 = vmatprep.subr.mxu0 0.0
  %3203 = vmatpush1.msra.mxu0 %v3055
  %3204 = vmatprep.subr.mxu0 0.0
  %3205 = vmatpush1.msra.mxu0 %v3056
  %3206 = vmatprep.subr.mxu0 0.0
  %3207 = vmatpush1.msra.mxu0 %v3142
  %3208 = vmatprep.mubr.f32.mxu0 %v627
  %3209 = vmatmul.mubr.f32.gmra.mrb[0].mxu0 %v14
  %v3210 = vpop.f32.mrb[0].mxu0
  %v3211 = vadd.f32 0.0, %v3210
  %v3212 = vpop.f32.mrb[0].mxu0
  %3213 = vmatprep.mubr.f32.mxu0 %v630
  %3214 = vmatmul.mubr.f32.gmra.mrb[0].mxu0 %v16
  %v3215 = vpop.f32.mrb[0].mxu0
  %v3216 = vadd.f32 0.0, %v3215
  %v3217 = vpop.f32.mrb[0].mxu0
  %3218 = vmatprep.mubr.f32.mxu0 %v633
  %3219 = vmatmul.mubr.f32.gmra.mrb[0].mxu0 %v18
  %v3220 = vpop.f32.mrb[0].mxu0
  %v3221 = vadd.f32 0.0, %v3220
  %v3222 = vpop.f32.mrb[0].mxu0
  %3223 = vdwg.mxu0
  %v3224 = vmax.f32 %v2404, %v3128
  %v3225 = vmax.f32 %v2405, %v3133
  %v3226 = vmax.f32 %v2406, %v3138
  %v3227 = vmax.f32 %v2407, %v3211
  %v3228 = vmax.f32 %v2408, %v3216
  %v3229 = vmax.f32 %v2409, %v3221
  %v3230 = vld [vmem:[%s2] sm:$0xff]
  %v3231 = vld [vmem:[%s2 + $0x8] sm:$0xff]
  %v3232 = vld [vmem:[%s2 + $0x10] sm:$0xf]
  %3234 = vset.pattern.permute.xlu0 0
  %3235 = vperm.xlu0 %3234, %v3230
  %v3236 = vpop.permute.xlu0 %3235
  %3239 = vset.pattern.permute.xlu0 0
  %3240 = vperm.xlu0 %3239, %v3231
  %v3241 = vpop.permute.xlu0 %3240
  %3244 = vset.pattern.permute.xlu0 0
  %3245 = vperm.xlu0 %3244, %v3232
  %v3246 = vpop.permute.xlu0 %3245
  %v3248 = vadd.f32 %v3224, %v3236
  %v3249 = vadd.f32 %v3225, %v3241
  %v3250 = vadd.f32 %v3226, %v3246
  %v3251 = vadd.f32 %v3227, %v3236
  %v3252 = vadd.f32 %v3228, %v3241
  %v3253 = vadd.f32 %v3229, %v3246
  %v3254 = vmax.f32 %v3248, 0.0
  %v3255 = vmax.f32 %v3249, 0.0
  %v3256 = vmax.f32 %v3250, 0.0
  %v3257 = vmax.f32 %v3251, 0.0
  %v3258 = vmax.f32 %v3252, 0.0
  %v3259 = vmax.f32 %v3253, 0.0
  %3260 = vst.msk [vmem:[%s3] sm:$0xff] %vm24, %v3254
  %3261 = vst.msk [vmem:[%s3 + $0x8] sm:$0xff] %vm24, %v3255
  %vm3262 = vcmask 191488
  %3263 = vst.msk [vmem:[%s3 + $0x10] sm:$0xf] %vm3262, %v3256
  %3264 = vst.msk [vmem:[%s3 + $0x18] sm:$0xff] %vm24, %v3257
  %3265 = vst.msk [vmem:[%s3 + $0x20] sm:$0xff] %vm24, %v3258
  %3266 = vst.msk [vmem:[%s3 + $0x28] sm:$0xf] %vm3262, %v3259
  // Predicated region
  $region14: #{network_forward.4} parent=0 // pred_check
    _
  $region15: #{network_forward.4} parent=0 // pred_check_branch
    %3268 = sbr.rel (0) target = $region17
  $region16: #{network_forward.4} parent=0 // pred_region
    _
  $region17: #{network_forward.4} parent=0 // pred_fallthru
    _
  // Predicated region
  $region18: #{network_forward.4} parent=0 // pred_check
    _
  $region19: #{network_forward.4} parent=0 // pred_check_branch
    %3270 = sbr.rel (0) target = $region21
  $region20: #{network_forward.4} parent=0 // pred_region
    _
  $region21: #{network_forward.4} parent=0 // pred_fallthru
    _

</llo_original>
